<compile_context>
chip_gen: v7x
topology: tpu7x:2x2x1
jax: 0.10.0
libtpu: 0.0.40
codegen_flags: <defaults>
</compile_context>

<pallas_src>
import math

import jax
import jax.numpy as jnp
from jax import lax
from jax.experimental import pallas as pl
from jax.experimental.pallas import tpu as pltpu


# --------------------------------------------------------------------------
# helpers
# --------------------------------------------------------------------------
def _bspec_full(shape):
    nd = len(shape)
    return pl.BlockSpec(tuple(shape), lambda *_: (0,) * nd)


def _gru_row_tile(bn, max_tile=256):
    """Row tile over B*N: multiple of 8, divides bn, and (when possible)
    <= bn/2 so the 'parallel' grid has >= 2 steps (v7x has 2 TensorCores)."""
    cap = min(max_tile, bn // 2) if bn >= 16 else bn
    cap = max(cap, 8)
    for t in range(cap - cap % 8, 7, -8):
        if bn % t == 0:
            return t
    return bn


def _row_tile(n, max_tile=256):
    """Query-row tile for the GAT attention (bounds per-step VMEM on v7x)."""
    if n <= max_tile:
        return n
    for t in range(max_tile - max_tile % 8, 7, -8):
        if n % t == 0:
            return t
    return n


def _sigmoid(v):
    # sigma(x) = 0.5 * (1 + tanh(x/2)) -> transcendental lands on the EUP slot
    # instead of a VALU divide inside the serial recurrence.
    return 0.5 * jnp.tanh(0.5 * v) + 0.5


def _round_up(x, m):
    return ((x + m - 1) // m) * m


# --------------------------------------------------------------------------
# Kernel 1: 2-layer GRU (whole sequence, last hidden state out)
# --------------------------------------------------------------------------
def _make_gru_kernel(T, H, unroll):
    def kernel(gi0_ref, whh0_ref, bhh0_ref, wih1_ref, bih1_ref,
               whh1_ref, bhh1_ref, out_ref):
        rt = out_ref.shape[0]

        # Hoist weight / bias loads out of the serial time loop (JAX does not
        # CSE broadcasts; re-reading per step wastes vld/VALU bundles).
        whh0 = whh0_ref[...]
        bhh0 = bhh0_ref[...]
        wih1 = wih1_ref[...]
        bih1 = bih1_ref[...]
        whh1 = whh1_ref[...]
        bhh1 = bhh1_ref[...]

        def body(t, carry):
            h0, h1 = carry
            gi0 = gi0_ref[t]                                     # [rt, 3H]

            # ---- layer 0: only the recurrent matmul stays in the loop ----
            gh0 = jnp.dot(h0, whh0, preferred_element_type=jnp.float32) + bhh0
            r0 = _sigmoid(gi0[:, 0:H] + gh0[:, 0:H])
            z0 = _sigmoid(gi0[:, H:2 * H] + gh0[:, H:2 * H])
            n0 = jnp.tanh(gi0[:, 2 * H:3 * H] + r0 * gh0[:, 2 * H:3 * H])
            h0 = (1.0 - z0) * n0 + z0 * h0

            # ---- layer 1: two plain MXU dots (no concat, no block-diag) ----
            gi1 = jnp.dot(h0, wih1, preferred_element_type=jnp.float32) + bih1
            gh1 = jnp.dot(h1, whh1, preferred_element_type=jnp.float32) + bhh1
            r1 = _sigmoid(gi1[:, 0:H] + gh1[:, 0:H])
            z1 = _sigmoid(gi1[:, H:2 * H] + gh1[:, H:2 * H])
            n1 = jnp.tanh(gi1[:, 2 * H:3 * H] + r1 * gh1[:, 2 * H:3 * H])
            h1 = (1.0 - z1) * n1 + z1 * h1
            return (h0, h1)

        h0 = jnp.zeros((rt, H), jnp.float32)
        h1 = jnp.zeros((rt, H), jnp.float32)
        _, h1 = lax.fori_loop(0, T, body, (h0, h1), unroll=unroll)
        out_ref[...] = h1
    return kernel


def gru_forward(x_tmajor, p):
    """x_tmajor: [T, B*N, F] -> last hidden state of GRU layer 2, [B*N, H]."""
    T, BN, F_ = x_tmajor.shape
    H = p['whh0'].shape[0]

    # Layer-0 input projection hoisted all the way into XLA: one [T*BN, F] x
    # [F, 3H] matmul, lane-dense result fed to the recurrence kernel.
    gi0 = jnp.einsum('tbf,fg->tbg', x_tmajor, p['wih0'],
                     preferred_element_type=jnp.float32) + p['bih0']

    rt = _gru_row_tile(BN)
    grid = (BN // rt,)

    # Explicit VMEM budget: double-buffered gi0 block + output + weights.
    lane3h = _round_up(3 * H, 128)
    vmem_est = (2 * T * _round_up(rt, 8) * lane3h * 4
                + 2 * _round_up(rt, 8) * _round_up(H, 128) * 4
                + 2 * 3 * _round_up(H, 8) * lane3h * 4
                + 2 * 3 * 8 * lane3h * 4)
    vmem_limit = int(min(max(2 * vmem_est, 16 * 2 ** 20), 64 * 2 ** 20))

    kernel = _make_gru_kernel(T, H, unroll=(T <= 16))
    return pl.pallas_call(
        kernel,
        out_shape=jax.ShapeDtypeStruct((BN, H), jnp.float32),
        grid=grid,
        in_specs=[
            pl.BlockSpec((T, rt, 3 * H), lambda r: (0, r, 0)),
            pl.BlockSpec((H, 3 * H), lambda r: (0, 0)),
            pl.BlockSpec((1, 3 * H), lambda r: (0, 0)),
            pl.BlockSpec((H, 3 * H), lambda r: (0, 0)),
            pl.BlockSpec((1, 3 * H), lambda r: (0, 0)),
            pl.BlockSpec((H, 3 * H), lambda r: (0, 0)),
            pl.BlockSpec((1, 3 * H), lambda r: (0, 0)),
        ],
        out_specs=pl.BlockSpec((rt, H), lambda r: (r, 0)),
        compiler_params=pltpu.CompilerParams(
            dimension_semantics=("parallel",),
            vmem_limit_bytes=vmem_limit),
    )(gi0, p['whh0'], p['bhh0'], p['wih1'], p['bih1'], p['whh1'], p['bhh1'])


# --------------------------------------------------------------------------
# Kernel 2: fused factor extractor (GAT + Res-C + Full-C + nn_layer)
#           grid = (batch, query-row tiles)
# --------------------------------------------------------------------------
def _make_factor_kernel(n_heads, head_dim, has_proj, alpha=0.2, ln_eps=1e-5):
    def kernel(*refs):
        if has_proj:
            (xk_ref, xq_ref, adj_ref, gw_ref, asrc_ref, adst_ref,
             rw1_ref, rb1_ref, rwp_ref, rbp_ref, rw2_ref, rb2_ref,
             fcw_ref, fcb_ref, lng_ref, lnb_ref,
             nw1_ref, nb1_ref, nw2_ref, nb2_ref,
             rf_ref, attn_ref) = refs
        else:
            (xk_ref, xq_ref, adj_ref, gw_ref, asrc_ref, adst_ref,
             rw1_ref, rb1_ref, rw2_ref, rb2_ref,
             fcw_ref, fcb_ref, lng_ref, lnb_ref,
             nw1_ref, nb1_ref, nw2_ref, nb2_ref,
             rf_ref, attn_ref) = refs

        x = xk_ref[0]                                    # [N, H]  (all keys)
        x_q = xq_ref[0]                                  # [rq, H] (query tile)
        adj_q = adj_ref[0]                               # [rq, N]
        gw = gw_ref[...]

        # ---- Multi-head GAT: concatenated-head projection ----
        Wh = jnp.dot(x, gw, preferred_element_type=jnp.float32)      # [N, GH]
        Wh_q = jnp.dot(x_q, gw, preferred_element_type=jnp.float32)  # [rq, GH]

        # All heads' source/dest attention logits via ONE MXU matmul each
        # (block-diagonal attention-vector matrix) + a single transpose.
        fs_all = jnp.dot(Wh_q, asrc_ref[...],
                         preferred_element_type=jnp.float32)         # [rq, heads]
        fd_all = jnp.dot(Wh, adst_ref[...],
                         preferred_element_type=jnp.float32)         # [N, heads]
        fd_t = jnp.transpose(fd_all)                                 # [heads, N]

        head_outs = []
        for k in range(n_heads):
            lo = k * head_dim
            e = fs_all[:, k:k + 1] + fd_t[k:k + 1, :]    # [rq, N]
            e = jnp.where(e > 0, e, alpha * e)           # LeakyReLU(0.2)
            e = jnp.where(adj_q > 0, e, -1e9)
            m = jnp.max(e, axis=-1, keepdims=True)
            pexp = jnp.exp(e - m)
            att = pexp / jnp.sum(pexp, axis=-1, keepdims=True)
            attn_ref[0, k] = att                         # store per head (no stack)
            head_outs.append(jnp.dot(att, Wh[:, lo:lo + head_dim],
                                     preferred_element_type=jnp.float32))
        gat_out = jnp.concatenate(head_outs, axis=-1)    # [rq, GH]

        # ---- Res-C: Linear -> ReLU -> Linear (+skip) -> ReLU ----
        h1 = jnp.maximum(
            jnp.dot(gat_out, rw1_ref[...],
                    preferred_element_type=jnp.float32) + rb1_ref[...], 0.0)
        if has_proj:
            skip = jnp.dot(gat_out, rwp_ref[...],
                           preferred_element_type=jnp.float32) + rbp_ref[...]
        else:
            skip = gat_out
        res = jnp.maximum(
            jnp.dot(h1, rw2_ref[...],
                    preferred_element_type=jnp.float32) + rb2_ref[...] + skip,
            0.0)

        # ---- Full-C: Linear -> LayerNorm(affine) -> tanh ----
        y = jnp.dot(res, fcw_ref[...],
                    preferred_element_type=jnp.float32) + fcb_ref[...]
        mu = jnp.mean(y, axis=-1, keepdims=True)
        var = jnp.mean((y - mu) * (y - mu), axis=-1, keepdims=True)
        y = (y - mu) * lax.rsqrt(var + ln_eps)
        rf = jnp.tanh(y * lng_ref[...] + lnb_ref[...])

        # ---- nn_layer: Linear -> ReLU -> Linear ----
        h2 = jnp.maximum(
            jnp.dot(rf, nw1_ref[...],
                    preferred_element_type=jnp.float32) + nb1_ref[...], 0.0)
        enhanced = jnp.dot(h2, nw2_ref[...],
                           preferred_element_type=jnp.float32) + nb2_ref[...]

        # Lane-dense store: risk factors emitted transposed as [K, rq].
        rf_ref[0] = jnp.transpose(enhanced)
    return kernel


def factor_extractor_forward(gru_feats, adj_b, p, cfg):
    B, N, H = gru_feats.shape
    heads = cfg['gat_heads']
    GH = cfg['gat_hidden']
    hd = GH // heads
    K = cfg['num_risk_factors']
    has_proj = p['res_wp'] is not None

    gat_w = jnp.transpose(p['gat_w'], (1, 0, 2)).reshape(H, heads * hd)

    # Block-diagonal packing of the per-head attention vectors so all heads'
    # logits come from one [., GH] x [GH, heads] matmul.
    eye_h = jnp.eye(heads, dtype=jnp.float32)
    a_src = p['gat_a_src'].reshape(heads, hd)
    a_dst = p['gat_a_dst'].reshape(heads, hd)
    asrc_mat = (a_src[:, :, None] * eye_h[:, None, :]).reshape(heads * hd, heads)
    adst_mat = (a_dst[:, :, None] * eye_h[:, None, :]).reshape(heads * hd, heads)

    rq = _row_tile(N)
    nr = N // rq

    args = [gru_feats, gru_feats, adj_b, gat_w, asrc_mat, adst_mat,
            p['res_w1'], p['res_b1'].reshape(1, -1)]
    if has_proj:
        args += [p['res_wp'], p['res_bp'].reshape(1, -1)]
    args += [p['res_w2'], p['res_b2'].reshape(1, -1),
             p['fc_w'], p['fc_b'].reshape(1, -1),
             p['ln_gamma'].reshape(1, -1), p['ln_beta'].reshape(1, -1),
             p['nn_w1'], p['nn_b1'].reshape(1, -1),
             p['nn_w2'], p['nn_b2'].reshape(1, -1)]

    in_specs = [
        pl.BlockSpec((1, N, H), lambda b, r: (b, 0, 0)),    # keys: whole graph
        pl.BlockSpec((1, rq, H), lambda b, r: (b, r, 0)),   # query-row tile
        pl.BlockSpec((1, rq, N), lambda b, r: (b, r, 0)),   # adjacency rows
    ]
    in_specs += [_bspec_full(a.shape) for a in args[3:]]

    kernel = _make_factor_kernel(heads, hd, has_proj)
    rf_t, attn = pl.pallas_call(
        kernel,
        out_shape=(jax.ShapeDtypeStruct((B, K, N), jnp.float32),
                   jax.ShapeDtypeStruct((B, heads, N, N), jnp.float32)),
        grid=(B, nr),
        in_specs=in_specs,
        out_specs=(
            pl.BlockSpec((1, K, rq), lambda b, r: (b, 0, r)),
            pl.BlockSpec((1, heads, rq, N), lambda b, r: (b, 0, r, 0)),
        ),
        compiler_params=pltpu.CompilerParams(
            dimension_semantics=("parallel", "parallel")),
    )(*args)
    return rf_t, attn


# --------------------------------------------------------------------------
# Kernel 3: fused relational embedding (both TGC layers) + prediction head
# --------------------------------------------------------------------------
def _make_embed_predict_kernel(n_hidden):
    def kernel(*refs):
        x_ref, mt_ref, w0_ref, b0_ref, w1_ref, b1_ref = refs[:6]
        idx = 6
        hidden_refs = []
        for _ in range(n_hidden):
            hidden_refs.append((refs[idx], refs[idx + 1]))
            idx += 2
        wout_ref, bout_ref = refs[idx], refs[idx + 1]
        pred_ref = refs[idx + 2]

        X = x_ref[0]                                             # [N, F]
        Mt = mt_ref[0]                                           # [K, N]

        # similarity softmax(relu(M M^T)) computed ONCE; the risk factors
        # arrive pre-transposed so the MXU contracts dim 0 of both operands
        # (no in-kernel XLU transpose).
        sim = lax.dot_general(Mt, Mt, (((0,), (0,)), ((), ())),
                              preferred_element_type=jnp.float32)  # [N, N]
        sim = jnp.maximum(sim, 0.0)
        mx = jnp.max(sim, axis=-1, keepdims=True)
        pexp = jnp.exp(sim - mx)
        sim = pexp / jnp.sum(pexp, axis=-1, keepdims=True)

        # TGC layer 0 ('add') + inter-layer ReLU
        XW0 = jnp.dot(X, w0_ref[...], preferred_element_type=jnp.float32)
        Z = XW0 + jnp.dot(sim, XW0,
                          preferred_element_type=jnp.float32) + b0_ref[...]
        Z = jnp.maximum(Z, 0.0)

        # TGC layer 1 ('subtract')
        XW1 = jnp.dot(Z, w1_ref[...], preferred_element_type=jnp.float32)
        out = XW1 - jnp.dot(sim, XW1,
                            preferred_element_type=jnp.float32) + b1_ref[...]

        # Prediction head: [Linear, ReLU, BatchNorm1d(eval), Dropout]* + Linear
        # (BatchNorm eval scale already folded into the following weights).
        for w_ref, b_ref in hidden_refs:
            out = jnp.maximum(
                jnp.dot(out, w_ref[...],
                        preferred_element_type=jnp.float32) + b_ref[...], 0.0)
        pred_ref[0] = jnp.dot(out, wout_ref[...],
                              preferred_element_type=jnp.float32) + bout_ref[...]
    return kernel


def embed_predict_forward(current, risk_factors_t, p, cfg):
    B, N, F_ = current.shape
    P = cfg['num_pred']
    n_hidden = len(p['pred_hidden'])
    # TODO(synk): BatchNorm1d eval modeled with fresh running stats (mean=0,
    # var=1, gamma=1, beta=0) -> y = x / sqrt(1 + eps); the positive scale is
    # folded into the NEXT layer's weight (relu(x)*s @ W == relu(x) @ (s*W)).
    bn_scale = 1.0 / math.sqrt(1.0 + 1e-5)

    args = [current, risk_factors_t,
            p['tgc_w0'], p['tgc_b0'].reshape(1, -1),
            p['tgc_w1'], p['tgc_b1'].reshape(1, -1)]
    for i, (w, b) in enumerate(p['pred_hidden']):
        w_eff = w if i == 0 else w * bn_scale
        args += [w_eff, b.reshape(1, -1)]
    w_out_eff = p['pred_w_out'] * (bn_scale if n_hidden > 0 else 1.0)
    args += [w_out_eff, p['pred_b_out'].reshape(1, -1)]

    K = risk_factors_t.shape[1]
    in_specs = [pl.BlockSpec((1, N, F_), lambda b: (b, 0, 0)),
                pl.BlockSpec((1, K, N), lambda b: (b, 0, 0))]
    in_specs += [_bspec_full(a.shape) for a in args[2:]]

    # NOTE: prediction output kept [B, N, P]; with P=1 its volume (N floats
    # per batch) is negligible next to the attn / risk-factor stores, which
    # were made lane-dense instead.
    kernel = _make_embed_predict_kernel(n_hidden)
    return pl.pallas_call(
        kernel,
        out_shape=jax.ShapeDtypeStruct((B, N, P), jnp.float32),
        grid=(B,),
        in_specs=in_specs,
        out_specs=pl.BlockSpec((1, N, P), lambda b: (b, 0, 0)),
        compiler_params=pltpu.CompilerParams(
            dimension_semantics=("parallel",)),
    )(*args)


# --------------------------------------------------------------------------
# Parameter init (deterministic, xavier-uniform-like)
# --------------------------------------------------------------------------
def _xavier(key, shape):
    fan_in, fan_out = shape[-2], shape[-1]
    lim = math.sqrt(6.0 / (fan_in + fan_out))
    return jax.random.uniform(key, shape, jnp.float32, -lim, lim)


def init_params(key, cfg):
    F = cfg['F']; H = cfg['gru_hidden']
    GH = cfg['gat_hidden']; heads = cfg['gat_heads']; hd = GH // heads
    RH = cfg['res_hidden']; K = cfg['num_risk_factors']
    TH = cfg['tgc_hidden']; TO = cfg['tgc_out']
    keys = iter(jax.random.split(key, 64))
    p = {}
    p['gru'] = {
        'wih0': _xavier(next(keys), (F, 3 * H)),
        'whh0': _xavier(next(keys), (H, 3 * H)),
        'bih0': jnp.zeros((1, 3 * H), jnp.float32),
        'bhh0': jnp.zeros((1, 3 * H), jnp.float32),
        'wih1': _xavier(next(keys), (H, 3 * H)),
        'whh1': _xavier(next(keys), (H, 3 * H)),
        'bih1': jnp.zeros((1, 3 * H), jnp.float32),
        'bhh1': jnp.zeros((1, 3 * H), jnp.float32),
    }
    p['gat_w'] = _xavier(next(keys), (heads, H, hd))
    p['gat_a_src'] = _xavier(next(keys), (heads, 1, hd))
    p['gat_a_dst'] = _xavier(next(keys), (heads, 1, hd))
    p['res_w1'] = _xavier(next(keys), (GH, RH)); p['res_b1'] = jnp.zeros((RH,), jnp.float32)
    p['res_w2'] = _xavier(next(keys), (RH, RH)); p['res_b2'] = jnp.zeros((RH,), jnp.float32)
    if GH != RH:
        p['res_wp'] = _xavier(next(keys), (GH, RH)); p['res_bp'] = jnp.zeros((RH,), jnp.float32)
    else:
        p['res_wp'] = None; p['res_bp'] = None
    p['fc_w'] = _xavier(next(keys), (RH, K)); p['fc_b'] = jnp.zeros((K,), jnp.float32)
    p['ln_gamma'] = jnp.ones((K,), jnp.float32)
    p['ln_beta'] = jnp.zeros((K,), jnp.float32)
    p['nn_w1'] = _xavier(next(keys), (K, K)); p['nn_b1'] = jnp.zeros((K,), jnp.float32)
    p['nn_w2'] = _xavier(next(keys), (K, K)); p['nn_b2'] = jnp.zeros((K,), jnp.float32)
    p['tgc_w0'] = _xavier(next(keys), (F, TH)); p['tgc_b0'] = jnp.zeros((TH,), jnp.float32)
    p['tgc_w1'] = _xavier(next(keys), (TH, TO)); p['tgc_b1'] = jnp.zeros((TO,), jnp.float32)
    pred = []
    cur = TO
    for hsize in cfg['pred_hidden']:
        pred.append((_xavier(next(keys), (cur, hsize)), jnp.zeros((hsize,), jnp.float32)))
        cur = hsize
    p['pred_hidden'] = pred
    p['pred_w_out'] = _xavier(next(keys), (cur, cfg['num_pred']))
    p['pred_b_out'] = jnp.zeros((cfg['num_pred'],), jnp.float32)
    return p


# --------------------------------------------------------------------------
# Full ASTGNNFactorModel forward
# --------------------------------------------------------------------------
def astgnn_forward(params, seq_inputs, adj, cfg):
    B, T, N, F = seq_inputs.shape
    H = cfg['gru_hidden']

    # torch: sequential_inputs.view(B*N, T, F) on a [B,T,N,F]-contiguous tensor
    # -> raw row-major reinterpret (NO permute); jnp.reshape matches it exactly.
    gru_in = seq_inputs.reshape(B * N, T, F)
    gru_in_t = jnp.transpose(gru_in, (1, 0, 2))                 # [T, B*N, F]
    gru_last = gru_forward(gru_in_t, params['gru'])             # [B*N, H]
    gru_feats = gru_last.reshape(B, N, H)                       # dropout: eval id

    if adj.ndim == 2:
        adj_b = jnp.broadcast_to(adj[None], (B, N, N))
    else:
        adj_b = adj

    rf_t, attn = factor_extractor_forward(gru_feats, adj_b, params, cfg)
    risk_factors = jnp.transpose(rf_t, (0, 2, 1))               # [B, N, K]

    current = seq_inputs[:, -1, :, :]                           # [B, N, F]
    predictions = embed_predict_forward(current, rf_t, params, cfg)
    return predictions, risk_factors, attn


# --------------------------------------------------------------------------
if __name__ == "__main__":
    cfg = dict(B=2, T=8, N=16, F=8,
               gru_hidden=16, gat_hidden=16, gat_heads=4,
               res_hidden=16, num_risk_factors=8,
               tgc_hidden=16, tgc_out=16,
               pred_hidden=[16, 8], num_pred=1)

    key = jax.random.PRNGKey(0)
    kx, kadj, kp = jax.random.split(key, 3)
    seq_inputs = jax.random.normal(kx, (cfg['B'], cfg['T'], cfg['N'], cfg['F']),
                                   jnp.float32)
    adj = (jax.random.uniform(kadj, (cfg['N'], cfg['N'])) > 0.5).astype(jnp.float32)
    adj = jnp.maximum(adj, jnp.eye(cfg['N'], dtype=jnp.float32))   # self-loops

    params = init_params(kp, cfg)

    fwd = jax.jit(lambda p, x, a: astgnn_forward(p, x, a, cfg))
    preds, risk_factors, attn = fwd(params, seq_inputs, adj)
    jax.block_until_ready((preds, risk_factors, attn))

    assert preds.shape == (cfg['B'], cfg['N'], cfg['num_pred'])
    assert risk_factors.shape == (cfg['B'], cfg['N'], cfg['num_risk_factors'])
    assert attn.shape == (cfg['B'], cfg['gat_heads'], cfg['N'], cfg['N'])
    print("KERNEL_OK")
</pallas_src>

<mosaic_0001>
module attributes {stable_mosaic.version = 11 : i64} {
  func.func @kernel(%arg0: i32, %arg1: memref<8x16x48xf32, #tpu.memory_space<vmem>>, %arg2: memref<16x48xf32, #tpu.memory_space<vmem>>, %arg3: memref<1x48xf32, #tpu.memory_space<vmem>>, %arg4: memref<16x48xf32, #tpu.memory_space<vmem>>, %arg5: memref<1x48xf32, #tpu.memory_space<vmem>>, %arg6: memref<16x48xf32, #tpu.memory_space<vmem>>, %arg7: memref<1x48xf32, #tpu.memory_space<vmem>>, %arg8: memref<16x16xf32, #tpu.memory_space<vmem>>) attributes {dimension_semantics = [#tpu.dimension_semantics<parallel>], iteration_bounds = array<i64: 2>, scalar_prefetch = 0 : i64, scratch_operands = 0 : i64, tpu.core_type = #tpu.core_type<tc>, window_params = [{transform_indices = @transform_0, window_bounds = array<i64: 8, 16, 48>}, {pipeline_mode = #tpu.pipeline_mode<synchronous>, transform_indices = @transform_1, window_bounds = array<i64: 16, 48>}, {pipeline_mode = #tpu.pipeline_mode<synchronous>, transform_indices = @transform_2, window_bounds = array<i64: 1, 48>}, {pipeline_mode = #tpu.pipeline_mode<synchronous>, transform_indices = @transform_3, window_bounds = array<i64: 16, 48>}, {pipeline_mode = #tpu.pipeline_mode<synchronous>, transform_indices = @transform_4, window_bounds = array<i64: 1, 48>}, {pipeline_mode = #tpu.pipeline_mode<synchronous>, transform_indices = @transform_5, window_bounds = array<i64: 16, 48>}, {pipeline_mode = #tpu.pipeline_mode<synchronous>, transform_indices = @transform_6, window_bounds = array<i64: 1, 48>}, {transform_indices = @transform_7, window_bounds = array<i64: 16, 16>}]} {
    %c0 = arith.constant 0 : index
    %c0_0 = arith.constant 0 : index
    %0 = vector.load %arg2[%c0, %c0_0] : memref<16x48xf32, #tpu.memory_space<vmem>>, vector<16x48xf32>
    %c0_1 = arith.constant 0 : index
    %c0_2 = arith.constant 0 : index
    %1 = vector.load %arg3[%c0_1, %c0_2] : memref<1x48xf32, #tpu.memory_space<vmem>>, vector<1x48xf32>
    %c0_3 = arith.constant 0 : index
    %c0_4 = arith.constant 0 : index
    %2 = vector.load %arg4[%c0_3, %c0_4] : memref<16x48xf32, #tpu.memory_space<vmem>>, vector<16x48xf32>
    %c0_5 = arith.constant 0 : index
    %c0_6 = arith.constant 0 : index
    %3 = vector.load %arg5[%c0_5, %c0_6] : memref<1x48xf32, #tpu.memory_space<vmem>>, vector<1x48xf32>
    %c0_7 = arith.constant 0 : index
    %c0_8 = arith.constant 0 : index
    %4 = vector.load %arg6[%c0_7, %c0_8] : memref<16x48xf32, #tpu.memory_space<vmem>>, vector<16x48xf32>
    %c0_9 = arith.constant 0 : index
    %c0_10 = arith.constant 0 : index
    %5 = vector.load %arg7[%c0_9, %c0_10] : memref<1x48xf32, #tpu.memory_space<vmem>>, vector<1x48xf32>
    %cst = arith.constant 0.000000e+00 : f32
    %6 = vector.broadcast %cst : f32 to vector<16x16xf32>
    %cst_11 = arith.constant 0.000000e+00 : f32
    %7 = vector.broadcast %cst_11 : f32 to vector<16x16xf32>
    %c0_i32 = arith.constant 0 : i32
    %8 = arith.index_cast %c0_i32 : i32 to index
    %c0_12 = arith.constant 0 : index
    %c0_13 = arith.constant 0 : index
    %9 = vector.load %arg1[%8, %c0_12, %c0_13] : memref<8x16x48xf32, #tpu.memory_space<vmem>>, vector<1x16x48xf32>
    %10 = vector.shape_cast %9 : vector<1x16x48xf32> to vector<16x48xf32>
    %cst_14 = arith.constant dense<0.000000e+00> : vector<16x48xf32>
    %11 = tpu.matmul %6, %0, %cst_14 {dimension_numbers = #tpu.dot_dimension_numbers<[1], [0], [0], [1], [0, 0, 1, 1], [], []>} : vector<16x16xf32>, vector<16x48xf32>, vector<16x48xf32> -> vector<16x48xf32>
    %12 = vector.broadcast %1 : vector<1x48xf32> to vector<16x48xf32>
    %13 = arith.addf %11, %12 : vector<16x48xf32>
    %14 = vector.extract_strided_slice %10 {offsets = [0, 0], sizes = [16, 16], strides = [1, 1]} : vector<16x48xf32> to vector<16x16xf32>
    %15 = vector.extract_strided_slice %13 {offsets = [0, 0], sizes = [16, 16], strides = [1, 1]} : vector<16x48xf32> to vector<16x16xf32>
    %16 = arith.addf %14, %15 : vector<16x16xf32>
    %cst_15 = arith.constant 5.000000e-01 : f32
    %17 = vector.broadcast %cst_15 : f32 to vector<16x16xf32>
    %18 = arith.mulf %17, %16 : vector<16x16xf32>
    %19 = math.tanh %18 : vector<16x16xf32>
    %cst_16 = arith.constant 5.000000e-01 : f32
    %20 = vector.broadcast %cst_16 : f32 to vector<16x16xf32>
    %21 = arith.mulf %20, %19 : vector<16x16xf32>
    %cst_17 = arith.constant 5.000000e-01 : f32
    %22 = vector.broadcast %cst_17 : f32 to vector<16x16xf32>
    %23 = arith.addf %21, %22 : vector<16x16xf32>
    %24 = vector.extract_strided_slice %10 {offsets = [0, 16], sizes = [16, 16], strides = [1, 1]} : vector<16x48xf32> to vector<16x16xf32>
    %25 = vector.extract_strided_slice %13 {offsets = [0, 16], sizes = [16, 16], strides = [1, 1]} : vector<16x48xf32> to vector<16x16xf32>
    %26 = arith.addf %24, %25 : vector<16x16xf32>
    %cst_18 = arith.constant 5.000000e-01 : f32
    %27 = vector.broadcast %cst_18 : f32 to vector<16x16xf32>
    %28 = arith.mulf %27, %26 : vector<16x16xf32>
    %29 = math.tanh %28 : vector<16x16xf32>
    %cst_19 = arith.constant 5.000000e-01 : f32
    %30 = vector.broadcast %cst_19 : f32 to vector<16x16xf32>
    %31 = arith.mulf %30, %29 : vector<16x16xf32>
    %cst_20 = arith.constant 5.000000e-01 : f32
    %32 = vector.broadcast %cst_20 : f32 to vector<16x16xf32>
    %33 = arith.addf %31, %32 : vector<16x16xf32>
    %34 = vector.extract_strided_slice %10 {offsets = [0, 32], sizes = [16, 16], strides = [1, 1]} : vector<16x48xf32> to vector<16x16xf32>
    %35 = vector.extract_strided_slice %13 {offsets = [0, 32], sizes = [16, 16], strides = [1, 1]} : vector<16x48xf32> to vector<16x16xf32>
    %36 = arith.mulf %23, %35 : vector<16x16xf32>
    %37 = arith.addf %34, %36 : vector<16x16xf32>
    %38 = math.tanh %37 : vector<16x16xf32>
    %cst_21 = arith.constant 1.000000e+00 : f32
    %39 = vector.broadcast %cst_21 : f32 to vector<16x16xf32>
    %40 = arith.subf %39, %33 : vector<16x16xf32>
    %41 = arith.mulf %40, %38 : vector<16x16xf32>
    %42 = arith.mulf %33, %6 : vector<16x16xf32>
    %43 = arith.addf %41, %42 : vector<16x16xf32>
    %cst_22 = arith.constant dense<0.000000e+00> : vector<16x48xf32>
    %44 = tpu.matmul %43, %2, %cst_22 {dimension_numbers = #tpu.dot_dimension_numbers<[1], [0], [0], [1], [0, 0, 1, 1], [], []>} : vector<16x16xf32>, vector<16x48xf32>, vector<16x48xf32> -> vector<16x48xf32>
    %45 = vector.broadcast %3 : vector<1x48xf32> to vector<16x48xf32>
    %46 = arith.addf %44, %45 : vector<16x48xf32>
    %cst_23 = arith.constant dense<0.000000e+00> : vector<16x48xf32>
    %47 = tpu.matmul %7, %4, %cst_23 {dimension_numbers = #tpu.dot_dimension_numbers<[1], [0], [0], [1], [0, 0, 1, 1], [], []>} : vector<16x16xf32>, vector<16x48xf32>, vector<16x48xf32> -> vector<16x48xf32>
    %48 = vector.broadcast %5 : vector<1x48xf32> to vector<16x48xf32>
    %49 = arith.addf %47, %48 : vector<16x48xf32>
    %50 = vector.extract_strided_slice %46 {offsets = [0, 0], sizes = [16, 16], strides = [1, 1]} : vector<16x48xf32> to vector<16x16xf32>
    %51 = vector.extract_strided_slice %49 {offsets = [0, 0], sizes = [16, 16], strides = [1, 1]} : vector<16x48xf32> to vector<16x16xf32>
    %52 = arith.addf %50, %51 : vector<16x16xf32>
    %cst_24 = arith.constant 5.000000e-01 : f32
    %53 = vector.broadcast %cst_24 : f32 to vector<16x16xf32>
    %54 = arith.mulf %53, %52 : vector<16x16xf32>
    %55 = math.tanh %54 : vector<16x16xf32>
    %cst_25 = arith.constant 5.000000e-01 : f32
    %56 = vector.broadcast %cst_25 : f32 to vector<16x16xf32>
    %57 = arith.mulf %56, %55 : vector<16x16xf32>
    %cst_26 = arith.constant 5.000000e-01 : f32
    %58 = vector.broadcast %cst_26 : f32 to vector<16x16xf32>
    %59 = arith.addf %57, %58 : vector<16x16xf32>
    %60 = vector.extract_strided_slice %46 {offsets = [0, 16], sizes = [16, 16], strides = [1, 1]} : vector<16x48xf32> to vector<16x16xf32>
    %61 = vector.extract_strided_slice %49 {offsets = [0, 16], sizes = [16, 16], strides = [1, 1]} : vector<16x48xf32> to vector<16x16xf32>
    %62 = arith.addf %60, %61 : vector<16x16xf32>
    %cst_27 = arith.constant 5.000000e-01 : f32
    %63 = vector.broadcast %cst_27 : f32 to vector<16x16xf32>
    %64 = arith.mulf %63, %62 : vector<16x16xf32>
    %65 = math.tanh %64 : vector<16x16xf32>
    %cst_28 = arith.constant 5.000000e-01 : f32
    %66 = vector.broadcast %cst_28 : f32 to vector<16x16xf32>
    %67 = arith.mulf %66, %65 : vector<16x16xf32>
    %cst_29 = arith.constant 5.000000e-01 : f32
    %68 = vector.broadcast %cst_29 : f32 to vector<16x16xf32>
    %69 = arith.addf %67, %68 : vector<16x16xf32>
    %70 = vector.extract_strided_slice %46 {offsets = [0, 32], sizes = [16, 16], strides = [1, 1]} : vector<16x48xf32> to vector<16x16xf32>
    %71 = vector.extract_strided_slice %49 {offsets = [0, 32], sizes = [16, 16], strides = [1, 1]} : vector<16x48xf32> to vector<16x16xf32>
    %72 = arith.mulf %59, %71 : vector<16x16xf32>
    %73 = arith.addf %70, %72 : vector<16x16xf32>
    %74 = math.tanh %73 : vector<16x16xf32>
    %cst_30 = arith.constant 1.000000e+00 : f32
    %75 = vector.broadcast %cst_30 : f32 to vector<16x16xf32>
    %76 = arith.subf %75, %69 : vector<16x16xf32>
    %77 = arith.mulf %76, %74 : vector<16x16xf32>
    %78 = arith.mulf %69, %7 : vector<16x16xf32>
    %79 = arith.addf %77, %78 : vector<16x16xf32>
    %c1_i32 = arith.constant 1 : i32
    %80 = arith.index_cast %c1_i32 : i32 to index
    %c0_31 = arith.constant 0 : index
    %c0_32 = arith.constant 0 : index
    %81 = vector.load %arg1[%80, %c0_31, %c0_32] : memref<8x16x48xf32, #tpu.memory_space<vmem>>, vector<1x16x48xf32>
    %82 = vector.shape_cast %81 : vector<1x16x48xf32> to vector<16x48xf32>
    %cst_33 = arith.constant dense<0.000000e+00> : vector<16x48xf32>
    %83 = tpu.matmul %43, %0, %cst_33 {dimension_numbers = #tpu.dot_dimension_numbers<[1], [0], [0], [1], [0, 0, 1, 1], [], []>} : vector<16x16xf32>, vector<16x48xf32>, vector<16x48xf32> -> vector<16x48xf32>
    %84 = vector.broadcast %1 : vector<1x48xf32> to vector<16x48xf32>
    %85 = arith.addf %83, %84 : vector<16x48xf32>
    %86 = vector.extract_strided_slice %82 {offsets = [0, 0], sizes = [16, 16], strides = [1, 1]} : vector<16x48xf32> to vector<16x16xf32>
    %87 = vector.extract_strided_slice %85 {offsets = [0, 0], sizes = [16, 16], strides = [1, 1]} : vector<16x48xf32> to vector<16x16xf32>
    %88 = arith.addf %86, %87 : vector<16x16xf32>
    %cst_34 = arith.constant 5.000000e-01 : f32
    %89 = vector.broadcast %cst_34 : f32 to vector<16x16xf32>
    %90 = arith.mulf %89, %88 : vector<16x16xf32>
    %91 = math.tanh %90 : vector<16x16xf32>
    %cst_35 = arith.constant 5.000000e-01 : f32
    %92 = vector.broadcast %cst_35 : f32 to vector<16x16xf32>
    %93 = arith.mulf %92, %91 : vector<16x16xf32>
    %cst_36 = arith.constant 5.000000e-01 : f32
    %94 = vector.broadcast %cst_36 : f32 to vector<16x16xf32>
    %95 = arith.addf %93, %94 : vector<16x16xf32>
    %96 = vector.extract_strided_slice %82 {offsets = [0, 16], sizes = [16, 16], strides = [1, 1]} : vector<16x48xf32> to vector<16x16xf32>
    %97 = vector.extract_strided_slice %85 {offsets = [0, 16], sizes = [16, 16], strides = [1, 1]} : vector<16x48xf32> to vector<16x16xf32>
    %98 = arith.addf %96, %97 : vector<16x16xf32>
    %cst_37 = arith.constant 5.000000e-01 : f32
    %99 = vector.broadcast %cst_37 : f32 to vector<16x16xf32>
    %100 = arith.mulf %99, %98 : vector<16x16xf32>
    %101 = math.tanh %100 : vector<16x16xf32>
    %cst_38 = arith.constant 5.000000e-01 : f32
    %102 = vector.broadcast %cst_38 : f32 to vector<16x16xf32>
    %103 = arith.mulf %102, %101 : vector<16x16xf32>
    %cst_39 = arith.constant 5.000000e-01 : f32
    %104 = vector.broadcast %cst_39 : f32 to vector<16x16xf32>
    %105 = arith.addf %103, %104 : vector<16x16xf32>
    %106 = vector.extract_strided_slice %82 {offsets = [0, 32], sizes = [16, 16], strides = [1, 1]} : vector<16x48xf32> to vector<16x16xf32>
    %107 = vector.extract_strided_slice %85 {offsets = [0, 32], sizes = [16, 16], strides = [1, 1]} : vector<16x48xf32> to vector<16x16xf32>
    %108 = arith.mulf %95, %107 : vector<16x16xf32>
    %109 = arith.addf %106, %108 : vector<16x16xf32>
    %110 = math.tanh %109 : vector<16x16xf32>
    %cst_40 = arith.constant 1.000000e+00 : f32
    %111 = vector.broadcast %cst_40 : f32 to vector<16x16xf32>
    %112 = arith.subf %111, %105 : vector<16x16xf32>
    %113 = arith.mulf %112, %110 : vector<16x16xf32>
    %114 = arith.mulf %105, %43 : vector<16x16xf32>
    %115 = arith.addf %113, %114 : vector<16x16xf32>
    %cst_41 = arith.constant dense<0.000000e+00> : vector<16x48xf32>
    %116 = tpu.matmul %115, %2, %cst_41 {dimension_numbers = #tpu.dot_dimension_numbers<[1], [0], [0], [1], [0, 0, 1, 1], [], []>} : vector<16x16xf32>, vector<16x48xf32>, vector<16x48xf32> -> vector<16x48xf32>
    %117 = vector.broadcast %3 : vector<1x48xf32> to vector<16x48xf32>
    %118 = arith.addf %116, %117 : vector<16x48xf32>
    %cst_42 = arith.constant dense<0.000000e+00> : vector<16x48xf32>
    %119 = tpu.matmul %79, %4, %cst_42 {dimension_numbers = #tpu.dot_dimension_numbers<[1], [0], [0], [1], [0, 0, 1, 1], [], []>} : vector<16x16xf32>, vector<16x48xf32>, vector<16x48xf32> -> vector<16x48xf32>
    %120 = vector.broadcast %5 : vector<1x48xf32> to vector<16x48xf32>
    %121 = arith.addf %119, %120 : vector<16x48xf32>
    %122 = vector.extract_strided_slice %118 {offsets = [0, 0], sizes = [16, 16], strides = [1, 1]} : vector<16x48xf32> to vector<16x16xf32>
    %123 = vector.extract_strided_slice %121 {offsets = [0, 0], sizes = [16, 16], strides = [1, 1]} : vector<16x48xf32> to vector<16x16xf32>
    %124 = arith.addf %122, %123 : vector<16x16xf32>
    %cst_43 = arith.constant 5.000000e-01 : f32
    %125 = vector.broadcast %cst_43 : f32 to vector<16x16xf32>
    %126 = arith.mulf %125, %124 : vector<16x16xf32>
    %127 = math.tanh %126 : vector<16x16xf32>
    %cst_44 = arith.constant 5.000000e-01 : f32
    %128 = vector.broadcast %cst_44 : f32 to vector<16x16xf32>
    %129 = arith.mulf %128, %127 : vector<16x16xf32>
    %cst_45 = arith.constant 5.000000e-01 : f32
    %130 = vector.broadcast %cst_45 : f32 to vector<16x16xf32>
    %131 = arith.addf %129, %130 : vector<16x16xf32>
    %132 = vector.extract_strided_slice %118 {offsets = [0, 16], sizes = [16, 16], strides = [1, 1]} : vector<16x48xf32> to vector<16x16xf32>
    %133 = vector.extract_strided_slice %121 {offsets = [0, 16], sizes = [16, 16], strides = [1, 1]} : vector<16x48xf32> to vector<16x16xf32>
    %134 = arith.addf %132, %133 : vector<16x16xf32>
    %cst_46 = arith.constant 5.000000e-01 : f32
    %135 = vector.broadcast %cst_46 : f32 to vector<16x16xf32>
    %136 = arith.mulf %135, %134 : vector<16x16xf32>
    %137 = math.tanh %136 : vector<16x16xf32>
    %cst_47 = arith.constant 5.000000e-01 : f32
    %138 = vector.broadcast %cst_47 : f32 to vector<16x16xf32>
    %139 = arith.mulf %138, %137 : vector<16x16xf32>
    %cst_48 = arith.constant 5.000000e-01 : f32
    %140 = vector.broadcast %cst_48 : f32 to vector<16x16xf32>
    %141 = arith.addf %139, %140 : vector<16x16xf32>
    %142 = vector.extract_strided_slice %118 {offsets = [0, 32], sizes = [16, 16], strides = [1, 1]} : vector<16x48xf32> to vector<16x16xf32>
    %143 = vector.extract_strided_slice %121 {offsets = [0, 32], sizes = [16, 16], strides = [1, 1]} : vector<16x48xf32> to vector<16x16xf32>
    %144 = arith.mulf %131, %143 : vector<16x16xf32>
    %145 = arith.addf %142, %144 : vector<16x16xf32>
    %146 = math.tanh %145 : vector<16x16xf32>
    %cst_49 = arith.constant 1.000000e+00 : f32
    %147 = vector.broadcast %cst_49 : f32 to vector<16x16xf32>
    %148 = arith.subf %147, %141 : vector<16x16xf32>
    %149 = arith.mulf %148, %146 : vector<16x16xf32>
    %150 = arith.mulf %141, %79 : vector<16x16xf32>
    %151 = arith.addf %149, %150 : vector<16x16xf32>
    %c2_i32 = arith.constant 2 : i32
    %152 = arith.index_cast %c2_i32 : i32 to index
    %c0_50 = arith.constant 0 : index
    %c0_51 = arith.constant 0 : index
    %153 = vector.load %arg1[%152, %c0_50, %c0_51] : memref<8x16x48xf32, #tpu.memory_space<vmem>>, vector<1x16x48xf32>
    %154 = vector.shape_cast %153 : vector<1x16x48xf32> to vector<16x48xf32>
    %cst_52 = arith.constant dense<0.000000e+00> : vector<16x48xf32>
    %155 = tpu.matmul %115, %0, %cst_52 {dimension_numbers = #tpu.dot_dimension_numbers<[1], [0], [0], [1], [0, 0, 1, 1], [], []>} : vector<16x16xf32>, vector<16x48xf32>, vector<16x48xf32> -> vector<16x48xf32>
    %156 = vector.broadcast %1 : vector<1x48xf32> to vector<16x48xf32>
    %157 = arith.addf %155, %156 : vector<16x48xf32>
    %158 = vector.extract_strided_slice %154 {offsets = [0, 0], sizes = [16, 16], strides = [1, 1]} : vector<16x48xf32> to vector<16x16xf32>
    %159 = vector.extract_strided_slice %157 {offsets = [0, 0], sizes = [16, 16], strides = [1, 1]} : vector<16x48xf32> to vector<16x16xf32>
    %160 = arith.addf %158, %159 : vector<16x16xf32>
    %cst_53 = arith.constant 5.000000e-01 : f32
    %161 = vector.broadcast %cst_53 : f32 to vector<16x16xf32>
    %162 = arith.mulf %161, %160 : vector<16x16xf32>
    %163 = math.tanh %162 : vector<16x16xf32>
    %cst_54 = arith.constant 5.000000e-01 : f32
    %164 = vector.broadcast %cst_54 : f32 to vector<16x16xf32>
    %165 = arith.mulf %164, %163 : vector<16x16xf32>
    %cst_55 = arith.constant 5.000000e-01 : f32
    %166 = vector.broadcast %cst_55 : f32 to vector<16x16xf32>
    %167 = arith.addf %165, %166 : vector<16x16xf32>
    %168 = vector.extract_strided_slice %154 {offsets = [0, 16], sizes = [16, 16], strides = [1, 1]} : vector<16x48xf32> to vector<16x16xf32>
    %169 = vector.extract_strided_slice %157 {offsets = [0, 16], sizes = [16, 16], strides = [1, 1]} : vector<16x48xf32> to vector<16x16xf32>
    %170 = arith.addf %168, %169 : vector<16x16xf32>
    %cst_56 = arith.constant 5.000000e-01 : f32
    %171 = vector.broadcast %cst_56 : f32 to vector<16x16xf32>
    %172 = arith.mulf %171, %170 : vector<16x16xf32>
    %173 = math.tanh %172 : vector<16x16xf32>
    %cst_57 = arith.constant 5.000000e-01 : f32
    %174 = vector.broadcast %cst_57 : f32 to vector<16x16xf32>
    %175 = arith.mulf %174, %173 : vector<16x16xf32>
    %cst_58 = arith.constant 5.000000e-01 : f32
    %176 = vector.broadcast %cst_58 : f32 to vector<16x16xf32>
    %177 = arith.addf %175, %176 : vector<16x16xf32>
    %178 = vector.extract_strided_slice %154 {offsets = [0, 32], sizes = [16, 16], strides = [1, 1]} : vector<16x48xf32> to vector<16x16xf32>
    %179 = vector.extract_strided_slice %157 {offsets = [0, 32], sizes = [16, 16], strides = [1, 1]} : vector<16x48xf32> to vector<16x16xf32>
    %180 = arith.mulf %167, %179 : vector<16x16xf32>
    %181 = arith.addf %178, %180 : vector<16x16xf32>
    %182 = math.tanh %181 : vector<16x16xf32>
    %cst_59 = arith.constant 1.000000e+00 : f32
    %183 = vector.broadcast %cst_59 : f32 to vector<16x16xf32>
    %184 = arith.subf %183, %177 : vector<16x16xf32>
    %185 = arith.mulf %184, %182 : vector<16x16xf32>
    %186 = arith.mulf %177, %115 : vector<16x16xf32>
    %187 = arith.addf %185, %186 : vector<16x16xf32>
    %cst_60 = arith.constant dense<0.000000e+00> : vector<16x48xf32>
    %188 = tpu.matmul %187, %2, %cst_60 {dimension_numbers = #tpu.dot_dimension_numbers<[1], [0], [0], [1], [0, 0, 1, 1], [], []>} : vector<16x16xf32>, vector<16x48xf32>, vector<16x48xf32> -> vector<16x48xf32>
    %189 = vector.broadcast %3 : vector<1x48xf32> to vector<16x48xf32>
    %190 = arith.addf %188, %189 : vector<16x48xf32>
    %cst_61 = arith.constant dense<0.000000e+00> : vector<16x48xf32>
    %191 = tpu.matmul %151, %4, %cst_61 {dimension_numbers = #tpu.dot_dimension_numbers<[1], [0], [0], [1], [0, 0, 1, 1], [], []>} : vector<16x16xf32>, vector<16x48xf32>, vector<16x48xf32> -> vector<16x48xf32>
    %192 = vector.broadcast %5 : vector<1x48xf32> to vector<16x48xf32>
    %193 = arith.addf %191, %192 : vector<16x48xf32>
    %194 = vector.extract_strided_slice %190 {offsets = [0, 0], sizes = [16, 16], strides = [1, 1]} : vector<16x48xf32> to vector<16x16xf32>
    %195 = vector.extract_strided_slice %193 {offsets = [0, 0], sizes = [16, 16], strides = [1, 1]} : vector<16x48xf32> to vector<16x16xf32>
    %196 = arith.addf %194, %195 : vector<16x16xf32>
    %cst_62 = arith.constant 5.000000e-01 : f32
    %197 = vector.broadcast %cst_62 : f32 to vector<16x16xf32>
    %198 = arith.mulf %197, %196 : vector<16x16xf32>
    %199 = math.tanh %198 : vector<16x16xf32>
    %cst_63 = arith.constant 5.000000e-01 : f32
    %200 = vector.broadcast %cst_63 : f32 to vector<16x16xf32>
    %201 = arith.mulf %200, %199 : vector<16x16xf32>
    %cst_64 = arith.constant 5.000000e-01 : f32
    %202 = vector.broadcast %cst_64 : f32 to vector<16x16xf32>
    %203 = arith.addf %201, %202 : vector<16x16xf32>
    %204 = vector.extract_strided_slice %190 {offsets = [0, 16], sizes = [16, 16], strides = [1, 1]} : vector<16x48xf32> to vector<16x16xf32>
    %205 = vector.extract_strided_slice %193 {offsets = [0, 16], sizes = [16, 16], strides = [1, 1]} : vector<16x48xf32> to vector<16x16xf32>
    %206 = arith.addf %204, %205 : vector<16x16xf32>
    %cst_65 = arith.constant 5.000000e-01 : f32
    %207 = vector.broadcast %cst_65 : f32 to vector<16x16xf32>
    %208 = arith.mulf %207, %206 : vector<16x16xf32>
    %209 = math.tanh %208 : vector<16x16xf32>
    %cst_66 = arith.constant 5.000000e-01 : f32
    %210 = vector.broadcast %cst_66 : f32 to vector<16x16xf32>
    %211 = arith.mulf %210, %209 : vector<16x16xf32>
    %cst_67 = arith.constant 5.000000e-01 : f32
    %212 = vector.broadcast %cst_67 : f32 to vector<16x16xf32>
    %213 = arith.addf %211, %212 : vector<16x16xf32>
    %214 = vector.extract_strided_slice %190 {offsets = [0, 32], sizes = [16, 16], strides = [1, 1]} : vector<16x48xf32> to vector<16x16xf32>
    %215 = vector.extract_strided_slice %193 {offsets = [0, 32], sizes = [16, 16], strides = [1, 1]} : vector<16x48xf32> to vector<16x16xf32>
    %216 = arith.mulf %203, %215 : vector<16x16xf32>
    %217 = arith.addf %214, %216 : vector<16x16xf32>
    %218 = math.tanh %217 : vector<16x16xf32>
    %cst_68 = arith.constant 1.000000e+00 : f32
    %219 = vector.broadcast %cst_68 : f32 to vector<16x16xf32>
    %220 = arith.subf %219, %213 : vector<16x16xf32>
    %221 = arith.mulf %220, %218 : vector<16x16xf32>
    %222 = arith.mulf %213, %151 : vector<16x16xf32>
    %223 = arith.addf %221, %222 : vector<16x16xf32>
    %c3_i32 = arith.constant 3 : i32
    %224 = arith.index_cast %c3_i32 : i32 to index
    %c0_69 = arith.constant 0 : index
    %c0_70 = arith.constant 0 : index
    %225 = vector.load %arg1[%224, %c0_69, %c0_70] : memref<8x16x48xf32, #tpu.memory_space<vmem>>, vector<1x16x48xf32>
    %226 = vector.shape_cast %225 : vector<1x16x48xf32> to vector<16x48xf32>
    %cst_71 = arith.constant dense<0.000000e+00> : vector<16x48xf32>
    %227 = tpu.matmul %187, %0, %cst_71 {dimension_numbers = #tpu.dot_dimension_numbers<[1], [0], [0], [1], [0, 0, 1, 1], [], []>} : vector<16x16xf32>, vector<16x48xf32>, vector<16x48xf32> -> vector<16x48xf32>
    %228 = vector.broadcast %1 : vector<1x48xf32> to vector<16x48xf32>
    %229 = arith.addf %227, %228 : vector<16x48xf32>
    %230 = vector.extract_strided_slice %226 {offsets = [0, 0], sizes = [16, 16], strides = [1, 1]} : vector<16x48xf32> to vector<16x16xf32>
    %231 = vector.extract_strided_slice %229 {offsets = [0, 0], sizes = [16, 16], strides = [1, 1]} : vector<16x48xf32> to vector<16x16xf32>
    %232 = arith.addf %230, %231 : vector<16x16xf32>
    %cst_72 = arith.constant 5.000000e-01 : f32
    %233 = vector.broadcast %cst_72 : f32 to vector<16x16xf32>
    %234 = arith.mulf %233, %232 : vector<16x16xf32>
    %235 = math.tanh %234 : vector<16x16xf32>
    %cst_73 = arith.constant 5.000000e-01 : f32
    %236 = vector.broadcast %cst_73 : f32 to vector<16x16xf32>
    %237 = arith.mulf %236, %235 : vector<16x16xf32>
    %cst_74 = arith.constant 5.000000e-01 : f32
    %238 = vector.broadcast %cst_74 : f32 to vector<16x16xf32>
    %239 = arith.addf %237, %238 : vector<16x16xf32>
    %240 = vector.extract_strided_slice %226 {offsets = [0, 16], sizes = [16, 16], strides = [1, 1]} : vector<16x48xf32> to vector<16x16xf32>
    %241 = vector.extract_strided_slice %229 {offsets = [0, 16], sizes = [16, 16], strides = [1, 1]} : vector<16x48xf32> to vector<16x16xf32>
    %242 = arith.addf %240, %241 : vector<16x16xf32>
    %cst_75 = arith.constant 5.000000e-01 : f32
    %243 = vector.broadcast %cst_75 : f32 to vector<16x16xf32>
    %244 = arith.mulf %243, %242 : vector<16x16xf32>
    %245 = math.tanh %244 : vector<16x16xf32>
    %cst_76 = arith.constant 5.000000e-01 : f32
    %246 = vector.broadcast %cst_76 : f32 to vector<16x16xf32>
    %247 = arith.mulf %246, %245 : vector<16x16xf32>
    %cst_77 = arith.constant 5.000000e-01 : f32
    %248 = vector.broadcast %cst_77 : f32 to vector<16x16xf32>
    %249 = arith.addf %247, %248 : vector<16x16xf32>
    %250 = vector.extract_strided_slice %226 {offsets = [0, 32], sizes = [16, 16], strides = [1, 1]} : vector<16x48xf32> to vector<16x16xf32>
    %251 = vector.extract_strided_slice %229 {offsets = [0, 32], sizes = [16, 16], strides = [1, 1]} : vector<16x48xf32> to vector<16x16xf32>
    %252 = arith.mulf %239, %251 : vector<16x16xf32>
    %253 = arith.addf %250, %252 : vector<16x16xf32>
    %254 = math.tanh %253 : vector<16x16xf32>
    %cst_78 = arith.constant 1.000000e+00 : f32
    %255 = vector.broadcast %cst_78 : f32 to vector<16x16xf32>
    %256 = arith.subf %255, %249 : vector<16x16xf32>
    %257 = arith.mulf %256, %254 : vector<16x16xf32>
    %258 = arith.mulf %249, %187 : vector<16x16xf32>
    %259 = arith.addf %257, %258 : vector<16x16xf32>
    %cst_79 = arith.constant dense<0.000000e+00> : vector<16x48xf32>
    %260 = tpu.matmul %259, %2, %cst_79 {dimension_numbers = #tpu.dot_dimension_numbers<[1], [0], [0], [1], [0, 0, 1, 1], [], []>} : vector<16x16xf32>, vector<16x48xf32>, vector<16x48xf32> -> vector<16x48xf32>
    %261 = vector.broadcast %3 : vector<1x48xf32> to vector<16x48xf32>
    %262 = arith.addf %260, %261 : vector<16x48xf32>
    %cst_80 = arith.constant dense<0.000000e+00> : vector<16x48xf32>
    %263 = tpu.matmul %223, %4, %cst_80 {dimension_numbers = #tpu.dot_dimension_numbers<[1], [0], [0], [1], [0, 0, 1, 1], [], []>} : vector<16x16xf32>, vector<16x48xf32>, vector<16x48xf32> -> vector<16x48xf32>
    %264 = vector.broadcast %5 : vector<1x48xf32> to vector<16x48xf32>
    %265 = arith.addf %263, %264 : vector<16x48xf32>
    %266 = vector.extract_strided_slice %262 {offsets = [0, 0], sizes = [16, 16], strides = [1, 1]} : vector<16x48xf32> to vector<16x16xf32>
    %267 = vector.extract_strided_slice %265 {offsets = [0, 0], sizes = [16, 16], strides = [1, 1]} : vector<16x48xf32> to vector<16x16xf32>
    %268 = arith.addf %266, %267 : vector<16x16xf32>
    %cst_81 = arith.constant 5.000000e-01 : f32
    %269 = vector.broadcast %cst_81 : f32 to vector<16x16xf32>
    %270 = arith.mulf %269, %268 : vector<16x16xf32>
    %271 = math.tanh %270 : vector<16x16xf32>
    %cst_82 = arith.constant 5.000000e-01 : f32
    %272 = vector.broadcast %cst_82 : f32 to vector<16x16xf32>
    %273 = arith.mulf %272, %271 : vector<16x16xf32>
    %cst_83 = arith.constant 5.000000e-01 : f32
    %274 = vector.broadcast %cst_83 : f32 to vector<16x16xf32>
    %275 = arith.addf %273, %274 : vector<16x16xf32>
    %276 = vector.extract_strided_slice %262 {offsets = [0, 16], sizes = [16, 16], strides = [1, 1]} : vector<16x48xf32> to vector<16x16xf32>
    %277 = vector.extract_strided_slice %265 {offsets = [0, 16], sizes = [16, 16], strides = [1, 1]} : vector<16x48xf32> to vector<16x16xf32>
    %278 = arith.addf %276, %277 : vector<16x16xf32>
    %cst_84 = arith.constant 5.000000e-01 : f32
    %279 = vector.broadcast %cst_84 : f32 to vector<16x16xf32>
    %280 = arith.mulf %279, %278 : vector<16x16xf32>
    %281 = math.tanh %280 : vector<16x16xf32>
    %cst_85 = arith.constant 5.000000e-01 : f32
    %282 = vector.broadcast %cst_85 : f32 to vector<16x16xf32>
    %283 = arith.mulf %282, %281 : vector<16x16xf32>
    %cst_86 = arith.constant 5.000000e-01 : f32
    %284 = vector.broadcast %cst_86 : f32 to vector<16x16xf32>
    %285 = arith.addf %283, %284 : vector<16x16xf32>
    %286 = vector.extract_strided_slice %262 {offsets = [0, 32], sizes = [16, 16], strides = [1, 1]} : vector<16x48xf32> to vector<16x16xf32>
    %287 = vector.extract_strided_slice %265 {offsets = [0, 32], sizes = [16, 16], strides = [1, 1]} : vector<16x48xf32> to vector<16x16xf32>
    %288 = arith.mulf %275, %287 : vector<16x16xf32>
    %289 = arith.addf %286, %288 : vector<16x16xf32>
    %290 = math.tanh %289 : vector<16x16xf32>
    %cst_87 = arith.constant 1.000000e+00 : f32
    %291 = vector.broadcast %cst_87 : f32 to vector<16x16xf32>
    %292 = arith.subf %291, %285 : vector<16x16xf32>
    %293 = arith.mulf %292, %290 : vector<16x16xf32>
    %294 = arith.mulf %285, %223 : vector<16x16xf32>
    %295 = arith.addf %293, %294 : vector<16x16xf32>
    %c4_i32 = arith.constant 4 : i32
    %296 = arith.index_cast %c4_i32 : i32 to index
    %c0_88 = arith.constant 0 : index
    %c0_89 = arith.constant 0 : index
    %297 = vector.load %arg1[%296, %c0_88, %c0_89] : memref<8x16x48xf32, #tpu.memory_space<vmem>>, vector<1x16x48xf32>
    %298 = vector.shape_cast %297 : vector<1x16x48xf32> to vector<16x48xf32>
    %cst_90 = arith.constant dense<0.000000e+00> : vector<16x48xf32>
    %299 = tpu.matmul %259, %0, %cst_90 {dimension_numbers = #tpu.dot_dimension_numbers<[1], [0], [0], [1], [0, 0, 1, 1], [], []>} : vector<16x16xf32>, vector<16x48xf32>, vector<16x48xf32> -> vector<16x48xf32>
    %300 = vector.broadcast %1 : vector<1x48xf32> to vector<16x48xf32>
    %301 = arith.addf %299, %300 : vector<16x48xf32>
    %302 = vector.extract_strided_slice %298 {offsets = [0, 0], sizes = [16, 16], strides = [1, 1]} : vector<16x48xf32> to vector<16x16xf32>
    %303 = vector.extract_strided_slice %301 {offsets = [0, 0], sizes = [16, 16], strides = [1, 1]} : vector<16x48xf32> to vector<16x16xf32>
    %304 = arith.addf %302, %303 : vector<16x16xf32>
    %cst_91 = arith.constant 5.000000e-01 : f32
    %305 = vector.broadcast %cst_91 : f32 to vector<16x16xf32>
    %306 = arith.mulf %305, %304 : vector<16x16xf32>
    %307 = math.tanh %306 : vector<16x16xf32>
    %cst_92 = arith.constant 5.000000e-01 : f32
    %308 = vector.broadcast %cst_92 : f32 to vector<16x16xf32>
    %309 = arith.mulf %308, %307 : vector<16x16xf32>
    %cst_93 = arith.constant 5.000000e-01 : f32
    %310 = vector.broadcast %cst_93 : f32 to vector<16x16xf32>
    %311 = arith.addf %309, %310 : vector<16x16xf32>
    %312 = vector.extract_strided_slice %298 {offsets = [0, 16], sizes = [16, 16], strides = [1, 1]} : vector<16x48xf32> to vector<16x16xf32>
    %313 = vector.extract_strided_slice %301 {offsets = [0, 16], sizes = [16, 16], strides = [1, 1]} : vector<16x48xf32> to vector<16x16xf32>
    %314 = arith.addf %312, %313 : vector<16x16xf32>
    %cst_94 = arith.constant 5.000000e-01 : f32
    %315 = vector.broadcast %cst_94 : f32 to vector<16x16xf32>
    %316 = arith.mulf %315, %314 : vector<16x16xf32>
    %317 = math.tanh %316 : vector<16x16xf32>
    %cst_95 = arith.constant 5.000000e-01 : f32
    %318 = vector.broadcast %cst_95 : f32 to vector<16x16xf32>
    %319 = arith.mulf %318, %317 : vector<16x16xf32>
    %cst_96 = arith.constant 5.000000e-01 : f32
    %320 = vector.broadcast %cst_96 : f32 to vector<16x16xf32>
    %321 = arith.addf %319, %320 : vector<16x16xf32>
    %322 = vector.extract_strided_slice %298 {offsets = [0, 32], sizes = [16, 16], strides = [1, 1]} : vector<16x48xf32> to vector<16x16xf32>
    %323 = vector.extract_strided_slice %301 {offsets = [0, 32], sizes = [16, 16], strides = [1, 1]} : vector<16x48xf32> to vector<16x16xf32>
    %324 = arith.mulf %311, %323 : vector<16x16xf32>
    %325 = arith.addf %322, %324 : vector<16x16xf32>
    %326 = math.tanh %325 : vector<16x16xf32>
    %cst_97 = arith.constant 1.000000e+00 : f32
    %327 = vector.broadcast %cst_97 : f32 to vector<16x16xf32>
    %328 = arith.subf %327, %321 : vector<16x16xf32>
    %329 = arith.mulf %328, %326 : vector<16x16xf32>
    %330 = arith.mulf %321, %259 : vector<16x16xf32>
    %331 = arith.addf %329, %330 : vector<16x16xf32>
    %cst_98 = arith.constant dense<0.000000e+00> : vector<16x48xf32>
    %332 = tpu.matmul %331, %2, %cst_98 {dimension_numbers = #tpu.dot_dimension_numbers<[1], [0], [0], [1], [0, 0, 1, 1], [], []>} : vector<16x16xf32>, vector<16x48xf32>, vector<16x48xf32> -> vector<16x48xf32>
    %333 = vector.broadcast %3 : vector<1x48xf32> to vector<16x48xf32>
    %334 = arith.addf %332, %333 : vector<16x48xf32>
    %cst_99 = arith.constant dense<0.000000e+00> : vector<16x48xf32>
    %335 = tpu.matmul %295, %4, %cst_99 {dimension_numbers = #tpu.dot_dimension_numbers<[1], [0], [0], [1], [0, 0, 1, 1], [], []>} : vector<16x16xf32>, vector<16x48xf32>, vector<16x48xf32> -> vector<16x48xf32>
    %336 = vector.broadcast %5 : vector<1x48xf32> to vector<16x48xf32>
    %337 = arith.addf %335, %336 : vector<16x48xf32>
    %338 = vector.extract_strided_slice %334 {offsets = [0, 0], sizes = [16, 16], strides = [1, 1]} : vector<16x48xf32> to vector<16x16xf32>
    %339 = vector.extract_strided_slice %337 {offsets = [0, 0], sizes = [16, 16], strides = [1, 1]} : vector<16x48xf32> to vector<16x16xf32>
    %340 = arith.addf %338, %339 : vector<16x16xf32>
    %cst_100 = arith.constant 5.000000e-01 : f32
    %341 = vector.broadcast %cst_100 : f32 to vector<16x16xf32>
    %342 = arith.mulf %341, %340 : vector<16x16xf32>
    %343 = math.tanh %342 : vector<16x16xf32>
    %cst_101 = arith.constant 5.000000e-01 : f32
    %344 = vector.broadcast %cst_101 : f32 to vector<16x16xf32>
    %345 = arith.mulf %344, %343 : vector<16x16xf32>
    %cst_102 = arith.constant 5.000000e-01 : f32
    %346 = vector.broadcast %cst_102 : f32 to vector<16x16xf32>
    %347 = arith.addf %345, %346 : vector<16x16xf32>
    %348 = vector.extract_strided_slice %334 {offsets = [0, 16], sizes = [16, 16], strides = [1, 1]} : vector<16x48xf32> to vector<16x16xf32>
    %349 = vector.extract_strided_slice %337 {offsets = [0, 16], sizes = [16, 16], strides = [1, 1]} : vector<16x48xf32> to vector<16x16xf32>
    %350 = arith.addf %348, %349 : vector<16x16xf32>
    %cst_103 = arith.constant 5.000000e-01 : f32
    %351 = vector.broadcast %cst_103 : f32 to vector<16x16xf32>
    %352 = arith.mulf %351, %350 : vector<16x16xf32>
    %353 = math.tanh %352 : vector<16x16xf32>
    %cst_104 = arith.constant 5.000000e-01 : f32
    %354 = vector.broadcast %cst_104 : f32 to vector<16x16xf32>
    %355 = arith.mulf %354, %353 : vector<16x16xf32>
    %cst_105 = arith.constant 5.000000e-01 : f32
    %356 = vector.broadcast %cst_105 : f32 to vector<16x16xf32>
    %357 = arith.addf %355, %356 : vector<16x16xf32>
    %358 = vector.extract_strided_slice %334 {offsets = [0, 32], sizes = [16, 16], strides = [1, 1]} : vector<16x48xf32> to vector<16x16xf32>
    %359 = vector.extract_strided_slice %337 {offsets = [0, 32], sizes = [16, 16], strides = [1, 1]} : vector<16x48xf32> to vector<16x16xf32>
    %360 = arith.mulf %347, %359 : vector<16x16xf32>
    %361 = arith.addf %358, %360 : vector<16x16xf32>
    %362 = math.tanh %361 : vector<16x16xf32>
    %cst_106 = arith.constant 1.000000e+00 : f32
    %363 = vector.broadcast %cst_106 : f32 to vector<16x16xf32>
    %364 = arith.subf %363, %357 : vector<16x16xf32>
    %365 = arith.mulf %364, %362 : vector<16x16xf32>
    %366 = arith.mulf %357, %295 : vector<16x16xf32>
    %367 = arith.addf %365, %366 : vector<16x16xf32>
    %c5_i32 = arith.constant 5 : i32
    %368 = arith.index_cast %c5_i32 : i32 to index
    %c0_107 = arith.constant 0 : index
    %c0_108 = arith.constant 0 : index
    %369 = vector.load %arg1[%368, %c0_107, %c0_108] : memref<8x16x48xf32, #tpu.memory_space<vmem>>, vector<1x16x48xf32>
    %370 = vector.shape_cast %369 : vector<1x16x48xf32> to vector<16x48xf32>
    %cst_109 = arith.constant dense<0.000000e+00> : vector<16x48xf32>
    %371 = tpu.matmul %331, %0, %cst_109 {dimension_numbers = #tpu.dot_dimension_numbers<[1], [0], [0], [1], [0, 0, 1, 1], [], []>} : vector<16x16xf32>, vector<16x48xf32>, vector<16x48xf32> -> vector<16x48xf32>
    %372 = vector.broadcast %1 : vector<1x48xf32> to vector<16x48xf32>
    %373 = arith.addf %371, %372 : vector<16x48xf32>
    %374 = vector.extract_strided_slice %370 {offsets = [0, 0], sizes = [16, 16], strides = [1, 1]} : vector<16x48xf32> to vector<16x16xf32>
    %375 = vector.extract_strided_slice %373 {offsets = [0, 0], sizes = [16, 16], strides = [1, 1]} : vector<16x48xf32> to vector<16x16xf32>
    %376 = arith.addf %374, %375 : vector<16x16xf32>
    %cst_110 = arith.constant 5.000000e-01 : f32
    %377 = vector.broadcast %cst_110 : f32 to vector<16x16xf32>
    %378 = arith.mulf %377, %376 : vector<16x16xf32>
    %379 = math.tanh %378 : vector<16x16xf32>
    %cst_111 = arith.constant 5.000000e-01 : f32
    %380 = vector.broadcast %cst_111 : f32 to vector<16x16xf32>
    %381 = arith.mulf %380, %379 : vector<16x16xf32>
    %cst_112 = arith.constant 5.000000e-01 : f32
    %382 = vector.broadcast %cst_112 : f32 to vector<16x16xf32>
    %383 = arith.addf %381, %382 : vector<16x16xf32>
    %384 = vector.extract_strided_slice %370 {offsets = [0, 16], sizes = [16, 16], strides = [1, 1]} : vector<16x48xf32> to vector<16x16xf32>
    %385 = vector.extract_strided_slice %373 {offsets = [0, 16], sizes = [16, 16], strides = [1, 1]} : vector<16x48xf32> to vector<16x16xf32>
    %386 = arith.addf %384, %385 : vector<16x16xf32>
    %cst_113 = arith.constant 5.000000e-01 : f32
    %387 = vector.broadcast %cst_113 : f32 to vector<16x16xf32>
    %388 = arith.mulf %387, %386 : vector<16x16xf32>
    %389 = math.tanh %388 : vector<16x16xf32>
    %cst_114 = arith.constant 5.000000e-01 : f32
    %390 = vector.broadcast %cst_114 : f32 to vector<16x16xf32>
    %391 = arith.mulf %390, %389 : vector<16x16xf32>
    %cst_115 = arith.constant 5.000000e-01 : f32
    %392 = vector.broadcast %cst_115 : f32 to vector<16x16xf32>
    %393 = arith.addf %391, %392 : vector<16x16xf32>
    %394 = vector.extract_strided_slice %370 {offsets = [0, 32], sizes = [16, 16], strides = [1, 1]} : vector<16x48xf32> to vector<16x16xf32>
    %395 = vector.extract_strided_slice %373 {offsets = [0, 32], sizes = [16, 16], strides = [1, 1]} : vector<16x48xf32> to vector<16x16xf32>
    %396 = arith.mulf %383, %395 : vector<16x16xf32>
    %397 = arith.addf %394, %396 : vector<16x16xf32>
    %398 = math.tanh %397 : vector<16x16xf32>
    %cst_116 = arith.constant 1.000000e+00 : f32
    %399 = vector.broadcast %cst_116 : f32 to vector<16x16xf32>
    %400 = arith.subf %399, %393 : vector<16x16xf32>
    %401 = arith.mulf %400, %398 : vector<16x16xf32>
    %402 = arith.mulf %393, %331 : vector<16x16xf32>
    %403 = arith.addf %401, %402 : vector<16x16xf32>
    %cst_117 = arith.constant dense<0.000000e+00> : vector<16x48xf32>
    %404 = tpu.matmul %403, %2, %cst_117 {dimension_numbers = #tpu.dot_dimension_numbers<[1], [0], [0], [1], [0, 0, 1, 1], [], []>} : vector<16x16xf32>, vector<16x48xf32>, vector<16x48xf32> -> vector<16x48xf32>
    %405 = vector.broadcast %3 : vector<1x48xf32> to vector<16x48xf32>
    %406 = arith.addf %404, %405 : vector<16x48xf32>
    %cst_118 = arith.constant dense<0.000000e+00> : vector<16x48xf32>
    %407 = tpu.matmul %367, %4, %cst_118 {dimension_numbers = #tpu.dot_dimension_numbers<[1], [0], [0], [1], [0, 0, 1, 1], [], []>} : vector<16x16xf32>, vector<16x48xf32>, vector<16x48xf32> -> vector<16x48xf32>
    %408 = vector.broadcast %5 : vector<1x48xf32> to vector<16x48xf32>
    %409 = arith.addf %407, %408 : vector<16x48xf32>
    %410 = vector.extract_strided_slice %406 {offsets = [0, 0], sizes = [16, 16], strides = [1, 1]} : vector<16x48xf32> to vector<16x16xf32>
    %411 = vector.extract_strided_slice %409 {offsets = [0, 0], sizes = [16, 16], strides = [1, 1]} : vector<16x48xf32> to vector<16x16xf32>
    %412 = arith.addf %410, %411 : vector<16x16xf32>
    %cst_119 = arith.constant 5.000000e-01 : f32
    %413 = vector.broadcast %cst_119 : f32 to vector<16x16xf32>
    %414 = arith.mulf %413, %412 : vector<16x16xf32>
    %415 = math.tanh %414 : vector<16x16xf32>
    %cst_120 = arith.constant 5.000000e-01 : f32
    %416 = vector.broadcast %cst_120 : f32 to vector<16x16xf32>
    %417 = arith.mulf %416, %415 : vector<16x16xf32>
    %cst_121 = arith.constant 5.000000e-01 : f32
    %418 = vector.broadcast %cst_121 : f32 to vector<16x16xf32>
    %419 = arith.addf %417, %418 : vector<16x16xf32>
    %420 = vector.extract_strided_slice %406 {offsets = [0, 16], sizes = [16, 16], strides = [1, 1]} : vector<16x48xf32> to vector<16x16xf32>
    %421 = vector.extract_strided_slice %409 {offsets = [0, 16], sizes = [16, 16], strides = [1, 1]} : vector<16x48xf32> to vector<16x16xf32>
    %422 = arith.addf %420, %421 : vector<16x16xf32>
    %cst_122 = arith.constant 5.000000e-01 : f32
    %423 = vector.broadcast %cst_122 : f32 to vector<16x16xf32>
    %424 = arith.mulf %423, %422 : vector<16x16xf32>
    %425 = math.tanh %424 : vector<16x16xf32>
    %cst_123 = arith.constant 5.000000e-01 : f32
    %426 = vector.broadcast %cst_123 : f32 to vector<16x16xf32>
    %427 = arith.mulf %426, %425 : vector<16x16xf32>
    %cst_124 = arith.constant 5.000000e-01 : f32
    %428 = vector.broadcast %cst_124 : f32 to vector<16x16xf32>
    %429 = arith.addf %427, %428 : vector<16x16xf32>
    %430 = vector.extract_strided_slice %406 {offsets = [0, 32], sizes = [16, 16], strides = [1, 1]} : vector<16x48xf32> to vector<16x16xf32>
    %431 = vector.extract_strided_slice %409 {offsets = [0, 32], sizes = [16, 16], strides = [1, 1]} : vector<16x48xf32> to vector<16x16xf32>
    %432 = arith.mulf %419, %431 : vector<16x16xf32>
    %433 = arith.addf %430, %432 : vector<16x16xf32>
    %434 = math.tanh %433 : vector<16x16xf32>
    %cst_125 = arith.constant 1.000000e+00 : f32
    %435 = vector.broadcast %cst_125 : f32 to vector<16x16xf32>
    %436 = arith.subf %435, %429 : vector<16x16xf32>
    %437 = arith.mulf %436, %434 : vector<16x16xf32>
    %438 = arith.mulf %429, %367 : vector<16x16xf32>
    %439 = arith.addf %437, %438 : vector<16x16xf32>
    %c6_i32 = arith.constant 6 : i32
    %440 = arith.index_cast %c6_i32 : i32 to index
    %c0_126 = arith.constant 0 : index
    %c0_127 = arith.constant 0 : index
    %441 = vector.load %arg1[%440, %c0_126, %c0_127] : memref<8x16x48xf32, #tpu.memory_space<vmem>>, vector<1x16x48xf32>
    %442 = vector.shape_cast %441 : vector<1x16x48xf32> to vector<16x48xf32>
    %cst_128 = arith.constant dense<0.000000e+00> : vector<16x48xf32>
    %443 = tpu.matmul %403, %0, %cst_128 {dimension_numbers = #tpu.dot_dimension_numbers<[1], [0], [0], [1], [0, 0, 1, 1], [], []>} : vector<16x16xf32>, vector<16x48xf32>, vector<16x48xf32> -> vector<16x48xf32>
    %444 = vector.broadcast %1 : vector<1x48xf32> to vector<16x48xf32>
    %445 = arith.addf %443, %444 : vector<16x48xf32>
    %446 = vector.extract_strided_slice %442 {offsets = [0, 0], sizes = [16, 16], strides = [1, 1]} : vector<16x48xf32> to vector<16x16xf32>
    %447 = vector.extract_strided_slice %445 {offsets = [0, 0], sizes = [16, 16], strides = [1, 1]} : vector<16x48xf32> to vector<16x16xf32>
    %448 = arith.addf %446, %447 : vector<16x16xf32>
    %cst_129 = arith.constant 5.000000e-01 : f32
    %449 = vector.broadcast %cst_129 : f32 to vector<16x16xf32>
    %450 = arith.mulf %449, %448 : vector<16x16xf32>
    %451 = math.tanh %450 : vector<16x16xf32>
    %cst_130 = arith.constant 5.000000e-01 : f32
    %452 = vector.broadcast %cst_130 : f32 to vector<16x16xf32>
    %453 = arith.mulf %452, %451 : vector<16x16xf32>
    %cst_131 = arith.constant 5.000000e-01 : f32
    %454 = vector.broadcast %cst_131 : f32 to vector<16x16xf32>
    %455 = arith.addf %453, %454 : vector<16x16xf32>
    %456 = vector.extract_strided_slice %442 {offsets = [0, 16], sizes = [16, 16], strides = [1, 1]} : vector<16x48xf32> to vector<16x16xf32>
    %457 = vector.extract_strided_slice %445 {offsets = [0, 16], sizes = [16, 16], strides = [1, 1]} : vector<16x48xf32> to vector<16x16xf32>
    %458 = arith.addf %456, %457 : vector<16x16xf32>
    %cst_132 = arith.constant 5.000000e-01 : f32
    %459 = vector.broadcast %cst_132 : f32 to vector<16x16xf32>
    %460 = arith.mulf %459, %458 : vector<16x16xf32>
    %461 = math.tanh %460 : vector<16x16xf32>
    %cst_133 = arith.constant 5.000000e-01 : f32
    %462 = vector.broadcast %cst_133 : f32 to vector<16x16xf32>
    %463 = arith.mulf %462, %461 : vector<16x16xf32>
    %cst_134 = arith.constant 5.000000e-01 : f32
    %464 = vector.broadcast %cst_134 : f32 to vector<16x16xf32>
    %465 = arith.addf %463, %464 : vector<16x16xf32>
    %466 = vector.extract_strided_slice %442 {offsets = [0, 32], sizes = [16, 16], strides = [1, 1]} : vector<16x48xf32> to vector<16x16xf32>
    %467 = vector.extract_strided_slice %445 {offsets = [0, 32], sizes = [16, 16], strides = [1, 1]} : vector<16x48xf32> to vector<16x16xf32>
    %468 = arith.mulf %455, %467 : vector<16x16xf32>
    %469 = arith.addf %466, %468 : vector<16x16xf32>
    %470 = math.tanh %469 : vector<16x16xf32>
    %cst_135 = arith.constant 1.000000e+00 : f32
    %471 = vector.broadcast %cst_135 : f32 to vector<16x16xf32>
    %472 = arith.subf %471, %465 : vector<16x16xf32>
    %473 = arith.mulf %472, %470 : vector<16x16xf32>
    %474 = arith.mulf %465, %403 : vector<16x16xf32>
    %475 = arith.addf %473, %474 : vector<16x16xf32>
    %cst_136 = arith.constant dense<0.000000e+00> : vector<16x48xf32>
    %476 = tpu.matmul %475, %2, %cst_136 {dimension_numbers = #tpu.dot_dimension_numbers<[1], [0], [0], [1], [0, 0, 1, 1], [], []>} : vector<16x16xf32>, vector<16x48xf32>, vector<16x48xf32> -> vector<16x48xf32>
    %477 = vector.broadcast %3 : vector<1x48xf32> to vector<16x48xf32>
    %478 = arith.addf %476, %477 : vector<16x48xf32>
    %cst_137 = arith.constant dense<0.000000e+00> : vector<16x48xf32>
    %479 = tpu.matmul %439, %4, %cst_137 {dimension_numbers = #tpu.dot_dimension_numbers<[1], [0], [0], [1], [0, 0, 1, 1], [], []>} : vector<16x16xf32>, vector<16x48xf32>, vector<16x48xf32> -> vector<16x48xf32>
    %480 = vector.broadcast %5 : vector<1x48xf32> to vector<16x48xf32>
    %481 = arith.addf %479, %480 : vector<16x48xf32>
    %482 = vector.extract_strided_slice %478 {offsets = [0, 0], sizes = [16, 16], strides = [1, 1]} : vector<16x48xf32> to vector<16x16xf32>
    %483 = vector.extract_strided_slice %481 {offsets = [0, 0], sizes = [16, 16], strides = [1, 1]} : vector<16x48xf32> to vector<16x16xf32>
    %484 = arith.addf %482, %483 : vector<16x16xf32>
    %cst_138 = arith.constant 5.000000e-01 : f32
    %485 = vector.broadcast %cst_138 : f32 to vector<16x16xf32>
    %486 = arith.mulf %485, %484 : vector<16x16xf32>
    %487 = math.tanh %486 : vector<16x16xf32>
    %cst_139 = arith.constant 5.000000e-01 : f32
    %488 = vector.broadcast %cst_139 : f32 to vector<16x16xf32>
    %489 = arith.mulf %488, %487 : vector<16x16xf32>
    %cst_140 = arith.constant 5.000000e-01 : f32
    %490 = vector.broadcast %cst_140 : f32 to vector<16x16xf32>
    %491 = arith.addf %489, %490 : vector<16x16xf32>
    %492 = vector.extract_strided_slice %478 {offsets = [0, 16], sizes = [16, 16], strides = [1, 1]} : vector<16x48xf32> to vector<16x16xf32>
    %493 = vector.extract_strided_slice %481 {offsets = [0, 16], sizes = [16, 16], strides = [1, 1]} : vector<16x48xf32> to vector<16x16xf32>
    %494 = arith.addf %492, %493 : vector<16x16xf32>
    %cst_141 = arith.constant 5.000000e-01 : f32
    %495 = vector.broadcast %cst_141 : f32 to vector<16x16xf32>
    %496 = arith.mulf %495, %494 : vector<16x16xf32>
    %497 = math.tanh %496 : vector<16x16xf32>
    %cst_142 = arith.constant 5.000000e-01 : f32
    %498 = vector.broadcast %cst_142 : f32 to vector<16x16xf32>
    %499 = arith.mulf %498, %497 : vector<16x16xf32>
    %cst_143 = arith.constant 5.000000e-01 : f32
    %500 = vector.broadcast %cst_143 : f32 to vector<16x16xf32>
    %501 = arith.addf %499, %500 : vector<16x16xf32>
    %502 = vector.extract_strided_slice %478 {offsets = [0, 32], sizes = [16, 16], strides = [1, 1]} : vector<16x48xf32> to vector<16x16xf32>
    %503 = vector.extract_strided_slice %481 {offsets = [0, 32], sizes = [16, 16], strides = [1, 1]} : vector<16x48xf32> to vector<16x16xf32>
    %504 = arith.mulf %491, %503 : vector<16x16xf32>
    %505 = arith.addf %502, %504 : vector<16x16xf32>
    %506 = math.tanh %505 : vector<16x16xf32>
    %cst_144 = arith.constant 1.000000e+00 : f32
    %507 = vector.broadcast %cst_144 : f32 to vector<16x16xf32>
    %508 = arith.subf %507, %501 : vector<16x16xf32>
    %509 = arith.mulf %508, %506 : vector<16x16xf32>
    %510 = arith.mulf %501, %439 : vector<16x16xf32>
    %511 = arith.addf %509, %510 : vector<16x16xf32>
    %c7_i32 = arith.constant 7 : i32
    %512 = arith.index_cast %c7_i32 : i32 to index
    %c0_145 = arith.constant 0 : index
    %c0_146 = arith.constant 0 : index
    %513 = vector.load %arg1[%512, %c0_145, %c0_146] : memref<8x16x48xf32, #tpu.memory_space<vmem>>, vector<1x16x48xf32>
    %514 = vector.shape_cast %513 : vector<1x16x48xf32> to vector<16x48xf32>
    %cst_147 = arith.constant dense<0.000000e+00> : vector<16x48xf32>
    %515 = tpu.matmul %475, %0, %cst_147 {dimension_numbers = #tpu.dot_dimension_numbers<[1], [0], [0], [1], [0, 0, 1, 1], [], []>} : vector<16x16xf32>, vector<16x48xf32>, vector<16x48xf32> -> vector<16x48xf32>
    %516 = vector.broadcast %1 : vector<1x48xf32> to vector<16x48xf32>
    %517 = arith.addf %515, %516 : vector<16x48xf32>
    %518 = vector.extract_strided_slice %514 {offsets = [0, 0], sizes = [16, 16], strides = [1, 1]} : vector<16x48xf32> to vector<16x16xf32>
    %519 = vector.extract_strided_slice %517 {offsets = [0, 0], sizes = [16, 16], strides = [1, 1]} : vector<16x48xf32> to vector<16x16xf32>
    %520 = arith.addf %518, %519 : vector<16x16xf32>
    %cst_148 = arith.constant 5.000000e-01 : f32
    %521 = vector.broadcast %cst_148 : f32 to vector<16x16xf32>
    %522 = arith.mulf %521, %520 : vector<16x16xf32>
    %523 = math.tanh %522 : vector<16x16xf32>
    %cst_149 = arith.constant 5.000000e-01 : f32
    %524 = vector.broadcast %cst_149 : f32 to vector<16x16xf32>
    %525 = arith.mulf %524, %523 : vector<16x16xf32>
    %cst_150 = arith.constant 5.000000e-01 : f32
    %526 = vector.broadcast %cst_150 : f32 to vector<16x16xf32>
    %527 = arith.addf %525, %526 : vector<16x16xf32>
    %528 = vector.extract_strided_slice %514 {offsets = [0, 16], sizes = [16, 16], strides = [1, 1]} : vector<16x48xf32> to vector<16x16xf32>
    %529 = vector.extract_strided_slice %517 {offsets = [0, 16], sizes = [16, 16], strides = [1, 1]} : vector<16x48xf32> to vector<16x16xf32>
    %530 = arith.addf %528, %529 : vector<16x16xf32>
    %cst_151 = arith.constant 5.000000e-01 : f32
    %531 = vector.broadcast %cst_151 : f32 to vector<16x16xf32>
    %532 = arith.mulf %531, %530 : vector<16x16xf32>
    %533 = math.tanh %532 : vector<16x16xf32>
    %cst_152 = arith.constant 5.000000e-01 : f32
    %534 = vector.broadcast %cst_152 : f32 to vector<16x16xf32>
    %535 = arith.mulf %534, %533 : vector<16x16xf32>
    %cst_153 = arith.constant 5.000000e-01 : f32
    %536 = vector.broadcast %cst_153 : f32 to vector<16x16xf32>
    %537 = arith.addf %535, %536 : vector<16x16xf32>
    %538 = vector.extract_strided_slice %514 {offsets = [0, 32], sizes = [16, 16], strides = [1, 1]} : vector<16x48xf32> to vector<16x16xf32>
    %539 = vector.extract_strided_slice %517 {offsets = [0, 32], sizes = [16, 16], strides = [1, 1]} : vector<16x48xf32> to vector<16x16xf32>
    %540 = arith.mulf %527, %539 : vector<16x16xf32>
    %541 = arith.addf %538, %540 : vector<16x16xf32>
    %542 = math.tanh %541 : vector<16x16xf32>
    %cst_154 = arith.constant 1.000000e+00 : f32
    %543 = vector.broadcast %cst_154 : f32 to vector<16x16xf32>
    %544 = arith.subf %543, %537 : vector<16x16xf32>
    %545 = arith.mulf %544, %542 : vector<16x16xf32>
    %546 = arith.mulf %537, %475 : vector<16x16xf32>
    %547 = arith.addf %545, %546 : vector<16x16xf32>
    %cst_155 = arith.constant dense<0.000000e+00> : vector<16x48xf32>
    %548 = tpu.matmul %547, %2, %cst_155 {dimension_numbers = #tpu.dot_dimension_numbers<[1], [0], [0], [1], [0, 0, 1, 1], [], []>} : vector<16x16xf32>, vector<16x48xf32>, vector<16x48xf32> -> vector<16x48xf32>
    %549 = vector.broadcast %3 : vector<1x48xf32> to vector<16x48xf32>
    %550 = arith.addf %548, %549 : vector<16x48xf32>
    %cst_156 = arith.constant dense<0.000000e+00> : vector<16x48xf32>
    %551 = tpu.matmul %511, %4, %cst_156 {dimension_numbers = #tpu.dot_dimension_numbers<[1], [0], [0], [1], [0, 0, 1, 1], [], []>} : vector<16x16xf32>, vector<16x48xf32>, vector<16x48xf32> -> vector<16x48xf32>
    %552 = vector.broadcast %5 : vector<1x48xf32> to vector<16x48xf32>
    %553 = arith.addf %551, %552 : vector<16x48xf32>
    %554 = vector.extract_strided_slice %550 {offsets = [0, 0], sizes = [16, 16], strides = [1, 1]} : vector<16x48xf32> to vector<16x16xf32>
    %555 = vector.extract_strided_slice %553 {offsets = [0, 0], sizes = [16, 16], strides = [1, 1]} : vector<16x48xf32> to vector<16x16xf32>
    %556 = arith.addf %554, %555 : vector<16x16xf32>
    %cst_157 = arith.constant 5.000000e-01 : f32
    %557 = vector.broadcast %cst_157 : f32 to vector<16x16xf32>
    %558 = arith.mulf %557, %556 : vector<16x16xf32>
    %559 = math.tanh %558 : vector<16x16xf32>
    %cst_158 = arith.constant 5.000000e-01 : f32
    %560 = vector.broadcast %cst_158 : f32 to vector<16x16xf32>
    %561 = arith.mulf %560, %559 : vector<16x16xf32>
    %cst_159 = arith.constant 5.000000e-01 : f32
    %562 = vector.broadcast %cst_159 : f32 to vector<16x16xf32>
    %563 = arith.addf %561, %562 : vector<16x16xf32>
    %564 = vector.extract_strided_slice %550 {offsets = [0, 16], sizes = [16, 16], strides = [1, 1]} : vector<16x48xf32> to vector<16x16xf32>
    %565 = vector.extract_strided_slice %553 {offsets = [0, 16], sizes = [16, 16], strides = [1, 1]} : vector<16x48xf32> to vector<16x16xf32>
    %566 = arith.addf %564, %565 : vector<16x16xf32>
    %cst_160 = arith.constant 5.000000e-01 : f32
    %567 = vector.broadcast %cst_160 : f32 to vector<16x16xf32>
    %568 = arith.mulf %567, %566 : vector<16x16xf32>
    %569 = math.tanh %568 : vector<16x16xf32>
    %cst_161 = arith.constant 5.000000e-01 : f32
    %570 = vector.broadcast %cst_161 : f32 to vector<16x16xf32>
    %571 = arith.mulf %570, %569 : vector<16x16xf32>
    %cst_162 = arith.constant 5.000000e-01 : f32
    %572 = vector.broadcast %cst_162 : f32 to vector<16x16xf32>
    %573 = arith.addf %571, %572 : vector<16x16xf32>
    %574 = vector.extract_strided_slice %550 {offsets = [0, 32], sizes = [16, 16], strides = [1, 1]} : vector<16x48xf32> to vector<16x16xf32>
    %575 = vector.extract_strided_slice %553 {offsets = [0, 32], sizes = [16, 16], strides = [1, 1]} : vector<16x48xf32> to vector<16x16xf32>
    %576 = arith.mulf %563, %575 : vector<16x16xf32>
    %577 = arith.addf %574, %576 : vector<16x16xf32>
    %578 = math.tanh %577 : vector<16x16xf32>
    %cst_163 = arith.constant 1.000000e+00 : f32
    %579 = vector.broadcast %cst_163 : f32 to vector<16x16xf32>
    %580 = arith.subf %579, %573 : vector<16x16xf32>
    %581 = arith.mulf %580, %578 : vector<16x16xf32>
    %582 = arith.mulf %573, %511 : vector<16x16xf32>
    %583 = arith.addf %581, %582 : vector<16x16xf32>
    %c8_i32 = arith.constant 8 : i32
    %c0_164 = arith.constant 0 : index
    %c0_165 = arith.constant 0 : index
    %584 = vector.load %arg8[%c0_164, %c0_165] : memref<16x16xf32, #tpu.memory_space<vmem>>, vector<16x16xf32>
    tpu.vector_store %arg8[%c0_164, %c0_165], %583 {strides = array<i32>} : memref<16x16xf32, #tpu.memory_space<vmem>>, vector<16x16xf32>,
    return
  }
  func.func @transform_0(%arg0: i32) -> (i32, i32, i32) {
    %c0_i32 = arith.constant 0 : i32
    %c0_i32_0 = arith.constant 0 : i32
    %c0_i32_1 = arith.constant 0 : i32
    return %c0_i32, %arg0, %c0_i32_0 : i32, i32, i32
  }
  func.func @transform_1(%arg0: i32) -> (i32, i32) {
    %c0_i32 = arith.constant 0 : i32
    %c0_i32_0 = arith.constant 0 : i32
    %c0_i32_1 = arith.constant 0 : i32
    return %c0_i32, %c0_i32_0 : i32, i32
  }
  func.func @transform_2(%arg0: i32) -> (i32, i32) {
    %c0_i32 = arith.constant 0 : i32
    %c0_i32_0 = arith.constant 0 : i32
    %c0_i32_1 = arith.constant 0 : i32
    return %c0_i32, %c0_i32_0 : i32, i32
  }
  func.func @transform_3(%arg0: i32) -> (i32, i32) {
    %c0_i32 = arith.constant 0 : i32
    %c0_i32_0 = arith.constant 0 : i32
    %c0_i32_1 = arith.constant 0 : i32
    return %c0_i32, %c0_i32_0 : i32, i32
  }
  func.func @transform_4(%arg0: i32) -> (i32, i32) {
    %c0_i32 = arith.constant 0 : i32
    %c0_i32_0 = arith.constant 0 : i32
    %c0_i32_1 = arith.constant 0 : i32
    return %c0_i32, %c0_i32_0 : i32, i32
  }
  func.func @transform_5(%arg0: i32) -> (i32, i32) {
    %c0_i32 = arith.constant 0 : i32
    %c0_i32_0 = arith.constant 0 : i32
    %c0_i32_1 = arith.constant 0 : i32
    return %c0_i32, %c0_i32_0 : i32, i32
  }
  func.func @transform_6(%arg0: i32) -> (i32, i32) {
    %c0_i32 = arith.constant 0 : i32
    %c0_i32_0 = arith.constant 0 : i32
    %c0_i32_1 = arith.constant 0 : i32
    return %c0_i32, %c0_i32_0 : i32, i32
  }
  func.func @transform_7(%arg0: i32) -> (i32, i32) {
    %c0_i32 = arith.constant 0 : i32
    %c0_i32_0 = arith.constant 0 : i32
    return %arg0, %c0_i32 : i32, i32
  }
}

module attributes {stable_mosaic.version = 11 : i64} {
  func.func @kernel(%arg0: i32, %arg1: memref<1x16x8xf32, #tpu.memory_space<vmem>>, %arg2: memref<1x8x16xf32, #tpu.memory_space<vmem>>, %arg3: memref<8x16xf32, #tpu.memory_space<vmem>>, %arg4: memref<1x16xf32, #tpu.memory_space<vmem>>, %arg5: memref<16x16xf32, #tpu.memory_space<vmem>>, %arg6: memref<1x16xf32, #tpu.memory_space<vmem>>, %arg7: memref<16x16xf32, #tpu.memory_space<vmem>>, %arg8: memref<1x16xf32, #tpu.memory_space<vmem>>, %arg9: memref<16x8xf32, #tpu.memory_space<vmem>>, %arg10: memref<1x8xf32, #tpu.memory_space<vmem>>, %arg11: memref<8x1xf32, #tpu.memory_space<vmem>>, %arg12: memref<1x1xf32, #tpu.memory_space<vmem>>, %arg13: memref<1x16x1xf32, #tpu.memory_space<vmem>>) attributes {dimension_semantics = [#tpu.dimension_semantics<parallel>], iteration_bounds = array<i64: 2>, scalar_prefetch = 0 : i64, scratch_operands = 0 : i64, tpu.core_type = #tpu.core_type<tc>, window_params = [{transform_indices = @transform_0, window_bounds = array<i64: 1, 16, 8>}, {transform_indices = @transform_1, window_bounds = array<i64: 1, 8, 16>}, {pipeline_mode = #tpu.pipeline_mode<synchronous>, transform_indices = @transform_2, window_bounds = array<i64: 8, 16>}, {pipeline_mode = #tpu.pipeline_mode<synchronous>, transform_indices = @transform_3, window_bounds = array<i64: 1, 16>}, {pipeline_mode = #tpu.pipeline_mode<synchronous>, transform_indices = @transform_4, window_bounds = array<i64: 16, 16>}, {pipeline_mode = #tpu.pipeline_mode<synchronous>, transform_indices = @transform_5, window_bounds = array<i64: 1, 16>}, {pipeline_mode = #tpu.pipeline_mode<synchronous>, transform_indices = @transform_6, window_bounds = array<i64: 16, 16>}, {pipeline_mode = #tpu.pipeline_mode<synchronous>, transform_indices = @transform_7, window_bounds = array<i64: 1, 16>}, {pipeline_mode = #tpu.pipeline_mode<synchronous>, transform_indices = @transform_8, window_bounds = array<i64: 16, 8>}, {pipeline_mode = #tpu.pipeline_mode<synchronous>, transform_indices = @transform_9, window_bounds = array<i64: 1, 8>}, {pipeline_mode = #tpu.pipeline_mode<synchronous>, transform_indices = @transform_10, window_bounds = array<i64: 8, 1>}, {pipeline_mode = #tpu.pipeline_mode<synchronous>, transform_indices = @transform_11, window_bounds = array<i64: 1, 1>}, {transform_indices = @transform_12, window_bounds = array<i64: 1, 16, 1>}]} {
    %c0 = arith.constant 0 : index
    %c0_0 = arith.constant 0 : index
    %c0_1 = arith.constant 0 : index
    %0 = vector.load %arg1[%c0, %c0_0, %c0_1] : memref<1x16x8xf32, #tpu.memory_space<vmem>>, vector<1x16x8xf32>
    %1 = vector.shape_cast %0 : vector<1x16x8xf32> to vector<16x8xf32>
    %c0_2 = arith.constant 0 : index
    %c0_3 = arith.constant 0 : index
    %c0_4 = arith.constant 0 : index
    %2 = vector.load %arg2[%c0_2, %c0_3, %c0_4] : memref<1x8x16xf32, #tpu.memory_space<vmem>>, vector<1x8x16xf32>
    %3 = vector.shape_cast %2 : vector<1x8x16xf32> to vector<8x16xf32>
    %cst = arith.constant dense<0.000000e+00> : vector<16x16xf32>
    %4 = tpu.matmul %3, %3, %cst {dimension_numbers = #tpu.dot_dimension_numbers<[0], [0], [1], [1], [0, 1, 1, 1], [], []>} : vector<8x16xf32>, vector<8x16xf32>, vector<16x16xf32> -> vector<16x16xf32>
    %cst_5 = arith.constant 0.000000e+00 : f32
    %5 = vector.broadcast %cst_5 : f32 to vector<16x16xf32>
    %6 = arith.maximumf %4, %5 : vector<16x16xf32>
    %cst_6 = arith.constant dense<0xFF800000> : vector<16xf32>
    %7 = vector.multi_reduction <maximumf>, %6, %cst_6 [1] : vector<16x16xf32> to vector<16xf32>
    %8 = vector.shape_cast %7 : vector<16xf32> to vector<16x1xf32>
    %9 = vector.broadcast %8 : vector<16x1xf32> to vector<16x16xf32>
    %10 = arith.subf %6, %9 : vector<16x16xf32>
    %11 = math.exp %10 : vector<16x16xf32>
    %cst_7 = arith.constant dense<0.000000e+00> : vector<16xf32>
    %12 = vector.multi_reduction <add>, %11, %cst_7 [1] : vector<16x16xf32> to vector<16xf32>
    %13 = vector.shape_cast %12 : vector<16xf32> to vector<16x1xf32>
    %14 = vector.broadcast %13 : vector<16x1xf32> to vector<16x16xf32>
    %15 = arith.divf %11, %14 : vector<16x16xf32>
    %c0_8 = arith.constant 0 : index
    %c0_9 = arith.constant 0 : index
    %16 = vector.load %arg3[%c0_8, %c0_9] : memref<8x16xf32, #tpu.memory_space<vmem>>, vector<8x16xf32>
    %cst_10 = arith.constant dense<0.000000e+00> : vector<16x16xf32>
    %17 = tpu.matmul %1, %16, %cst_10 {dimension_numbers = #tpu.dot_dimension_numbers<[1], [0], [0], [1], [0, 0, 1, 1], [], []>} : vector<16x8xf32>, vector<8x16xf32>, vector<16x16xf32> -> vector<16x16xf32>
    %cst_11 = arith.constant dense<0.000000e+00> : vector<16x16xf32>
    %18 = tpu.matmul %15, %17, %cst_11 {dimension_numbers = #tpu.dot_dimension_numbers<[1], [0], [0], [1], [0, 0, 1, 1], [], []>} : vector<16x16xf32>, vector<16x16xf32>, vector<16x16xf32> -> vector<16x16xf32>
    %19 = arith.addf %17, %18 : vector<16x16xf32>
    %c0_12 = arith.constant 0 : index
    %c0_13 = arith.constant 0 : index
    %20 = vector.load %arg4[%c0_12, %c0_13] : memref<1x16xf32, #tpu.memory_space<vmem>>, vector<1x16xf32>
    %21 = vector.broadcast %20 : vector<1x16xf32> to vector<16x16xf32>
    %22 = arith.addf %19, %21 : vector<16x16xf32>
    %cst_14 = arith.constant 0.000000e+00 : f32
    %23 = vector.broadcast %cst_14 : f32 to vector<16x16xf32>
    %24 = arith.maximumf %22, %23 : vector<16x16xf32>
    %c0_15 = arith.constant 0 : index
    %c0_16 = arith.constant 0 : index
    %25 = vector.load %arg5[%c0_15, %c0_16] : memref<16x16xf32, #tpu.memory_space<vmem>>, vector<16x16xf32>
    %cst_17 = arith.constant dense<0.000000e+00> : vector<16x16xf32>
    %26 = tpu.matmul %24, %25, %cst_17 {dimension_numbers = #tpu.dot_dimension_numbers<[1], [0], [0], [1], [0, 0, 1, 1], [], []>} : vector<16x16xf32>, vector<16x16xf32>, vector<16x16xf32> -> vector<16x16xf32>
    %cst_18 = arith.constant dense<0.000000e+00> : vector<16x16xf32>
    %27 = tpu.matmul %15, %26, %cst_18 {dimension_numbers = #tpu.dot_dimension_numbers<[1], [0], [0], [1], [0, 0, 1, 1], [], []>} : vector<16x16xf32>, vector<16x16xf32>, vector<16x16xf32> -> vector<16x16xf32>
    %28 = arith.subf %26, %27 : vector<16x16xf32>
    %c0_19 = arith.constant 0 : index
    %c0_20 = arith.constant 0 : index
    %29 = vector.load %arg6[%c0_19, %c0_20] : memref<1x16xf32, #tpu.memory_space<vmem>>, vector<1x16xf32>
    %30 = vector.broadcast %29 : vector<1x16xf32> to vector<16x16xf32>
    %31 = arith.addf %28, %30 : vector<16x16xf32>
    %c0_21 = arith.constant 0 : index
    %c0_22 = arith.constant 0 : index
    %32 = vector.load %arg7[%c0_21, %c0_22] : memref<16x16xf32, #tpu.memory_space<vmem>>, vector<16x16xf32>
    %cst_23 = arith.constant dense<0.000000e+00> : vector<16x16xf32>
    %33 = tpu.matmul %31, %32, %cst_23 {dimension_numbers = #tpu.dot_dimension_numbers<[1], [0], [0], [1], [0, 0, 1, 1], [], []>} : vector<16x16xf32>, vector<16x16xf32>, vector<16x16xf32> -> vector<16x16xf32>
    %c0_24 = arith.constant 0 : index
    %c0_25 = arith.constant 0 : index
    %34 = vector.load %arg8[%c0_24, %c0_25] : memref<1x16xf32, #tpu.memory_space<vmem>>, vector<1x16xf32>
    %35 = vector.broadcast %34 : vector<1x16xf32> to vector<16x16xf32>
    %36 = arith.addf %33, %35 : vector<16x16xf32>
    %cst_26 = arith.constant 0.000000e+00 : f32
    %37 = vector.broadcast %cst_26 : f32 to vector<16x16xf32>
    %38 = arith.maximumf %36, %37 : vector<16x16xf32>
    %c0_27 = arith.constant 0 : index
    %c0_28 = arith.constant 0 : index
    %39 = vector.load %arg9[%c0_27, %c0_28] : memref<16x8xf32, #tpu.memory_space<vmem>>, vector<16x8xf32>
    %cst_29 = arith.constant dense<0.000000e+00> : vector<16x8xf32>
    %40 = tpu.matmul %38, %39, %cst_29 {dimension_numbers = #tpu.dot_dimension_numbers<[1], [0], [0], [1], [0, 0, 1, 1], [], []>} : vector<16x16xf32>, vector<16x8xf32>, vector<16x8xf32> -> vector<16x8xf32>
    %c0_30 = arith.constant 0 : index
    %c0_31 = arith.constant 0 : index
    %41 = vector.load %arg10[%c0_30, %c0_31] : memref<1x8xf32, #tpu.memory_space<vmem>>, vector<1x8xf32>
    %42 = vector.broadcast %41 : vector<1x8xf32> to vector<16x8xf32>
    %43 = arith.addf %40, %42 : vector<16x8xf32>
    %cst_32 = arith.constant 0.000000e+00 : f32
    %44 = vector.broadcast %cst_32 : f32 to vector<16x8xf32>
    %45 = arith.maximumf %43, %44 : vector<16x8xf32>
    %c0_33 = arith.constant 0 : index
    %c0_34 = arith.constant 0 : index
    %46 = vector.load %arg11[%c0_33, %c0_34] : memref<8x1xf32, #tpu.memory_space<vmem>>, vector<8x1xf32>
    %cst_35 = arith.constant dense<0.000000e+00> : vector<16x1xf32>
    %47 = tpu.matmul %45, %46, %cst_35 {dimension_numbers = #tpu.dot_dimension_numbers<[1], [0], [0], [1], [0, 0, 1, 1], [], []>} : vector<16x8xf32>, vector<8x1xf32>, vector<16x1xf32> -> vector<16x1xf32>
    %c0_36 = arith.constant 0 : index
    %c0_37 = arith.constant 0 : index
    %48 = vector.load %arg12[%c0_36, %c0_37] : memref<1x1xf32, #tpu.memory_space<vmem>>, vector<1x1xf32>
    %49 = vector.broadcast %48 : vector<1x1xf32> to vector<16x1xf32>
    %50 = arith.addf %47, %49 : vector<16x1xf32>
    %c0_38 = arith.constant 0 : index
    %c0_39 = arith.constant 0 : index
    %c0_40 = arith.constant 0 : index
    %51 = vector.load %arg13[%c0_38, %c0_39, %c0_40] : memref<1x16x1xf32, #tpu.memory_space<vmem>>, vector<1x16x1xf32>
    %52 = vector.shape_cast %51 : vector<1x16x1xf32> to vector<16x1xf32>
    %53 = vector.shape_cast %50 : vector<16x1xf32> to vector<1x16x1xf32>
    tpu.vector_store %arg13[%c0_38, %c0_39, %c0_40], %53 {strides = array<i32>} : memref<1x16x1xf32, #tpu.memory_space<vmem>>, vector<1x16x1xf32>,
    return
  }
  func.func @transform_0(%arg0: i32) -> (i32, i32, i32) {
    %c0_i32 = arith.constant 0 : i32
    %c0_i32_0 = arith.constant 0 : i32
    %c0_i32_1 = arith.constant 0 : i32
    return %arg0, %c0_i32, %c0_i32_0 : i32, i32, i32
  }
  func.func @transform_1(%arg0: i32) -> (i32, i32, i32) {
    %c0_i32 = arith.constant 0 : i32
    %c0_i32_0 = arith.constant 0 : i32
    %c0_i32_1 = arith.constant 0 : i32
    return %arg0, %c0_i32, %c0_i32_0 : i32, i32, i32
  }
  func.func @transform_2(%arg0: i32) -> (i32, i32) {
    %c0_i32 = arith.constant 0 : i32
    %c0_i32_0 = arith.constant 0 : i32
    %c0_i32_1 = arith.constant 0 : i32
    return %c0_i32, %c0_i32_0 : i32, i32
  }
  func.func @transform_3(%arg0: i32) -> (i32, i32) {
    %c0_i32 = arith.constant 0 : i32
    %c0_i32_0 = arith.constant 0 : i32
    %c0_i32_1 = arith.constant 0 : i32
    return %c0_i32, %c0_i32_0 : i32, i32
  }
  func.func @transform_4(%arg0: i32) -> (i32, i32) {
    %c0_i32 = arith.constant 0 : i32
    %c0_i32_0 = arith.constant 0 : i32
    %c0_i32_1 = arith.constant 0 : i32
    return %c0_i32, %c0_i32_0 : i32, i32
  }
  func.func @transform_5(%arg0: i32) -> (i32, i32) {
    %c0_i32 = arith.constant 0 : i32
    %c0_i32_0 = arith.constant 0 : i32
    %c0_i32_1 = arith.constant 0 : i32
    return %c0_i32, %c0_i32_0 : i32, i32
  }
  func.func @transform_6(%arg0: i32) -> (i32, i32) {
    %c0_i32 = arith.constant 0 : i32
    %c0_i32_0 = arith.constant 0 : i32
    %c0_i32_1 = arith.constant 0 : i32
    return %c0_i32, %c0_i32_0 : i32, i32
  }
  func.func @transform_7(%arg0: i32) -> (i32, i32) {
    %c0_i32 = arith.constant 0 : i32
    %c0_i32_0 = arith.constant 0 : i32
    %c0_i32_1 = arith.constant 0 : i32
    return %c0_i32, %c0_i32_0 : i32, i32
  }
  func.func @transform_8(%arg0: i32) -> (i32, i32) {
    %c0_i32 = arith.constant 0 : i32
    %c0_i32_0 = arith.constant 0 : i32
    %c0_i32_1 = arith.constant 0 : i32
    return %c0_i32, %c0_i32_0 : i32, i32
  }
  func.func @transform_9(%arg0: i32) -> (i32, i32) {
    %c0_i32 = arith.constant 0 : i32
    %c0_i32_0 = arith.constant 0 : i32
    %c0_i32_1 = arith.constant 0 : i32
    return %c0_i32, %c0_i32_0 : i32, i32
  }
  func.func @transform_10(%arg0: i32) -> (i32, i32) {
    %c0_i32 = arith.constant 0 : i32
    %c0_i32_0 = arith.constant 0 : i32
    %c0_i32_1 = arith.constant 0 : i32
    return %c0_i32, %c0_i32_0 : i32, i32
  }
  func.func @transform_11(%arg0: i32) -> (i32, i32) {
    %c0_i32 = arith.constant 0 : i32
    %c0_i32_0 = arith.constant 0 : i32
    %c0_i32_1 = arith.constant 0 : i32
    return %c0_i32, %c0_i32_0 : i32, i32
  }
  func.func @transform_12(%arg0: i32) -> (i32, i32, i32) {
    %c0_i32 = arith.constant 0 : i32
    %c0_i32_0 = arith.constant 0 : i32
    %c0_i32_1 = arith.constant 0 : i32
    return %arg0, %c0_i32, %c0_i32_0 : i32, i32, i32
  }
}

module attributes {stable_mosaic.version = 11 : i64} {
  func.func @kernel(%arg0: i32, %arg1: i32, %arg2: memref<1x16x16xf32, #tpu.memory_space<vmem>>, %arg3: memref<1x16x16xf32, #tpu.memory_space<vmem>>, %arg4: memref<1x16x16xf32, #tpu.memory_space<vmem>>, %arg5: memref<16x16xf32, #tpu.memory_space<vmem>>, %arg6: memref<16x4xf32, #tpu.memory_space<vmem>>, %arg7: memref<16x4xf32, #tpu.memory_space<vmem>>, %arg8: memref<16x16xf32, #tpu.memory_space<vmem>>, %arg9: memref<1x16xf32, #tpu.memory_space<vmem>>, %arg10: memref<16x16xf32, #tpu.memory_space<vmem>>, %arg11: memref<1x16xf32, #tpu.memory_space<vmem>>, %arg12: memref<16x8xf32, #tpu.memory_space<vmem>>, %arg13: memref<1x8xf32, #tpu.memory_space<vmem>>, %arg14: memref<1x8xf32, #tpu.memory_space<vmem>>, %arg15: memref<1x8xf32, #tpu.memory_space<vmem>>, %arg16: memref<8x8xf32, #tpu.memory_space<vmem>>, %arg17: memref<1x8xf32, #tpu.memory_space<vmem>>, %arg18: memref<8x8xf32, #tpu.memory_space<vmem>>, %arg19: memref<1x8xf32, #tpu.memory_space<vmem>>, %arg20: memref<1x8x16xf32, #tpu.memory_space<vmem>>, %arg21: memref<1x4x16x16xf32, #tpu.memory_space<vmem>>) attributes {dimension_semantics = [#tpu.dimension_semantics<parallel>, #tpu.dimension_semantics<parallel>], iteration_bounds = array<i64: 2, 1>, scalar_prefetch = 0 : i64, scratch_operands = 0 : i64, tpu.core_type = #tpu.core_type<tc>, window_params = [{transform_indices = @transform_0, window_bounds = array<i64: 1, 16, 16>}, {transform_indices = @transform_1, window_bounds = array<i64: 1, 16, 16>}, {transform_indices = @transform_2, window_bounds = array<i64: 1, 16, 16>}, {pipeline_mode = #tpu.pipeline_mode<synchronous>, transform_indices = @transform_3, window_bounds = array<i64: 16, 16>}, {pipeline_mode = #tpu.pipeline_mode<synchronous>, transform_indices = @transform_4, window_bounds = array<i64: 16, 4>}, {pipeline_mode = #tpu.pipeline_mode<synchronous>, transform_indices = @transform_5, window_bounds = array<i64: 16, 4>}, {pipeline_mode = #tpu.pipeline_mode<synchronous>, transform_indices = @transform_6, window_bounds = array<i64: 16, 16>}, {pipeline_mode = #tpu.pipeline_mode<synchronous>, transform_indices = @transform_7, window_bounds = array<i64: 1, 16>}, {pipeline_mode = #tpu.pipeline_mode<synchronous>, transform_indices = @transform_8, window_bounds = array<i64: 16, 16>}, {pipeline_mode = #tpu.pipeline_mode<synchronous>, transform_indices = @transform_9, window_bounds = array<i64: 1, 16>}, {pipeline_mode = #tpu.pipeline_mode<synchronous>, transform_indices = @transform_10, window_bounds = array<i64: 16, 8>}, {pipeline_mode = #tpu.pipeline_mode<synchronous>, transform_indices = @transform_11, window_bounds = array<i64: 1, 8>}, {pipeline_mode = #tpu.pipeline_mode<synchronous>, transform_indices = @transform_12, window_bounds = array<i64: 1, 8>}, {pipeline_mode = #tpu.pipeline_mode<synchronous>, transform_indices = @transform_13, window_bounds = array<i64: 1, 8>}, {pipeline_mode = #tpu.pipeline_mode<synchronous>, transform_indices = @transform_14, window_bounds = array<i64: 8, 8>}, {pipeline_mode = #tpu.pipeline_mode<synchronous>, transform_indices = @transform_15, window_bounds = array<i64: 1, 8>}, {pipeline_mode = #tpu.pipeline_mode<synchronous>, transform_indices = @transform_16, window_bounds = array<i64: 8, 8>}, {pipeline_mode = #tpu.pipeline_mode<synchronous>, transform_indices = @transform_17, window_bounds = array<i64: 1, 8>}, {transform_indices = @transform_18, window_bounds = array<i64: 1, 8, 16>}, {transform_indices = @transform_19, window_bounds = array<i64: 1, 4, 16, 16>}]} {
    %c0 = arith.constant 0 : index
    %c0_0 = arith.constant 0 : index
    %c0_1 = arith.constant 0 : index
    %0 = vector.load %arg2[%c0, %c0_0, %c0_1] : memref<1x16x16xf32, #tpu.memory_space<vmem>>, vector<1x16x16xf32>
    %1 = vector.shape_cast %0 : vector<1x16x16xf32> to vector<16x16xf32>
    %c0_2 = arith.constant 0 : index
    %c0_3 = arith.constant 0 : index
    %c0_4 = arith.constant 0 : index
    %2 = vector.load %arg3[%c0_2, %c0_3, %c0_4] : memref<1x16x16xf32, #tpu.memory_space<vmem>>, vector<1x16x16xf32>
    %3 = vector.shape_cast %2 : vector<1x16x16xf32> to vector<16x16xf32>
    %c0_5 = arith.constant 0 : index
    %c0_6 = arith.constant 0 : index
    %c0_7 = arith.constant 0 : index
    %4 = vector.load %arg4[%c0_5, %c0_6, %c0_7] : memref<1x16x16xf32, #tpu.memory_space<vmem>>, vector<1x16x16xf32>
    %5 = vector.shape_cast %4 : vector<1x16x16xf32> to vector<16x16xf32>
    %c0_8 = arith.constant 0 : index
    %c0_9 = arith.constant 0 : index
    %6 = vector.load %arg5[%c0_8, %c0_9] : memref<16x16xf32, #tpu.memory_space<vmem>>, vector<16x16xf32>
    %cst = arith.constant dense<0.000000e+00> : vector<16x16xf32>
    %7 = tpu.matmul %1, %6, %cst {dimension_numbers = #tpu.dot_dimension_numbers<[1], [0], [0], [1], [0, 0, 1, 1], [], []>} : vector<16x16xf32>, vector<16x16xf32>, vector<16x16xf32> -> vector<16x16xf32>
    %cst_10 = arith.constant dense<0.000000e+00> : vector<16x16xf32>
    %8 = tpu.matmul %3, %6, %cst_10 {dimension_numbers = #tpu.dot_dimension_numbers<[1], [0], [0], [1], [0, 0, 1, 1], [], []>} : vector<16x16xf32>, vector<16x16xf32>, vector<16x16xf32> -> vector<16x16xf32>
    %c0_11 = arith.constant 0 : index
    %c0_12 = arith.constant 0 : index
    %9 = vector.load %arg6[%c0_11, %c0_12] : memref<16x4xf32, #tpu.memory_space<vmem>>, vector<16x4xf32>
    %cst_13 = arith.constant dense<0.000000e+00> : vector<16x4xf32>
    %10 = tpu.matmul %8, %9, %cst_13 {dimension_numbers = #tpu.dot_dimension_numbers<[1], [0], [0], [1], [0, 0, 1, 1], [], []>} : vector<16x16xf32>, vector<16x4xf32>, vector<16x4xf32> -> vector<16x4xf32>
    %c0_14 = arith.constant 0 : index
    %c0_15 = arith.constant 0 : index
    %11 = vector.load %arg7[%c0_14, %c0_15] : memref<16x4xf32, #tpu.memory_space<vmem>>, vector<16x4xf32>
    %cst_16 = arith.constant dense<0.000000e+00> : vector<16x4xf32>
    %12 = tpu.matmul %7, %11, %cst_16 {dimension_numbers = #tpu.dot_dimension_numbers<[1], [0], [0], [1], [0, 0, 1, 1], [], []>} : vector<16x16xf32>, vector<16x4xf32>, vector<16x4xf32> -> vector<16x4xf32>
    %13 = tpu.transpose %12, [1, 0] : vector<16x4xf32> -> vector<4x16xf32>
    %14 = vector.extract_strided_slice %10 {offsets = [0, 0], sizes = [16, 1], strides = [1, 1]} : vector<16x4xf32> to vector<16x1xf32>
    %15 = vector.extract_strided_slice %13 {offsets = [0, 0], sizes = [1, 16], strides = [1, 1]} : vector<4x16xf32> to vector<1x16xf32>
    %16 = vector.broadcast %14 : vector<16x1xf32> to vector<16x16xf32>
    %17 = vector.broadcast %15 : vector<1x16xf32> to vector<16x16xf32>
    %18 = arith.addf %16, %17 : vector<16x16xf32>
    %cst_17 = arith.constant 0.000000e+00 : f32
    %19 = vector.broadcast %cst_17 : f32 to vector<16x16xf32>
    %20 = arith.cmpf ogt, %18, %19 : vector<16x16xf32>
    %cst_18 = arith.constant 2.000000e-01 : f32
    %21 = vector.broadcast %cst_18 : f32 to vector<16x16xf32>
    %22 = arith.mulf %21, %18 : vector<16x16xf32>
    %23 = arith.select %20, %18, %22 : vector<16x16xi1>, vector<16x16xf32>
    %cst_19 = arith.constant 0.000000e+00 : f32
    %24 = vector.broadcast %cst_19 : f32 to vector<16x16xf32>
    %25 = arith.cmpf ogt, %5, %24 : vector<16x16xf32>
    %cst_20 = arith.constant -1.000000e+09 : f32
    %26 = vector.broadcast %cst_20 : f32 to vector<16x16xf32>
    %27 = arith.select %25, %23, %26 : vector<16x16xi1>, vector<16x16xf32>
    %cst_21 = arith.constant dense<0xFF800000> : vector<16xf32>
    %28 = vector.multi_reduction <maximumf>, %27, %cst_21 [1] : vector<16x16xf32> to vector<16xf32>
    %29 = vector.shape_cast %28 : vector<16xf32> to vector<16x1xf32>
    %30 = vector.broadcast %29 : vector<16x1xf32> to vector<16x16xf32>
    %31 = arith.subf %27, %30 : vector<16x16xf32>
    %32 = math.exp %31 : vector<16x16xf32>
    %cst_22 = arith.constant dense<0.000000e+00> : vector<16xf32>
    %33 = vector.multi_reduction <add>, %32, %cst_22 [1] : vector<16x16xf32> to vector<16xf32>
    %34 = vector.shape_cast %33 : vector<16xf32> to vector<16x1xf32>
    %35 = vector.broadcast %34 : vector<16x1xf32> to vector<16x16xf32>
    %36 = arith.divf %32, %35 : vector<16x16xf32>
    %c0_23 = arith.constant 0 : index
    %c0_24 = arith.constant 0 : index
    %c0_25 = arith.constant 0 : index
    %c0_26 = arith.constant 0 : index
    %37 = vector.load %arg21[%c0_23, %c0_24, %c0_25, %c0_26] : memref<1x4x16x16xf32, #tpu.memory_space<vmem>>, vector<1x1x16x16xf32>
    %38 = vector.shape_cast %37 : vector<1x1x16x16xf32> to vector<16x16xf32>
    %39 = vector.shape_cast %36 : vector<16x16xf32> to vector<1x1x16x16xf32>
    tpu.vector_store %arg21[%c0_23, %c0_24, %c0_25, %c0_26], %39 {strides = array<i32>} : memref<1x4x16x16xf32, #tpu.memory_space<vmem>>, vector<1x1x16x16xf32>,
    %40 = vector.extract_strided_slice %7 {offsets = [0, 0], sizes = [16, 4], strides = [1, 1]} : vector<16x16xf32> to vector<16x4xf32>
    %cst_27 = arith.constant dense<0.000000e+00> : vector<16x4xf32>
    %41 = tpu.matmul %36, %40, %cst_27 {dimension_numbers = #tpu.dot_dimension_numbers<[1], [0], [0], [1], [0, 0, 1, 1], [], []>} : vector<16x16xf32>, vector<16x4xf32>, vector<16x4xf32> -> vector<16x4xf32>
    %42 = vector.extract_strided_slice %10 {offsets = [0, 1], sizes = [16, 1], strides = [1, 1]} : vector<16x4xf32> to vector<16x1xf32>
    %43 = vector.extract_strided_slice %13 {offsets = [1, 0], sizes = [1, 16], strides = [1, 1]} : vector<4x16xf32> to vector<1x16xf32>
    %44 = vector.broadcast %42 : vector<16x1xf32> to vector<16x16xf32>
    %45 = vector.broadcast %43 : vector<1x16xf32> to vector<16x16xf32>
    %46 = arith.addf %44, %45 : vector<16x16xf32>
    %cst_28 = arith.constant 0.000000e+00 : f32
    %47 = vector.broadcast %cst_28 : f32 to vector<16x16xf32>
    %48 = arith.cmpf ogt, %46, %47 : vector<16x16xf32>
    %cst_29 = arith.constant 2.000000e-01 : f32
    %49 = vector.broadcast %cst_29 : f32 to vector<16x16xf32>
    %50 = arith.mulf %49, %46 : vector<16x16xf32>
    %51 = arith.select %48, %46, %50 : vector<16x16xi1>, vector<16x16xf32>
    %cst_30 = arith.constant 0.000000e+00 : f32
    %52 = vector.broadcast %cst_30 : f32 to vector<16x16xf32>
    %53 = arith.cmpf ogt, %5, %52 : vector<16x16xf32>
    %cst_31 = arith.constant -1.000000e+09 : f32
    %54 = vector.broadcast %cst_31 : f32 to vector<16x16xf32>
    %55 = arith.select %53, %51, %54 : vector<16x16xi1>, vector<16x16xf32>
    %cst_32 = arith.constant dense<0xFF800000> : vector<16xf32>
    %56 = vector.multi_reduction <maximumf>, %55, %cst_32 [1] : vector<16x16xf32> to vector<16xf32>
    %57 = vector.shape_cast %56 : vector<16xf32> to vector<16x1xf32>
    %58 = vector.broadcast %57 : vector<16x1xf32> to vector<16x16xf32>
    %59 = arith.subf %55, %58 : vector<16x16xf32>
    %60 = math.exp %59 : vector<16x16xf32>
    %cst_33 = arith.constant dense<0.000000e+00> : vector<16xf32>
    %61 = vector.multi_reduction <add>, %60, %cst_33 [1] : vector<16x16xf32> to vector<16xf32>
    %62 = vector.shape_cast %61 : vector<16xf32> to vector<16x1xf32>
    %63 = vector.broadcast %62 : vector<16x1xf32> to vector<16x16xf32>
    %64 = arith.divf %60, %63 : vector<16x16xf32>
    %c0_34 = arith.constant 0 : index
    %c1 = arith.constant 1 : index
    %c0_35 = arith.constant 0 : index
    %c0_36 = arith.constant 0 : index
    %65 = vector.load %arg21[%c0_34, %c1, %c0_35, %c0_36] : memref<1x4x16x16xf32, #tpu.memory_space<vmem>>, vector<1x1x16x16xf32>
    %66 = vector.shape_cast %65 : vector<1x1x16x16xf32> to vector<16x16xf32>
    %67 = vector.shape_cast %64 : vector<16x16xf32> to vector<1x1x16x16xf32>
    tpu.vector_store %arg21[%c0_34, %c1, %c0_35, %c0_36], %67 {strides = array<i32>} : memref<1x4x16x16xf32, #tpu.memory_space<vmem>>, vector<1x1x16x16xf32>,
    %68 = vector.extract_strided_slice %7 {offsets = [0, 4], sizes = [16, 4], strides = [1, 1]} : vector<16x16xf32> to vector<16x4xf32>
    %cst_37 = arith.constant dense<0.000000e+00> : vector<16x4xf32>
    %69 = tpu.matmul %64, %68, %cst_37 {dimension_numbers = #tpu.dot_dimension_numbers<[1], [0], [0], [1], [0, 0, 1, 1], [], []>} : vector<16x16xf32>, vector<16x4xf32>, vector<16x4xf32> -> vector<16x4xf32>
    %70 = vector.extract_strided_slice %10 {offsets = [0, 2], sizes = [16, 1], strides = [1, 1]} : vector<16x4xf32> to vector<16x1xf32>
    %71 = vector.extract_strided_slice %13 {offsets = [2, 0], sizes = [1, 16], strides = [1, 1]} : vector<4x16xf32> to vector<1x16xf32>
    %72 = vector.broadcast %70 : vector<16x1xf32> to vector<16x16xf32>
    %73 = vector.broadcast %71 : vector<1x16xf32> to vector<16x16xf32>
    %74 = arith.addf %72, %73 : vector<16x16xf32>
    %cst_38 = arith.constant 0.000000e+00 : f32
    %75 = vector.broadcast %cst_38 : f32 to vector<16x16xf32>
    %76 = arith.cmpf ogt, %74, %75 : vector<16x16xf32>
    %cst_39 = arith.constant 2.000000e-01 : f32
    %77 = vector.broadcast %cst_39 : f32 to vector<16x16xf32>
    %78 = arith.mulf %77, %74 : vector<16x16xf32>
    %79 = arith.select %76, %74, %78 : vector<16x16xi1>, vector<16x16xf32>
    %cst_40 = arith.constant 0.000000e+00 : f32
    %80 = vector.broadcast %cst_40 : f32 to vector<16x16xf32>
    %81 = arith.cmpf ogt, %5, %80 : vector<16x16xf32>
    %cst_41 = arith.constant -1.000000e+09 : f32
    %82 = vector.broadcast %cst_41 : f32 to vector<16x16xf32>
    %83 = arith.select %81, %79, %82 : vector<16x16xi1>, vector<16x16xf32>
    %cst_42 = arith.constant dense<0xFF800000> : vector<16xf32>
    %84 = vector.multi_reduction <maximumf>, %83, %cst_42 [1] : vector<16x16xf32> to vector<16xf32>
    %85 = vector.shape_cast %84 : vector<16xf32> to vector<16x1xf32>
    %86 = vector.broadcast %85 : vector<16x1xf32> to vector<16x16xf32>
    %87 = arith.subf %83, %86 : vector<16x16xf32>
    %88 = math.exp %87 : vector<16x16xf32>
    %cst_43 = arith.constant dense<0.000000e+00> : vector<16xf32>
    %89 = vector.multi_reduction <add>, %88, %cst_43 [1] : vector<16x16xf32> to vector<16xf32>
    %90 = vector.shape_cast %89 : vector<16xf32> to vector<16x1xf32>
    %91 = vector.broadcast %90 : vector<16x1xf32> to vector<16x16xf32>
    %92 = arith.divf %88, %91 : vector<16x16xf32>
    %c0_44 = arith.constant 0 : index
    %c2 = arith.constant 2 : index
    %c0_45 = arith.constant 0 : index
    %c0_46 = arith.constant 0 : index
    %93 = vector.load %arg21[%c0_44, %c2, %c0_45, %c0_46] : memref<1x4x16x16xf32, #tpu.memory_space<vmem>>, vector<1x1x16x16xf32>
    %94 = vector.shape_cast %93 : vector<1x1x16x16xf32> to vector<16x16xf32>
    %95 = vector.shape_cast %92 : vector<16x16xf32> to vector<1x1x16x16xf32>
    tpu.vector_store %arg21[%c0_44, %c2, %c0_45, %c0_46], %95 {strides = array<i32>} : memref<1x4x16x16xf32, #tpu.memory_space<vmem>>, vector<1x1x16x16xf32>,
    %96 = vector.extract_strided_slice %7 {offsets = [0, 8], sizes = [16, 4], strides = [1, 1]} : vector<16x16xf32> to vector<16x4xf32>
    %cst_47 = arith.constant dense<0.000000e+00> : vector<16x4xf32>
    %97 = tpu.matmul %92, %96, %cst_47 {dimension_numbers = #tpu.dot_dimension_numbers<[1], [0], [0], [1], [0, 0, 1, 1], [], []>} : vector<16x16xf32>, vector<16x4xf32>, vector<16x4xf32> -> vector<16x4xf32>
    %98 = vector.extract_strided_slice %10 {offsets = [0, 3], sizes = [16, 1], strides = [1, 1]} : vector<16x4xf32> to vector<16x1xf32>
    %99 = vector.extract_strided_slice %13 {offsets = [3, 0], sizes = [1, 16], strides = [1, 1]} : vector<4x16xf32> to vector<1x16xf32>
    %100 = vector.broadcast %98 : vector<16x1xf32> to vector<16x16xf32>
    %101 = vector.broadcast %99 : vector<1x16xf32> to vector<16x16xf32>
    %102 = arith.addf %100, %101 : vector<16x16xf32>
    %cst_48 = arith.constant 0.000000e+00 : f32
    %103 = vector.broadcast %cst_48 : f32 to vector<16x16xf32>
    %104 = arith.cmpf ogt, %102, %103 : vector<16x16xf32>
    %cst_49 = arith.constant 2.000000e-01 : f32
    %105 = vector.broadcast %cst_49 : f32 to vector<16x16xf32>
    %106 = arith.mulf %105, %102 : vector<16x16xf32>
    %107 = arith.select %104, %102, %106 : vector<16x16xi1>, vector<16x16xf32>
    %cst_50 = arith.constant 0.000000e+00 : f32
    %108 = vector.broadcast %cst_50 : f32 to vector<16x16xf32>
    %109 = arith.cmpf ogt, %5, %108 : vector<16x16xf32>
    %cst_51 = arith.constant -1.000000e+09 : f32
    %110 = vector.broadcast %cst_51 : f32 to vector<16x16xf32>
    %111 = arith.select %109, %107, %110 : vector<16x16xi1>, vector<16x16xf32>
    %cst_52 = arith.constant dense<0xFF800000> : vector<16xf32>
    %112 = vector.multi_reduction <maximumf>, %111, %cst_52 [1] : vector<16x16xf32> to vector<16xf32>
    %113 = vector.shape_cast %112 : vector<16xf32> to vector<16x1xf32>
    %114 = vector.broadcast %113 : vector<16x1xf32> to vector<16x16xf32>
    %115 = arith.subf %111, %114 : vector<16x16xf32>
    %116 = math.exp %115 : vector<16x16xf32>
    %cst_53 = arith.constant dense<0.000000e+00> : vector<16xf32>
    %117 = vector.multi_reduction <add>, %116, %cst_53 [1] : vector<16x16xf32> to vector<16xf32>
    %118 = vector.shape_cast %117 : vector<16xf32> to vector<16x1xf32>
    %119 = vector.broadcast %118 : vector<16x1xf32> to vector<16x16xf32>
    %120 = arith.divf %116, %119 : vector<16x16xf32>
    %c0_54 = arith.constant 0 : index
    %c3 = arith.constant 3 : index
    %c0_55 = arith.constant 0 : index
    %c0_56 = arith.constant 0 : index
    %121 = vector.load %arg21[%c0_54, %c3, %c0_55, %c0_56] : memref<1x4x16x16xf32, #tpu.memory_space<vmem>>, vector<1x1x16x16xf32>
    %122 = vector.shape_cast %121 : vector<1x1x16x16xf32> to vector<16x16xf32>
    %123 = vector.shape_cast %120 : vector<16x16xf32> to vector<1x1x16x16xf32>
    tpu.vector_store %arg21[%c0_54, %c3, %c0_55, %c0_56], %123 {strides = array<i32>} : memref<1x4x16x16xf32, #tpu.memory_space<vmem>>, vector<1x1x16x16xf32>,
    %124 = vector.extract_strided_slice %7 {offsets = [0, 12], sizes = [16, 4], strides = [1, 1]} : vector<16x16xf32> to vector<16x4xf32>
    %cst_57 = arith.constant dense<0.000000e+00> : vector<16x4xf32>
    %125 = tpu.matmul %120, %124, %cst_57 {dimension_numbers = #tpu.dot_dimension_numbers<[1], [0], [0], [1], [0, 0, 1, 1], [], []>} : vector<16x16xf32>, vector<16x4xf32>, vector<16x4xf32> -> vector<16x4xf32>
    %126 = tpu.concatenate %41, %69, %97, %125 in 1 : vector<16x4xf32>, vector<16x4xf32>, vector<16x4xf32>, vector<16x4xf32> -> vector<16x16xf32>
    %c0_58 = arith.constant 0 : index
    %c0_59 = arith.constant 0 : index
    %127 = vector.load %arg8[%c0_58, %c0_59] : memref<16x16xf32, #tpu.memory_space<vmem>>, vector<16x16xf32>
    %cst_60 = arith.constant dense<0.000000e+00> : vector<16x16xf32>
    %128 = tpu.matmul %126, %127, %cst_60 {dimension_numbers = #tpu.dot_dimension_numbers<[1], [0], [0], [1], [0, 0, 1, 1], [], []>} : vector<16x16xf32>, vector<16x16xf32>, vector<16x16xf32> -> vector<16x16xf32>
    %c0_61 = arith.constant 0 : index
    %c0_62 = arith.constant 0 : index
    %129 = vector.load %arg9[%c0_61, %c0_62] : memref<1x16xf32, #tpu.memory_space<vmem>>, vector<1x16xf32>
    %130 = vector.broadcast %129 : vector<1x16xf32> to vector<16x16xf32>
    %131 = arith.addf %128, %130 : vector<16x16xf32>
    %cst_63 = arith.constant 0.000000e+00 : f32
    %132 = vector.broadcast %cst_63 : f32 to vector<16x16xf32>
    %133 = arith.maximumf %131, %132 : vector<16x16xf32>
    %c0_64 = arith.constant 0 : index
    %c0_65 = arith.constant 0 : index
    %134 = vector.load %arg10[%c0_64, %c0_65] : memref<16x16xf32, #tpu.memory_space<vmem>>, vector<16x16xf32>
    %cst_66 = arith.constant dense<0.000000e+00> : vector<16x16xf32>
    %135 = tpu.matmul %133, %134, %cst_66 {dimension_numbers = #tpu.dot_dimension_numbers<[1], [0], [0], [1], [0, 0, 1, 1], [], []>} : vector<16x16xf32>, vector<16x16xf32>, vector<16x16xf32> -> vector<16x16xf32>
    %c0_67 = arith.constant 0 : index
    %c0_68 = arith.constant 0 : index
    %136 = vector.load %arg11[%c0_67, %c0_68] : memref<1x16xf32, #tpu.memory_space<vmem>>, vector<1x16xf32>
    %137 = vector.broadcast %136 : vector<1x16xf32> to vector<16x16xf32>
    %138 = arith.addf %135, %137 : vector<16x16xf32>
    %139 = arith.addf %138, %126 : vector<16x16xf32>
    %cst_69 = arith.constant 0.000000e+00 : f32
    %140 = vector.broadcast %cst_69 : f32 to vector<16x16xf32>
    %141 = arith.maximumf %139, %140 : vector<16x16xf32>
    %c0_70 = arith.constant 0 : index
    %c0_71 = arith.constant 0 : index
    %142 = vector.load %arg12[%c0_70, %c0_71] : memref<16x8xf32, #tpu.memory_space<vmem>>, vector<16x8xf32>
    %cst_72 = arith.constant dense<0.000000e+00> : vector<16x8xf32>
    %143 = tpu.matmul %141, %142, %cst_72 {dimension_numbers = #tpu.dot_dimension_numbers<[1], [0], [0], [1], [0, 0, 1, 1], [], []>} : vector<16x16xf32>, vector<16x8xf32>, vector<16x8xf32> -> vector<16x8xf32>
    %c0_73 = arith.constant 0 : index
    %c0_74 = arith.constant 0 : index
    %144 = vector.load %arg13[%c0_73, %c0_74] : memref<1x8xf32, #tpu.memory_space<vmem>>, vector<1x8xf32>
    %145 = vector.broadcast %144 : vector<1x8xf32> to vector<16x8xf32>
    %146 = arith.addf %143, %145 : vector<16x8xf32>
    %cst_75 = arith.constant dense<0.000000e+00> : vector<16xf32>
    %147 = vector.multi_reduction <add>, %146, %cst_75 [1] : vector<16x8xf32> to vector<16xf32>
    %148 = vector.shape_cast %147 : vector<16xf32> to vector<16x1xf32>
    %cst_76 = arith.constant 8.000000e+00 : f32
    %149 = vector.broadcast %cst_76 : f32 to vector<16x1xf32>
    %150 = arith.divf %148, %149 : vector<16x1xf32>
    %151 = vector.broadcast %150 : vector<16x1xf32> to vector<16x8xf32>
    %152 = arith.subf %146, %151 : vector<16x8xf32>
    %153 = vector.broadcast %150 : vector<16x1xf32> to vector<16x8xf32>
    %154 = arith.subf %146, %153 : vector<16x8xf32>
    %155 = arith.mulf %152, %154 : vector<16x8xf32>
    %cst_77 = arith.constant dense<0.000000e+00> : vector<16xf32>
    %156 = vector.multi_reduction <add>, %155, %cst_77 [1] : vector<16x8xf32> to vector<16xf32>
    %157 = vector.shape_cast %156 : vector<16xf32> to vector<16x1xf32>
    %cst_78 = arith.constant 8.000000e+00 : f32
    %158 = vector.broadcast %cst_78 : f32 to vector<16x1xf32>
    %159 = arith.divf %157, %158 : vector<16x1xf32>
    %160 = vector.broadcast %150 : vector<16x1xf32> to vector<16x8xf32>
    %161 = arith.subf %146, %160 : vector<16x8xf32>
    %cst_79 = arith.constant 9.99999974E-6 : f32
    %162 = vector.broadcast %cst_79 : f32 to vector<16x1xf32>
    %163 = arith.addf %159, %162 : vector<16x1xf32>
    %164 = math.rsqrt %163 : vector<16x1xf32>
    %165 = vector.broadcast %164 : vector<16x1xf32> to vector<16x8xf32>
    %166 = arith.mulf %161, %165 : vector<16x8xf32>
    %c0_80 = arith.constant 0 : index
    %c0_81 = arith.constant 0 : index
    %167 = vector.load %arg14[%c0_80, %c0_81] : memref<1x8xf32, #tpu.memory_space<vmem>>, vector<1x8xf32>
    %168 = vector.broadcast %167 : vector<1x8xf32> to vector<16x8xf32>
    %169 = arith.mulf %166, %168 : vector<16x8xf32>
    %c0_82 = arith.constant 0 : index
    %c0_83 = arith.constant 0 : index
    %170 = vector.load %arg15[%c0_82, %c0_83] : memref<1x8xf32, #tpu.memory_space<vmem>>, vector<1x8xf32>
    %171 = vector.broadcast %170 : vector<1x8xf32> to vector<16x8xf32>
    %172 = arith.addf %169, %171 : vector<16x8xf32>
    %173 = math.tanh %172 : vector<16x8xf32>
    %c0_84 = arith.constant 0 : index
    %c0_85 = arith.constant 0 : index
    %174 = vector.load %arg16[%c0_84, %c0_85] : memref<8x8xf32, #tpu.memory_space<vmem>>, vector<8x8xf32>
    %cst_86 = arith.constant dense<0.000000e+00> : vector<16x8xf32>
    %175 = tpu.matmul %173, %174, %cst_86 {dimension_numbers = #tpu.dot_dimension_numbers<[1], [0], [0], [1], [0, 0, 1, 1], [], []>} : vector<16x8xf32>, vector<8x8xf32>, vector<16x8xf32> -> vector<16x8xf32>
    %c0_87 = arith.constant 0 : index
    %c0_88 = arith.constant 0 : index
    %176 = vector.load %arg17[%c0_87, %c0_88] : memref<1x8xf32, #tpu.memory_space<vmem>>, vector<1x8xf32>
    %177 = vector.broadcast %176 : vector<1x8xf32> to vector<16x8xf32>
    %178 = arith.addf %175, %177 : vector<16x8xf32>
    %cst_89 = arith.constant 0.000000e+00 : f32
    %179 = vector.broadcast %cst_89 : f32 to vector<16x8xf32>
    %180 = arith.maximumf %178, %179 : vector<16x8xf32>
    %c0_90 = arith.constant 0 : index
    %c0_91 = arith.constant 0 : index
    %181 = vector.load %arg18[%c0_90, %c0_91] : memref<8x8xf32, #tpu.memory_space<vmem>>, vector<8x8xf32>
    %cst_92 = arith.constant dense<0.000000e+00> : vector<16x8xf32>
    %182 = tpu.matmul %180, %181, %cst_92 {dimension_numbers = #tpu.dot_dimension_numbers<[1], [0], [0], [1], [0, 0, 1, 1], [], []>} : vector<16x8xf32>, vector<8x8xf32>, vector<16x8xf32> -> vector<16x8xf32>
    %c0_93 = arith.constant 0 : index
    %c0_94 = arith.constant 0 : index
    %183 = vector.load %arg19[%c0_93, %c0_94] : memref<1x8xf32, #tpu.memory_space<vmem>>, vector<1x8xf32>
    %184 = vector.broadcast %183 : vector<1x8xf32> to vector<16x8xf32>
    %185 = arith.addf %182, %184 : vector<16x8xf32>
    %186 = tpu.transpose %185, [1, 0] : vector<16x8xf32> -> vector<8x16xf32>
    %c0_95 = arith.constant 0 : index
    %c0_96 = arith.constant 0 : index
    %c0_97 = arith.constant 0 : index
    %187 = vector.load %arg20[%c0_95, %c0_96, %c0_97] : memref<1x8x16xf32, #tpu.memory_space<vmem>>, vector<1x8x16xf32>
    %188 = vector.shape_cast %187 : vector<1x8x16xf32> to vector<8x16xf32>
    %189 = vector.shape_cast %186 : vector<8x16xf32> to vector<1x8x16xf32>
    tpu.vector_store %arg20[%c0_95, %c0_96, %c0_97], %189 {strides = array<i32>} : memref<1x8x16xf32, #tpu.memory_space<vmem>>, vector<1x8x16xf32>,
    return
  }
  func.func @transform_0(%arg0: i32, %arg1: i32) -> (i32, i32, i32) {
    %c0_i32 = arith.constant 0 : i32
    %c0_i32_0 = arith.constant 0 : i32
    %c0_i32_1 = arith.constant 0 : i32
    return %arg0, %c0_i32, %c0_i32_0 : i32, i32, i32
  }
  func.func @transform_1(%arg0: i32, %arg1: i32) -> (i32, i32, i32) {
    %c0_i32 = arith.constant 0 : i32
    %c0_i32_0 = arith.constant 0 : i32
    return %arg0, %arg1, %c0_i32 : i32, i32, i32
  }
  func.func @transform_2(%arg0: i32, %arg1: i32) -> (i32, i32, i32) {
    %c0_i32 = arith.constant 0 : i32
    %c0_i32_0 = arith.constant 0 : i32
    return %arg0, %arg1, %c0_i32 : i32, i32, i32
  }
  func.func @transform_3(%arg0: i32, %arg1: i32) -> (i32, i32) {
    %c0_i32 = arith.constant 0 : i32
    %c0_i32_0 = arith.constant 0 : i32
    %c0_i32_1 = arith.constant 0 : i32
    return %c0_i32, %c0_i32_0 : i32, i32
  }
  func.func @transform_4(%arg0: i32, %arg1: i32) -> (i32, i32) {
    %c0_i32 = arith.constant 0 : i32
    %c0_i32_0 = arith.constant 0 : i32
    %c0_i32_1 = arith.constant 0 : i32
    return %c0_i32, %c0_i32_0 : i32, i32
  }
  func.func @transform_5(%arg0: i32, %arg1: i32) -> (i32, i32) {
    %c0_i32 = arith.constant 0 : i32
    %c0_i32_0 = arith.constant 0 : i32
    %c0_i32_1 = arith.constant 0 : i32
    return %c0_i32, %c0_i32_0 : i32, i32
  }
  func.func @transform_6(%arg0: i32, %arg1: i32) -> (i32, i32) {
    %c0_i32 = arith.constant 0 : i32
    %c0_i32_0 = arith.constant 0 : i32
    %c0_i32_1 = arith.constant 0 : i32
    return %c0_i32, %c0_i32_0 : i32, i32
  }
  func.func @transform_7(%arg0: i32, %arg1: i32) -> (i32, i32) {
    %c0_i32 = arith.constant 0 : i32
    %c0_i32_0 = arith.constant 0 : i32
    %c0_i32_1 = arith.constant 0 : i32
    return %c0_i32, %c0_i32_0 : i32, i32
  }
  func.func @transform_8(%arg0: i32, %arg1: i32) -> (i32, i32) {
    %c0_i32 = arith.constant 0 : i32
    %c0_i32_0 = arith.constant 0 : i32
    %c0_i32_1 = arith.constant 0 : i32
    return %c0_i32, %c0_i32_0 : i32, i32
  }
  func.func @transform_9(%arg0: i32, %arg1: i32) -> (i32, i32) {
    %c0_i32 = arith.constant 0 : i32
    %c0_i32_0 = arith.constant 0 : i32
    %c0_i32_1 = arith.constant 0 : i32
    return %c0_i32, %c0_i32_0 : i32, i32
  }
  func.func @transform_10(%arg0: i32, %arg1: i32) -> (i32, i32) {
    %c0_i32 = arith.constant 0 : i32
    %c0_i32_0 = arith.constant 0 : i32
    %c0_i32_1 = arith.constant 0 : i32
    return %c0_i32, %c0_i32_0 : i32, i32
  }
  func.func @transform_11(%arg0: i32, %arg1: i32) -> (i32, i32) {
    %c0_i32 = arith.constant 0 : i32
    %c0_i32_0 = arith.constant 0 : i32
    %c0_i32_1 = arith.constant 0 : i32
    return %c0_i32, %c0_i32_0 : i32, i32
  }
  func.func @transform_12(%arg0: i32, %arg1: i32) -> (i32, i32) {
    %c0_i32 = arith.constant 0 : i32
    %c0_i32_0 = arith.constant 0 : i32
    %c0_i32_1 = arith.constant 0 : i32
    return %c0_i32, %c0_i32_0 : i32, i32
  }
  func.func @transform_13(%arg0: i32, %arg1: i32) -> (i32, i32) {
    %c0_i32 = arith.constant 0 : i32
    %c0_i32_0 = arith.constant 0 : i32
    %c0_i32_1 = arith.constant 0 : i32
    return %c0_i32, %c0_i32_0 : i32, i32
  }
  func.func @transform_14(%arg0: i32, %arg1: i32) -> (i32, i32) {
    %c0_i32 = arith.constant 0 : i32
    %c0_i32_0 = arith.constant 0 : i32
    %c0_i32_1 = arith.constant 0 : i32
    return %c0_i32, %c0_i32_0 : i32, i32
  }
  func.func @transform_15(%arg0: i32, %arg1: i32) -> (i32, i32) {
    %c0_i32 = arith.constant 0 : i32
    %c0_i32_0 = arith.constant 0 : i32
    %c0_i32_1 = arith.constant 0 : i32
    return %c0_i32, %c0_i32_0 : i32, i32
  }
  func.func @transform_16(%arg0: i32, %arg1: i32) -> (i32, i32) {
    %c0_i32 = arith.constant 0 : i32
    %c0_i32_0 = arith.constant 0 : i32
    %c0_i32_1 = arith.constant 0 : i32
    return %c0_i32, %c0_i32_0 : i32, i32
  }
  func.func @transform_17(%arg0: i32, %arg1: i32) -> (i32, i32) {
    %c0_i32 = arith.constant 0 : i32
    %c0_i32_0 = arith.constant 0 : i32
    %c0_i32_1 = arith.constant 0 : i32
    return %c0_i32, %c0_i32_0 : i32, i32
  }
  func.func @transform_18(%arg0: i32, %arg1: i32) -> (i32, i32, i32) {
    %c0_i32 = arith.constant 0 : i32
    %c0_i32_0 = arith.constant 0 : i32
    return %arg0, %c0_i32, %arg1 : i32, i32, i32
  }
  func.func @transform_19(%arg0: i32, %arg1: i32) -> (i32, i32, i32, i32) {
    %c0_i32 = arith.constant 0 : i32
    %c0_i32_0 = arith.constant 0 : i32
    %c0_i32_1 = arith.constant 0 : i32
    return %arg0, %c0_i32, %arg1, %c0_i32_0 : i32, i32, i32, i32
  }
}

</mosaic_0001>

<llo_original>
// kernel: _lambda_.5
$region0: #{_lambda_.5}
  #allocation0 [shape = 'u32[]', space=smem, size = 0x4, offset = 0x4, fixed_abs, tag = 'smem constant byte address 0x4 - core index']
  #allocation1 [shape = 'u32[144,128]{1,0:T(1,128)}', space=vmem, size = 0x12000, scoped, tag = 'internal scratch']
  #allocation2 [shape = 'f32[1,1]{1,0:T(1,128)S(1)}', space=vmem, size = 0x200, scoped, tag = 'scoped memory for _lambda_.5']
  %s0 = inlined_call_operand.vmem [shape: f32[2,16,8], index: 0, kind: input, shape index: {}]
  %s1 = inlined_call_operand.vmem [shape: f32[2,8,16], index: 1, kind: input, shape index: {}]
  %s2 = inlined_call_operand.vmem [shape: f32[8,16], index: 2, kind: input, shape index: {}]
  %s3 = inlined_call_operand.vmem [shape: f32[1,16], index: 3, kind: input, shape index: {}]
  %s4 = inlined_call_operand.vmem [shape: f32[16,16], index: 4, kind: input, shape index: {}]
  %s5 = inlined_call_operand.vmem [shape: f32[1,16], index: 5, kind: input, shape index: {}]
  %s6 = inlined_call_operand.vmem [shape: f32[16,16], index: 6, kind: input, shape index: {}]
  %s7 = inlined_call_operand.vmem [shape: f32[1,16], index: 7, kind: input, shape index: {}]
  %s8 = inlined_call_operand.vmem [shape: f32[16,8], index: 8, kind: input, shape index: {}]
  %s9 = inlined_call_operand.vmem [shape: f32[1,8], index: 9, kind: input, shape index: {}]
  %s10 = inlined_call_operand.vmem [shape: f32[8,1], index: 10, kind: input, shape index: {}]
  %s11 = inlined_call_operand.<no memory space> [shape: f32[1,1], index: 11, kind: input, shape index: {}]
  %s12 = inlined_call_operand.vmem [shape: f32[2,16,1], index: 12, kind: output, shape index: {}]
  %s13 = sld [smem:[#allocation0]]
  $region81: #{_lambda_.5} parent=0
    _
  %s15 = ssub.s32 1, %s13
  %s16 = scalar_select 0, %s15, %s13
  %v17 = vstv %s11
  %18 = vst [vmem:[#allocation2] sm:$0x1] %v17
  loop: start=0, step=1, limit=4
  $region2: #{_lambda_.5} parent=0 // loop_pre_header
    _
  $region3: #{_lambda_.5} parent=0 // loop_header
    %s20 = sphi 0, %s24
    %p21 = scmp.ge.s32.totalorder %s20, 4
    %s30 = sphi 0, %s32
    %s33 = sphi 0, %s30
    %s34 = sphi 0, %s33
    %s50 = sphi 0, %s34
    %s56 = sphi 0, %s58
    %s59 = sphi 0, %s56
    %s60 = sphi 0, %s59
    %s76 = sphi 0, %s60
    %s80 = sphi 0, %s80
    %s82 = sphi 0, %s80
    %s83 = sphi 0, %s82
    %s97 = sphi 0, %s83
    %s101 = sphi 0, %s101
    %s103 = sphi 0, %s101
    %s104 = sphi 0, %s103
    %s118 = sphi 0, %s104
    %s122 = sphi 0, %s122
    %s124 = sphi 0, %s122
    %s125 = sphi 0, %s124
    %s139 = sphi 0, %s125
    %s143 = sphi 0, %s143
    %s145 = sphi 0, %s143
    %s146 = sphi 0, %s145
    %s160 = sphi 0, %s146
    %s164 = sphi 0, %s164
    %s166 = sphi 0, %s164
    %s167 = sphi 0, %s166
    %s181 = sphi 0, %s167
    %s185 = sphi 0, %s185
    %s187 = sphi 0, %s185
    %s188 = sphi 0, %s187
    %s202 = sphi 0, %s188
    %s206 = sphi 0, %s206
    %s208 = sphi 0, %s206
    %s209 = sphi 0, %s208
    %s223 = sphi 0, %s209
    %s227 = sphi 0, %s227
    %s229 = sphi 0, %s227
    %s230 = sphi 0, %s229
    %s244 = sphi 0, %s230
    %s248 = sphi 0, %s248
    %s250 = sphi 0, %s248
    %s251 = sphi 0, %s250
    %s265 = sphi 0, %s251
    %s269 = sphi 0, %s269
    %s271 = sphi 0, %s269
    %s272 = sphi 0, %s271
    %s286 = sphi 0, %s272
    %s292 = sphi 0, %s294
    %s295 = sphi 0, %s292
    %s296 = sphi 0, %s295
    %s312 = sphi 0, %s296
  $region4: #{_lambda_.5} parent=0 // loop_header_branch
    %23 = sbr.rel (%p21) target = $region8
  $region5: #{_lambda_.5} parent=0 // loop_body
    %s25 = ssub.s32 %s20, 1
    %s26 = ssub.s32 %s20, 2
    %s27 = sadd.s32 %s20, 1
    %s28 = ssub.s32 %s20, %s27
    %p29 = scmp.eq.s32.totalorder %s28, 0
    %s31 = sadd.s32 %s30, 1
    %s32 = scalar_select %p29, %s30, %s31
    %p35 = pneg %p29
    %p36 = scmp.eq.s32.totalorder %s20, 1
    %p37 = por %p35, %p36
    %p38 = scmp.ne.s32.totalorder %s30, %s33
    %p39 = scmp.eq.s32.totalorder %s20, 0
    %p40 = por %p38, %p39
    %p41 = scmp.ne.s32.totalorder %s30, %s33
    %p42 = scmp.eq.s32.totalorder %s25, 1
    %p43 = por %p41, %p42
    %p44 = scmp.ne.s32.totalorder %s33, %s34
    %p45 = scmp.eq.s32.totalorder %s25, 0
    %p46 = por %p44, %p45
    %p47 = scmp.ne.s32.totalorder %s33, %s34
    %p48 = scmp.eq.s32.totalorder %s26, 1
    %p49 = por %p47, %p48
    %p51 = scmp.ne.s32.totalorder %s34, %s50
    %p52 = scmp.eq.s32.totalorder %s26, 0
    %p53 = por %p51, %p52
    %s54 = ssub.s32 %s20, %s27
    %p55 = scmp.eq.s32.totalorder %s54, 0
    %s57 = sadd.s32 %s56, 1
    %s58 = scalar_select %p55, %s56, %s57
    %p61 = pneg %p55
    %p62 = scmp.eq.s32.totalorder %s20, 1
    %p63 = por %p61, %p62
    %p64 = scmp.ne.s32.totalorder %s56, %s59
    %p65 = scmp.eq.s32.totalorder %s20, 0
    %p66 = por %p64, %p65
    %p67 = scmp.ne.s32.totalorder %s56, %s59
    %p68 = scmp.eq.s32.totalorder %s25, 1
    %p69 = por %p67, %p68
    %p70 = scmp.ne.s32.totalorder %s59, %s60
    %p71 = scmp.eq.s32.totalorder %s25, 0
    %p72 = por %p70, %p71
    %p73 = scmp.ne.s32.totalorder %s59, %s60
    %p74 = scmp.eq.s32.totalorder %s26, 1
    %p75 = por %p73, %p74
    %p77 = scmp.ne.s32.totalorder %s60, %s76
    %p78 = scmp.eq.s32.totalorder %s26, 0
    %p79 = por %p77, %p78
    %s81 = sadd.s32 %s80, 1
    %p84 = scmp.eq.s32.totalorder %s20, 1
    %p85 = scmp.ne.s32.totalorder %s80, %s82
    %p86 = scmp.eq.s32.totalorder %s20, 0
    %p87 = por %p85, %p86
    %p88 = scmp.ne.s32.totalorder %s80, %s82
    %p89 = scmp.eq.s32.totalorder %s25, 1
    %p90 = por %p88, %p89
    %p91 = scmp.ne.s32.totalorder %s82, %s83
    %p92 = scmp.eq.s32.totalorder %s25, 0
    %p93 = por %p91, %p92
    %p94 = scmp.ne.s32.totalorder %s82, %s83
    %p95 = scmp.eq.s32.totalorder %s26, 1
    %p96 = por %p94, %p95
    %p98 = scmp.ne.s32.totalorder %s83, %s97
    %p99 = scmp.eq.s32.totalorder %s26, 0
    %p100 = por %p98, %p99
    %s102 = sadd.s32 %s101, 1
    %p105 = scmp.eq.s32.totalorder %s20, 1
    %p106 = scmp.ne.s32.totalorder %s101, %s103
    %p107 = scmp.eq.s32.totalorder %s20, 0
    %p108 = por %p106, %p107
    %p109 = scmp.ne.s32.totalorder %s101, %s103
    %p110 = scmp.eq.s32.totalorder %s25, 1
    %p111 = por %p109, %p110
    %p112 = scmp.ne.s32.totalorder %s103, %s104
    %p113 = scmp.eq.s32.totalorder %s25, 0
    %p114 = por %p112, %p113
    %p115 = scmp.ne.s32.totalorder %s103, %s104
    %p116 = scmp.eq.s32.totalorder %s26, 1
    %p117 = por %p115, %p116
    %p119 = scmp.ne.s32.totalorder %s104, %s118
    %p120 = scmp.eq.s32.totalorder %s26, 0
    %p121 = por %p119, %p120
    %s123 = sadd.s32 %s122, 1
    %p126 = scmp.eq.s32.totalorder %s20, 1
    %p127 = scmp.ne.s32.totalorder %s122, %s124
    %p128 = scmp.eq.s32.totalorder %s20, 0
    %p129 = por %p127, %p128
    %p130 = scmp.ne.s32.totalorder %s122, %s124
    %p131 = scmp.eq.s32.totalorder %s25, 1
    %p132 = por %p130, %p131
    %p133 = scmp.ne.s32.totalorder %s124, %s125
    %p134 = scmp.eq.s32.totalorder %s25, 0
    %p135 = por %p133, %p134
    %p136 = scmp.ne.s32.totalorder %s124, %s125
    %p137 = scmp.eq.s32.totalorder %s26, 1
    %p138 = por %p136, %p137
    %p140 = scmp.ne.s32.totalorder %s125, %s139
    %p141 = scmp.eq.s32.totalorder %s26, 0
    %p142 = por %p140, %p141
    %s144 = sadd.s32 %s143, 1
    %p147 = scmp.eq.s32.totalorder %s20, 1
    %p148 = scmp.ne.s32.totalorder %s143, %s145
    %p149 = scmp.eq.s32.totalorder %s20, 0
    %p150 = por %p148, %p149
    %p151 = scmp.ne.s32.totalorder %s143, %s145
    %p152 = scmp.eq.s32.totalorder %s25, 1
    %p153 = por %p151, %p152
    %p154 = scmp.ne.s32.totalorder %s145, %s146
    %p155 = scmp.eq.s32.totalorder %s25, 0
    %p156 = por %p154, %p155
    %p157 = scmp.ne.s32.totalorder %s145, %s146
    %p158 = scmp.eq.s32.totalorder %s26, 1
    %p159 = por %p157, %p158
    %p161 = scmp.ne.s32.totalorder %s146, %s160
    %p162 = scmp.eq.s32.totalorder %s26, 0
    %p163 = por %p161, %p162
    %s165 = sadd.s32 %s164, 1
    %p168 = scmp.eq.s32.totalorder %s20, 1
    %p169 = scmp.ne.s32.totalorder %s164, %s166
    %p170 = scmp.eq.s32.totalorder %s20, 0
    %p171 = por %p169, %p170
    %p172 = scmp.ne.s32.totalorder %s164, %s166
    %p173 = scmp.eq.s32.totalorder %s25, 1
    %p174 = por %p172, %p173
    %p175 = scmp.ne.s32.totalorder %s166, %s167
    %p176 = scmp.eq.s32.totalorder %s25, 0
    %p177 = por %p175, %p176
    %p178 = scmp.ne.s32.totalorder %s166, %s167
    %p179 = scmp.eq.s32.totalorder %s26, 1
    %p180 = por %p178, %p179
    %p182 = scmp.ne.s32.totalorder %s167, %s181
    %p183 = scmp.eq.s32.totalorder %s26, 0
    %p184 = por %p182, %p183
    %s186 = sadd.s32 %s185, 1
    %p189 = scmp.eq.s32.totalorder %s20, 1
    %p190 = scmp.ne.s32.totalorder %s185, %s187
    %p191 = scmp.eq.s32.totalorder %s20, 0
    %p192 = por %p190, %p191
    %p193 = scmp.ne.s32.totalorder %s185, %s187
    %p194 = scmp.eq.s32.totalorder %s25, 1
    %p195 = por %p193, %p194
    %p196 = scmp.ne.s32.totalorder %s187, %s188
    %p197 = scmp.eq.s32.totalorder %s25, 0
    %p198 = por %p196, %p197
    %p199 = scmp.ne.s32.totalorder %s187, %s188
    %p200 = scmp.eq.s32.totalorder %s26, 1
    %p201 = por %p199, %p200
    %p203 = scmp.ne.s32.totalorder %s188, %s202
    %p204 = scmp.eq.s32.totalorder %s26, 0
    %p205 = por %p203, %p204
    %s207 = sadd.s32 %s206, 1
    %p210 = scmp.eq.s32.totalorder %s20, 1
    %p211 = scmp.ne.s32.totalorder %s206, %s208
    %p212 = scmp.eq.s32.totalorder %s20, 0
    %p213 = por %p211, %p212
    %p214 = scmp.ne.s32.totalorder %s206, %s208
    %p215 = scmp.eq.s32.totalorder %s25, 1
    %p216 = por %p214, %p215
    %p217 = scmp.ne.s32.totalorder %s208, %s209
    %p218 = scmp.eq.s32.totalorder %s25, 0
    %p219 = por %p217, %p218
    %p220 = scmp.ne.s32.totalorder %s208, %s209
    %p221 = scmp.eq.s32.totalorder %s26, 1
    %p222 = por %p220, %p221
    %p224 = scmp.ne.s32.totalorder %s209, %s223
    %p225 = scmp.eq.s32.totalorder %s26, 0
    %p226 = por %p224, %p225
    %s228 = sadd.s32 %s227, 1
    %p231 = scmp.eq.s32.totalorder %s20, 1
    %p232 = scmp.ne.s32.totalorder %s227, %s229
    %p233 = scmp.eq.s32.totalorder %s20, 0
    %p234 = por %p232, %p233
    %p235 = scmp.ne.s32.totalorder %s227, %s229
    %p236 = scmp.eq.s32.totalorder %s25, 1
    %p237 = por %p235, %p236
    %p238 = scmp.ne.s32.totalorder %s229, %s230
    %p239 = scmp.eq.s32.totalorder %s25, 0
    %p240 = por %p238, %p239
    %p241 = scmp.ne.s32.totalorder %s229, %s230
    %p242 = scmp.eq.s32.totalorder %s26, 1
    %p243 = por %p241, %p242
    %p245 = scmp.ne.s32.totalorder %s230, %s244
    %p246 = scmp.eq.s32.totalorder %s26, 0
    %p247 = por %p245, %p246
    %s249 = sadd.s32 %s248, 1
    %p252 = scmp.eq.s32.totalorder %s20, 1
    %p253 = scmp.ne.s32.totalorder %s248, %s250
    %p254 = scmp.eq.s32.totalorder %s20, 0
    %p255 = por %p253, %p254
    %p256 = scmp.ne.s32.totalorder %s248, %s250
    %p257 = scmp.eq.s32.totalorder %s25, 1
    %p258 = por %p256, %p257
    %p259 = scmp.ne.s32.totalorder %s250, %s251
    %p260 = scmp.eq.s32.totalorder %s25, 0
    %p261 = por %p259, %p260
    %p262 = scmp.ne.s32.totalorder %s250, %s251
    %p263 = scmp.eq.s32.totalorder %s26, 1
    %p264 = por %p262, %p263
    %p266 = scmp.ne.s32.totalorder %s251, %s265
    %p267 = scmp.eq.s32.totalorder %s26, 0
    %p268 = por %p266, %p267
    %s270 = sadd.s32 %s269, 1
    %p273 = scmp.eq.s32.totalorder %s20, 1
    %p274 = scmp.ne.s32.totalorder %s269, %s271
    %p275 = scmp.eq.s32.totalorder %s20, 0
    %p276 = por %p274, %p275
    %p277 = scmp.ne.s32.totalorder %s269, %s271
    %p278 = scmp.eq.s32.totalorder %s25, 1
    %p279 = por %p277, %p278
    %p280 = scmp.ne.s32.totalorder %s271, %s272
    %p281 = scmp.eq.s32.totalorder %s25, 0
    %p282 = por %p280, %p281
    %p283 = scmp.ne.s32.totalorder %s271, %s272
    %p284 = scmp.eq.s32.totalorder %s26, 1
    %p285 = por %p283, %p284
    %p287 = scmp.ne.s32.totalorder %s272, %s286
    %p288 = scmp.eq.s32.totalorder %s26, 0
    %p289 = por %p287, %p288
    %s290 = ssub.s32 %s20, %s27
    %p291 = scmp.eq.s32.totalorder %s290, 0
    %s293 = sadd.s32 %s292, 1
    %s294 = scalar_select %p291, %s292, %s293
    %p297 = pneg %p291
    %p298 = scmp.eq.s32.totalorder %s20, 1
    %p299 = por %p297, %p298
    %p300 = scmp.ne.s32.totalorder %s292, %s295
    %p301 = scmp.eq.s32.totalorder %s20, 0
    %p302 = por %p300, %p301
    %p303 = scmp.ne.s32.totalorder %s292, %s295
    %p304 = scmp.eq.s32.totalorder %s25, 1
    %p305 = por %p303, %p304
    %p306 = scmp.ne.s32.totalorder %s295, %s296
    %p307 = scmp.eq.s32.totalorder %s25, 0
    %p308 = por %p306, %p307
    %p309 = scmp.ne.s32.totalorder %s295, %s296
    %p310 = scmp.eq.s32.totalorder %s26, 1
    %p311 = por %p309, %p310
    %p313 = scmp.ne.s32.totalorder %s296, %s312
    %p314 = scmp.eq.s32.totalorder %s26, 0
    %p315 = por %p313, %p314
    %p316 = scmp.le.s32.totalorder 1, %s20
    %p317 = scmp.lt.s32.totalorder %s20, 3
    %p318 = pnand %p316, %p317
    %p319 = pneg %p318
    // Predicated region
    $region9: #{_lambda_.5} parent=5 // pred_check
      _
    $region10: #{_lambda_.5} parent=5 // pred_check_branch
      %321 = sbr.rel (%p318) target = $region12
    $region11: #{_lambda_.5} parent=5 // pred_region
      %s322 = ssub.s32 %s20, 1
      // Predicated region
      $region13: #{_lambda_.5} parent=11 // pred_check
        %p323 = pneg %p93
      $region14: #{_lambda_.5} parent=11 // pred_check_branch
        %325 = sbr.rel (%p323) target = $region16
      $region15: #{_lambda_.5} parent=11 // pred_region
        _
      $region16: #{_lambda_.5} parent=11 // pred_fallthru
        _
      // Predicated region
      $region17: #{_lambda_.5} parent=11 // pred_check
        %p326 = pneg %p114
      $region18: #{_lambda_.5} parent=11 // pred_check_branch
        %328 = sbr.rel (%p326) target = $region20
      $region19: #{_lambda_.5} parent=11 // pred_region
        _
      $region20: #{_lambda_.5} parent=11 // pred_fallthru
        _
      // Predicated region
      $region21: #{_lambda_.5} parent=11 // pred_check
        %p329 = pneg %p135
      $region22: #{_lambda_.5} parent=11 // pred_check_branch
        %331 = sbr.rel (%p329) target = $region24
      $region23: #{_lambda_.5} parent=11 // pred_region
        _
      $region24: #{_lambda_.5} parent=11 // pred_fallthru
        _
      // Predicated region
      $region25: #{_lambda_.5} parent=11 // pred_check
        %p332 = pneg %p156
      $region26: #{_lambda_.5} parent=11 // pred_check_branch
        %334 = sbr.rel (%p332) target = $region28
      $region27: #{_lambda_.5} parent=11 // pred_region
        _
      $region28: #{_lambda_.5} parent=11 // pred_fallthru
        _
      // Predicated region
      $region29: #{_lambda_.5} parent=11 // pred_check
        %p335 = pneg %p177
      $region30: #{_lambda_.5} parent=11 // pred_check_branch
        %337 = sbr.rel (%p335) target = $region32
      $region31: #{_lambda_.5} parent=11 // pred_region
        _
      $region32: #{_lambda_.5} parent=11 // pred_fallthru
        _
      // Predicated region
      $region33: #{_lambda_.5} parent=11 // pred_check
        %p338 = pneg %p198
      $region34: #{_lambda_.5} parent=11 // pred_check_branch
        %340 = sbr.rel (%p338) target = $region36
      $region35: #{_lambda_.5} parent=11 // pred_region
        _
      $region36: #{_lambda_.5} parent=11 // pred_fallthru
        _
      // Predicated region
      $region37: #{_lambda_.5} parent=11 // pred_check
        %p341 = pneg %p219
      $region38: #{_lambda_.5} parent=11 // pred_check_branch
        %343 = sbr.rel (%p341) target = $region40
      $region39: #{_lambda_.5} parent=11 // pred_region
        _
      $region40: #{_lambda_.5} parent=11 // pred_fallthru
        _
      // Predicated region
      $region41: #{_lambda_.5} parent=11 // pred_check
        %p344 = pneg %p240
      $region42: #{_lambda_.5} parent=11 // pred_check_branch
        %346 = sbr.rel (%p344) target = $region44
      $region43: #{_lambda_.5} parent=11 // pred_region
        _
      $region44: #{_lambda_.5} parent=11 // pred_fallthru
        _
      // Predicated region
      $region45: #{_lambda_.5} parent=11 // pred_check
        %p347 = pneg %p261
      $region46: #{_lambda_.5} parent=11 // pred_check_branch
        %349 = sbr.rel (%p347) target = $region48
      $region47: #{_lambda_.5} parent=11 // pred_region
        _
      $region48: #{_lambda_.5} parent=11 // pred_fallthru
        _
      // Predicated region
      $region49: #{_lambda_.5} parent=11 // pred_check
        %p350 = pneg %p282
      $region50: #{_lambda_.5} parent=11 // pred_check_branch
        %352 = sbr.rel (%p350) target = $region52
      $region51: #{_lambda_.5} parent=11 // pred_region
        _
      $region52: #{_lambda_.5} parent=11 // pred_fallthru
        _
    $region12: #{_lambda_.5} parent=5 // pred_fallthru
      _
    %p353 = scmp.lt.s32.totalorder %s20, 2
    // Predicated region
    $region53: #{_lambda_.5} parent=5 // pred_check
      %p354 = pneg %p353
    $region54: #{_lambda_.5} parent=5 // pred_check_branch
      %356 = sbr.rel (%p354) target = $region56
    $region55: #{_lambda_.5} parent=5 // pred_region
      // Predicated region
      $region57: #{_lambda_.5} parent=55 // pred_check
        %p357 = pneg %p40
      $region58: #{_lambda_.5} parent=55 // pred_check_branch
        %359 = sbr.rel (%p357) target = $region60
      $region59: #{_lambda_.5} parent=55 // pred_region
        %p360 = scmp.lt.s32.totalorder %s20, 1
        %s361 = scalar_select %p360, %s20, 1
        %s362 = smul.addr %s361, 2
        %s363 = smul.addr %s362, 8
        %s364 = scalar_lea.vmem %s0, %s363
      $region60: #{_lambda_.5} parent=55 // pred_fallthru
        _
      // Predicated region
      $region61: #{_lambda_.5} parent=55 // pred_check
        %p365 = pneg %p66
      $region62: #{_lambda_.5} parent=55 // pred_check_branch
        %367 = sbr.rel (%p365) target = $region64
      $region63: #{_lambda_.5} parent=55 // pred_region
        %p368 = scmp.lt.s32.totalorder %s20, 1
        %s369 = scalar_select %p368, %s20, 1
        %s370 = smul.addr %s369, 8
        %s371 = scalar_lea.vmem %s1, %s370
      $region64: #{_lambda_.5} parent=55 // pred_fallthru
        _
    $region56: #{_lambda_.5} parent=5 // pred_fallthru
      _
    %p372 = scmp.le.s32.totalorder 1, %s20
    %p373 = scmp.lt.s32.totalorder %s20, 3
    %p374 = pnand %p372, %p373
    %p375 = pneg %p374
    // Predicated region
    $region65: #{_lambda_.5} parent=5 // pred_check
      _
    $region66: #{_lambda_.5} parent=5 // pred_check_branch
      %377 = sbr.rel (%p374) target = $region68
    $region67: #{_lambda_.5} parent=5 // pred_region
      %s378 = ssub.s32 %s20, 1
      %p379 = scmp.lt.s32.totalorder %s25, 1
      %s380 = scalar_select %p379, %s25, 1
      %s381 = smul.addr %s380, 2
      %s382 = smul.addr %s381, 8
      %s383 = scalar_lea.vmem %s0, %s382
      %p384 = pneg %p46
      %p385 = pneg %p43
      %p386 = scmp.lt.s32.totalorder %s25, 1
      %s387 = scalar_select %p386, %s25, 1
      %s388 = smul.addr %s387, 8
      %s389 = scalar_lea.vmem %s1, %s388
      %p390 = pneg %p72
      %p391 = pneg %p69
      %p392 = pneg %p93
      %p393 = pneg %p90
      %p394 = pneg %p114
      %p395 = pneg %p111
      %p396 = pneg %p135
      %p397 = pneg %p132
      %p398 = pneg %p156
      %p399 = pneg %p153
      %p400 = pneg %p177
      %p401 = pneg %p174
      %p402 = pneg %p198
      %p403 = pneg %p195
      %p404 = pneg %p219
      %p405 = pneg %p216
      %p406 = pneg %p240
      %p407 = pneg %p237
      %p408 = pneg %p261
      %p409 = pneg %p258
      %p410 = pneg %p282
      %p411 = pneg %p279
      %p412 = pneg %p308
      %p413 = pneg %p305
      %p414 = scmp.lt.s32.totalorder %s25, 1
      %s415 = scalar_select %p414, %s25, 1
      %s416 = smul.addr %s415, 2
      %s417 = smul.addr %s416, 8
      %s418 = scalar_lea.vmem %s12, %s417
      %p419 = scmp.lt.s32.totalorder %s25, 1
      %s420 = scalar_select %p419, %s25, 1
      %s421 = smul.addr %s420, 2
      %s422 = smul.addr %s421, 8
      %s423 = scalar_lea.vmem %s0, %s422
      %p424 = scmp.lt.s32.totalorder %s25, 1
      %s425 = scalar_select %p424, %s25, 1
      %s426 = smul.addr %s425, 8
      %s427 = scalar_lea.vmem %s1, %s426
      %p428 = scmp.lt.s32.totalorder %s25, 1
      %s429 = scalar_select %p428, %s25, 1
      %s430 = smul.addr %s429, 2
      %s431 = smul.addr %s430, 8
      %s432 = scalar_lea.vmem %s12, %s431
      %v433 = vld [vmem:[%s423] sm:$0xff]
      %v434 = vld [vmem:[%s423 + $0x8] sm:$0xff]
      %v435 = vld [vmem:[%s427] sm:$0xff]
      %436 = vxpose.xlu0.b32.start [1/16] %v435, 128
      %437 = vxpose.xlu0.b32.cont [2/16] 0.0, 128
      %438 = vxpose.xlu0.b32.cont [3/16] 0.0, 128
      %439 = vxpose.xlu0.b32.cont [4/16] 0.0, 128
      %440 = vxpose.xlu0.b32.cont [5/16] 0.0, 128
      %441 = vxpose.xlu0.b32.cont [6/16] 0.0, 128
      %442 = vxpose.xlu0.b32.cont [7/16] 0.0, 128
      %443 = vxpose.xlu0.b32.cont [8/16] 0.0, 128
      %444 = vxpose.xlu0.b32.cont [9/16] 0.0, 128
      %445 = vxpose.xlu0.b32.cont [10/16] 0.0, 128
      %446 = vxpose.xlu0.b32.cont [11/16] 0.0, 128
      %447 = vxpose.xlu0.b32.cont [12/16] 0.0, 128
      %448 = vxpose.xlu0.b32.cont [13/16] 0.0, 128
      %449 = vxpose.xlu0.b32.cont [14/16] 0.0, 128
      %450 = vxpose.xlu0.b32.cont [15/16] 0.0, 128
      %451 = vxpose.xlu0.b32.end [16/16] 0.0, 128
      %v452 = vpop.trf.xlu0
      %v453 = vpop.trf.xlu0
      %v454 = vpop.trf.xlu0
      %v455 = vpop.trf.xlu0
      %v456 = vpop.trf.xlu0
      %v457 = vpop.trf.xlu0
      %v458 = vpop.trf.xlu0
      %v459 = vpop.trf.xlu0
      %v460 = vpop.trf.xlu0
      %v461 = vpop.trf.xlu0
      %v462 = vpop.trf.xlu0
      %v463 = vpop.trf.xlu0
      %v464 = vpop.trf.xlu0
      %v465 = vpop.trf.xlu0
      %v466 = vpop.trf.xlu0
      %v467 = vpop.trf.xlu0
      %vm468 = vcmask 64512
      %v470 = vsel %vm468, %v452, 0
      %v473 = vsel %vm468, %v453, 0
      %475 = vmatprep.subr.mxu0 0.0
      %476 = vmatpush1.msra.mxu0 %v435
      %477 = vmatprep.subr.mxu0 0.0
      %478 = vmatpush1.msra.mxu0 0.0
      %479 = vmatprep.subr.mxu0 0.0
      %480 = vmatpush1.msra.mxu0 0.0
      %481 = vmatprep.subr.mxu0 0.0
      %482 = vmatpush1.msra.mxu0 0.0
      %483 = vmatprep.subr.mxu0 0.0
      %484 = vmatpush1.msra.mxu0 0.0
      %485 = vmatprep.subr.mxu0 0.0
      %486 = vmatpush1.msra.mxu0 0.0
      %487 = vmatprep.subr.mxu0 0.0
      %488 = vmatpush1.msra.mxu0 0.0
      %489 = vmatprep.subr.mxu0 0.0
      %490 = vmatpush1.msra.mxu0 0.0
      %491 = vmatprep.subr.mxu0 0.0
      %492 = vmatpush1.msra.mxu0 0.0
      %493 = vmatprep.subr.mxu0 0.0
      %494 = vmatpush1.msra.mxu0 0.0
      %495 = vmatprep.subr.mxu0 0.0
      %496 = vmatpush1.msra.mxu0 0.0
      %497 = vmatprep.subr.mxu0 0.0
      %498 = vmatpush1.msra.mxu0 0.0
      %499 = vmatprep.subr.mxu0 0.0
      %500 = vmatpush1.msra.mxu0 0.0
      %501 = vmatprep.subr.mxu0 0.0
      %502 = vmatpush1.msra.mxu0 0.0
      %503 = vmatprep.subr.mxu0 0.0
      %504 = vmatpush1.msra.mxu0 0.0
      %505 = vmatprep.subr.mxu0 0.0
      %506 = vmatpush1.msra.mxu0 0.0
      %507 = vmatprep.subr.mxu0 0.0
      %508 = vmatpush1.msra.mxu0 0.0
      %509 = vmatprep.subr.mxu0 0.0
      %510 = vmatpush1.msra.mxu0 0.0
      %511 = vmatprep.subr.mxu0 0.0
      %512 = vmatpush1.msra.mxu0 0.0
      %513 = vmatprep.subr.mxu0 0.0
      %514 = vmatpush1.msra.mxu0 0.0
      %515 = vmatprep.subr.mxu0 0.0
      %516 = vmatpush1.msra.mxu0 0.0
      %517 = vmatprep.subr.mxu0 0.0
      %518 = vmatpush1.msra.mxu0 0.0
      %519 = vmatprep.subr.mxu0 0.0
      %520 = vmatpush1.msra.mxu0 0.0
      %521 = vmatprep.subr.mxu0 0.0
      %522 = vmatpush1.msra.mxu0 0.0
      %523 = vmatprep.subr.mxu0 0.0
      %524 = vmatpush1.msra.mxu0 0.0
      %525 = vmatprep.subr.mxu0 0.0
      %526 = vmatpush1.msra.mxu0 0.0
      %527 = vmatprep.subr.mxu0 0.0
      %528 = vmatpush1.msra.mxu0 0.0
      %529 = vmatprep.subr.mxu0 0.0
      %530 = vmatpush1.msra.mxu0 0.0
      %531 = vmatprep.subr.mxu0 0.0
      %532 = vmatpush1.msra.mxu0 0.0
      %533 = vmatprep.subr.mxu0 0.0
      %534 = vmatpush1.msra.mxu0 0.0
      %535 = vmatprep.subr.mxu0 0.0
      %536 = vmatpush1.msra.mxu0 0.0
      %537 = vmatprep.subr.mxu0 0.0
      %538 = vmatpush1.msra.mxu0 0.0
      %539 = vmatprep.mubr.f32.mxu0 0.0
      %540 = vmatmul.mubr.f32.gmra.mrb[0].mxu0 %v470
      %v541 = vpop.f32.mrb[0].mxu0
      %v542 = vadd.f32 0.0, %v541
      %v543 = vpop.f32.mrb[0].mxu0
      %544 = vmatprep.mubr.f32.mxu0 0.0
      %545 = vmatmul.mubr.f32.gmra.mrb[0].mxu0 %v473
      %v546 = vpop.f32.mrb[0].mxu0
      %v547 = vadd.f32 0.0, %v546
      %v548 = vpop.f32.mrb[0].mxu0
      %549 = vdwg.mxu0
      %v550 = vmax.f32 %v542, 0.0
      %v551 = vmax.f32 %v547, 0.0
      %vm552 = vcmask 130048
      %v553 = vsel %vm552, %v550, -inf
      %554 = vmax.xlane.f32.xlu0 %v553
      %v555 = vpop.xlane.xlu0 %554
      %v556 = vsel %vm552, %v551, -inf
      %557 = vmax.xlane.f32.xlu0 %v556
      %v558 = vpop.xlane.xlu0 %557
      %v559 = vsub.f32 %v550, %v555
      %v560 = vsub.f32 %v551, %v558
      %v561 = vmul.f32 %v559, 1.442695
      %v562 = vpow.pop %v561
      %v563 = vmul.f32 %v560, 1.442695
      %v564 = vpow.pop %v563
      %v565 = vsel %vm552, %v562, 0.0
      %566 = vadd.xlane.f32.xlu0 %v565
      %v567 = vpop.xlane.xlu0 %566
      %v568 = vsel %vm552, %v564, 0.0
      %569 = vadd.xlane.f32.xlu0 %v568
      %v570 = vpop.xlane.xlu0 %569
      %v571 = vrcp.pop %v567
      %v572 = vmul.f32 %v562, %v571
      %v573 = vrcp.pop %v570
      %v574 = vmul.f32 %v564, %v573
      %v575 = vld [vmem:[%s2] sm:$0xff]
      %v577 = vsel %vm468, %v433, 0
      %v580 = vsel %vm468, %v434, 0
      %582 = vmatprep.subr.mxu0 0.0
      %583 = vmatpush1.msra.mxu0 %v575
      %584 = vmatprep.subr.mxu0 0.0
      %585 = vmatpush1.msra.mxu0 0.0
      %586 = vmatprep.subr.mxu0 0.0
      %587 = vmatpush1.msra.mxu0 0.0
      %588 = vmatprep.subr.mxu0 0.0
      %589 = vmatpush1.msra.mxu0 0.0
      %590 = vmatprep.subr.mxu0 0.0
      %591 = vmatpush1.msra.mxu0 0.0
      %592 = vmatprep.subr.mxu0 0.0
      %593 = vmatpush1.msra.mxu0 0.0
      %594 = vmatprep.subr.mxu0 0.0
      %595 = vmatpush1.msra.mxu0 0.0
      %596 = vmatprep.subr.mxu0 0.0
      %597 = vmatpush1.msra.mxu0 0.0
      %598 = vmatprep.subr.mxu0 0.0
      %599 = vmatpush1.msra.mxu0 0.0
      %600 = vmatprep.subr.mxu0 0.0
      %601 = vmatpush1.msra.mxu0 0.0
      %602 = vmatprep.subr.mxu0 0.0
      %603 = vmatpush1.msra.mxu0 0.0
      %604 = vmatprep.subr.mxu0 0.0
      %605 = vmatpush1.msra.mxu0 0.0
      %606 = vmatprep.subr.mxu0 0.0
      %607 = vmatpush1.msra.mxu0 0.0
      %608 = vmatprep.subr.mxu0 0.0
      %609 = vmatpush1.msra.mxu0 0.0
      %610 = vmatprep.subr.mxu0 0.0
      %611 = vmatpush1.msra.mxu0 0.0
      %612 = vmatprep.subr.mxu0 0.0
      %613 = vmatpush1.msra.mxu0 0.0
      %614 = vmatprep.subr.mxu0 0.0
      %615 = vmatpush1.msra.mxu0 0.0
      %616 = vmatprep.subr.mxu0 0.0
      %617 = vmatpush1.msra.mxu0 0.0
      %618 = vmatprep.subr.mxu0 0.0
      %619 = vmatpush1.msra.mxu0 0.0
      %620 = vmatprep.subr.mxu0 0.0
      %621 = vmatpush1.msra.mxu0 0.0
      %622 = vmatprep.subr.mxu0 0.0
      %623 = vmatpush1.msra.mxu0 0.0
      %624 = vmatprep.subr.mxu0 0.0
      %625 = vmatpush1.msra.mxu0 0.0
      %626 = vmatprep.subr.mxu0 0.0
      %627 = vmatpush1.msra.mxu0 0.0
      %628 = vmatprep.subr.mxu0 0.0
      %629 = vmatpush1.msra.mxu0 0.0
      %630 = vmatprep.subr.mxu0 0.0
      %631 = vmatpush1.msra.mxu0 0.0
      %632 = vmatprep.subr.mxu0 0.0
      %633 = vmatpush1.msra.mxu0 0.0
      %634 = vmatprep.subr.mxu0 0.0
      %635 = vmatpush1.msra.mxu0 0.0
      %636 = vmatprep.subr.mxu0 0.0
      %637 = vmatpush1.msra.mxu0 0.0
      %638 = vmatprep.subr.mxu0 0.0
      %639 = vmatpush1.msra.mxu0 0.0
      %640 = vmatprep.subr.mxu0 0.0
      %641 = vmatpush1.msra.mxu0 0.0
      %642 = vmatprep.subr.mxu0 0.0
      %643 = vmatpush1.msra.mxu0 0.0
      %644 = vmatprep.subr.mxu0 0.0
      %645 = vmatpush1.msra.mxu0 0.0
      %646 = vmatprep.mubr.f32.mxu0 0.0
      %647 = vmatmul.mubr.f32.gmra.mrb[0].mxu0 %v577
      %v648 = vpop.f32.mrb[0].mxu0
      %v649 = vadd.f32 0.0, %v648
      %v650 = vpop.f32.mrb[0].mxu0
      %651 = vmatprep.mubr.f32.mxu0 0.0
      %652 = vmatmul.mubr.f32.gmra.mrb[0].mxu0 %v580
      %v653 = vpop.f32.mrb[0].mxu0
      %v654 = vadd.f32 0.0, %v653
      %v655 = vpop.f32.mrb[0].mxu0
      %656 = vdwg.mxu0
      %v658 = vsel %vm552, %v572, 0
      %v661 = vsel %vm552, %v574, 0
      %663 = vmatprep.subr.mxu0 0.0
      %664 = vmatpush1.msra.mxu0 %v649
      %665 = vmatprep.subr.mxu0 0.0
      %666 = vmatpush1.msra.mxu0 %v654
      %667 = vmatprep.subr.mxu0 0.0
      %668 = vmatpush1.msra.mxu0 0.0
      %669 = vmatprep.subr.mxu0 0.0
      %670 = vmatpush1.msra.mxu0 0.0
      %671 = vmatprep.subr.mxu0 0.0
      %672 = vmatpush1.msra.mxu0 0.0
      %673 = vmatprep.subr.mxu0 0.0
      %674 = vmatpush1.msra.mxu0 0.0
      %675 = vmatprep.subr.mxu0 0.0
      %676 = vmatpush1.msra.mxu0 0.0
      %677 = vmatprep.subr.mxu0 0.0
      %678 = vmatpush1.msra.mxu0 0.0
      %679 = vmatprep.subr.mxu0 0.0
      %680 = vmatpush1.msra.mxu0 0.0
      %681 = vmatprep.subr.mxu0 0.0
      %682 = vmatpush1.msra.mxu0 0.0
      %683 = vmatprep.subr.mxu0 0.0
      %684 = vmatpush1.msra.mxu0 0.0
      %685 = vmatprep.subr.mxu0 0.0
      %686 = vmatpush1.msra.mxu0 0.0
      %687 = vmatprep.subr.mxu0 0.0
      %688 = vmatpush1.msra.mxu0 0.0
      %689 = vmatprep.subr.mxu0 0.0
      %690 = vmatpush1.msra.mxu0 0.0
      %691 = vmatprep.subr.mxu0 0.0
      %692 = vmatpush1.msra.mxu0 0.0
      %693 = vmatprep.subr.mxu0 0.0
      %694 = vmatpush1.msra.mxu0 0.0
      %695 = vmatprep.subr.mxu0 0.0
      %696 = vmatpush1.msra.mxu0 0.0
      %697 = vmatprep.subr.mxu0 0.0
      %698 = vmatpush1.msra.mxu0 0.0
      %699 = vmatprep.subr.mxu0 0.0
      %700 = vmatpush1.msra.mxu0 0.0
      %701 = vmatprep.subr.mxu0 0.0
      %702 = vmatpush1.msra.mxu0 0.0
      %703 = vmatprep.subr.mxu0 0.0
      %704 = vmatpush1.msra.mxu0 0.0
      %705 = vmatprep.subr.mxu0 0.0
      %706 = vmatpush1.msra.mxu0 0.0
      %707 = vmatprep.subr.mxu0 0.0
      %708 = vmatpush1.msra.mxu0 0.0
      %709 = vmatprep.subr.mxu0 0.0
      %710 = vmatpush1.msra.mxu0 0.0
      %711 = vmatprep.subr.mxu0 0.0
      %712 = vmatpush1.msra.mxu0 0.0
      %713 = vmatprep.subr.mxu0 0.0
      %714 = vmatpush1.msra.mxu0 0.0
      %715 = vmatprep.subr.mxu0 0.0
      %716 = vmatpush1.msra.mxu0 0.0
      %717 = vmatprep.subr.mxu0 0.0
      %718 = vmatpush1.msra.mxu0 0.0
      %719 = vmatprep.subr.mxu0 0.0
      %720 = vmatpush1.msra.mxu0 0.0
      %721 = vmatprep.subr.mxu0 0.0
      %722 = vmatpush1.msra.mxu0 0.0
      %723 = vmatprep.subr.mxu0 0.0
      %724 = vmatpush1.msra.mxu0 0.0
      %725 = vmatprep.subr.mxu0 0.0
      %726 = vmatpush1.msra.mxu0 0.0
      %727 = vmatprep.mubr.f32.mxu0 0.0
      %728 = vmatmul.mubr.f32.gmra.mrb[0].mxu0 %v658
      %v729 = vpop.f32.mrb[0].mxu0
      %v730 = vadd.f32 0.0, %v729
      %v731 = vpop.f32.mrb[0].mxu0
      %732 = vmatprep.mubr.f32.mxu0 0.0
      %733 = vmatmul.mubr.f32.gmra.mrb[0].mxu0 %v661
      %v734 = vpop.f32.mrb[0].mxu0
      %v735 = vadd.f32 0.0, %v734
      %v736 = vpop.f32.mrb[0].mxu0
      %737 = vdwg.mxu0
      %v738 = vadd.f32 %v649, %v730
      %v739 = vadd.f32 %v654, %v735
      %v740 = vld [vmem:[%s3] sm:$0x1]
      %v742 = vlaneseq
      %v743 = vshrl.u32 %v742, 7
      %v744 = vsub.s32 0, %v743
      %v745 = vrot.slane %v740, %v744
      %v747 = vadd.f32 %v738, %v745
      %v748 = vadd.f32 %v739, %v745
      %v749 = vmax.f32 %v747, 0.0
      %v750 = vmax.f32 %v748, 0.0
      %v751 = vld [vmem:[%s4] sm:$0xff]
      %v752 = vld [vmem:[%s4 + $0x8] sm:$0xff]
      %v754 = vsel %vm552, %v749, 0
      %v757 = vsel %vm552, %v750, 0
      %759 = vmatprep.subr.mxu0 0.0
      %760 = vmatpush1.msra.mxu0 %v751
      %761 = vmatprep.subr.mxu0 0.0
      %762 = vmatpush1.msra.mxu0 %v752
      %763 = vmatprep.subr.mxu0 0.0
      %764 = vmatpush1.msra.mxu0 0.0
      %765 = vmatprep.subr.mxu0 0.0
      %766 = vmatpush1.msra.mxu0 0.0
      %767 = vmatprep.subr.mxu0 0.0
      %768 = vmatpush1.msra.mxu0 0.0
      %769 = vmatprep.subr.mxu0 0.0
      %770 = vmatpush1.msra.mxu0 0.0
      %771 = vmatprep.subr.mxu0 0.0
      %772 = vmatpush1.msra.mxu0 0.0
      %773 = vmatprep.subr.mxu0 0.0
      %774 = vmatpush1.msra.mxu0 0.0
      %775 = vmatprep.subr.mxu0 0.0
      %776 = vmatpush1.msra.mxu0 0.0
      %777 = vmatprep.subr.mxu0 0.0
      %778 = vmatpush1.msra.mxu0 0.0
      %779 = vmatprep.subr.mxu0 0.0
      %780 = vmatpush1.msra.mxu0 0.0
      %781 = vmatprep.subr.mxu0 0.0
      %782 = vmatpush1.msra.mxu0 0.0
      %783 = vmatprep.subr.mxu0 0.0
      %784 = vmatpush1.msra.mxu0 0.0
      %785 = vmatprep.subr.mxu0 0.0
      %786 = vmatpush1.msra.mxu0 0.0
      %787 = vmatprep.subr.mxu0 0.0
      %788 = vmatpush1.msra.mxu0 0.0
      %789 = vmatprep.subr.mxu0 0.0
      %790 = vmatpush1.msra.mxu0 0.0
      %791 = vmatprep.subr.mxu0 0.0
      %792 = vmatpush1.msra.mxu0 0.0
      %793 = vmatprep.subr.mxu0 0.0
      %794 = vmatpush1.msra.mxu0 0.0
      %795 = vmatprep.subr.mxu0 0.0
      %796 = vmatpush1.msra.mxu0 0.0
      %797 = vmatprep.subr.mxu0 0.0
      %798 = vmatpush1.msra.mxu0 0.0
      %799 = vmatprep.subr.mxu0 0.0
      %800 = vmatpush1.msra.mxu0 0.0
      %801 = vmatprep.subr.mxu0 0.0
      %802 = vmatpush1.msra.mxu0 0.0
      %803 = vmatprep.subr.mxu0 0.0
      %804 = vmatpush1.msra.mxu0 0.0
      %805 = vmatprep.subr.mxu0 0.0
      %806 = vmatpush1.msra.mxu0 0.0
      %807 = vmatprep.subr.mxu0 0.0
      %808 = vmatpush1.msra.mxu0 0.0
      %809 = vmatprep.subr.mxu0 0.0
      %810 = vmatpush1.msra.mxu0 0.0
      %811 = vmatprep.subr.mxu0 0.0
      %812 = vmatpush1.msra.mxu0 0.0
      %813 = vmatprep.subr.mxu0 0.0
      %814 = vmatpush1.msra.mxu0 0.0
      %815 = vmatprep.subr.mxu0 0.0
      %816 = vmatpush1.msra.mxu0 0.0
      %817 = vmatprep.subr.mxu0 0.0
      %818 = vmatpush1.msra.mxu0 0.0
      %819 = vmatprep.subr.mxu0 0.0
      %820 = vmatpush1.msra.mxu0 0.0
      %821 = vmatprep.subr.mxu0 0.0
      %822 = vmatpush1.msra.mxu0 0.0
      %823 = vmatprep.mubr.f32.mxu0 0.0
      %824 = vmatmul.mubr.f32.gmra.mrb[0].mxu0 %v754
      %v825 = vpop.f32.mrb[0].mxu0
      %v826 = vadd.f32 0.0, %v825
      %v827 = vpop.f32.mrb[0].mxu0
      %828 = vmatprep.mubr.f32.mxu0 0.0
      %829 = vmatmul.mubr.f32.gmra.mrb[0].mxu0 %v757
      %v830 = vpop.f32.mrb[0].mxu0
      %v831 = vadd.f32 0.0, %v830
      %v832 = vpop.f32.mrb[0].mxu0
      %833 = vdwg.mxu0
      %834 = vmatprep.subr.mxu0 0.0
      %835 = vmatpush1.msra.mxu0 %v826
      %836 = vmatprep.subr.mxu0 0.0
      %837 = vmatpush1.msra.mxu0 %v831
      %838 = vmatprep.subr.mxu0 0.0
      %839 = vmatpush1.msra.mxu0 0.0
      %840 = vmatprep.subr.mxu0 0.0
      %841 = vmatpush1.msra.mxu0 0.0
      %842 = vmatprep.subr.mxu0 0.0
      %843 = vmatpush1.msra.mxu0 0.0
      %844 = vmatprep.subr.mxu0 0.0
      %845 = vmatpush1.msra.mxu0 0.0
      %846 = vmatprep.subr.mxu0 0.0
      %847 = vmatpush1.msra.mxu0 0.0
      %848 = vmatprep.subr.mxu0 0.0
      %849 = vmatpush1.msra.mxu0 0.0
      %850 = vmatprep.subr.mxu0 0.0
      %851 = vmatpush1.msra.mxu0 0.0
      %852 = vmatprep.subr.mxu0 0.0
      %853 = vmatpush1.msra.mxu0 0.0
      %854 = vmatprep.subr.mxu0 0.0
      %855 = vmatpush1.msra.mxu0 0.0
      %856 = vmatprep.subr.mxu0 0.0
      %857 = vmatpush1.msra.mxu0 0.0
      %858 = vmatprep.subr.mxu0 0.0
      %859 = vmatpush1.msra.mxu0 0.0
      %860 = vmatprep.subr.mxu0 0.0
      %861 = vmatpush1.msra.mxu0 0.0
      %862 = vmatprep.subr.mxu0 0.0
      %863 = vmatpush1.msra.mxu0 0.0
      %864 = vmatprep.subr.mxu0 0.0
      %865 = vmatpush1.msra.mxu0 0.0
      %866 = vmatprep.subr.mxu0 0.0
      %867 = vmatpush1.msra.mxu0 0.0
      %868 = vmatprep.subr.mxu0 0.0
      %869 = vmatpush1.msra.mxu0 0.0
      %870 = vmatprep.subr.mxu0 0.0
      %871 = vmatpush1.msra.mxu0 0.0
      %872 = vmatprep.subr.mxu0 0.0
      %873 = vmatpush1.msra.mxu0 0.0
      %874 = vmatprep.subr.mxu0 0.0
      %875 = vmatpush1.msra.mxu0 0.0
      %876 = vmatprep.subr.mxu0 0.0
      %877 = vmatpush1.msra.mxu0 0.0
      %878 = vmatprep.subr.mxu0 0.0
      %879 = vmatpush1.msra.mxu0 0.0
      %880 = vmatprep.subr.mxu0 0.0
      %881 = vmatpush1.msra.mxu0 0.0
      %882 = vmatprep.subr.mxu0 0.0
      %883 = vmatpush1.msra.mxu0 0.0
      %884 = vmatprep.subr.mxu0 0.0
      %885 = vmatpush1.msra.mxu0 0.0
      %886 = vmatprep.subr.mxu0 0.0
      %887 = vmatpush1.msra.mxu0 0.0
      %888 = vmatprep.subr.mxu0 0.0
      %889 = vmatpush1.msra.mxu0 0.0
      %890 = vmatprep.subr.mxu0 0.0
      %891 = vmatpush1.msra.mxu0 0.0
      %892 = vmatprep.subr.mxu0 0.0
      %893 = vmatpush1.msra.mxu0 0.0
      %894 = vmatprep.subr.mxu0 0.0
      %895 = vmatpush1.msra.mxu0 0.0
      %896 = vmatprep.subr.mxu0 0.0
      %897 = vmatpush1.msra.mxu0 0.0
      %898 = vmatprep.mubr.f32.mxu0 0.0
      %899 = vmatmul.mubr.f32.gmra.mrb[0].mxu0 %v658
      %v900 = vpop.f32.mrb[0].mxu0
      %v901 = vadd.f32 0.0, %v900
      %v902 = vpop.f32.mrb[0].mxu0
      %903 = vmatprep.mubr.f32.mxu0 0.0
      %904 = vmatmul.mubr.f32.gmra.mrb[0].mxu0 %v661
      %v905 = vpop.f32.mrb[0].mxu0
      %v906 = vadd.f32 0.0, %v905
      %v907 = vpop.f32.mrb[0].mxu0
      %908 = vdwg.mxu0
      %v909 = vsub.f32 %v826, %v901
      %v910 = vsub.f32 %v831, %v906
      %v911 = vld [vmem:[%s5] sm:$0x1]
      %v913 = vlaneseq
      %v914 = vshrl.u32 %v913, 7
      %v915 = vsub.s32 0, %v914
      %v916 = vrot.slane %v911, %v915
      %v918 = vadd.f32 %v909, %v916
      %v919 = vadd.f32 %v910, %v916
      %v920 = vld [vmem:[%s6] sm:$0xff]
      %v921 = vld [vmem:[%s6 + $0x8] sm:$0xff]
      %v922 = vld [vmem:[%s7] sm:$0x1]
      %v924 = vlaneseq
      %v925 = vshrl.u32 %v924, 7
      %v926 = vsub.s32 0, %v925
      %v927 = vrot.slane %v922, %v926
      %v930 = vsel %vm552, %v918, 0
      %v933 = vsel %vm552, %v919, 0
      %935 = vmatprep.subr.mxu0 0.0
      %936 = vmatpush1.msra.mxu0 %v920
      %937 = vmatprep.subr.mxu0 0.0
      %938 = vmatpush1.msra.mxu0 %v921
      %939 = vmatprep.subr.mxu0 0.0
      %940 = vmatpush1.msra.mxu0 0.0
      %941 = vmatprep.subr.mxu0 0.0
      %942 = vmatpush1.msra.mxu0 0.0
      %943 = vmatprep.subr.mxu0 0.0
      %944 = vmatpush1.msra.mxu0 0.0
      %945 = vmatprep.subr.mxu0 0.0
      %946 = vmatpush1.msra.mxu0 0.0
      %947 = vmatprep.subr.mxu0 0.0
      %948 = vmatpush1.msra.mxu0 0.0
      %949 = vmatprep.subr.mxu0 0.0
      %950 = vmatpush1.msra.mxu0 0.0
      %951 = vmatprep.subr.mxu0 0.0
      %952 = vmatpush1.msra.mxu0 0.0
      %953 = vmatprep.subr.mxu0 0.0
      %954 = vmatpush1.msra.mxu0 0.0
      %955 = vmatprep.subr.mxu0 0.0
      %956 = vmatpush1.msra.mxu0 0.0
      %957 = vmatprep.subr.mxu0 0.0
      %958 = vmatpush1.msra.mxu0 0.0
      %959 = vmatprep.subr.mxu0 0.0
      %960 = vmatpush1.msra.mxu0 0.0
      %961 = vmatprep.subr.mxu0 0.0
      %962 = vmatpush1.msra.mxu0 0.0
      %963 = vmatprep.subr.mxu0 0.0
      %964 = vmatpush1.msra.mxu0 0.0
      %965 = vmatprep.subr.mxu0 0.0
      %966 = vmatpush1.msra.mxu0 0.0
      %967 = vmatprep.subr.mxu0 0.0
      %968 = vmatpush1.msra.mxu0 0.0
      %969 = vmatprep.subr.mxu0 0.0
      %970 = vmatpush1.msra.mxu0 0.0
      %971 = vmatprep.subr.mxu0 0.0
      %972 = vmatpush1.msra.mxu0 0.0
      %973 = vmatprep.subr.mxu0 0.0
      %974 = vmatpush1.msra.mxu0 0.0
      %975 = vmatprep.subr.mxu0 0.0
      %976 = vmatpush1.msra.mxu0 0.0
      %977 = vmatprep.subr.mxu0 0.0
      %978 = vmatpush1.msra.mxu0 0.0
      %979 = vmatprep.subr.mxu0 0.0
      %980 = vmatpush1.msra.mxu0 0.0
      %981 = vmatprep.subr.mxu0 0.0
      %982 = vmatpush1.msra.mxu0 0.0
      %983 = vmatprep.subr.mxu0 0.0
      %984 = vmatpush1.msra.mxu0 0.0
      %985 = vmatprep.subr.mxu0 0.0
      %986 = vmatpush1.msra.mxu0 0.0
      %987 = vmatprep.subr.mxu0 0.0
      %988 = vmatpush1.msra.mxu0 0.0
      %989 = vmatprep.subr.mxu0 0.0
      %990 = vmatpush1.msra.mxu0 0.0
      %991 = vmatprep.subr.mxu0 0.0
      %992 = vmatpush1.msra.mxu0 0.0
      %993 = vmatprep.subr.mxu0 0.0
      %994 = vmatpush1.msra.mxu0 0.0
      %995 = vmatprep.subr.mxu0 0.0
      %996 = vmatpush1.msra.mxu0 0.0
      %997 = vmatprep.subr.mxu0 0.0
      %998 = vmatpush1.msra.mxu0 0.0
      %999 = vmatprep.mubr.f32.mxu0 0.0
      %1000 = vmatmul.mubr.f32.gmra.mrb[0].mxu0 %v930
      %v1001 = vpop.f32.mrb[0].mxu0
      %v1002 = vadd.f32 %v927, %v1001
      %v1003 = vpop.f32.mrb[0].mxu0
      %1004 = vmatprep.mubr.f32.mxu0 0.0
      %1005 = vmatmul.mubr.f32.gmra.mrb[0].mxu0 %v933
      %v1006 = vpop.f32.mrb[0].mxu0
      %v1007 = vadd.f32 %v927, %v1006
      %v1008 = vpop.f32.mrb[0].mxu0
      %1009 = vdwg.mxu0
      %v1010 = vmax.f32 %v1002, 0.0
      %v1011 = vmax.f32 %v1007, 0.0
      %v1012 = vld [vmem:[%s8] sm:$0xff]
      %v1013 = vld [vmem:[%s8 + $0x8] sm:$0xff]
      %v1014 = vld [vmem:[%s9] sm:$0x1]
      %v1016 = vlaneseq
      %v1017 = vshrl.u32 %v1016, 7
      %v1018 = vsub.s32 0, %v1017
      %v1019 = vrot.slane %v1014, %v1018
      %v1022 = vsel %vm552, %v1010, 0
      %v1025 = vsel %vm552, %v1011, 0
      %1027 = vmatprep.subr.mxu0 0.0
      %1028 = vmatpush1.msra.mxu0 %v1012
      %1029 = vmatprep.subr.mxu0 0.0
      %1030 = vmatpush1.msra.mxu0 %v1013
      %1031 = vmatprep.subr.mxu0 0.0
      %1032 = vmatpush1.msra.mxu0 0.0
      %1033 = vmatprep.subr.mxu0 0.0
      %1034 = vmatpush1.msra.mxu0 0.0
      %1035 = vmatprep.subr.mxu0 0.0
      %1036 = vmatpush1.msra.mxu0 0.0
      %1037 = vmatprep.subr.mxu0 0.0
      %1038 = vmatpush1.msra.mxu0 0.0
      %1039 = vmatprep.subr.mxu0 0.0
      %1040 = vmatpush1.msra.mxu0 0.0
      %1041 = vmatprep.subr.mxu0 0.0
      %1042 = vmatpush1.msra.mxu0 0.0
      %1043 = vmatprep.subr.mxu0 0.0
      %1044 = vmatpush1.msra.mxu0 0.0
      %1045 = vmatprep.subr.mxu0 0.0
      %1046 = vmatpush1.msra.mxu0 0.0
      %1047 = vmatprep.subr.mxu0 0.0
      %1048 = vmatpush1.msra.mxu0 0.0
      %1049 = vmatprep.subr.mxu0 0.0
      %1050 = vmatpush1.msra.mxu0 0.0
      %1051 = vmatprep.subr.mxu0 0.0
      %1052 = vmatpush1.msra.mxu0 0.0
      %1053 = vmatprep.subr.mxu0 0.0
      %1054 = vmatpush1.msra.mxu0 0.0
      %1055 = vmatprep.subr.mxu0 0.0
      %1056 = vmatpush1.msra.mxu0 0.0
      %1057 = vmatprep.subr.mxu0 0.0
      %1058 = vmatpush1.msra.mxu0 0.0
      %1059 = vmatprep.subr.mxu0 0.0
      %1060 = vmatpush1.msra.mxu0 0.0
      %1061 = vmatprep.subr.mxu0 0.0
      %1062 = vmatpush1.msra.mxu0 0.0
      %1063 = vmatprep.subr.mxu0 0.0
      %1064 = vmatpush1.msra.mxu0 0.0
      %1065 = vmatprep.subr.mxu0 0.0
      %1066 = vmatpush1.msra.mxu0 0.0
      %1067 = vmatprep.subr.mxu0 0.0
      %1068 = vmatpush1.msra.mxu0 0.0
      %1069 = vmatprep.subr.mxu0 0.0
      %1070 = vmatpush1.msra.mxu0 0.0
      %1071 = vmatprep.subr.mxu0 0.0
      %1072 = vmatpush1.msra.mxu0 0.0
      %1073 = vmatprep.subr.mxu0 0.0
      %1074 = vmatpush1.msra.mxu0 0.0
      %1075 = vmatprep.subr.mxu0 0.0
      %1076 = vmatpush1.msra.mxu0 0.0
      %1077 = vmatprep.subr.mxu0 0.0
      %1078 = vmatpush1.msra.mxu0 0.0
      %1079 = vmatprep.subr.mxu0 0.0
      %1080 = vmatpush1.msra.mxu0 0.0
      %1081 = vmatprep.subr.mxu0 0.0
      %1082 = vmatpush1.msra.mxu0 0.0
      %1083 = vmatprep.subr.mxu0 0.0
      %1084 = vmatpush1.msra.mxu0 0.0
      %1085 = vmatprep.subr.mxu0 0.0
      %1086 = vmatpush1.msra.mxu0 0.0
      %1087 = vmatprep.subr.mxu0 0.0
      %1088 = vmatpush1.msra.mxu0 0.0
      %1089 = vmatprep.subr.mxu0 0.0
      %1090 = vmatpush1.msra.mxu0 0.0
      %1091 = vmatprep.mubr.f32.mxu0 0.0
      %1092 = vmatmul.mubr.f32.gmra.mrb[0].mxu0 %v1022
      %v1093 = vpop.f32.mrb[0].mxu0
      %v1094 = vadd.f32 %v1019, %v1093
      %v1095 = vpop.f32.mrb[0].mxu0
      %1096 = vmatprep.mubr.f32.mxu0 0.0
      %1097 = vmatmul.mubr.f32.gmra.mrb[0].mxu0 %v1025
      %v1098 = vpop.f32.mrb[0].mxu0
      %v1099 = vadd.f32 %v1019, %v1098
      %v1100 = vpop.f32.mrb[0].mxu0
      %1101 = vdwg.mxu0
      %v1102 = vmax.f32 %v1094, 0.0
      %v1103 = vmax.f32 %v1099, 0.0
      %v1104 = vld [vmem:[%s10] sm:$0xff]
      %v1105 = vld [vmem:[#allocation2] sm:$0x1]
      %v1107 = vlaneseq
      %v1108 = vshrl.u32 %v1107, 7
      %v1109 = vsub.s32 0, %v1108
      %v1110 = vrot.slane %v1105, %v1109
      %v1113 = vsel %vm468, %v1102, 0
      %v1116 = vsel %vm468, %v1103, 0
      %1118 = vmatprep.subr.mxu0 0.0
      %1119 = vmatpush1.msra.mxu0 %v1104
      %1120 = vmatprep.subr.mxu0 0.0
      %1121 = vmatpush1.msra.mxu0 0.0
      %1122 = vmatprep.subr.mxu0 0.0
      %1123 = vmatpush1.msra.mxu0 0.0
      %1124 = vmatprep.subr.mxu0 0.0
      %1125 = vmatpush1.msra.mxu0 0.0
      %1126 = vmatprep.subr.mxu0 0.0
      %1127 = vmatpush1.msra.mxu0 0.0
      %1128 = vmatprep.subr.mxu0 0.0
      %1129 = vmatpush1.msra.mxu0 0.0
      %1130 = vmatprep.subr.mxu0 0.0
      %1131 = vmatpush1.msra.mxu0 0.0
      %1132 = vmatprep.subr.mxu0 0.0
      %1133 = vmatpush1.msra.mxu0 0.0
      %1134 = vmatprep.subr.mxu0 0.0
      %1135 = vmatpush1.msra.mxu0 0.0
      %1136 = vmatprep.subr.mxu0 0.0
      %1137 = vmatpush1.msra.mxu0 0.0
      %1138 = vmatprep.subr.mxu0 0.0
      %1139 = vmatpush1.msra.mxu0 0.0
      %1140 = vmatprep.subr.mxu0 0.0
      %1141 = vmatpush1.msra.mxu0 0.0
      %1142 = vmatprep.subr.mxu0 0.0
      %1143 = vmatpush1.msra.mxu0 0.0
      %1144 = vmatprep.subr.mxu0 0.0
      %1145 = vmatpush1.msra.mxu0 0.0
      %1146 = vmatprep.subr.mxu0 0.0
      %1147 = vmatpush1.msra.mxu0 0.0
      %1148 = vmatprep.subr.mxu0 0.0
      %1149 = vmatpush1.msra.mxu0 0.0
      %1150 = vmatprep.subr.mxu0 0.0
      %1151 = vmatpush1.msra.mxu0 0.0
      %1152 = vmatprep.subr.mxu0 0.0
      %1153 = vmatpush1.msra.mxu0 0.0
      %1154 = vmatprep.subr.mxu0 0.0
      %1155 = vmatpush1.msra.mxu0 0.0
      %1156 = vmatprep.subr.mxu0 0.0
      %1157 = vmatpush1.msra.mxu0 0.0
      %1158 = vmatprep.subr.mxu0 0.0
      %1159 = vmatpush1.msra.mxu0 0.0
      %1160 = vmatprep.subr.mxu0 0.0
      %1161 = vmatpush1.msra.mxu0 0.0
      %1162 = vmatprep.subr.mxu0 0.0
      %1163 = vmatpush1.msra.mxu0 0.0
      %1164 = vmatprep.subr.mxu0 0.0
      %1165 = vmatpush1.msra.mxu0 0.0
      %1166 = vmatprep.subr.mxu0 0.0
      %1167 = vmatpush1.msra.mxu0 0.0
      %1168 = vmatprep.subr.mxu0 0.0
      %1169 = vmatpush1.msra.mxu0 0.0
      %1170 = vmatprep.subr.mxu0 0.0
      %1171 = vmatpush1.msra.mxu0 0.0
      %1172 = vmatprep.subr.mxu0 0.0
      %1173 = vmatpush1.msra.mxu0 0.0
      %1174 = vmatprep.subr.mxu0 0.0
      %1175 = vmatpush1.msra.mxu0 0.0
      %1176 = vmatprep.subr.mxu0 0.0
      %1177 = vmatpush1.msra.mxu0 0.0
      %1178 = vmatprep.subr.mxu0 0.0
      %1179 = vmatpush1.msra.mxu0 0.0
      %1180 = vmatprep.subr.mxu0 0.0
      %1181 = vmatpush1.msra.mxu0 0.0
      %1182 = vmatprep.mubr.f32.mxu0 0.0
      %1183 = vmatmul.mubr.f32.gmra.mrb[0].mxu0 %v1113
      %v1184 = vpop.f32.mrb[0].mxu0
      %v1185 = vadd.f32 %v1110, %v1184
      %v1186 = vpop.f32.mrb[0].mxu0
      %1187 = vmatprep.mubr.f32.mxu0 0.0
      %1188 = vmatmul.mubr.f32.gmra.mrb[0].mxu0 %v1116
      %v1189 = vpop.f32.mrb[0].mxu0
      %v1190 = vadd.f32 %v1110, %v1189
      %v1191 = vpop.f32.mrb[0].mxu0
      %1192 = vdwg.mxu0
      %vm1193 = vcmask 7168
      %1194 = vst.msk [vmem:[%s432] sm:$0xff] %vm1193, %v1185
      %1195 = vst.msk [vmem:[%s432 + $0x8] sm:$0xff] %vm1193, %v1190
      %p1196 = scmp.lt.s32.totalorder %s25, 1
      %s1197 = scalar_select %p1196, %s25, 1
      %s1198 = smul.addr %s1197, 2
      %s1199 = smul.addr %s1198, 8
      %s1200 = scalar_lea.vmem %s12, %s1199
      // Predicated region
      $region69: #{_lambda_.5} parent=67 // pred_check
        %p1201 = pneg %p305
      $region70: #{_lambda_.5} parent=67 // pred_check_branch
        %1203 = sbr.rel (%p1201) target = $region72
      $region71: #{_lambda_.5} parent=67 // pred_region
        _
      $region72: #{_lambda_.5} parent=67 // pred_fallthru
        _
    $region68: #{_lambda_.5} parent=5 // pred_fallthru
      _
    %p1204 = scmp.le.s32.totalorder 2, %s20
    // Predicated region
    $region73: #{_lambda_.5} parent=5 // pred_check
      %p1205 = pneg %p1204
    $region74: #{_lambda_.5} parent=5 // pred_check_branch
      %1207 = sbr.rel (%p1205) target = $region76
    $region75: #{_lambda_.5} parent=5 // pred_region
      %s1208 = ssub.s32 %s20, 2
      // Predicated region
      $region77: #{_lambda_.5} parent=75 // pred_check
        %p1209 = pneg %p311
      $region78: #{_lambda_.5} parent=75 // pred_check_branch
        %1211 = sbr.rel (%p1209) target = $region80
      $region79: #{_lambda_.5} parent=75 // pred_region
        %p1212 = scmp.lt.s32.totalorder %s26, 1
        %s1213 = scalar_select %p1212, %s26, 1
        %s1214 = smul.addr %s1213, 2
        %s1215 = smul.addr %s1214, 8
        %s1216 = scalar_lea.vmem %s12, %s1215
      $region80: #{_lambda_.5} parent=75 // pred_fallthru
        _
    $region76: #{_lambda_.5} parent=5 // pred_fallthru
      _
  $region6: #{_lambda_.5} parent=0 // loop_footer
    %s24 = sadd.s32 1, %s20
  $region7: #{_lambda_.5} parent=0 // loop_footer_branch
    %19 = sbr.rel target = $region3
  $region8: #{_lambda_.5} parent=0 // loop_exit
    _

// kernel: _lambda_.3
$region0: #{_lambda_.3}
  #allocation0 [shape = 'u32[]', space=smem, size = 0x4, offset = 0x4, fixed_abs, tag = 'smem constant byte address 0x4 - core index']
  #allocation1 [shape = 'u32[144,128]{1,0:T(1,128)}', space=vmem, size = 0x12000, scoped, tag = 'internal scratch']
  %s0 = inlined_call_operand.vmem [shape: f32[8,32,48], index: 0, kind: input, shape index: {}]
  %s1 = inlined_call_operand.vmem [shape: f32[16,48], index: 1, kind: input, shape index: {}]
  %s2 = inlined_call_operand.vmem [shape: f32[1,48], index: 2, kind: input, shape index: {}]
  %s3 = inlined_call_operand.vmem [shape: f32[16,48], index: 3, kind: input, shape index: {}]
  %s4 = inlined_call_operand.vmem [shape: f32[1,48], index: 4, kind: input, shape index: {}]
  %s5 = inlined_call_operand.vmem [shape: f32[16,48], index: 5, kind: input, shape index: {}]
  %s6 = inlined_call_operand.vmem [shape: f32[1,48], index: 6, kind: input, shape index: {}]
  %s7 = inlined_call_operand.vmem [shape: f32[32,16], index: 7, kind: output, shape index: {}]
  %s8 = sld [smem:[#allocation0]]
  $region99: #{_lambda_.3} parent=0
    _
  %s10 = ssub.s32 1, %s8
  %s11 = scalar_select 0, %s10, %s8
  $region1: #{_lambda_.3} parent=0
    #allocation2 [shape = 'u8[131072]{0}', space=vmem, size = 0x20000, scoped, tag = 'input window, operand 0']
    loop: start=0, step=1, limit=4
    $region2: #{_lambda_.3} parent=1 // loop_pre_header
      _
    $region3: #{_lambda_.3} parent=1 // loop_header
      %s13 = sphi 0, %s17
      %p14 = scmp.ge.s32.totalorder %s13, 4
      %s23 = sphi 0, %s25
      %s26 = sphi 0, %s23
      %s27 = sphi 0, %s26
      %s43 = sphi 0, %s27
      %s47 = sphi 0, %s47
      %s49 = sphi 0, %s47
      %s50 = sphi 0, %s49
      %s64 = sphi 0, %s50
      %s68 = sphi 0, %s68
      %s70 = sphi 0, %s68
      %s71 = sphi 0, %s70
      %s85 = sphi 0, %s71
      %s89 = sphi 0, %s89
      %s91 = sphi 0, %s89
      %s92 = sphi 0, %s91
      %s106 = sphi 0, %s92
      %s110 = sphi 0, %s110
      %s112 = sphi 0, %s110
      %s113 = sphi 0, %s112
      %s127 = sphi 0, %s113
      %s131 = sphi 0, %s131
      %s133 = sphi 0, %s131
      %s134 = sphi 0, %s133
      %s148 = sphi 0, %s134
      %s152 = sphi 0, %s152
      %s154 = sphi 0, %s152
      %s155 = sphi 0, %s154
      %s169 = sphi 0, %s155
      %s175 = sphi 0, %s177
      %s178 = sphi 0, %s175
      %s179 = sphi 0, %s178
      %s195 = sphi 0, %s179
    $region4: #{_lambda_.3} parent=1 // loop_header_branch
      %16 = sbr.rel (%p14) target = $region8
    $region5: #{_lambda_.3} parent=1 // loop_body
      %s18 = ssub.s32 %s13, 1
      %s19 = ssub.s32 %s13, 2
      %s20 = sadd.s32 %s13, 1
      %s21 = ssub.s32 %s13, %s20
      %p22 = scmp.eq.s32.totalorder %s21, 0
      %s24 = sadd.s32 %s23, 1
      %s25 = scalar_select %p22, %s23, %s24
      %p28 = pneg %p22
      %p29 = scmp.eq.s32.totalorder %s13, 1
      %p30 = por %p28, %p29
      %p31 = scmp.ne.s32.totalorder %s23, %s26
      %p32 = scmp.eq.s32.totalorder %s13, 0
      %p33 = por %p31, %p32
      %p34 = scmp.ne.s32.totalorder %s23, %s26
      %p35 = scmp.eq.s32.totalorder %s18, 1
      %p36 = por %p34, %p35
      %p37 = scmp.ne.s32.totalorder %s26, %s27
      %p38 = scmp.eq.s32.totalorder %s18, 0
      %p39 = por %p37, %p38
      %p40 = scmp.ne.s32.totalorder %s26, %s27
      %p41 = scmp.eq.s32.totalorder %s19, 1
      %p42 = por %p40, %p41
      %p44 = scmp.ne.s32.totalorder %s27, %s43
      %p45 = scmp.eq.s32.totalorder %s19, 0
      %p46 = por %p44, %p45
      %s48 = sadd.s32 %s47, 1
      %p51 = scmp.eq.s32.totalorder %s13, 1
      %p52 = scmp.ne.s32.totalorder %s47, %s49
      %p53 = scmp.eq.s32.totalorder %s13, 0
      %p54 = por %p52, %p53
      %p55 = scmp.ne.s32.totalorder %s47, %s49
      %p56 = scmp.eq.s32.totalorder %s18, 1
      %p57 = por %p55, %p56
      %p58 = scmp.ne.s32.totalorder %s49, %s50
      %p59 = scmp.eq.s32.totalorder %s18, 0
      %p60 = por %p58, %p59
      %p61 = scmp.ne.s32.totalorder %s49, %s50
      %p62 = scmp.eq.s32.totalorder %s19, 1
      %p63 = por %p61, %p62
      %p65 = scmp.ne.s32.totalorder %s50, %s64
      %p66 = scmp.eq.s32.totalorder %s19, 0
      %p67 = por %p65, %p66
      %s69 = sadd.s32 %s68, 1
      %p72 = scmp.eq.s32.totalorder %s13, 1
      %p73 = scmp.ne.s32.totalorder %s68, %s70
      %p74 = scmp.eq.s32.totalorder %s13, 0
      %p75 = por %p73, %p74
      %p76 = scmp.ne.s32.totalorder %s68, %s70
      %p77 = scmp.eq.s32.totalorder %s18, 1
      %p78 = por %p76, %p77
      %p79 = scmp.ne.s32.totalorder %s70, %s71
      %p80 = scmp.eq.s32.totalorder %s18, 0
      %p81 = por %p79, %p80
      %p82 = scmp.ne.s32.totalorder %s70, %s71
      %p83 = scmp.eq.s32.totalorder %s19, 1
      %p84 = por %p82, %p83
      %p86 = scmp.ne.s32.totalorder %s71, %s85
      %p87 = scmp.eq.s32.totalorder %s19, 0
      %p88 = por %p86, %p87
      %s90 = sadd.s32 %s89, 1
      %p93 = scmp.eq.s32.totalorder %s13, 1
      %p94 = scmp.ne.s32.totalorder %s89, %s91
      %p95 = scmp.eq.s32.totalorder %s13, 0
      %p96 = por %p94, %p95
      %p97 = scmp.ne.s32.totalorder %s89, %s91
      %p98 = scmp.eq.s32.totalorder %s18, 1
      %p99 = por %p97, %p98
      %p100 = scmp.ne.s32.totalorder %s91, %s92
      %p101 = scmp.eq.s32.totalorder %s18, 0
      %p102 = por %p100, %p101
      %p103 = scmp.ne.s32.totalorder %s91, %s92
      %p104 = scmp.eq.s32.totalorder %s19, 1
      %p105 = por %p103, %p104
      %p107 = scmp.ne.s32.totalorder %s92, %s106
      %p108 = scmp.eq.s32.totalorder %s19, 0
      %p109 = por %p107, %p108
      %s111 = sadd.s32 %s110, 1
      %p114 = scmp.eq.s32.totalorder %s13, 1
      %p115 = scmp.ne.s32.totalorder %s110, %s112
      %p116 = scmp.eq.s32.totalorder %s13, 0
      %p117 = por %p115, %p116
      %p118 = scmp.ne.s32.totalorder %s110, %s112
      %p119 = scmp.eq.s32.totalorder %s18, 1
      %p120 = por %p118, %p119
      %p121 = scmp.ne.s32.totalorder %s112, %s113
      %p122 = scmp.eq.s32.totalorder %s18, 0
      %p123 = por %p121, %p122
      %p124 = scmp.ne.s32.totalorder %s112, %s113
      %p125 = scmp.eq.s32.totalorder %s19, 1
      %p126 = por %p124, %p125
      %p128 = scmp.ne.s32.totalorder %s113, %s127
      %p129 = scmp.eq.s32.totalorder %s19, 0
      %p130 = por %p128, %p129
      %s132 = sadd.s32 %s131, 1
      %p135 = scmp.eq.s32.totalorder %s13, 1
      %p136 = scmp.ne.s32.totalorder %s131, %s133
      %p137 = scmp.eq.s32.totalorder %s13, 0
      %p138 = por %p136, %p137
      %p139 = scmp.ne.s32.totalorder %s131, %s133
      %p140 = scmp.eq.s32.totalorder %s18, 1
      %p141 = por %p139, %p140
      %p142 = scmp.ne.s32.totalorder %s133, %s134
      %p143 = scmp.eq.s32.totalorder %s18, 0
      %p144 = por %p142, %p143
      %p145 = scmp.ne.s32.totalorder %s133, %s134
      %p146 = scmp.eq.s32.totalorder %s19, 1
      %p147 = por %p145, %p146
      %p149 = scmp.ne.s32.totalorder %s134, %s148
      %p150 = scmp.eq.s32.totalorder %s19, 0
      %p151 = por %p149, %p150
      %s153 = sadd.s32 %s152, 1
      %p156 = scmp.eq.s32.totalorder %s13, 1
      %p157 = scmp.ne.s32.totalorder %s152, %s154
      %p158 = scmp.eq.s32.totalorder %s13, 0
      %p159 = por %p157, %p158
      %p160 = scmp.ne.s32.totalorder %s152, %s154
      %p161 = scmp.eq.s32.totalorder %s18, 1
      %p162 = por %p160, %p161
      %p163 = scmp.ne.s32.totalorder %s154, %s155
      %p164 = scmp.eq.s32.totalorder %s18, 0
      %p165 = por %p163, %p164
      %p166 = scmp.ne.s32.totalorder %s154, %s155
      %p167 = scmp.eq.s32.totalorder %s19, 1
      %p168 = por %p166, %p167
      %p170 = scmp.ne.s32.totalorder %s155, %s169
      %p171 = scmp.eq.s32.totalorder %s19, 0
      %p172 = por %p170, %p171
      %s173 = ssub.s32 %s13, %s20
      %p174 = scmp.eq.s32.totalorder %s173, 0
      %s176 = sadd.s32 %s175, 1
      %s177 = scalar_select %p174, %s175, %s176
      %p180 = pneg %p174
      %p181 = scmp.eq.s32.totalorder %s13, 1
      %p182 = por %p180, %p181
      %p183 = scmp.ne.s32.totalorder %s175, %s178
      %p184 = scmp.eq.s32.totalorder %s13, 0
      %p185 = por %p183, %p184
      %p186 = scmp.ne.s32.totalorder %s175, %s178
      %p187 = scmp.eq.s32.totalorder %s18, 1
      %p188 = por %p186, %p187
      %p189 = scmp.ne.s32.totalorder %s178, %s179
      %p190 = scmp.eq.s32.totalorder %s18, 0
      %p191 = por %p189, %p190
      %p192 = scmp.ne.s32.totalorder %s178, %s179
      %p193 = scmp.eq.s32.totalorder %s19, 1
      %p194 = por %p192, %p193
      %p196 = scmp.ne.s32.totalorder %s179, %s195
      %p197 = scmp.eq.s32.totalorder %s19, 0
      %p198 = por %p196, %p197
      %p199 = scmp.le.s32.totalorder 1, %s13
      %p200 = scmp.lt.s32.totalorder %s13, 3
      %p201 = pnand %p199, %p200
      %p202 = pneg %p201
      // Predicated region
      $region9: #{_lambda_.3} parent=5 // pred_check
        _
      $region10: #{_lambda_.3} parent=5 // pred_check_branch
        %204 = sbr.rel (%p201) target = $region12
      $region11: #{_lambda_.3} parent=5 // pred_region
        %s205 = ssub.s32 %s13, 1
        // Predicated region
        $region13: #{_lambda_.3} parent=11 // pred_check
          %p206 = pneg %p60
        $region14: #{_lambda_.3} parent=11 // pred_check_branch
          %208 = sbr.rel (%p206) target = $region16
        $region15: #{_lambda_.3} parent=11 // pred_region
          _
        $region16: #{_lambda_.3} parent=11 // pred_fallthru
          _
        // Predicated region
        $region17: #{_lambda_.3} parent=11 // pred_check
          %p209 = pneg %p81
        $region18: #{_lambda_.3} parent=11 // pred_check_branch
          %211 = sbr.rel (%p209) target = $region20
        $region19: #{_lambda_.3} parent=11 // pred_region
          _
        $region20: #{_lambda_.3} parent=11 // pred_fallthru
          _
        // Predicated region
        $region21: #{_lambda_.3} parent=11 // pred_check
          %p212 = pneg %p102
        $region22: #{_lambda_.3} parent=11 // pred_check_branch
          %214 = sbr.rel (%p212) target = $region24
        $region23: #{_lambda_.3} parent=11 // pred_region
          _
        $region24: #{_lambda_.3} parent=11 // pred_fallthru
          _
        // Predicated region
        $region25: #{_lambda_.3} parent=11 // pred_check
          %p215 = pneg %p123
        $region26: #{_lambda_.3} parent=11 // pred_check_branch
          %217 = sbr.rel (%p215) target = $region28
        $region27: #{_lambda_.3} parent=11 // pred_region
          _
        $region28: #{_lambda_.3} parent=11 // pred_fallthru
          _
        // Predicated region
        $region29: #{_lambda_.3} parent=11 // pred_check
          %p218 = pneg %p144
        $region30: #{_lambda_.3} parent=11 // pred_check_branch
          %220 = sbr.rel (%p218) target = $region32
        $region31: #{_lambda_.3} parent=11 // pred_region
          _
        $region32: #{_lambda_.3} parent=11 // pred_fallthru
          _
        // Predicated region
        $region33: #{_lambda_.3} parent=11 // pred_check
          %p221 = pneg %p165
        $region34: #{_lambda_.3} parent=11 // pred_check_branch
          %223 = sbr.rel (%p221) target = $region36
        $region35: #{_lambda_.3} parent=11 // pred_region
          _
        $region36: #{_lambda_.3} parent=11 // pred_fallthru
          _
      $region12: #{_lambda_.3} parent=5 // pred_fallthru
        _
      %p224 = scmp.lt.s32.totalorder %s13, 2
      // Predicated region
      $region37: #{_lambda_.3} parent=5 // pred_check
        %p225 = pneg %p224
      $region38: #{_lambda_.3} parent=5 // pred_check_branch
        %227 = sbr.rel (%p225) target = $region40
      $region39: #{_lambda_.3} parent=5 // pred_region
        // Predicated region
        $region41: #{_lambda_.3} parent=39 // pred_check
          %p228 = pneg %p33
        $region42: #{_lambda_.3} parent=39 // pred_check_branch
          %230 = sbr.rel (%p228) target = $region44
        $region43: #{_lambda_.3} parent=39 // pred_region
          %s231 = sand.u32 %s23, 1
          %s232 = sand.u32 %s23, 1
          %s233 = smul.addr %s232, 128
          %s234 = scalar_lea.vmem [#allocation2], %s233
          %s235 = smul.u32 2, %s13
          %s236 = smul.addr %s235, 8
          %s237 = scalar_lea.vmem %s0, %s236
          // Predicated region
          $region45: #{_lambda_.3} parent=43 // pred_check
            _
          $region46: #{_lambda_.3} parent=43 // pred_check_branch
            %239 = sbr.rel (0) target = $region48
          $region47: #{_lambda_.3} parent=43 // pred_region
            // Predicated region
            $region49: #{_lambda_.3} parent=47 // pred_check
              _
            $region50: #{_lambda_.3} parent=47 // pred_check_branch
              %241 = sbr.rel (0) target = $region52
            $region51: #{_lambda_.3} parent=47 // pred_region
              // Predicated region
              $region64: #{_lambda_.3} parent=51 // pred_check
                _
              $region65: #{_lambda_.3} parent=51 // pred_check_branch
                %286 = sbr.rel (0) target = $region67
              $region66: #{_lambda_.3} parent=51 // pred_region
                loop: start=0, step=1, limit=1
                $region68: #{_lambda_.3} parent=66 // loop_pre_header
                  _
                $region69: #{_lambda_.3} parent=66 // loop_header
                  %s288 = sphi 0, %s292
                  %p289 = scmp.ge.s32.totalorder %s288, 1
                  %s293 = sphi %s237, %s237
                  %s294 = sphi %s234, %s234
                $region70: #{_lambda_.3} parent=66 // loop_header_branch
                  %291 = sbr.rel (%p289) target = $region74
                $region71: #{_lambda_.3} parent=66 // loop_body
                  %v295 = vld [vmem:[%s293] sm:$0xff]
                  %296 = vst [vmem:[%s294] sm:$0xff] %v295
                  %v297 = vld [vmem:[%s293 + $0x8] sm:$0xff]
                  %298 = vst [vmem:[%s294 + $0x8] sm:$0xff] %v297
                  %v299 = vld [vmem:[%s293 + $0x20] sm:$0xff]
                  %300 = vst [vmem:[%s294 + $0x10] sm:$0xff] %v299
                  %v301 = vld [vmem:[%s293 + $0x28] sm:$0xff]
                  %302 = vst [vmem:[%s294 + $0x18] sm:$0xff] %v301
                  %v303 = vld [vmem:[%s293 + $0x40] sm:$0xff]
                  %304 = vst [vmem:[%s294 + $0x20] sm:$0xff] %v303
                  %v305 = vld [vmem:[%s293 + $0x48] sm:$0xff]
                  %306 = vst [vmem:[%s294 + $0x28] sm:$0xff] %v305
                  %v307 = vld [vmem:[%s293 + $0x60] sm:$0xff]
                  %308 = vst [vmem:[%s294 + $0x30] sm:$0xff] %v307
                  %v309 = vld [vmem:[%s293 + $0x68] sm:$0xff]
                  %310 = vst [vmem:[%s294 + $0x38] sm:$0xff] %v309
                  %v311 = vld [vmem:[%s293 + $0x80] sm:$0xff]
                  %312 = vst [vmem:[%s294 + $0x40] sm:$0xff] %v311
                  %v313 = vld [vmem:[%s293 + $0x88] sm:$0xff]
                  %314 = vst [vmem:[%s294 + $0x48] sm:$0xff] %v313
                  %v315 = vld [vmem:[%s293 + $0xa0] sm:$0xff]
                  %316 = vst [vmem:[%s294 + $0x50] sm:$0xff] %v315
                  %v317 = vld [vmem:[%s293 + $0xa8] sm:$0xff]
                  %318 = vst [vmem:[%s294 + $0x58] sm:$0xff] %v317
                  %v319 = vld [vmem:[%s293 + $0xc0] sm:$0xff]
                  %320 = vst [vmem:[%s294 + $0x60] sm:$0xff] %v319
                  %v321 = vld [vmem:[%s293 + $0xc8] sm:$0xff]
                  %322 = vst [vmem:[%s294 + $0x68] sm:$0xff] %v321
                  %v323 = vld [vmem:[%s293 + $0xe0] sm:$0xff]
                  %324 = vst [vmem:[%s294 + $0x70] sm:$0xff] %v323
                  %v325 = vld [vmem:[%s293 + $0xe8] sm:$0xff]
                  %326 = vst [vmem:[%s294 + $0x78] sm:$0xff] %v325
                $region72: #{_lambda_.3} parent=66 // loop_footer
                  %s292 = sadd.s32 1, %s288
                $region73: #{_lambda_.3} parent=66 // loop_footer_branch
                  %287 = sbr.rel target = $region69
                $region74: #{_lambda_.3} parent=66 // loop_exit
                  _
              $region67: #{_lambda_.3} parent=51 // pred_fallthru
                _
              // Predicated region
              $region75: #{_lambda_.3} parent=51 // pred_check
                _
              $region76: #{_lambda_.3} parent=51 // pred_check_branch
                %328 = sbr.rel target = $region78
              $region77: #{_lambda_.3} parent=51 // pred_region
                _
              $region78: #{_lambda_.3} parent=51 // pred_fallthru
                _
            $region52: #{_lambda_.3} parent=47 // pred_fallthru
              _
            // Predicated region
            $region53: #{_lambda_.3} parent=47 // pred_check
              _
            $region54: #{_lambda_.3} parent=47 // pred_check_branch
              %243 = sbr.rel target = $region56
            $region55: #{_lambda_.3} parent=47 // pred_region
              loop: start=0, step=1, limit=1
              $region57: #{_lambda_.3} parent=55 // loop_pre_header
                _
              $region58: #{_lambda_.3} parent=55 // loop_header
                %s246 = sphi 0, %s250
                %p247 = scmp.ge.s32.totalorder %s246, 1
                %s251 = sphi %s237, %s237
                %s252 = sphi %s234, %s234
              $region59: #{_lambda_.3} parent=55 // loop_header_branch
                %249 = sbr.rel (%p247) target = $region63
              $region60: #{_lambda_.3} parent=55 // loop_body
                %v253 = vld [vmem:[%s251] sm:$0xff]
                %254 = vst [vmem:[%s252] sm:$0xff] %v253
                %v255 = vld [vmem:[%s251 + $0x8] sm:$0xff]
                %256 = vst [vmem:[%s252 + $0x8] sm:$0xff] %v255
                %v257 = vld [vmem:[%s251 + $0x20] sm:$0xff]
                %258 = vst [vmem:[%s252 + $0x10] sm:$0xff] %v257
                %v259 = vld [vmem:[%s251 + $0x28] sm:$0xff]
                %260 = vst [vmem:[%s252 + $0x18] sm:$0xff] %v259
                %v261 = vld [vmem:[%s251 + $0x40] sm:$0xff]
                %262 = vst [vmem:[%s252 + $0x20] sm:$0xff] %v261
                %v263 = vld [vmem:[%s251 + $0x48] sm:$0xff]
                %264 = vst [vmem:[%s252 + $0x28] sm:$0xff] %v263
                %v265 = vld [vmem:[%s251 + $0x60] sm:$0xff]
                %266 = vst [vmem:[%s252 + $0x30] sm:$0xff] %v265
                %v267 = vld [vmem:[%s251 + $0x68] sm:$0xff]
                %268 = vst [vmem:[%s252 + $0x38] sm:$0xff] %v267
                %v269 = vld [vmem:[%s251 + $0x80] sm:$0xff]
                %270 = vst [vmem:[%s252 + $0x40] sm:$0xff] %v269
                %v271 = vld [vmem:[%s251 + $0x88] sm:$0xff]
                %272 = vst [vmem:[%s252 + $0x48] sm:$0xff] %v271
                %v273 = vld [vmem:[%s251 + $0xa0] sm:$0xff]
                %274 = vst [vmem:[%s252 + $0x50] sm:$0xff] %v273
                %v275 = vld [vmem:[%s251 + $0xa8] sm:$0xff]
                %276 = vst [vmem:[%s252 + $0x58] sm:$0xff] %v275
                %v277 = vld [vmem:[%s251 + $0xc0] sm:$0xff]
                %278 = vst [vmem:[%s252 + $0x60] sm:$0xff] %v277
                %v279 = vld [vmem:[%s251 + $0xc8] sm:$0xff]
                %280 = vst [vmem:[%s252 + $0x68] sm:$0xff] %v279
                %v281 = vld [vmem:[%s251 + $0xe0] sm:$0xff]
                %282 = vst [vmem:[%s252 + $0x70] sm:$0xff] %v281
                %v283 = vld [vmem:[%s251 + $0xe8] sm:$0xff]
                %284 = vst [vmem:[%s252 + $0x78] sm:$0xff] %v283
              $region61: #{_lambda_.3} parent=55 // loop_footer
                %s250 = sadd.s32 1, %s246
              $region62: #{_lambda_.3} parent=55 // loop_footer_branch
                %245 = sbr.rel target = $region58
              $region63: #{_lambda_.3} parent=55 // loop_exit
                _
            $region56: #{_lambda_.3} parent=47 // pred_fallthru
              _
          $region48: #{_lambda_.3} parent=43 // pred_fallthru
            _
          %329 = vnop
        $region44: #{_lambda_.3} parent=39 // pred_fallthru
          _
      $region40: #{_lambda_.3} parent=5 // pred_fallthru
        _
      %p330 = scmp.le.s32.totalorder 1, %s13
      %p331 = scmp.lt.s32.totalorder %s13, 3
      %p332 = pnand %p330, %p331
      %p333 = pneg %p332
      // Predicated region
      $region79: #{_lambda_.3} parent=5 // pred_check
        _
      $region80: #{_lambda_.3} parent=5 // pred_check_branch
        %335 = sbr.rel (%p332) target = $region82
      $region81: #{_lambda_.3} parent=5 // pred_region
        %s336 = ssub.s32 %s13, 1
        %s337 = sand.u32 %s26, 1
        %s338 = sand.u32 %s26, 1
        %s339 = smul.addr %s338, 128
        %s340 = scalar_lea.vmem [#allocation2], %s339
        // Predicated region
        $region83: #{_lambda_.3} parent=81 // pred_check
          %p341 = pneg %p39
        $region84: #{_lambda_.3} parent=81 // pred_check_branch
          %343 = sbr.rel (%p341) target = $region86
        $region85: #{_lambda_.3} parent=81 // pred_region
          _
        $region86: #{_lambda_.3} parent=81 // pred_fallthru
          _
        %s344 = sand.u32 %s26, 1
        %s345 = sand.u32 %s26, 1
        %s346 = smul.addr %s345, 128
        %s347 = scalar_lea.vmem [#allocation2], %s346
        %p348 = pneg %p39
        %p349 = pneg %p36
        %p350 = pneg %p60
        %p351 = pneg %p57
        %p352 = pneg %p81
        %p353 = pneg %p78
        %p354 = pneg %p102
        %p355 = pneg %p99
        %p356 = pneg %p123
        %p357 = pneg %p120
        %p358 = pneg %p144
        %p359 = pneg %p141
        %p360 = pneg %p165
        %p361 = pneg %p162
        %p362 = pneg %p191
        %p363 = pneg %p188
        %s364 = smul.u32 2, %s18
        %p365 = scmp.lt.s32.totalorder %s364, 3
        %s366 = scalar_select %p365, %s364, 3
        %s367 = smul.addr %s366, 8
        %s368 = scalar_lea.vmem %s7, %s367
        %s369 = smul.u32 2, %s18
        %s370 = smul.u32 2, %s18
        %p371 = scmp.lt.s32.totalorder %s370, 3
        %s372 = scalar_select %p371, %s370, 3
        %s373 = smul.addr %s372, 8
        %s374 = scalar_lea.vmem %s7, %s373
        %s375 = smul.u32 2, %s18
        %v376 = vld [vmem:[%s1] sm:$0xff]
        %v377 = vld [vmem:[%s1 + $0x8] sm:$0xff]
        %v378 = vld [vmem:[%s2] sm:$0x1]
        %v379 = vld [vmem:[%s3] sm:$0xff]
        %v380 = vld [vmem:[%s3 + $0x8] sm:$0xff]
        %v381 = vld [vmem:[%s4] sm:$0x1]
        %v382 = vld [vmem:[%s5] sm:$0xff]
        %v383 = vld [vmem:[%s5 + $0x8] sm:$0xff]
        %v384 = vld [vmem:[%s6] sm:$0x1]
        %v385 = vld [vmem:[%s340] sm:$0xff]
        %v386 = vld [vmem:[%s340 + $0x8] sm:$0xff]
        %v388 = vlaneseq
        %v389 = vshrl.u32 %v388, 7
        %v390 = vsub.s32 0, %v389
        %v391 = vrot.slane %v378, %v390
        %vm393 = vcmask 130048
        %v395 = vsel %vm393, 0.0, 0
        %397 = vmatprep.subr.mxu0 0.0
        %398 = vmatpush1.msra.mxu0 %v376
        %399 = vmatprep.subr.mxu0 0.0
        %400 = vmatpush1.msra.mxu0 %v377
        %401 = vmatprep.subr.mxu0 0.0
        %402 = vmatpush1.msra.mxu0 0.0
        %403 = vmatprep.subr.mxu0 0.0
        %404 = vmatpush1.msra.mxu0 0.0
        %405 = vmatprep.subr.mxu0 0.0
        %406 = vmatpush1.msra.mxu0 0.0
        %407 = vmatprep.subr.mxu0 0.0
        %408 = vmatpush1.msra.mxu0 0.0
        %409 = vmatprep.subr.mxu0 0.0
        %410 = vmatpush1.msra.mxu0 0.0
        %411 = vmatprep.subr.mxu0 0.0
        %412 = vmatpush1.msra.mxu0 0.0
        %413 = vmatprep.subr.mxu0 0.0
        %414 = vmatpush1.msra.mxu0 0.0
        %415 = vmatprep.subr.mxu0 0.0
        %416 = vmatpush1.msra.mxu0 0.0
        %417 = vmatprep.subr.mxu0 0.0
        %418 = vmatpush1.msra.mxu0 0.0
        %419 = vmatprep.subr.mxu0 0.0
        %420 = vmatpush1.msra.mxu0 0.0
        %421 = vmatprep.subr.mxu0 0.0
        %422 = vmatpush1.msra.mxu0 0.0
        %423 = vmatprep.subr.mxu0 0.0
        %424 = vmatpush1.msra.mxu0 0.0
        %425 = vmatprep.subr.mxu0 0.0
        %426 = vmatpush1.msra.mxu0 0.0
        %427 = vmatprep.subr.mxu0 0.0
        %428 = vmatpush1.msra.mxu0 0.0
        %429 = vmatprep.subr.mxu0 0.0
        %430 = vmatpush1.msra.mxu0 0.0
        %431 = vmatprep.subr.mxu0 0.0
        %432 = vmatpush1.msra.mxu0 0.0
        %433 = vmatprep.subr.mxu0 0.0
        %434 = vmatpush1.msra.mxu0 0.0
        %435 = vmatprep.subr.mxu0 0.0
        %436 = vmatpush1.msra.mxu0 0.0
        %437 = vmatprep.subr.mxu0 0.0
        %438 = vmatpush1.msra.mxu0 0.0
        %439 = vmatprep.subr.mxu0 0.0
        %440 = vmatpush1.msra.mxu0 0.0
        %441 = vmatprep.subr.mxu0 0.0
        %442 = vmatpush1.msra.mxu0 0.0
        %443 = vmatprep.subr.mxu0 0.0
        %444 = vmatpush1.msra.mxu0 0.0
        %445 = vmatprep.subr.mxu0 0.0
        %446 = vmatpush1.msra.mxu0 0.0
        %447 = vmatprep.subr.mxu0 0.0
        %448 = vmatpush1.msra.mxu0 0.0
        %449 = vmatprep.subr.mxu0 0.0
        %450 = vmatpush1.msra.mxu0 0.0
        %451 = vmatprep.subr.mxu0 0.0
        %452 = vmatpush1.msra.mxu0 0.0
        %453 = vmatprep.subr.mxu0 0.0
        %454 = vmatpush1.msra.mxu0 0.0
        %455 = vmatprep.subr.mxu0 0.0
        %456 = vmatpush1.msra.mxu0 0.0
        %457 = vmatprep.subr.mxu0 0.0
        %458 = vmatpush1.msra.mxu0 0.0
        %459 = vmatprep.subr.mxu0 0.0
        %460 = vmatpush1.msra.mxu0 0.0
        %461 = vmatprep.mubr.f32.mxu0 0.0
        %462 = vmatmul.mubr.f32.gmra.mrb[0].mxu0 %v395
        %v463 = vpop.f32.mrb[0].mxu0
        %v464 = vadd.f32 %v391, %v463
        %v465 = vpop.f32.mrb[0].mxu0
        %466 = vmatprep.mubr.f32.mxu0 0.0
        %467 = vmatmul.mubr.f32.gmra.mrb[0].mxu0 %v395
        %v468 = vpop.f32.mrb[0].mxu0
        %v469 = vadd.f32 %v391, %v468
        %v470 = vpop.f32.mrb[0].mxu0
        %471 = vdwg.mxu0
        %v472 = vadd.f32 %v385, %v464
        %v473 = vadd.f32 %v386, %v469
        %v474 = vmul.f32 %v472, 0.5
        %v475 = vmul.f32 %v473, 0.5
        %v476 = vtanh.pop %v474
        %v477 = vtanh.pop %v475
        %v478 = vmul.f32 %v476, 0.5
        %v479 = vmul.f32 %v477, 0.5
        %v480 = vadd.f32 %v478, 0.5
        %v481 = vadd.f32 %v479, 0.5
        %484 = vrot.lane.b32.xlu0 %v464, 96
        %v485 = vpop.permute.xlu0 %484
        %486 = vrot.lane.b32.xlu0 %v469, 96
        %v487 = vpop.permute.xlu0 %486
        %v490 = vmul.f32 %v480, %v485
        %v491 = vmul.f32 %v481, %v487
        %494 = vrot.lane.b32.xlu0 %v490, 32
        %v495 = vpop.permute.xlu0 %494
        %496 = vrot.lane.b32.xlu0 %v491, 32
        %v497 = vpop.permute.xlu0 %496
        %v500 = vadd.f32 %v385, %v495
        %v501 = vadd.f32 %v386, %v497
        %v502 = vtanh.pop %v500
        %v503 = vtanh.pop %v501
        %v504 = vsub.f32 1.0, %v480
        %v505 = vsub.f32 1.0, %v481
        %508 = vrot.lane.b32.xlu0 %v502, 112
        %v509 = vpop.permute.xlu0 %508
        %510 = vrot.lane.b32.xlu0 %v503, 112
        %v511 = vpop.permute.xlu0 %510
        %v514 = vmul.f32 %v504, %v509
        %v515 = vmul.f32 %v505, %v511
        %v516 = vmul.f32 %v480, 0.0
        %v517 = vmul.f32 %v481, 0.0
        %v518 = vadd.f32 %v514, %v516
        %v519 = vadd.f32 %v515, %v517
        %v521 = vlaneseq
        %v522 = vshrl.u32 %v521, 7
        %v523 = vsub.s32 0, %v522
        %v524 = vrot.slane %v381, %v523
        %528 = vrot.lane.b32.xlu0 %v518, 112
        %v529 = vpop.permute.xlu0 %528
        %530 = vrot.lane.b32.xlu0 %v519, 112
        %v531 = vpop.permute.xlu0 %530
        %v532 = vsel %vm393, %v529, 0
        %v534 = vsel %vm393, %v531, 0
        %536 = vmatprep.subr.mxu0 0.0
        %537 = vmatpush1.msra.mxu0 %v379
        %538 = vmatprep.subr.mxu0 0.0
        %539 = vmatpush1.msra.mxu0 %v380
        %540 = vmatprep.subr.mxu0 0.0
        %541 = vmatpush1.msra.mxu0 0.0
        %542 = vmatprep.subr.mxu0 0.0
        %543 = vmatpush1.msra.mxu0 0.0
        %544 = vmatprep.subr.mxu0 0.0
        %545 = vmatpush1.msra.mxu0 0.0
        %546 = vmatprep.subr.mxu0 0.0
        %547 = vmatpush1.msra.mxu0 0.0
        %548 = vmatprep.subr.mxu0 0.0
        %549 = vmatpush1.msra.mxu0 0.0
        %550 = vmatprep.subr.mxu0 0.0
        %551 = vmatpush1.msra.mxu0 0.0
        %552 = vmatprep.subr.mxu0 0.0
        %553 = vmatpush1.msra.mxu0 0.0
        %554 = vmatprep.subr.mxu0 0.0
        %555 = vmatpush1.msra.mxu0 0.0
        %556 = vmatprep.subr.mxu0 0.0
        %557 = vmatpush1.msra.mxu0 0.0
        %558 = vmatprep.subr.mxu0 0.0
        %559 = vmatpush1.msra.mxu0 0.0
        %560 = vmatprep.subr.mxu0 0.0
        %561 = vmatpush1.msra.mxu0 0.0
        %562 = vmatprep.subr.mxu0 0.0
        %563 = vmatpush1.msra.mxu0 0.0
        %564 = vmatprep.subr.mxu0 0.0
        %565 = vmatpush1.msra.mxu0 0.0
        %566 = vmatprep.subr.mxu0 0.0
        %567 = vmatpush1.msra.mxu0 0.0
        %568 = vmatprep.subr.mxu0 0.0
        %569 = vmatpush1.msra.mxu0 0.0
        %570 = vmatprep.subr.mxu0 0.0
        %571 = vmatpush1.msra.mxu0 0.0
        %572 = vmatprep.subr.mxu0 0.0
        %573 = vmatpush1.msra.mxu0 0.0
        %574 = vmatprep.subr.mxu0 0.0
        %575 = vmatpush1.msra.mxu0 0.0
        %576 = vmatprep.subr.mxu0 0.0
        %577 = vmatpush1.msra.mxu0 0.0
        %578 = vmatprep.subr.mxu0 0.0
        %579 = vmatpush1.msra.mxu0 0.0
        %580 = vmatprep.subr.mxu0 0.0
        %581 = vmatpush1.msra.mxu0 0.0
        %582 = vmatprep.subr.mxu0 0.0
        %583 = vmatpush1.msra.mxu0 0.0
        %584 = vmatprep.subr.mxu0 0.0
        %585 = vmatpush1.msra.mxu0 0.0
        %586 = vmatprep.subr.mxu0 0.0
        %587 = vmatpush1.msra.mxu0 0.0
        %588 = vmatprep.subr.mxu0 0.0
        %589 = vmatpush1.msra.mxu0 0.0
        %590 = vmatprep.subr.mxu0 0.0
        %591 = vmatpush1.msra.mxu0 0.0
        %592 = vmatprep.subr.mxu0 0.0
        %593 = vmatpush1.msra.mxu0 0.0
        %594 = vmatprep.subr.mxu0 0.0
        %595 = vmatpush1.msra.mxu0 0.0
        %596 = vmatprep.subr.mxu0 0.0
        %597 = vmatpush1.msra.mxu0 0.0
        %598 = vmatprep.subr.mxu0 0.0
        %599 = vmatpush1.msra.mxu0 0.0
        %600 = vmatprep.mubr.f32.mxu0 0.0
        %601 = vmatmul.mubr.f32.gmra.mrb[0].mxu0 %v532
        %v602 = vpop.f32.mrb[0].mxu0
        %v603 = vadd.f32 %v524, %v602
        %v604 = vpop.f32.mrb[0].mxu0
        %605 = vmatprep.mubr.f32.mxu0 0.0
        %606 = vmatmul.mubr.f32.gmra.mrb[0].mxu0 %v534
        %v607 = vpop.f32.mrb[0].mxu0
        %v608 = vadd.f32 %v524, %v607
        %v609 = vpop.f32.mrb[0].mxu0
        %610 = vdwg.mxu0
        %v612 = vlaneseq
        %v613 = vshrl.u32 %v612, 7
        %v614 = vsub.s32 0, %v613
        %v615 = vrot.slane %v384, %v614
        %617 = vmatprep.subr.mxu0 0.0
        %618 = vmatpush1.msra.mxu0 %v382
        %619 = vmatprep.subr.mxu0 0.0
        %620 = vmatpush1.msra.mxu0 %v383
        %621 = vmatprep.subr.mxu0 0.0
        %622 = vmatpush1.msra.mxu0 0.0
        %623 = vmatprep.subr.mxu0 0.0
        %624 = vmatpush1.msra.mxu0 0.0
        %625 = vmatprep.subr.mxu0 0.0
        %626 = vmatpush1.msra.mxu0 0.0
        %627 = vmatprep.subr.mxu0 0.0
        %628 = vmatpush1.msra.mxu0 0.0
        %629 = vmatprep.subr.mxu0 0.0
        %630 = vmatpush1.msra.mxu0 0.0
        %631 = vmatprep.subr.mxu0 0.0
        %632 = vmatpush1.msra.mxu0 0.0
        %633 = vmatprep.subr.mxu0 0.0
        %634 = vmatpush1.msra.mxu0 0.0
        %635 = vmatprep.subr.mxu0 0.0
        %636 = vmatpush1.msra.mxu0 0.0
        %637 = vmatprep.subr.mxu0 0.0
        %638 = vmatpush1.msra.mxu0 0.0
        %639 = vmatprep.subr.mxu0 0.0
        %640 = vmatpush1.msra.mxu0 0.0
        %641 = vmatprep.subr.mxu0 0.0
        %642 = vmatpush1.msra.mxu0 0.0
        %643 = vmatprep.subr.mxu0 0.0
        %644 = vmatpush1.msra.mxu0 0.0
        %645 = vmatprep.subr.mxu0 0.0
        %646 = vmatpush1.msra.mxu0 0.0
        %647 = vmatprep.subr.mxu0 0.0
        %648 = vmatpush1.msra.mxu0 0.0
        %649 = vmatprep.subr.mxu0 0.0
        %650 = vmatpush1.msra.mxu0 0.0
        %651 = vmatprep.subr.mxu0 0.0
        %652 = vmatpush1.msra.mxu0 0.0
        %653 = vmatprep.subr.mxu0 0.0
        %654 = vmatpush1.msra.mxu0 0.0
        %655 = vmatprep.subr.mxu0 0.0
        %656 = vmatpush1.msra.mxu0 0.0
        %657 = vmatprep.subr.mxu0 0.0
        %658 = vmatpush1.msra.mxu0 0.0
        %659 = vmatprep.subr.mxu0 0.0
        %660 = vmatpush1.msra.mxu0 0.0
        %661 = vmatprep.subr.mxu0 0.0
        %662 = vmatpush1.msra.mxu0 0.0
        %663 = vmatprep.subr.mxu0 0.0
        %664 = vmatpush1.msra.mxu0 0.0
        %665 = vmatprep.subr.mxu0 0.0
        %666 = vmatpush1.msra.mxu0 0.0
        %667 = vmatprep.subr.mxu0 0.0
        %668 = vmatpush1.msra.mxu0 0.0
        %669 = vmatprep.subr.mxu0 0.0
        %670 = vmatpush1.msra.mxu0 0.0
        %671 = vmatprep.subr.mxu0 0.0
        %672 = vmatpush1.msra.mxu0 0.0
        %673 = vmatprep.subr.mxu0 0.0
        %674 = vmatpush1.msra.mxu0 0.0
        %675 = vmatprep.subr.mxu0 0.0
        %676 = vmatpush1.msra.mxu0 0.0
        %677 = vmatprep.subr.mxu0 0.0
        %678 = vmatpush1.msra.mxu0 0.0
        %679 = vmatprep.subr.mxu0 0.0
        %680 = vmatpush1.msra.mxu0 0.0
        %681 = vmatprep.mubr.f32.mxu0 0.0
        %682 = vmatmul.mubr.f32.gmra.mrb[0].mxu0 %v395
        %v683 = vpop.f32.mrb[0].mxu0
        %v684 = vadd.f32 %v615, %v683
        %v685 = vpop.f32.mrb[0].mxu0
        %686 = vmatprep.mubr.f32.mxu0 0.0
        %687 = vmatmul.mubr.f32.gmra.mrb[0].mxu0 %v395
        %v688 = vpop.f32.mrb[0].mxu0
        %v689 = vadd.f32 %v615, %v688
        %v690 = vpop.f32.mrb[0].mxu0
        %691 = vdwg.mxu0
        %v692 = vadd.f32 %v603, %v684
        %v693 = vadd.f32 %v608, %v689
        %v694 = vmul.f32 %v692, 0.5
        %v695 = vmul.f32 %v693, 0.5
        %v696 = vtanh.pop %v694
        %v697 = vtanh.pop %v695
        %v698 = vmul.f32 %v696, 0.5
        %v699 = vmul.f32 %v697, 0.5
        %v700 = vadd.f32 %v698, 0.5
        %v701 = vadd.f32 %v699, 0.5
        %704 = vrot.lane.b32.xlu0 %v684, 96
        %v705 = vpop.permute.xlu0 %704
        %706 = vrot.lane.b32.xlu0 %v689, 96
        %v707 = vpop.permute.xlu0 %706
        %v710 = vmul.f32 %v700, %v705
        %v711 = vmul.f32 %v701, %v707
        %714 = vrot.lane.b32.xlu0 %v710, 32
        %v715 = vpop.permute.xlu0 %714
        %716 = vrot.lane.b32.xlu0 %v711, 32
        %v717 = vpop.permute.xlu0 %716
        %v720 = vadd.f32 %v603, %v715
        %v721 = vadd.f32 %v608, %v717
        %v722 = vtanh.pop %v720
        %v723 = vtanh.pop %v721
        %v724 = vsub.f32 1.0, %v700
        %v725 = vsub.f32 1.0, %v701
        %728 = vrot.lane.b32.xlu0 %v722, 112
        %v729 = vpop.permute.xlu0 %728
        %730 = vrot.lane.b32.xlu0 %v723, 112
        %v731 = vpop.permute.xlu0 %730
        %v734 = vmul.f32 %v724, %v729
        %v735 = vmul.f32 %v725, %v731
        %v736 = vmul.f32 %v700, 0.0
        %v737 = vmul.f32 %v701, 0.0
        %v738 = vadd.f32 %v734, %v736
        %v739 = vadd.f32 %v735, %v737
        %s740 = scalar_lea.vmem %s340, 16 [#allocation2]
        %v741 = vld [vmem:[%s740] sm:$0xff]
        %v742 = vld [vmem:[%s740 + $0x8] sm:$0xff]
        %743 = vmatprep.subr.mxu0 0.0
        %744 = vmatpush1.msra.mxu0 %v376
        %745 = vmatprep.subr.mxu0 0.0
        %746 = vmatpush1.msra.mxu0 %v377
        %747 = vmatprep.subr.mxu0 0.0
        %748 = vmatpush1.msra.mxu0 0.0
        %749 = vmatprep.subr.mxu0 0.0
        %750 = vmatpush1.msra.mxu0 0.0
        %751 = vmatprep.subr.mxu0 0.0
        %752 = vmatpush1.msra.mxu0 0.0
        %753 = vmatprep.subr.mxu0 0.0
        %754 = vmatpush1.msra.mxu0 0.0
        %755 = vmatprep.subr.mxu0 0.0
        %756 = vmatpush1.msra.mxu0 0.0
        %757 = vmatprep.subr.mxu0 0.0
        %758 = vmatpush1.msra.mxu0 0.0
        %759 = vmatprep.subr.mxu0 0.0
        %760 = vmatpush1.msra.mxu0 0.0
        %761 = vmatprep.subr.mxu0 0.0
        %762 = vmatpush1.msra.mxu0 0.0
        %763 = vmatprep.subr.mxu0 0.0
        %764 = vmatpush1.msra.mxu0 0.0
        %765 = vmatprep.subr.mxu0 0.0
        %766 = vmatpush1.msra.mxu0 0.0
        %767 = vmatprep.subr.mxu0 0.0
        %768 = vmatpush1.msra.mxu0 0.0
        %769 = vmatprep.subr.mxu0 0.0
        %770 = vmatpush1.msra.mxu0 0.0
        %771 = vmatprep.subr.mxu0 0.0
        %772 = vmatpush1.msra.mxu0 0.0
        %773 = vmatprep.subr.mxu0 0.0
        %774 = vmatpush1.msra.mxu0 0.0
        %775 = vmatprep.subr.mxu0 0.0
        %776 = vmatpush1.msra.mxu0 0.0
        %777 = vmatprep.subr.mxu0 0.0
        %778 = vmatpush1.msra.mxu0 0.0
        %779 = vmatprep.subr.mxu0 0.0
        %780 = vmatpush1.msra.mxu0 0.0
        %781 = vmatprep.subr.mxu0 0.0
        %782 = vmatpush1.msra.mxu0 0.0
        %783 = vmatprep.subr.mxu0 0.0
        %784 = vmatpush1.msra.mxu0 0.0
        %785 = vmatprep.subr.mxu0 0.0
        %786 = vmatpush1.msra.mxu0 0.0
        %787 = vmatprep.subr.mxu0 0.0
        %788 = vmatpush1.msra.mxu0 0.0
        %789 = vmatprep.subr.mxu0 0.0
        %790 = vmatpush1.msra.mxu0 0.0
        %791 = vmatprep.subr.mxu0 0.0
        %792 = vmatpush1.msra.mxu0 0.0
        %793 = vmatprep.subr.mxu0 0.0
        %794 = vmatpush1.msra.mxu0 0.0
        %795 = vmatprep.subr.mxu0 0.0
        %796 = vmatpush1.msra.mxu0 0.0
        %797 = vmatprep.subr.mxu0 0.0
        %798 = vmatpush1.msra.mxu0 0.0
        %799 = vmatprep.subr.mxu0 0.0
        %800 = vmatpush1.msra.mxu0 0.0
        %801 = vmatprep.subr.mxu0 0.0
        %802 = vmatpush1.msra.mxu0 0.0
        %803 = vmatprep.subr.mxu0 0.0
        %804 = vmatpush1.msra.mxu0 0.0
        %805 = vmatprep.subr.mxu0 0.0
        %806 = vmatpush1.msra.mxu0 0.0
        %807 = vmatprep.mubr.f32.mxu0 0.0
        %808 = vmatmul.mubr.f32.gmra.mrb[0].mxu0 %v532
        %v809 = vpop.f32.mrb[0].mxu0
        %v810 = vadd.f32 %v391, %v809
        %v811 = vpop.f32.mrb[0].mxu0
        %812 = vmatprep.mubr.f32.mxu0 0.0
        %813 = vmatmul.mubr.f32.gmra.mrb[0].mxu0 %v534
        %v814 = vpop.f32.mrb[0].mxu0
        %v815 = vadd.f32 %v391, %v814
        %v816 = vpop.f32.mrb[0].mxu0
        %817 = vdwg.mxu0
        %v818 = vadd.f32 %v741, %v810
        %v819 = vadd.f32 %v742, %v815
        %v820 = vmul.f32 %v818, 0.5
        %v821 = vmul.f32 %v819, 0.5
        %v822 = vtanh.pop %v820
        %v823 = vtanh.pop %v821
        %v824 = vmul.f32 %v822, 0.5
        %v825 = vmul.f32 %v823, 0.5
        %v826 = vadd.f32 %v824, 0.5
        %v827 = vadd.f32 %v825, 0.5
        %830 = vrot.lane.b32.xlu0 %v810, 96
        %v831 = vpop.permute.xlu0 %830
        %832 = vrot.lane.b32.xlu0 %v815, 96
        %v833 = vpop.permute.xlu0 %832
        %v836 = vmul.f32 %v826, %v831
        %v837 = vmul.f32 %v827, %v833
        %840 = vrot.lane.b32.xlu0 %v836, 32
        %v841 = vpop.permute.xlu0 %840
        %842 = vrot.lane.b32.xlu0 %v837, 32
        %v843 = vpop.permute.xlu0 %842
        %v846 = vadd.f32 %v741, %v841
        %v847 = vadd.f32 %v742, %v843
        %v848 = vtanh.pop %v846
        %v849 = vtanh.pop %v847
        %v850 = vsub.f32 1.0, %v826
        %v851 = vsub.f32 1.0, %v827
        %854 = vrot.lane.b32.xlu0 %v848, 112
        %v855 = vpop.permute.xlu0 %854
        %856 = vrot.lane.b32.xlu0 %v849, 112
        %v857 = vpop.permute.xlu0 %856
        %v860 = vmul.f32 %v850, %v855
        %v861 = vmul.f32 %v851, %v857
        %v862 = vmul.f32 %v826, %v518
        %v863 = vmul.f32 %v827, %v519
        %v864 = vadd.f32 %v860, %v862
        %v865 = vadd.f32 %v861, %v863
        %868 = vrot.lane.b32.xlu0 %v864, 112
        %v869 = vpop.permute.xlu0 %868
        %870 = vrot.lane.b32.xlu0 %v865, 112
        %v871 = vpop.permute.xlu0 %870
        %v872 = vsel %vm393, %v869, 0
        %v874 = vsel %vm393, %v871, 0
        %876 = vmatprep.subr.mxu0 0.0
        %877 = vmatpush1.msra.mxu0 %v379
        %878 = vmatprep.subr.mxu0 0.0
        %879 = vmatpush1.msra.mxu0 %v380
        %880 = vmatprep.subr.mxu0 0.0
        %881 = vmatpush1.msra.mxu0 0.0
        %882 = vmatprep.subr.mxu0 0.0
        %883 = vmatpush1.msra.mxu0 0.0
        %884 = vmatprep.subr.mxu0 0.0
        %885 = vmatpush1.msra.mxu0 0.0
        %886 = vmatprep.subr.mxu0 0.0
        %887 = vmatpush1.msra.mxu0 0.0
        %888 = vmatprep.subr.mxu0 0.0
        %889 = vmatpush1.msra.mxu0 0.0
        %890 = vmatprep.subr.mxu0 0.0
        %891 = vmatpush1.msra.mxu0 0.0
        %892 = vmatprep.subr.mxu0 0.0
        %893 = vmatpush1.msra.mxu0 0.0
        %894 = vmatprep.subr.mxu0 0.0
        %895 = vmatpush1.msra.mxu0 0.0
        %896 = vmatprep.subr.mxu0 0.0
        %897 = vmatpush1.msra.mxu0 0.0
        %898 = vmatprep.subr.mxu0 0.0
        %899 = vmatpush1.msra.mxu0 0.0
        %900 = vmatprep.subr.mxu0 0.0
        %901 = vmatpush1.msra.mxu0 0.0
        %902 = vmatprep.subr.mxu0 0.0
        %903 = vmatpush1.msra.mxu0 0.0
        %904 = vmatprep.subr.mxu0 0.0
        %905 = vmatpush1.msra.mxu0 0.0
        %906 = vmatprep.subr.mxu0 0.0
        %907 = vmatpush1.msra.mxu0 0.0
        %908 = vmatprep.subr.mxu0 0.0
        %909 = vmatpush1.msra.mxu0 0.0
        %910 = vmatprep.subr.mxu0 0.0
        %911 = vmatpush1.msra.mxu0 0.0
        %912 = vmatprep.subr.mxu0 0.0
        %913 = vmatpush1.msra.mxu0 0.0
        %914 = vmatprep.subr.mxu0 0.0
        %915 = vmatpush1.msra.mxu0 0.0
        %916 = vmatprep.subr.mxu0 0.0
        %917 = vmatpush1.msra.mxu0 0.0
        %918 = vmatprep.subr.mxu0 0.0
        %919 = vmatpush1.msra.mxu0 0.0
        %920 = vmatprep.subr.mxu0 0.0
        %921 = vmatpush1.msra.mxu0 0.0
        %922 = vmatprep.subr.mxu0 0.0
        %923 = vmatpush1.msra.mxu0 0.0
        %924 = vmatprep.subr.mxu0 0.0
        %925 = vmatpush1.msra.mxu0 0.0
        %926 = vmatprep.subr.mxu0 0.0
        %927 = vmatpush1.msra.mxu0 0.0
        %928 = vmatprep.subr.mxu0 0.0
        %929 = vmatpush1.msra.mxu0 0.0
        %930 = vmatprep.subr.mxu0 0.0
        %931 = vmatpush1.msra.mxu0 0.0
        %932 = vmatprep.subr.mxu0 0.0
        %933 = vmatpush1.msra.mxu0 0.0
        %934 = vmatprep.subr.mxu0 0.0
        %935 = vmatpush1.msra.mxu0 0.0
        %936 = vmatprep.subr.mxu0 0.0
        %937 = vmatpush1.msra.mxu0 0.0
        %938 = vmatprep.subr.mxu0 0.0
        %939 = vmatpush1.msra.mxu0 0.0
        %940 = vmatprep.mubr.f32.mxu0 0.0
        %941 = vmatmul.mubr.f32.gmra.mrb[0].mxu0 %v872
        %v942 = vpop.f32.mrb[0].mxu0
        %v943 = vadd.f32 %v524, %v942
        %v944 = vpop.f32.mrb[0].mxu0
        %945 = vmatprep.mubr.f32.mxu0 0.0
        %946 = vmatmul.mubr.f32.gmra.mrb[0].mxu0 %v874
        %v947 = vpop.f32.mrb[0].mxu0
        %v948 = vadd.f32 %v524, %v947
        %v949 = vpop.f32.mrb[0].mxu0
        %950 = vdwg.mxu0
        %953 = vrot.lane.b32.xlu0 %v738, 112
        %v954 = vpop.permute.xlu0 %953
        %955 = vrot.lane.b32.xlu0 %v739, 112
        %v956 = vpop.permute.xlu0 %955
        %v957 = vsel %vm393, %v954, 0
        %v959 = vsel %vm393, %v956, 0
        %961 = vmatprep.subr.mxu0 0.0
        %962 = vmatpush1.msra.mxu0 %v382
        %963 = vmatprep.subr.mxu0 0.0
        %964 = vmatpush1.msra.mxu0 %v383
        %965 = vmatprep.subr.mxu0 0.0
        %966 = vmatpush1.msra.mxu0 0.0
        %967 = vmatprep.subr.mxu0 0.0
        %968 = vmatpush1.msra.mxu0 0.0
        %969 = vmatprep.subr.mxu0 0.0
        %970 = vmatpush1.msra.mxu0 0.0
        %971 = vmatprep.subr.mxu0 0.0
        %972 = vmatpush1.msra.mxu0 0.0
        %973 = vmatprep.subr.mxu0 0.0
        %974 = vmatpush1.msra.mxu0 0.0
        %975 = vmatprep.subr.mxu0 0.0
        %976 = vmatpush1.msra.mxu0 0.0
        %977 = vmatprep.subr.mxu0 0.0
        %978 = vmatpush1.msra.mxu0 0.0
        %979 = vmatprep.subr.mxu0 0.0
        %980 = vmatpush1.msra.mxu0 0.0
        %981 = vmatprep.subr.mxu0 0.0
        %982 = vmatpush1.msra.mxu0 0.0
        %983 = vmatprep.subr.mxu0 0.0
        %984 = vmatpush1.msra.mxu0 0.0
        %985 = vmatprep.subr.mxu0 0.0
        %986 = vmatpush1.msra.mxu0 0.0
        %987 = vmatprep.subr.mxu0 0.0
        %988 = vmatpush1.msra.mxu0 0.0
        %989 = vmatprep.subr.mxu0 0.0
        %990 = vmatpush1.msra.mxu0 0.0
        %991 = vmatprep.subr.mxu0 0.0
        %992 = vmatpush1.msra.mxu0 0.0
        %993 = vmatprep.subr.mxu0 0.0
        %994 = vmatpush1.msra.mxu0 0.0
        %995 = vmatprep.subr.mxu0 0.0
        %996 = vmatpush1.msra.mxu0 0.0
        %997 = vmatprep.subr.mxu0 0.0
        %998 = vmatpush1.msra.mxu0 0.0
        %999 = vmatprep.subr.mxu0 0.0
        %1000 = vmatpush1.msra.mxu0 0.0
        %1001 = vmatprep.subr.mxu0 0.0
        %1002 = vmatpush1.msra.mxu0 0.0
        %1003 = vmatprep.subr.mxu0 0.0
        %1004 = vmatpush1.msra.mxu0 0.0
        %1005 = vmatprep.subr.mxu0 0.0
        %1006 = vmatpush1.msra.mxu0 0.0
        %1007 = vmatprep.subr.mxu0 0.0
        %1008 = vmatpush1.msra.mxu0 0.0
        %1009 = vmatprep.subr.mxu0 0.0
        %1010 = vmatpush1.msra.mxu0 0.0
        %1011 = vmatprep.subr.mxu0 0.0
        %1012 = vmatpush1.msra.mxu0 0.0
        %1013 = vmatprep.subr.mxu0 0.0
        %1014 = vmatpush1.msra.mxu0 0.0
        %1015 = vmatprep.subr.mxu0 0.0
        %1016 = vmatpush1.msra.mxu0 0.0
        %1017 = vmatprep.subr.mxu0 0.0
        %1018 = vmatpush1.msra.mxu0 0.0
        %1019 = vmatprep.subr.mxu0 0.0
        %1020 = vmatpush1.msra.mxu0 0.0
        %1021 = vmatprep.subr.mxu0 0.0
        %1022 = vmatpush1.msra.mxu0 0.0
        %1023 = vmatprep.subr.mxu0 0.0
        %1024 = vmatpush1.msra.mxu0 0.0
        %1025 = vmatprep.mubr.f32.mxu0 0.0
        %1026 = vmatmul.mubr.f32.gmra.mrb[0].mxu0 %v957
        %v1027 = vpop.f32.mrb[0].mxu0
        %v1028 = vadd.f32 %v615, %v1027
        %v1029 = vpop.f32.mrb[0].mxu0
        %1030 = vmatprep.mubr.f32.mxu0 0.0
        %1031 = vmatmul.mubr.f32.gmra.mrb[0].mxu0 %v959
        %v1032 = vpop.f32.mrb[0].mxu0
        %v1033 = vadd.f32 %v615, %v1032
        %v1034 = vpop.f32.mrb[0].mxu0
        %1035 = vdwg.mxu0
        %v1036 = vadd.f32 %v943, %v1028
        %v1037 = vadd.f32 %v948, %v1033
        %v1038 = vmul.f32 %v1036, 0.5
        %v1039 = vmul.f32 %v1037, 0.5
        %v1040 = vtanh.pop %v1038
        %v1041 = vtanh.pop %v1039
        %v1042 = vmul.f32 %v1040, 0.5
        %v1043 = vmul.f32 %v1041, 0.5
        %v1044 = vadd.f32 %v1042, 0.5
        %v1045 = vadd.f32 %v1043, 0.5
        %1048 = vrot.lane.b32.xlu0 %v1028, 96
        %v1049 = vpop.permute.xlu0 %1048
        %1050 = vrot.lane.b32.xlu0 %v1033, 96
        %v1051 = vpop.permute.xlu0 %1050
        %v1054 = vmul.f32 %v1044, %v1049
        %v1055 = vmul.f32 %v1045, %v1051
        %1058 = vrot.lane.b32.xlu0 %v1054, 32
        %v1059 = vpop.permute.xlu0 %1058
        %1060 = vrot.lane.b32.xlu0 %v1055, 32
        %v1061 = vpop.permute.xlu0 %1060
        %v1064 = vadd.f32 %v943, %v1059
        %v1065 = vadd.f32 %v948, %v1061
        %v1066 = vtanh.pop %v1064
        %v1067 = vtanh.pop %v1065
        %v1068 = vsub.f32 1.0, %v1044
        %v1069 = vsub.f32 1.0, %v1045
        %1072 = vrot.lane.b32.xlu0 %v1066, 112
        %v1073 = vpop.permute.xlu0 %1072
        %1074 = vrot.lane.b32.xlu0 %v1067, 112
        %v1075 = vpop.permute.xlu0 %1074
        %v1078 = vmul.f32 %v1068, %v1073
        %v1079 = vmul.f32 %v1069, %v1075
        %v1080 = vmul.f32 %v1044, %v738
        %v1081 = vmul.f32 %v1045, %v739
        %v1082 = vadd.f32 %v1078, %v1080
        %v1083 = vadd.f32 %v1079, %v1081
        %s1084 = scalar_lea.vmem %s340, 32 [#allocation2]
        %v1085 = vld [vmem:[%s1084] sm:$0xff]
        %v1086 = vld [vmem:[%s1084 + $0x8] sm:$0xff]
        %1087 = vmatprep.subr.mxu0 0.0
        %1088 = vmatpush1.msra.mxu0 %v376
        %1089 = vmatprep.subr.mxu0 0.0
        %1090 = vmatpush1.msra.mxu0 %v377
        %1091 = vmatprep.subr.mxu0 0.0
        %1092 = vmatpush1.msra.mxu0 0.0
        %1093 = vmatprep.subr.mxu0 0.0
        %1094 = vmatpush1.msra.mxu0 0.0
        %1095 = vmatprep.subr.mxu0 0.0
        %1096 = vmatpush1.msra.mxu0 0.0
        %1097 = vmatprep.subr.mxu0 0.0
        %1098 = vmatpush1.msra.mxu0 0.0
        %1099 = vmatprep.subr.mxu0 0.0
        %1100 = vmatpush1.msra.mxu0 0.0
        %1101 = vmatprep.subr.mxu0 0.0
        %1102 = vmatpush1.msra.mxu0 0.0
        %1103 = vmatprep.subr.mxu0 0.0
        %1104 = vmatpush1.msra.mxu0 0.0
        %1105 = vmatprep.subr.mxu0 0.0
        %1106 = vmatpush1.msra.mxu0 0.0
        %1107 = vmatprep.subr.mxu0 0.0
        %1108 = vmatpush1.msra.mxu0 0.0
        %1109 = vmatprep.subr.mxu0 0.0
        %1110 = vmatpush1.msra.mxu0 0.0
        %1111 = vmatprep.subr.mxu0 0.0
        %1112 = vmatpush1.msra.mxu0 0.0
        %1113 = vmatprep.subr.mxu0 0.0
        %1114 = vmatpush1.msra.mxu0 0.0
        %1115 = vmatprep.subr.mxu0 0.0
        %1116 = vmatpush1.msra.mxu0 0.0
        %1117 = vmatprep.subr.mxu0 0.0
        %1118 = vmatpush1.msra.mxu0 0.0
        %1119 = vmatprep.subr.mxu0 0.0
        %1120 = vmatpush1.msra.mxu0 0.0
        %1121 = vmatprep.subr.mxu0 0.0
        %1122 = vmatpush1.msra.mxu0 0.0
        %1123 = vmatprep.subr.mxu0 0.0
        %1124 = vmatpush1.msra.mxu0 0.0
        %1125 = vmatprep.subr.mxu0 0.0
        %1126 = vmatpush1.msra.mxu0 0.0
        %1127 = vmatprep.subr.mxu0 0.0
        %1128 = vmatpush1.msra.mxu0 0.0
        %1129 = vmatprep.subr.mxu0 0.0
        %1130 = vmatpush1.msra.mxu0 0.0
        %1131 = vmatprep.subr.mxu0 0.0
        %1132 = vmatpush1.msra.mxu0 0.0
        %1133 = vmatprep.subr.mxu0 0.0
        %1134 = vmatpush1.msra.mxu0 0.0
        %1135 = vmatprep.subr.mxu0 0.0
        %1136 = vmatpush1.msra.mxu0 0.0
        %1137 = vmatprep.subr.mxu0 0.0
        %1138 = vmatpush1.msra.mxu0 0.0
        %1139 = vmatprep.subr.mxu0 0.0
        %1140 = vmatpush1.msra.mxu0 0.0
        %1141 = vmatprep.subr.mxu0 0.0
        %1142 = vmatpush1.msra.mxu0 0.0
        %1143 = vmatprep.subr.mxu0 0.0
        %1144 = vmatpush1.msra.mxu0 0.0
        %1145 = vmatprep.subr.mxu0 0.0
        %1146 = vmatpush1.msra.mxu0 0.0
        %1147 = vmatprep.subr.mxu0 0.0
        %1148 = vmatpush1.msra.mxu0 0.0
        %1149 = vmatprep.subr.mxu0 0.0
        %1150 = vmatpush1.msra.mxu0 0.0
        %1151 = vmatprep.mubr.f32.mxu0 0.0
        %1152 = vmatmul.mubr.f32.gmra.mrb[0].mxu0 %v872
        %v1153 = vpop.f32.mrb[0].mxu0
        %v1154 = vadd.f32 %v391, %v1153
        %v1155 = vpop.f32.mrb[0].mxu0
        %1156 = vmatprep.mubr.f32.mxu0 0.0
        %1157 = vmatmul.mubr.f32.gmra.mrb[0].mxu0 %v874
        %v1158 = vpop.f32.mrb[0].mxu0
        %v1159 = vadd.f32 %v391, %v1158
        %v1160 = vpop.f32.mrb[0].mxu0
        %1161 = vdwg.mxu0
        %v1162 = vadd.f32 %v1085, %v1154
        %v1163 = vadd.f32 %v1086, %v1159
        %v1164 = vmul.f32 %v1162, 0.5
        %v1165 = vmul.f32 %v1163, 0.5
        %v1166 = vtanh.pop %v1164
        %v1167 = vtanh.pop %v1165
        %v1168 = vmul.f32 %v1166, 0.5
        %v1169 = vmul.f32 %v1167, 0.5
        %v1170 = vadd.f32 %v1168, 0.5
        %v1171 = vadd.f32 %v1169, 0.5
        %1174 = vrot.lane.b32.xlu0 %v1154, 96
        %v1175 = vpop.permute.xlu0 %1174
        %1176 = vrot.lane.b32.xlu0 %v1159, 96
        %v1177 = vpop.permute.xlu0 %1176
        %v1180 = vmul.f32 %v1170, %v1175
        %v1181 = vmul.f32 %v1171, %v1177
        %1184 = vrot.lane.b32.xlu0 %v1180, 32
        %v1185 = vpop.permute.xlu0 %1184
        %1186 = vrot.lane.b32.xlu0 %v1181, 32
        %v1187 = vpop.permute.xlu0 %1186
        %v1190 = vadd.f32 %v1085, %v1185
        %v1191 = vadd.f32 %v1086, %v1187
        %v1192 = vtanh.pop %v1190
        %v1193 = vtanh.pop %v1191
        %v1194 = vsub.f32 1.0, %v1170
        %v1195 = vsub.f32 1.0, %v1171
        %1198 = vrot.lane.b32.xlu0 %v1192, 112
        %v1199 = vpop.permute.xlu0 %1198
        %1200 = vrot.lane.b32.xlu0 %v1193, 112
        %v1201 = vpop.permute.xlu0 %1200
        %v1204 = vmul.f32 %v1194, %v1199
        %v1205 = vmul.f32 %v1195, %v1201
        %v1206 = vmul.f32 %v1170, %v864
        %v1207 = vmul.f32 %v1171, %v865
        %v1208 = vadd.f32 %v1204, %v1206
        %v1209 = vadd.f32 %v1205, %v1207
        %1212 = vrot.lane.b32.xlu0 %v1208, 112
        %v1213 = vpop.permute.xlu0 %1212
        %1214 = vrot.lane.b32.xlu0 %v1209, 112
        %v1215 = vpop.permute.xlu0 %1214
        %v1216 = vsel %vm393, %v1213, 0
        %v1218 = vsel %vm393, %v1215, 0
        %1220 = vmatprep.subr.mxu0 0.0
        %1221 = vmatpush1.msra.mxu0 %v379
        %1222 = vmatprep.subr.mxu0 0.0
        %1223 = vmatpush1.msra.mxu0 %v380
        %1224 = vmatprep.subr.mxu0 0.0
        %1225 = vmatpush1.msra.mxu0 0.0
        %1226 = vmatprep.subr.mxu0 0.0
        %1227 = vmatpush1.msra.mxu0 0.0
        %1228 = vmatprep.subr.mxu0 0.0
        %1229 = vmatpush1.msra.mxu0 0.0
        %1230 = vmatprep.subr.mxu0 0.0
        %1231 = vmatpush1.msra.mxu0 0.0
        %1232 = vmatprep.subr.mxu0 0.0
        %1233 = vmatpush1.msra.mxu0 0.0
        %1234 = vmatprep.subr.mxu0 0.0
        %1235 = vmatpush1.msra.mxu0 0.0
        %1236 = vmatprep.subr.mxu0 0.0
        %1237 = vmatpush1.msra.mxu0 0.0
        %1238 = vmatprep.subr.mxu0 0.0
        %1239 = vmatpush1.msra.mxu0 0.0
        %1240 = vmatprep.subr.mxu0 0.0
        %1241 = vmatpush1.msra.mxu0 0.0
        %1242 = vmatprep.subr.mxu0 0.0
        %1243 = vmatpush1.msra.mxu0 0.0
        %1244 = vmatprep.subr.mxu0 0.0
        %1245 = vmatpush1.msra.mxu0 0.0
        %1246 = vmatprep.subr.mxu0 0.0
        %1247 = vmatpush1.msra.mxu0 0.0
        %1248 = vmatprep.subr.mxu0 0.0
        %1249 = vmatpush1.msra.mxu0 0.0
        %1250 = vmatprep.subr.mxu0 0.0
        %1251 = vmatpush1.msra.mxu0 0.0
        %1252 = vmatprep.subr.mxu0 0.0
        %1253 = vmatpush1.msra.mxu0 0.0
        %1254 = vmatprep.subr.mxu0 0.0
        %1255 = vmatpush1.msra.mxu0 0.0
        %1256 = vmatprep.subr.mxu0 0.0
        %1257 = vmatpush1.msra.mxu0 0.0
        %1258 = vmatprep.subr.mxu0 0.0
        %1259 = vmatpush1.msra.mxu0 0.0
        %1260 = vmatprep.subr.mxu0 0.0
        %1261 = vmatpush1.msra.mxu0 0.0
        %1262 = vmatprep.subr.mxu0 0.0
        %1263 = vmatpush1.msra.mxu0 0.0
        %1264 = vmatprep.subr.mxu0 0.0
        %1265 = vmatpush1.msra.mxu0 0.0
        %1266 = vmatprep.subr.mxu0 0.0
        %1267 = vmatpush1.msra.mxu0 0.0
        %1268 = vmatprep.subr.mxu0 0.0
        %1269 = vmatpush1.msra.mxu0 0.0
        %1270 = vmatprep.subr.mxu0 0.0
        %1271 = vmatpush1.msra.mxu0 0.0
        %1272 = vmatprep.subr.mxu0 0.0
        %1273 = vmatpush1.msra.mxu0 0.0
        %1274 = vmatprep.subr.mxu0 0.0
        %1275 = vmatpush1.msra.mxu0 0.0
        %1276 = vmatprep.subr.mxu0 0.0
        %1277 = vmatpush1.msra.mxu0 0.0
        %1278 = vmatprep.subr.mxu0 0.0
        %1279 = vmatpush1.msra.mxu0 0.0
        %1280 = vmatprep.subr.mxu0 0.0
        %1281 = vmatpush1.msra.mxu0 0.0
        %1282 = vmatprep.subr.mxu0 0.0
        %1283 = vmatpush1.msra.mxu0 0.0
        %1284 = vmatprep.mubr.f32.mxu0 0.0
        %1285 = vmatmul.mubr.f32.gmra.mrb[0].mxu0 %v1216
        %v1286 = vpop.f32.mrb[0].mxu0
        %v1287 = vadd.f32 %v524, %v1286
        %v1288 = vpop.f32.mrb[0].mxu0
        %1289 = vmatprep.mubr.f32.mxu0 0.0
        %1290 = vmatmul.mubr.f32.gmra.mrb[0].mxu0 %v1218
        %v1291 = vpop.f32.mrb[0].mxu0
        %v1292 = vadd.f32 %v524, %v1291
        %v1293 = vpop.f32.mrb[0].mxu0
        %1294 = vdwg.mxu0
        %1297 = vrot.lane.b32.xlu0 %v1082, 112
        %v1298 = vpop.permute.xlu0 %1297
        %1299 = vrot.lane.b32.xlu0 %v1083, 112
        %v1300 = vpop.permute.xlu0 %1299
        %v1301 = vsel %vm393, %v1298, 0
        %v1303 = vsel %vm393, %v1300, 0
        %1305 = vmatprep.subr.mxu0 0.0
        %1306 = vmatpush1.msra.mxu0 %v382
        %1307 = vmatprep.subr.mxu0 0.0
        %1308 = vmatpush1.msra.mxu0 %v383
        %1309 = vmatprep.subr.mxu0 0.0
        %1310 = vmatpush1.msra.mxu0 0.0
        %1311 = vmatprep.subr.mxu0 0.0
        %1312 = vmatpush1.msra.mxu0 0.0
        %1313 = vmatprep.subr.mxu0 0.0
        %1314 = vmatpush1.msra.mxu0 0.0
        %1315 = vmatprep.subr.mxu0 0.0
        %1316 = vmatpush1.msra.mxu0 0.0
        %1317 = vmatprep.subr.mxu0 0.0
        %1318 = vmatpush1.msra.mxu0 0.0
        %1319 = vmatprep.subr.mxu0 0.0
        %1320 = vmatpush1.msra.mxu0 0.0
        %1321 = vmatprep.subr.mxu0 0.0
        %1322 = vmatpush1.msra.mxu0 0.0
        %1323 = vmatprep.subr.mxu0 0.0
        %1324 = vmatpush1.msra.mxu0 0.0
        %1325 = vmatprep.subr.mxu0 0.0
        %1326 = vmatpush1.msra.mxu0 0.0
        %1327 = vmatprep.subr.mxu0 0.0
        %1328 = vmatpush1.msra.mxu0 0.0
        %1329 = vmatprep.subr.mxu0 0.0
        %1330 = vmatpush1.msra.mxu0 0.0
        %1331 = vmatprep.subr.mxu0 0.0
        %1332 = vmatpush1.msra.mxu0 0.0
        %1333 = vmatprep.subr.mxu0 0.0
        %1334 = vmatpush1.msra.mxu0 0.0
        %1335 = vmatprep.subr.mxu0 0.0
        %1336 = vmatpush1.msra.mxu0 0.0
        %1337 = vmatprep.subr.mxu0 0.0
        %1338 = vmatpush1.msra.mxu0 0.0
        %1339 = vmatprep.subr.mxu0 0.0
        %1340 = vmatpush1.msra.mxu0 0.0
        %1341 = vmatprep.subr.mxu0 0.0
        %1342 = vmatpush1.msra.mxu0 0.0
        %1343 = vmatprep.subr.mxu0 0.0
        %1344 = vmatpush1.msra.mxu0 0.0
        %1345 = vmatprep.subr.mxu0 0.0
        %1346 = vmatpush1.msra.mxu0 0.0
        %1347 = vmatprep.subr.mxu0 0.0
        %1348 = vmatpush1.msra.mxu0 0.0
        %1349 = vmatprep.subr.mxu0 0.0
        %1350 = vmatpush1.msra.mxu0 0.0
        %1351 = vmatprep.subr.mxu0 0.0
        %1352 = vmatpush1.msra.mxu0 0.0
        %1353 = vmatprep.subr.mxu0 0.0
        %1354 = vmatpush1.msra.mxu0 0.0
        %1355 = vmatprep.subr.mxu0 0.0
        %1356 = vmatpush1.msra.mxu0 0.0
        %1357 = vmatprep.subr.mxu0 0.0
        %1358 = vmatpush1.msra.mxu0 0.0
        %1359 = vmatprep.subr.mxu0 0.0
        %1360 = vmatpush1.msra.mxu0 0.0
        %1361 = vmatprep.subr.mxu0 0.0
        %1362 = vmatpush1.msra.mxu0 0.0
        %1363 = vmatprep.subr.mxu0 0.0
        %1364 = vmatpush1.msra.mxu0 0.0
        %1365 = vmatprep.subr.mxu0 0.0
        %1366 = vmatpush1.msra.mxu0 0.0
        %1367 = vmatprep.subr.mxu0 0.0
        %1368 = vmatpush1.msra.mxu0 0.0
        %1369 = vmatprep.mubr.f32.mxu0 0.0
        %1370 = vmatmul.mubr.f32.gmra.mrb[0].mxu0 %v1301
        %v1371 = vpop.f32.mrb[0].mxu0
        %v1372 = vadd.f32 %v615, %v1371
        %v1373 = vpop.f32.mrb[0].mxu0
        %1374 = vmatprep.mubr.f32.mxu0 0.0
        %1375 = vmatmul.mubr.f32.gmra.mrb[0].mxu0 %v1303
        %v1376 = vpop.f32.mrb[0].mxu0
        %v1377 = vadd.f32 %v615, %v1376
        %v1378 = vpop.f32.mrb[0].mxu0
        %1379 = vdwg.mxu0
        %v1380 = vadd.f32 %v1287, %v1372
        %v1381 = vadd.f32 %v1292, %v1377
        %v1382 = vmul.f32 %v1380, 0.5
        %v1383 = vmul.f32 %v1381, 0.5
        %v1384 = vtanh.pop %v1382
        %v1385 = vtanh.pop %v1383
        %v1386 = vmul.f32 %v1384, 0.5
        %v1387 = vmul.f32 %v1385, 0.5
        %v1388 = vadd.f32 %v1386, 0.5
        %v1389 = vadd.f32 %v1387, 0.5
        %1392 = vrot.lane.b32.xlu0 %v1372, 96
        %v1393 = vpop.permute.xlu0 %1392
        %1394 = vrot.lane.b32.xlu0 %v1377, 96
        %v1395 = vpop.permute.xlu0 %1394
        %v1398 = vmul.f32 %v1388, %v1393
        %v1399 = vmul.f32 %v1389, %v1395
        %1402 = vrot.lane.b32.xlu0 %v1398, 32
        %v1403 = vpop.permute.xlu0 %1402
        %1404 = vrot.lane.b32.xlu0 %v1399, 32
        %v1405 = vpop.permute.xlu0 %1404
        %v1408 = vadd.f32 %v1287, %v1403
        %v1409 = vadd.f32 %v1292, %v1405
        %v1410 = vtanh.pop %v1408
        %v1411 = vtanh.pop %v1409
        %v1412 = vsub.f32 1.0, %v1388
        %v1413 = vsub.f32 1.0, %v1389
        %1416 = vrot.lane.b32.xlu0 %v1410, 112
        %v1417 = vpop.permute.xlu0 %1416
        %1418 = vrot.lane.b32.xlu0 %v1411, 112
        %v1419 = vpop.permute.xlu0 %1418
        %v1422 = vmul.f32 %v1412, %v1417
        %v1423 = vmul.f32 %v1413, %v1419
        %v1424 = vmul.f32 %v1388, %v1082
        %v1425 = vmul.f32 %v1389, %v1083
        %v1426 = vadd.f32 %v1422, %v1424
        %v1427 = vadd.f32 %v1423, %v1425
        %s1428 = scalar_lea.vmem %s340, 48 [#allocation2]
        %v1429 = vld [vmem:[%s1428] sm:$0xff]
        %v1430 = vld [vmem:[%s1428 + $0x8] sm:$0xff]
        %1431 = vmatprep.subr.mxu0 0.0
        %1432 = vmatpush1.msra.mxu0 %v376
        %1433 = vmatprep.subr.mxu0 0.0
        %1434 = vmatpush1.msra.mxu0 %v377
        %1435 = vmatprep.subr.mxu0 0.0
        %1436 = vmatpush1.msra.mxu0 0.0
        %1437 = vmatprep.subr.mxu0 0.0
        %1438 = vmatpush1.msra.mxu0 0.0
        %1439 = vmatprep.subr.mxu0 0.0
        %1440 = vmatpush1.msra.mxu0 0.0
        %1441 = vmatprep.subr.mxu0 0.0
        %1442 = vmatpush1.msra.mxu0 0.0
        %1443 = vmatprep.subr.mxu0 0.0
        %1444 = vmatpush1.msra.mxu0 0.0
        %1445 = vmatprep.subr.mxu0 0.0
        %1446 = vmatpush1.msra.mxu0 0.0
        %1447 = vmatprep.subr.mxu0 0.0
        %1448 = vmatpush1.msra.mxu0 0.0
        %1449 = vmatprep.subr.mxu0 0.0
        %1450 = vmatpush1.msra.mxu0 0.0
        %1451 = vmatprep.subr.mxu0 0.0
        %1452 = vmatpush1.msra.mxu0 0.0
        %1453 = vmatprep.subr.mxu0 0.0
        %1454 = vmatpush1.msra.mxu0 0.0
        %1455 = vmatprep.subr.mxu0 0.0
        %1456 = vmatpush1.msra.mxu0 0.0
        %1457 = vmatprep.subr.mxu0 0.0
        %1458 = vmatpush1.msra.mxu0 0.0
        %1459 = vmatprep.subr.mxu0 0.0
        %1460 = vmatpush1.msra.mxu0 0.0
        %1461 = vmatprep.subr.mxu0 0.0
        %1462 = vmatpush1.msra.mxu0 0.0
        %1463 = vmatprep.subr.mxu0 0.0
        %1464 = vmatpush1.msra.mxu0 0.0
        %1465 = vmatprep.subr.mxu0 0.0
        %1466 = vmatpush1.msra.mxu0 0.0
        %1467 = vmatprep.subr.mxu0 0.0
        %1468 = vmatpush1.msra.mxu0 0.0
        %1469 = vmatprep.subr.mxu0 0.0
        %1470 = vmatpush1.msra.mxu0 0.0
        %1471 = vmatprep.subr.mxu0 0.0
        %1472 = vmatpush1.msra.mxu0 0.0
        %1473 = vmatprep.subr.mxu0 0.0
        %1474 = vmatpush1.msra.mxu0 0.0
        %1475 = vmatprep.subr.mxu0 0.0
        %1476 = vmatpush1.msra.mxu0 0.0
        %1477 = vmatprep.subr.mxu0 0.0
        %1478 = vmatpush1.msra.mxu0 0.0
        %1479 = vmatprep.subr.mxu0 0.0
        %1480 = vmatpush1.msra.mxu0 0.0
        %1481 = vmatprep.subr.mxu0 0.0
        %1482 = vmatpush1.msra.mxu0 0.0
        %1483 = vmatprep.subr.mxu0 0.0
        %1484 = vmatpush1.msra.mxu0 0.0
        %1485 = vmatprep.subr.mxu0 0.0
        %1486 = vmatpush1.msra.mxu0 0.0
        %1487 = vmatprep.subr.mxu0 0.0
        %1488 = vmatpush1.msra.mxu0 0.0
        %1489 = vmatprep.subr.mxu0 0.0
        %1490 = vmatpush1.msra.mxu0 0.0
        %1491 = vmatprep.subr.mxu0 0.0
        %1492 = vmatpush1.msra.mxu0 0.0
        %1493 = vmatprep.subr.mxu0 0.0
        %1494 = vmatpush1.msra.mxu0 0.0
        %1495 = vmatprep.mubr.f32.mxu0 0.0
        %1496 = vmatmul.mubr.f32.gmra.mrb[0].mxu0 %v1216
        %v1497 = vpop.f32.mrb[0].mxu0
        %v1498 = vadd.f32 %v391, %v1497
        %v1499 = vpop.f32.mrb[0].mxu0
        %1500 = vmatprep.mubr.f32.mxu0 0.0
        %1501 = vmatmul.mubr.f32.gmra.mrb[0].mxu0 %v1218
        %v1502 = vpop.f32.mrb[0].mxu0
        %v1503 = vadd.f32 %v391, %v1502
        %v1504 = vpop.f32.mrb[0].mxu0
        %1505 = vdwg.mxu0
        %v1506 = vadd.f32 %v1429, %v1498
        %v1507 = vadd.f32 %v1430, %v1503
        %v1508 = vmul.f32 %v1506, 0.5
        %v1509 = vmul.f32 %v1507, 0.5
        %v1510 = vtanh.pop %v1508
        %v1511 = vtanh.pop %v1509
        %v1512 = vmul.f32 %v1510, 0.5
        %v1513 = vmul.f32 %v1511, 0.5
        %v1514 = vadd.f32 %v1512, 0.5
        %v1515 = vadd.f32 %v1513, 0.5
        %1518 = vrot.lane.b32.xlu0 %v1498, 96
        %v1519 = vpop.permute.xlu0 %1518
        %1520 = vrot.lane.b32.xlu0 %v1503, 96
        %v1521 = vpop.permute.xlu0 %1520
        %v1524 = vmul.f32 %v1514, %v1519
        %v1525 = vmul.f32 %v1515, %v1521
        %1528 = vrot.lane.b32.xlu0 %v1524, 32
        %v1529 = vpop.permute.xlu0 %1528
        %1530 = vrot.lane.b32.xlu0 %v1525, 32
        %v1531 = vpop.permute.xlu0 %1530
        %v1534 = vadd.f32 %v1429, %v1529
        %v1535 = vadd.f32 %v1430, %v1531
        %v1536 = vtanh.pop %v1534
        %v1537 = vtanh.pop %v1535
        %v1538 = vsub.f32 1.0, %v1514
        %v1539 = vsub.f32 1.0, %v1515
        %1542 = vrot.lane.b32.xlu0 %v1536, 112
        %v1543 = vpop.permute.xlu0 %1542
        %1544 = vrot.lane.b32.xlu0 %v1537, 112
        %v1545 = vpop.permute.xlu0 %1544
        %v1548 = vmul.f32 %v1538, %v1543
        %v1549 = vmul.f32 %v1539, %v1545
        %v1550 = vmul.f32 %v1514, %v1208
        %v1551 = vmul.f32 %v1515, %v1209
        %v1552 = vadd.f32 %v1548, %v1550
        %v1553 = vadd.f32 %v1549, %v1551
        %1556 = vrot.lane.b32.xlu0 %v1552, 112
        %v1557 = vpop.permute.xlu0 %1556
        %1558 = vrot.lane.b32.xlu0 %v1553, 112
        %v1559 = vpop.permute.xlu0 %1558
        %v1560 = vsel %vm393, %v1557, 0
        %v1562 = vsel %vm393, %v1559, 0
        %1564 = vmatprep.subr.mxu0 0.0
        %1565 = vmatpush1.msra.mxu0 %v379
        %1566 = vmatprep.subr.mxu0 0.0
        %1567 = vmatpush1.msra.mxu0 %v380
        %1568 = vmatprep.subr.mxu0 0.0
        %1569 = vmatpush1.msra.mxu0 0.0
        %1570 = vmatprep.subr.mxu0 0.0
        %1571 = vmatpush1.msra.mxu0 0.0
        %1572 = vmatprep.subr.mxu0 0.0
        %1573 = vmatpush1.msra.mxu0 0.0
        %1574 = vmatprep.subr.mxu0 0.0
        %1575 = vmatpush1.msra.mxu0 0.0
        %1576 = vmatprep.subr.mxu0 0.0
        %1577 = vmatpush1.msra.mxu0 0.0
        %1578 = vmatprep.subr.mxu0 0.0
        %1579 = vmatpush1.msra.mxu0 0.0
        %1580 = vmatprep.subr.mxu0 0.0
        %1581 = vmatpush1.msra.mxu0 0.0
        %1582 = vmatprep.subr.mxu0 0.0
        %1583 = vmatpush1.msra.mxu0 0.0
        %1584 = vmatprep.subr.mxu0 0.0
        %1585 = vmatpush1.msra.mxu0 0.0
        %1586 = vmatprep.subr.mxu0 0.0
        %1587 = vmatpush1.msra.mxu0 0.0
        %1588 = vmatprep.subr.mxu0 0.0
        %1589 = vmatpush1.msra.mxu0 0.0
        %1590 = vmatprep.subr.mxu0 0.0
        %1591 = vmatpush1.msra.mxu0 0.0
        %1592 = vmatprep.subr.mxu0 0.0
        %1593 = vmatpush1.msra.mxu0 0.0
        %1594 = vmatprep.subr.mxu0 0.0
        %1595 = vmatpush1.msra.mxu0 0.0
        %1596 = vmatprep.subr.mxu0 0.0
        %1597 = vmatpush1.msra.mxu0 0.0
        %1598 = vmatprep.subr.mxu0 0.0
        %1599 = vmatpush1.msra.mxu0 0.0
        %1600 = vmatprep.subr.mxu0 0.0
        %1601 = vmatpush1.msra.mxu0 0.0
        %1602 = vmatprep.subr.mxu0 0.0
        %1603 = vmatpush1.msra.mxu0 0.0
        %1604 = vmatprep.subr.mxu0 0.0
        %1605 = vmatpush1.msra.mxu0 0.0
        %1606 = vmatprep.subr.mxu0 0.0
        %1607 = vmatpush1.msra.mxu0 0.0
        %1608 = vmatprep.subr.mxu0 0.0
        %1609 = vmatpush1.msra.mxu0 0.0
        %1610 = vmatprep.subr.mxu0 0.0
        %1611 = vmatpush1.msra.mxu0 0.0
        %1612 = vmatprep.subr.mxu0 0.0
        %1613 = vmatpush1.msra.mxu0 0.0
        %1614 = vmatprep.subr.mxu0 0.0
        %1615 = vmatpush1.msra.mxu0 0.0
        %1616 = vmatprep.subr.mxu0 0.0
        %1617 = vmatpush1.msra.mxu0 0.0
        %1618 = vmatprep.subr.mxu0 0.0
        %1619 = vmatpush1.msra.mxu0 0.0
        %1620 = vmatprep.subr.mxu0 0.0
        %1621 = vmatpush1.msra.mxu0 0.0
        %1622 = vmatprep.subr.mxu0 0.0
        %1623 = vmatpush1.msra.mxu0 0.0
        %1624 = vmatprep.subr.mxu0 0.0
        %1625 = vmatpush1.msra.mxu0 0.0
        %1626 = vmatprep.subr.mxu0 0.0
        %1627 = vmatpush1.msra.mxu0 0.0
        %1628 = vmatprep.mubr.f32.mxu0 0.0
        %1629 = vmatmul.mubr.f32.gmra.mrb[0].mxu0 %v1560
        %v1630 = vpop.f32.mrb[0].mxu0
        %v1631 = vadd.f32 %v524, %v1630
        %v1632 = vpop.f32.mrb[0].mxu0
        %1633 = vmatprep.mubr.f32.mxu0 0.0
        %1634 = vmatmul.mubr.f32.gmra.mrb[0].mxu0 %v1562
        %v1635 = vpop.f32.mrb[0].mxu0
        %v1636 = vadd.f32 %v524, %v1635
        %v1637 = vpop.f32.mrb[0].mxu0
        %1638 = vdwg.mxu0
        %1641 = vrot.lane.b32.xlu0 %v1426, 112
        %v1642 = vpop.permute.xlu0 %1641
        %1643 = vrot.lane.b32.xlu0 %v1427, 112
        %v1644 = vpop.permute.xlu0 %1643
        %v1645 = vsel %vm393, %v1642, 0
        %v1647 = vsel %vm393, %v1644, 0
        %1649 = vmatprep.subr.mxu0 0.0
        %1650 = vmatpush1.msra.mxu0 %v382
        %1651 = vmatprep.subr.mxu0 0.0
        %1652 = vmatpush1.msra.mxu0 %v383
        %1653 = vmatprep.subr.mxu0 0.0
        %1654 = vmatpush1.msra.mxu0 0.0
        %1655 = vmatprep.subr.mxu0 0.0
        %1656 = vmatpush1.msra.mxu0 0.0
        %1657 = vmatprep.subr.mxu0 0.0
        %1658 = vmatpush1.msra.mxu0 0.0
        %1659 = vmatprep.subr.mxu0 0.0
        %1660 = vmatpush1.msra.mxu0 0.0
        %1661 = vmatprep.subr.mxu0 0.0
        %1662 = vmatpush1.msra.mxu0 0.0
        %1663 = vmatprep.subr.mxu0 0.0
        %1664 = vmatpush1.msra.mxu0 0.0
        %1665 = vmatprep.subr.mxu0 0.0
        %1666 = vmatpush1.msra.mxu0 0.0
        %1667 = vmatprep.subr.mxu0 0.0
        %1668 = vmatpush1.msra.mxu0 0.0
        %1669 = vmatprep.subr.mxu0 0.0
        %1670 = vmatpush1.msra.mxu0 0.0
        %1671 = vmatprep.subr.mxu0 0.0
        %1672 = vmatpush1.msra.mxu0 0.0
        %1673 = vmatprep.subr.mxu0 0.0
        %1674 = vmatpush1.msra.mxu0 0.0
        %1675 = vmatprep.subr.mxu0 0.0
        %1676 = vmatpush1.msra.mxu0 0.0
        %1677 = vmatprep.subr.mxu0 0.0
        %1678 = vmatpush1.msra.mxu0 0.0
        %1679 = vmatprep.subr.mxu0 0.0
        %1680 = vmatpush1.msra.mxu0 0.0
        %1681 = vmatprep.subr.mxu0 0.0
        %1682 = vmatpush1.msra.mxu0 0.0
        %1683 = vmatprep.subr.mxu0 0.0
        %1684 = vmatpush1.msra.mxu0 0.0
        %1685 = vmatprep.subr.mxu0 0.0
        %1686 = vmatpush1.msra.mxu0 0.0
        %1687 = vmatprep.subr.mxu0 0.0
        %1688 = vmatpush1.msra.mxu0 0.0
        %1689 = vmatprep.subr.mxu0 0.0
        %1690 = vmatpush1.msra.mxu0 0.0
        %1691 = vmatprep.subr.mxu0 0.0
        %1692 = vmatpush1.msra.mxu0 0.0
        %1693 = vmatprep.subr.mxu0 0.0
        %1694 = vmatpush1.msra.mxu0 0.0
        %1695 = vmatprep.subr.mxu0 0.0
        %1696 = vmatpush1.msra.mxu0 0.0
        %1697 = vmatprep.subr.mxu0 0.0
        %1698 = vmatpush1.msra.mxu0 0.0
        %1699 = vmatprep.subr.mxu0 0.0
        %1700 = vmatpush1.msra.mxu0 0.0
        %1701 = vmatprep.subr.mxu0 0.0
        %1702 = vmatpush1.msra.mxu0 0.0
        %1703 = vmatprep.subr.mxu0 0.0
        %1704 = vmatpush1.msra.mxu0 0.0
        %1705 = vmatprep.subr.mxu0 0.0
        %1706 = vmatpush1.msra.mxu0 0.0
        %1707 = vmatprep.subr.mxu0 0.0
        %1708 = vmatpush1.msra.mxu0 0.0
        %1709 = vmatprep.subr.mxu0 0.0
        %1710 = vmatpush1.msra.mxu0 0.0
        %1711 = vmatprep.subr.mxu0 0.0
        %1712 = vmatpush1.msra.mxu0 0.0
        %1713 = vmatprep.mubr.f32.mxu0 0.0
        %1714 = vmatmul.mubr.f32.gmra.mrb[0].mxu0 %v1645
        %v1715 = vpop.f32.mrb[0].mxu0
        %v1716 = vadd.f32 %v615, %v1715
        %v1717 = vpop.f32.mrb[0].mxu0
        %1718 = vmatprep.mubr.f32.mxu0 0.0
        %1719 = vmatmul.mubr.f32.gmra.mrb[0].mxu0 %v1647
        %v1720 = vpop.f32.mrb[0].mxu0
        %v1721 = vadd.f32 %v615, %v1720
        %v1722 = vpop.f32.mrb[0].mxu0
        %1723 = vdwg.mxu0
        %v1724 = vadd.f32 %v1631, %v1716
        %v1725 = vadd.f32 %v1636, %v1721
        %v1726 = vmul.f32 %v1724, 0.5
        %v1727 = vmul.f32 %v1725, 0.5
        %v1728 = vtanh.pop %v1726
        %v1729 = vtanh.pop %v1727
        %v1730 = vmul.f32 %v1728, 0.5
        %v1731 = vmul.f32 %v1729, 0.5
        %v1732 = vadd.f32 %v1730, 0.5
        %v1733 = vadd.f32 %v1731, 0.5
        %1736 = vrot.lane.b32.xlu0 %v1716, 96
        %v1737 = vpop.permute.xlu0 %1736
        %1738 = vrot.lane.b32.xlu0 %v1721, 96
        %v1739 = vpop.permute.xlu0 %1738
        %v1742 = vmul.f32 %v1732, %v1737
        %v1743 = vmul.f32 %v1733, %v1739
        %1746 = vrot.lane.b32.xlu0 %v1742, 32
        %v1747 = vpop.permute.xlu0 %1746
        %1748 = vrot.lane.b32.xlu0 %v1743, 32
        %v1749 = vpop.permute.xlu0 %1748
        %v1752 = vadd.f32 %v1631, %v1747
        %v1753 = vadd.f32 %v1636, %v1749
        %v1754 = vtanh.pop %v1752
        %v1755 = vtanh.pop %v1753
        %v1756 = vsub.f32 1.0, %v1732
        %v1757 = vsub.f32 1.0, %v1733
        %1760 = vrot.lane.b32.xlu0 %v1754, 112
        %v1761 = vpop.permute.xlu0 %1760
        %1762 = vrot.lane.b32.xlu0 %v1755, 112
        %v1763 = vpop.permute.xlu0 %1762
        %v1766 = vmul.f32 %v1756, %v1761
        %v1767 = vmul.f32 %v1757, %v1763
        %v1768 = vmul.f32 %v1732, %v1426
        %v1769 = vmul.f32 %v1733, %v1427
        %v1770 = vadd.f32 %v1766, %v1768
        %v1771 = vadd.f32 %v1767, %v1769
        %s1772 = scalar_lea.vmem %s340, 64 [#allocation2]
        %v1773 = vld [vmem:[%s1772] sm:$0xff]
        %v1774 = vld [vmem:[%s1772 + $0x8] sm:$0xff]
        %1775 = vmatprep.subr.mxu0 0.0
        %1776 = vmatpush1.msra.mxu0 %v376
        %1777 = vmatprep.subr.mxu0 0.0
        %1778 = vmatpush1.msra.mxu0 %v377
        %1779 = vmatprep.subr.mxu0 0.0
        %1780 = vmatpush1.msra.mxu0 0.0
        %1781 = vmatprep.subr.mxu0 0.0
        %1782 = vmatpush1.msra.mxu0 0.0
        %1783 = vmatprep.subr.mxu0 0.0
        %1784 = vmatpush1.msra.mxu0 0.0
        %1785 = vmatprep.subr.mxu0 0.0
        %1786 = vmatpush1.msra.mxu0 0.0
        %1787 = vmatprep.subr.mxu0 0.0
        %1788 = vmatpush1.msra.mxu0 0.0
        %1789 = vmatprep.subr.mxu0 0.0
        %1790 = vmatpush1.msra.mxu0 0.0
        %1791 = vmatprep.subr.mxu0 0.0
        %1792 = vmatpush1.msra.mxu0 0.0
        %1793 = vmatprep.subr.mxu0 0.0
        %1794 = vmatpush1.msra.mxu0 0.0
        %1795 = vmatprep.subr.mxu0 0.0
        %1796 = vmatpush1.msra.mxu0 0.0
        %1797 = vmatprep.subr.mxu0 0.0
        %1798 = vmatpush1.msra.mxu0 0.0
        %1799 = vmatprep.subr.mxu0 0.0
        %1800 = vmatpush1.msra.mxu0 0.0
        %1801 = vmatprep.subr.mxu0 0.0
        %1802 = vmatpush1.msra.mxu0 0.0
        %1803 = vmatprep.subr.mxu0 0.0
        %1804 = vmatpush1.msra.mxu0 0.0
        %1805 = vmatprep.subr.mxu0 0.0
        %1806 = vmatpush1.msra.mxu0 0.0
        %1807 = vmatprep.subr.mxu0 0.0
        %1808 = vmatpush1.msra.mxu0 0.0
        %1809 = vmatprep.subr.mxu0 0.0
        %1810 = vmatpush1.msra.mxu0 0.0
        %1811 = vmatprep.subr.mxu0 0.0
        %1812 = vmatpush1.msra.mxu0 0.0
        %1813 = vmatprep.subr.mxu0 0.0
        %1814 = vmatpush1.msra.mxu0 0.0
        %1815 = vmatprep.subr.mxu0 0.0
        %1816 = vmatpush1.msra.mxu0 0.0
        %1817 = vmatprep.subr.mxu0 0.0
        %1818 = vmatpush1.msra.mxu0 0.0
        %1819 = vmatprep.subr.mxu0 0.0
        %1820 = vmatpush1.msra.mxu0 0.0
        %1821 = vmatprep.subr.mxu0 0.0
        %1822 = vmatpush1.msra.mxu0 0.0
        %1823 = vmatprep.subr.mxu0 0.0
        %1824 = vmatpush1.msra.mxu0 0.0
        %1825 = vmatprep.subr.mxu0 0.0
        %1826 = vmatpush1.msra.mxu0 0.0
        %1827 = vmatprep.subr.mxu0 0.0
        %1828 = vmatpush1.msra.mxu0 0.0
        %1829 = vmatprep.subr.mxu0 0.0
        %1830 = vmatpush1.msra.mxu0 0.0
        %1831 = vmatprep.subr.mxu0 0.0
        %1832 = vmatpush1.msra.mxu0 0.0
        %1833 = vmatprep.subr.mxu0 0.0
        %1834 = vmatpush1.msra.mxu0 0.0
        %1835 = vmatprep.subr.mxu0 0.0
        %1836 = vmatpush1.msra.mxu0 0.0
        %1837 = vmatprep.subr.mxu0 0.0
        %1838 = vmatpush1.msra.mxu0 0.0
        %1839 = vmatprep.mubr.f32.mxu0 0.0
        %1840 = vmatmul.mubr.f32.gmra.mrb[0].mxu0 %v1560
        %v1841 = vpop.f32.mrb[0].mxu0
        %v1842 = vadd.f32 %v391, %v1841
        %v1843 = vpop.f32.mrb[0].mxu0
        %1844 = vmatprep.mubr.f32.mxu0 0.0
        %1845 = vmatmul.mubr.f32.gmra.mrb[0].mxu0 %v1562
        %v1846 = vpop.f32.mrb[0].mxu0
        %v1847 = vadd.f32 %v391, %v1846
        %v1848 = vpop.f32.mrb[0].mxu0
        %1849 = vdwg.mxu0
        %v1850 = vadd.f32 %v1773, %v1842
        %v1851 = vadd.f32 %v1774, %v1847
        %v1852 = vmul.f32 %v1850, 0.5
        %v1853 = vmul.f32 %v1851, 0.5
        %v1854 = vtanh.pop %v1852
        %v1855 = vtanh.pop %v1853
        %v1856 = vmul.f32 %v1854, 0.5
        %v1857 = vmul.f32 %v1855, 0.5
        %v1858 = vadd.f32 %v1856, 0.5
        %v1859 = vadd.f32 %v1857, 0.5
        %1862 = vrot.lane.b32.xlu0 %v1842, 96
        %v1863 = vpop.permute.xlu0 %1862
        %1864 = vrot.lane.b32.xlu0 %v1847, 96
        %v1865 = vpop.permute.xlu0 %1864
        %v1868 = vmul.f32 %v1858, %v1863
        %v1869 = vmul.f32 %v1859, %v1865
        %1872 = vrot.lane.b32.xlu0 %v1868, 32
        %v1873 = vpop.permute.xlu0 %1872
        %1874 = vrot.lane.b32.xlu0 %v1869, 32
        %v1875 = vpop.permute.xlu0 %1874
        %v1878 = vadd.f32 %v1773, %v1873
        %v1879 = vadd.f32 %v1774, %v1875
        %v1880 = vtanh.pop %v1878
        %v1881 = vtanh.pop %v1879
        %v1882 = vsub.f32 1.0, %v1858
        %v1883 = vsub.f32 1.0, %v1859
        %1886 = vrot.lane.b32.xlu0 %v1880, 112
        %v1887 = vpop.permute.xlu0 %1886
        %1888 = vrot.lane.b32.xlu0 %v1881, 112
        %v1889 = vpop.permute.xlu0 %1888
        %v1892 = vmul.f32 %v1882, %v1887
        %v1893 = vmul.f32 %v1883, %v1889
        %v1894 = vmul.f32 %v1858, %v1552
        %v1895 = vmul.f32 %v1859, %v1553
        %v1896 = vadd.f32 %v1892, %v1894
        %v1897 = vadd.f32 %v1893, %v1895
        %1900 = vrot.lane.b32.xlu0 %v1896, 112
        %v1901 = vpop.permute.xlu0 %1900
        %1902 = vrot.lane.b32.xlu0 %v1897, 112
        %v1903 = vpop.permute.xlu0 %1902
        %v1904 = vsel %vm393, %v1901, 0
        %v1906 = vsel %vm393, %v1903, 0
        %1908 = vmatprep.subr.mxu0 0.0
        %1909 = vmatpush1.msra.mxu0 %v379
        %1910 = vmatprep.subr.mxu0 0.0
        %1911 = vmatpush1.msra.mxu0 %v380
        %1912 = vmatprep.subr.mxu0 0.0
        %1913 = vmatpush1.msra.mxu0 0.0
        %1914 = vmatprep.subr.mxu0 0.0
        %1915 = vmatpush1.msra.mxu0 0.0
        %1916 = vmatprep.subr.mxu0 0.0
        %1917 = vmatpush1.msra.mxu0 0.0
        %1918 = vmatprep.subr.mxu0 0.0
        %1919 = vmatpush1.msra.mxu0 0.0
        %1920 = vmatprep.subr.mxu0 0.0
        %1921 = vmatpush1.msra.mxu0 0.0
        %1922 = vmatprep.subr.mxu0 0.0
        %1923 = vmatpush1.msra.mxu0 0.0
        %1924 = vmatprep.subr.mxu0 0.0
        %1925 = vmatpush1.msra.mxu0 0.0
        %1926 = vmatprep.subr.mxu0 0.0
        %1927 = vmatpush1.msra.mxu0 0.0
        %1928 = vmatprep.subr.mxu0 0.0
        %1929 = vmatpush1.msra.mxu0 0.0
        %1930 = vmatprep.subr.mxu0 0.0
        %1931 = vmatpush1.msra.mxu0 0.0
        %1932 = vmatprep.subr.mxu0 0.0
        %1933 = vmatpush1.msra.mxu0 0.0
        %1934 = vmatprep.subr.mxu0 0.0
        %1935 = vmatpush1.msra.mxu0 0.0
        %1936 = vmatprep.subr.mxu0 0.0
        %1937 = vmatpush1.msra.mxu0 0.0
        %1938 = vmatprep.subr.mxu0 0.0
        %1939 = vmatpush1.msra.mxu0 0.0
        %1940 = vmatprep.subr.mxu0 0.0
        %1941 = vmatpush1.msra.mxu0 0.0
        %1942 = vmatprep.subr.mxu0 0.0
        %1943 = vmatpush1.msra.mxu0 0.0
        %1944 = vmatprep.subr.mxu0 0.0
        %1945 = vmatpush1.msra.mxu0 0.0
        %1946 = vmatprep.subr.mxu0 0.0
        %1947 = vmatpush1.msra.mxu0 0.0
        %1948 = vmatprep.subr.mxu0 0.0
        %1949 = vmatpush1.msra.mxu0 0.0
        %1950 = vmatprep.subr.mxu0 0.0
        %1951 = vmatpush1.msra.mxu0 0.0
        %1952 = vmatprep.subr.mxu0 0.0
        %1953 = vmatpush1.msra.mxu0 0.0
        %1954 = vmatprep.subr.mxu0 0.0
        %1955 = vmatpush1.msra.mxu0 0.0
        %1956 = vmatprep.subr.mxu0 0.0
        %1957 = vmatpush1.msra.mxu0 0.0
        %1958 = vmatprep.subr.mxu0 0.0
        %1959 = vmatpush1.msra.mxu0 0.0
        %1960 = vmatprep.subr.mxu0 0.0
        %1961 = vmatpush1.msra.mxu0 0.0
        %1962 = vmatprep.subr.mxu0 0.0
        %1963 = vmatpush1.msra.mxu0 0.0
        %1964 = vmatprep.subr.mxu0 0.0
        %1965 = vmatpush1.msra.mxu0 0.0
        %1966 = vmatprep.subr.mxu0 0.0
        %1967 = vmatpush1.msra.mxu0 0.0
        %1968 = vmatprep.subr.mxu0 0.0
        %1969 = vmatpush1.msra.mxu0 0.0
        %1970 = vmatprep.subr.mxu0 0.0
        %1971 = vmatpush1.msra.mxu0 0.0
        %1972 = vmatprep.mubr.f32.mxu0 0.0
        %1973 = vmatmul.mubr.f32.gmra.mrb[0].mxu0 %v1904
        %v1974 = vpop.f32.mrb[0].mxu0
        %v1975 = vadd.f32 %v524, %v1974
        %v1976 = vpop.f32.mrb[0].mxu0
        %1977 = vmatprep.mubr.f32.mxu0 0.0
        %1978 = vmatmul.mubr.f32.gmra.mrb[0].mxu0 %v1906
        %v1979 = vpop.f32.mrb[0].mxu0
        %v1980 = vadd.f32 %v524, %v1979
        %v1981 = vpop.f32.mrb[0].mxu0
        %1982 = vdwg.mxu0
        %1985 = vrot.lane.b32.xlu0 %v1770, 112
        %v1986 = vpop.permute.xlu0 %1985
        %1987 = vrot.lane.b32.xlu0 %v1771, 112
        %v1988 = vpop.permute.xlu0 %1987
        %v1989 = vsel %vm393, %v1986, 0
        %v1991 = vsel %vm393, %v1988, 0
        %1993 = vmatprep.subr.mxu0 0.0
        %1994 = vmatpush1.msra.mxu0 %v382
        %1995 = vmatprep.subr.mxu0 0.0
        %1996 = vmatpush1.msra.mxu0 %v383
        %1997 = vmatprep.subr.mxu0 0.0
        %1998 = vmatpush1.msra.mxu0 0.0
        %1999 = vmatprep.subr.mxu0 0.0
        %2000 = vmatpush1.msra.mxu0 0.0
        %2001 = vmatprep.subr.mxu0 0.0
        %2002 = vmatpush1.msra.mxu0 0.0
        %2003 = vmatprep.subr.mxu0 0.0
        %2004 = vmatpush1.msra.mxu0 0.0
        %2005 = vmatprep.subr.mxu0 0.0
        %2006 = vmatpush1.msra.mxu0 0.0
        %2007 = vmatprep.subr.mxu0 0.0
        %2008 = vmatpush1.msra.mxu0 0.0
        %2009 = vmatprep.subr.mxu0 0.0
        %2010 = vmatpush1.msra.mxu0 0.0
        %2011 = vmatprep.subr.mxu0 0.0
        %2012 = vmatpush1.msra.mxu0 0.0
        %2013 = vmatprep.subr.mxu0 0.0
        %2014 = vmatpush1.msra.mxu0 0.0
        %2015 = vmatprep.subr.mxu0 0.0
        %2016 = vmatpush1.msra.mxu0 0.0
        %2017 = vmatprep.subr.mxu0 0.0
        %2018 = vmatpush1.msra.mxu0 0.0
        %2019 = vmatprep.subr.mxu0 0.0
        %2020 = vmatpush1.msra.mxu0 0.0
        %2021 = vmatprep.subr.mxu0 0.0
        %2022 = vmatpush1.msra.mxu0 0.0
        %2023 = vmatprep.subr.mxu0 0.0
        %2024 = vmatpush1.msra.mxu0 0.0
        %2025 = vmatprep.subr.mxu0 0.0
        %2026 = vmatpush1.msra.mxu0 0.0
        %2027 = vmatprep.subr.mxu0 0.0
        %2028 = vmatpush1.msra.mxu0 0.0
        %2029 = vmatprep.subr.mxu0 0.0
        %2030 = vmatpush1.msra.mxu0 0.0
        %2031 = vmatprep.subr.mxu0 0.0
        %2032 = vmatpush1.msra.mxu0 0.0
        %2033 = vmatprep.subr.mxu0 0.0
        %2034 = vmatpush1.msra.mxu0 0.0
        %2035 = vmatprep.subr.mxu0 0.0
        %2036 = vmatpush1.msra.mxu0 0.0
        %2037 = vmatprep.subr.mxu0 0.0
        %2038 = vmatpush1.msra.mxu0 0.0
        %2039 = vmatprep.subr.mxu0 0.0
        %2040 = vmatpush1.msra.mxu0 0.0
        %2041 = vmatprep.subr.mxu0 0.0
        %2042 = vmatpush1.msra.mxu0 0.0
        %2043 = vmatprep.subr.mxu0 0.0
        %2044 = vmatpush1.msra.mxu0 0.0
        %2045 = vmatprep.subr.mxu0 0.0
        %2046 = vmatpush1.msra.mxu0 0.0
        %2047 = vmatprep.subr.mxu0 0.0
        %2048 = vmatpush1.msra.mxu0 0.0
        %2049 = vmatprep.subr.mxu0 0.0
        %2050 = vmatpush1.msra.mxu0 0.0
        %2051 = vmatprep.subr.mxu0 0.0
        %2052 = vmatpush1.msra.mxu0 0.0
        %2053 = vmatprep.subr.mxu0 0.0
        %2054 = vmatpush1.msra.mxu0 0.0
        %2055 = vmatprep.subr.mxu0 0.0
        %2056 = vmatpush1.msra.mxu0 0.0
        %2057 = vmatprep.mubr.f32.mxu0 0.0
        %2058 = vmatmul.mubr.f32.gmra.mrb[0].mxu0 %v1989
        %v2059 = vpop.f32.mrb[0].mxu0
        %v2060 = vadd.f32 %v615, %v2059
        %v2061 = vpop.f32.mrb[0].mxu0
        %2062 = vmatprep.mubr.f32.mxu0 0.0
        %2063 = vmatmul.mubr.f32.gmra.mrb[0].mxu0 %v1991
        %v2064 = vpop.f32.mrb[0].mxu0
        %v2065 = vadd.f32 %v615, %v2064
        %v2066 = vpop.f32.mrb[0].mxu0
        %2067 = vdwg.mxu0
        %v2068 = vadd.f32 %v1975, %v2060
        %v2069 = vadd.f32 %v1980, %v2065
        %v2070 = vmul.f32 %v2068, 0.5
        %v2071 = vmul.f32 %v2069, 0.5
        %v2072 = vtanh.pop %v2070
        %v2073 = vtanh.pop %v2071
        %v2074 = vmul.f32 %v2072, 0.5
        %v2075 = vmul.f32 %v2073, 0.5
        %v2076 = vadd.f32 %v2074, 0.5
        %v2077 = vadd.f32 %v2075, 0.5
        %2080 = vrot.lane.b32.xlu0 %v2060, 96
        %v2081 = vpop.permute.xlu0 %2080
        %2082 = vrot.lane.b32.xlu0 %v2065, 96
        %v2083 = vpop.permute.xlu0 %2082
        %v2086 = vmul.f32 %v2076, %v2081
        %v2087 = vmul.f32 %v2077, %v2083
        %2090 = vrot.lane.b32.xlu0 %v2086, 32
        %v2091 = vpop.permute.xlu0 %2090
        %2092 = vrot.lane.b32.xlu0 %v2087, 32
        %v2093 = vpop.permute.xlu0 %2092
        %v2096 = vadd.f32 %v1975, %v2091
        %v2097 = vadd.f32 %v1980, %v2093
        %v2098 = vtanh.pop %v2096
        %v2099 = vtanh.pop %v2097
        %v2100 = vsub.f32 1.0, %v2076
        %v2101 = vsub.f32 1.0, %v2077
        %2104 = vrot.lane.b32.xlu0 %v2098, 112
        %v2105 = vpop.permute.xlu0 %2104
        %2106 = vrot.lane.b32.xlu0 %v2099, 112
        %v2107 = vpop.permute.xlu0 %2106
        %v2110 = vmul.f32 %v2100, %v2105
        %v2111 = vmul.f32 %v2101, %v2107
        %v2112 = vmul.f32 %v2076, %v1770
        %v2113 = vmul.f32 %v2077, %v1771
        %v2114 = vadd.f32 %v2110, %v2112
        %v2115 = vadd.f32 %v2111, %v2113
        %s2116 = scalar_lea.vmem %s340, 80 [#allocation2]
        %v2117 = vld [vmem:[%s2116] sm:$0xff]
        %v2118 = vld [vmem:[%s2116 + $0x8] sm:$0xff]
        %2119 = vmatprep.subr.mxu0 0.0
        %2120 = vmatpush1.msra.mxu0 %v376
        %2121 = vmatprep.subr.mxu0 0.0
        %2122 = vmatpush1.msra.mxu0 %v377
        %2123 = vmatprep.subr.mxu0 0.0
        %2124 = vmatpush1.msra.mxu0 0.0
        %2125 = vmatprep.subr.mxu0 0.0
        %2126 = vmatpush1.msra.mxu0 0.0
        %2127 = vmatprep.subr.mxu0 0.0
        %2128 = vmatpush1.msra.mxu0 0.0
        %2129 = vmatprep.subr.mxu0 0.0
        %2130 = vmatpush1.msra.mxu0 0.0
        %2131 = vmatprep.subr.mxu0 0.0
        %2132 = vmatpush1.msra.mxu0 0.0
        %2133 = vmatprep.subr.mxu0 0.0
        %2134 = vmatpush1.msra.mxu0 0.0
        %2135 = vmatprep.subr.mxu0 0.0
        %2136 = vmatpush1.msra.mxu0 0.0
        %2137 = vmatprep.subr.mxu0 0.0
        %2138 = vmatpush1.msra.mxu0 0.0
        %2139 = vmatprep.subr.mxu0 0.0
        %2140 = vmatpush1.msra.mxu0 0.0
        %2141 = vmatprep.subr.mxu0 0.0
        %2142 = vmatpush1.msra.mxu0 0.0
        %2143 = vmatprep.subr.mxu0 0.0
        %2144 = vmatpush1.msra.mxu0 0.0
        %2145 = vmatprep.subr.mxu0 0.0
        %2146 = vmatpush1.msra.mxu0 0.0
        %2147 = vmatprep.subr.mxu0 0.0
        %2148 = vmatpush1.msra.mxu0 0.0
        %2149 = vmatprep.subr.mxu0 0.0
        %2150 = vmatpush1.msra.mxu0 0.0
        %2151 = vmatprep.subr.mxu0 0.0
        %2152 = vmatpush1.msra.mxu0 0.0
        %2153 = vmatprep.subr.mxu0 0.0
        %2154 = vmatpush1.msra.mxu0 0.0
        %2155 = vmatprep.subr.mxu0 0.0
        %2156 = vmatpush1.msra.mxu0 0.0
        %2157 = vmatprep.subr.mxu0 0.0
        %2158 = vmatpush1.msra.mxu0 0.0
        %2159 = vmatprep.subr.mxu0 0.0
        %2160 = vmatpush1.msra.mxu0 0.0
        %2161 = vmatprep.subr.mxu0 0.0
        %2162 = vmatpush1.msra.mxu0 0.0
        %2163 = vmatprep.subr.mxu0 0.0
        %2164 = vmatpush1.msra.mxu0 0.0
        %2165 = vmatprep.subr.mxu0 0.0
        %2166 = vmatpush1.msra.mxu0 0.0
        %2167 = vmatprep.subr.mxu0 0.0
        %2168 = vmatpush1.msra.mxu0 0.0
        %2169 = vmatprep.subr.mxu0 0.0
        %2170 = vmatpush1.msra.mxu0 0.0
        %2171 = vmatprep.subr.mxu0 0.0
        %2172 = vmatpush1.msra.mxu0 0.0
        %2173 = vmatprep.subr.mxu0 0.0
        %2174 = vmatpush1.msra.mxu0 0.0
        %2175 = vmatprep.subr.mxu0 0.0
        %2176 = vmatpush1.msra.mxu0 0.0
        %2177 = vmatprep.subr.mxu0 0.0
        %2178 = vmatpush1.msra.mxu0 0.0
        %2179 = vmatprep.subr.mxu0 0.0
        %2180 = vmatpush1.msra.mxu0 0.0
        %2181 = vmatprep.subr.mxu0 0.0
        %2182 = vmatpush1.msra.mxu0 0.0
        %2183 = vmatprep.mubr.f32.mxu0 0.0
        %2184 = vmatmul.mubr.f32.gmra.mrb[0].mxu0 %v1904
        %v2185 = vpop.f32.mrb[0].mxu0
        %v2186 = vadd.f32 %v391, %v2185
        %v2187 = vpop.f32.mrb[0].mxu0
        %2188 = vmatprep.mubr.f32.mxu0 0.0
        %2189 = vmatmul.mubr.f32.gmra.mrb[0].mxu0 %v1906
        %v2190 = vpop.f32.mrb[0].mxu0
        %v2191 = vadd.f32 %v391, %v2190
        %v2192 = vpop.f32.mrb[0].mxu0
        %2193 = vdwg.mxu0
        %v2194 = vadd.f32 %v2117, %v2186
        %v2195 = vadd.f32 %v2118, %v2191
        %v2196 = vmul.f32 %v2194, 0.5
        %v2197 = vmul.f32 %v2195, 0.5
        %v2198 = vtanh.pop %v2196
        %v2199 = vtanh.pop %v2197
        %v2200 = vmul.f32 %v2198, 0.5
        %v2201 = vmul.f32 %v2199, 0.5
        %v2202 = vadd.f32 %v2200, 0.5
        %v2203 = vadd.f32 %v2201, 0.5
        %2206 = vrot.lane.b32.xlu0 %v2186, 96
        %v2207 = vpop.permute.xlu0 %2206
        %2208 = vrot.lane.b32.xlu0 %v2191, 96
        %v2209 = vpop.permute.xlu0 %2208
        %v2212 = vmul.f32 %v2202, %v2207
        %v2213 = vmul.f32 %v2203, %v2209
        %2216 = vrot.lane.b32.xlu0 %v2212, 32
        %v2217 = vpop.permute.xlu0 %2216
        %2218 = vrot.lane.b32.xlu0 %v2213, 32
        %v2219 = vpop.permute.xlu0 %2218
        %v2222 = vadd.f32 %v2117, %v2217
        %v2223 = vadd.f32 %v2118, %v2219
        %v2224 = vtanh.pop %v2222
        %v2225 = vtanh.pop %v2223
        %v2226 = vsub.f32 1.0, %v2202
        %v2227 = vsub.f32 1.0, %v2203
        %2230 = vrot.lane.b32.xlu0 %v2224, 112
        %v2231 = vpop.permute.xlu0 %2230
        %2232 = vrot.lane.b32.xlu0 %v2225, 112
        %v2233 = vpop.permute.xlu0 %2232
        %v2236 = vmul.f32 %v2226, %v2231
        %v2237 = vmul.f32 %v2227, %v2233
        %v2238 = vmul.f32 %v2202, %v1896
        %v2239 = vmul.f32 %v2203, %v1897
        %v2240 = vadd.f32 %v2236, %v2238
        %v2241 = vadd.f32 %v2237, %v2239
        %2244 = vrot.lane.b32.xlu0 %v2240, 112
        %v2245 = vpop.permute.xlu0 %2244
        %2246 = vrot.lane.b32.xlu0 %v2241, 112
        %v2247 = vpop.permute.xlu0 %2246
        %v2248 = vsel %vm393, %v2245, 0
        %v2250 = vsel %vm393, %v2247, 0
        %2252 = vmatprep.subr.mxu0 0.0
        %2253 = vmatpush1.msra.mxu0 %v379
        %2254 = vmatprep.subr.mxu0 0.0
        %2255 = vmatpush1.msra.mxu0 %v380
        %2256 = vmatprep.subr.mxu0 0.0
        %2257 = vmatpush1.msra.mxu0 0.0
        %2258 = vmatprep.subr.mxu0 0.0
        %2259 = vmatpush1.msra.mxu0 0.0
        %2260 = vmatprep.subr.mxu0 0.0
        %2261 = vmatpush1.msra.mxu0 0.0
        %2262 = vmatprep.subr.mxu0 0.0
        %2263 = vmatpush1.msra.mxu0 0.0
        %2264 = vmatprep.subr.mxu0 0.0
        %2265 = vmatpush1.msra.mxu0 0.0
        %2266 = vmatprep.subr.mxu0 0.0
        %2267 = vmatpush1.msra.mxu0 0.0
        %2268 = vmatprep.subr.mxu0 0.0
        %2269 = vmatpush1.msra.mxu0 0.0
        %2270 = vmatprep.subr.mxu0 0.0
        %2271 = vmatpush1.msra.mxu0 0.0
        %2272 = vmatprep.subr.mxu0 0.0
        %2273 = vmatpush1.msra.mxu0 0.0
        %2274 = vmatprep.subr.mxu0 0.0
        %2275 = vmatpush1.msra.mxu0 0.0
        %2276 = vmatprep.subr.mxu0 0.0
        %2277 = vmatpush1.msra.mxu0 0.0
        %2278 = vmatprep.subr.mxu0 0.0
        %2279 = vmatpush1.msra.mxu0 0.0
        %2280 = vmatprep.subr.mxu0 0.0
        %2281 = vmatpush1.msra.mxu0 0.0
        %2282 = vmatprep.subr.mxu0 0.0
        %2283 = vmatpush1.msra.mxu0 0.0
        %2284 = vmatprep.subr.mxu0 0.0
        %2285 = vmatpush1.msra.mxu0 0.0
        %2286 = vmatprep.subr.mxu0 0.0
        %2287 = vmatpush1.msra.mxu0 0.0
        %2288 = vmatprep.subr.mxu0 0.0
        %2289 = vmatpush1.msra.mxu0 0.0
        %2290 = vmatprep.subr.mxu0 0.0
        %2291 = vmatpush1.msra.mxu0 0.0
        %2292 = vmatprep.subr.mxu0 0.0
        %2293 = vmatpush1.msra.mxu0 0.0
        %2294 = vmatprep.subr.mxu0 0.0
        %2295 = vmatpush1.msra.mxu0 0.0
        %2296 = vmatprep.subr.mxu0 0.0
        %2297 = vmatpush1.msra.mxu0 0.0
        %2298 = vmatprep.subr.mxu0 0.0
        %2299 = vmatpush1.msra.mxu0 0.0
        %2300 = vmatprep.subr.mxu0 0.0
        %2301 = vmatpush1.msra.mxu0 0.0
        %2302 = vmatprep.subr.mxu0 0.0
        %2303 = vmatpush1.msra.mxu0 0.0
        %2304 = vmatprep.subr.mxu0 0.0
        %2305 = vmatpush1.msra.mxu0 0.0
        %2306 = vmatprep.subr.mxu0 0.0
        %2307 = vmatpush1.msra.mxu0 0.0
        %2308 = vmatprep.subr.mxu0 0.0
        %2309 = vmatpush1.msra.mxu0 0.0
        %2310 = vmatprep.subr.mxu0 0.0
        %2311 = vmatpush1.msra.mxu0 0.0
        %2312 = vmatprep.subr.mxu0 0.0
        %2313 = vmatpush1.msra.mxu0 0.0
        %2314 = vmatprep.subr.mxu0 0.0
        %2315 = vmatpush1.msra.mxu0 0.0
        %2316 = vmatprep.mubr.f32.mxu0 0.0
        %2317 = vmatmul.mubr.f32.gmra.mrb[0].mxu0 %v2248
        %v2318 = vpop.f32.mrb[0].mxu0
        %v2319 = vadd.f32 %v524, %v2318
        %v2320 = vpop.f32.mrb[0].mxu0
        %2321 = vmatprep.mubr.f32.mxu0 0.0
        %2322 = vmatmul.mubr.f32.gmra.mrb[0].mxu0 %v2250
        %v2323 = vpop.f32.mrb[0].mxu0
        %v2324 = vadd.f32 %v524, %v2323
        %v2325 = vpop.f32.mrb[0].mxu0
        %2326 = vdwg.mxu0
        %2329 = vrot.lane.b32.xlu0 %v2114, 112
        %v2330 = vpop.permute.xlu0 %2329
        %2331 = vrot.lane.b32.xlu0 %v2115, 112
        %v2332 = vpop.permute.xlu0 %2331
        %v2333 = vsel %vm393, %v2330, 0
        %v2335 = vsel %vm393, %v2332, 0
        %2337 = vmatprep.subr.mxu0 0.0
        %2338 = vmatpush1.msra.mxu0 %v382
        %2339 = vmatprep.subr.mxu0 0.0
        %2340 = vmatpush1.msra.mxu0 %v383
        %2341 = vmatprep.subr.mxu0 0.0
        %2342 = vmatpush1.msra.mxu0 0.0
        %2343 = vmatprep.subr.mxu0 0.0
        %2344 = vmatpush1.msra.mxu0 0.0
        %2345 = vmatprep.subr.mxu0 0.0
        %2346 = vmatpush1.msra.mxu0 0.0
        %2347 = vmatprep.subr.mxu0 0.0
        %2348 = vmatpush1.msra.mxu0 0.0
        %2349 = vmatprep.subr.mxu0 0.0
        %2350 = vmatpush1.msra.mxu0 0.0
        %2351 = vmatprep.subr.mxu0 0.0
        %2352 = vmatpush1.msra.mxu0 0.0
        %2353 = vmatprep.subr.mxu0 0.0
        %2354 = vmatpush1.msra.mxu0 0.0
        %2355 = vmatprep.subr.mxu0 0.0
        %2356 = vmatpush1.msra.mxu0 0.0
        %2357 = vmatprep.subr.mxu0 0.0
        %2358 = vmatpush1.msra.mxu0 0.0
        %2359 = vmatprep.subr.mxu0 0.0
        %2360 = vmatpush1.msra.mxu0 0.0
        %2361 = vmatprep.subr.mxu0 0.0
        %2362 = vmatpush1.msra.mxu0 0.0
        %2363 = vmatprep.subr.mxu0 0.0
        %2364 = vmatpush1.msra.mxu0 0.0
        %2365 = vmatprep.subr.mxu0 0.0
        %2366 = vmatpush1.msra.mxu0 0.0
        %2367 = vmatprep.subr.mxu0 0.0
        %2368 = vmatpush1.msra.mxu0 0.0
        %2369 = vmatprep.subr.mxu0 0.0
        %2370 = vmatpush1.msra.mxu0 0.0
        %2371 = vmatprep.subr.mxu0 0.0
        %2372 = vmatpush1.msra.mxu0 0.0
        %2373 = vmatprep.subr.mxu0 0.0
        %2374 = vmatpush1.msra.mxu0 0.0
        %2375 = vmatprep.subr.mxu0 0.0
        %2376 = vmatpush1.msra.mxu0 0.0
        %2377 = vmatprep.subr.mxu0 0.0
        %2378 = vmatpush1.msra.mxu0 0.0
        %2379 = vmatprep.subr.mxu0 0.0
        %2380 = vmatpush1.msra.mxu0 0.0
        %2381 = vmatprep.subr.mxu0 0.0
        %2382 = vmatpush1.msra.mxu0 0.0
        %2383 = vmatprep.subr.mxu0 0.0
        %2384 = vmatpush1.msra.mxu0 0.0
        %2385 = vmatprep.subr.mxu0 0.0
        %2386 = vmatpush1.msra.mxu0 0.0
        %2387 = vmatprep.subr.mxu0 0.0
        %2388 = vmatpush1.msra.mxu0 0.0
        %2389 = vmatprep.subr.mxu0 0.0
        %2390 = vmatpush1.msra.mxu0 0.0
        %2391 = vmatprep.subr.mxu0 0.0
        %2392 = vmatpush1.msra.mxu0 0.0
        %2393 = vmatprep.subr.mxu0 0.0
        %2394 = vmatpush1.msra.mxu0 0.0
        %2395 = vmatprep.subr.mxu0 0.0
        %2396 = vmatpush1.msra.mxu0 0.0
        %2397 = vmatprep.subr.mxu0 0.0
        %2398 = vmatpush1.msra.mxu0 0.0
        %2399 = vmatprep.subr.mxu0 0.0
        %2400 = vmatpush1.msra.mxu0 0.0
        %2401 = vmatprep.mubr.f32.mxu0 0.0
        %2402 = vmatmul.mubr.f32.gmra.mrb[0].mxu0 %v2333
        %v2403 = vpop.f32.mrb[0].mxu0
        %v2404 = vadd.f32 %v615, %v2403
        %v2405 = vpop.f32.mrb[0].mxu0
        %2406 = vmatprep.mubr.f32.mxu0 0.0
        %2407 = vmatmul.mubr.f32.gmra.mrb[0].mxu0 %v2335
        %v2408 = vpop.f32.mrb[0].mxu0
        %v2409 = vadd.f32 %v615, %v2408
        %v2410 = vpop.f32.mrb[0].mxu0
        %2411 = vdwg.mxu0
        %v2412 = vadd.f32 %v2319, %v2404
        %v2413 = vadd.f32 %v2324, %v2409
        %v2414 = vmul.f32 %v2412, 0.5
        %v2415 = vmul.f32 %v2413, 0.5
        %v2416 = vtanh.pop %v2414
        %v2417 = vtanh.pop %v2415
        %v2418 = vmul.f32 %v2416, 0.5
        %v2419 = vmul.f32 %v2417, 0.5
        %v2420 = vadd.f32 %v2418, 0.5
        %v2421 = vadd.f32 %v2419, 0.5
        %2424 = vrot.lane.b32.xlu0 %v2404, 96
        %v2425 = vpop.permute.xlu0 %2424
        %2426 = vrot.lane.b32.xlu0 %v2409, 96
        %v2427 = vpop.permute.xlu0 %2426
        %v2430 = vmul.f32 %v2420, %v2425
        %v2431 = vmul.f32 %v2421, %v2427
        %2434 = vrot.lane.b32.xlu0 %v2430, 32
        %v2435 = vpop.permute.xlu0 %2434
        %2436 = vrot.lane.b32.xlu0 %v2431, 32
        %v2437 = vpop.permute.xlu0 %2436
        %v2440 = vadd.f32 %v2319, %v2435
        %v2441 = vadd.f32 %v2324, %v2437
        %v2442 = vtanh.pop %v2440
        %v2443 = vtanh.pop %v2441
        %v2444 = vsub.f32 1.0, %v2420
        %v2445 = vsub.f32 1.0, %v2421
        %2448 = vrot.lane.b32.xlu0 %v2442, 112
        %v2449 = vpop.permute.xlu0 %2448
        %2450 = vrot.lane.b32.xlu0 %v2443, 112
        %v2451 = vpop.permute.xlu0 %2450
        %v2454 = vmul.f32 %v2444, %v2449
        %v2455 = vmul.f32 %v2445, %v2451
        %v2456 = vmul.f32 %v2420, %v2114
        %v2457 = vmul.f32 %v2421, %v2115
        %v2458 = vadd.f32 %v2454, %v2456
        %v2459 = vadd.f32 %v2455, %v2457
        %s2460 = scalar_lea.vmem %s340, 96 [#allocation2]
        %v2461 = vld [vmem:[%s2460] sm:$0xff]
        %v2462 = vld [vmem:[%s2460 + $0x8] sm:$0xff]
        %2463 = vmatprep.subr.mxu0 0.0
        %2464 = vmatpush1.msra.mxu0 %v376
        %2465 = vmatprep.subr.mxu0 0.0
        %2466 = vmatpush1.msra.mxu0 %v377
        %2467 = vmatprep.subr.mxu0 0.0
        %2468 = vmatpush1.msra.mxu0 0.0
        %2469 = vmatprep.subr.mxu0 0.0
        %2470 = vmatpush1.msra.mxu0 0.0
        %2471 = vmatprep.subr.mxu0 0.0
        %2472 = vmatpush1.msra.mxu0 0.0
        %2473 = vmatprep.subr.mxu0 0.0
        %2474 = vmatpush1.msra.mxu0 0.0
        %2475 = vmatprep.subr.mxu0 0.0
        %2476 = vmatpush1.msra.mxu0 0.0
        %2477 = vmatprep.subr.mxu0 0.0
        %2478 = vmatpush1.msra.mxu0 0.0
        %2479 = vmatprep.subr.mxu0 0.0
        %2480 = vmatpush1.msra.mxu0 0.0
        %2481 = vmatprep.subr.mxu0 0.0
        %2482 = vmatpush1.msra.mxu0 0.0
        %2483 = vmatprep.subr.mxu0 0.0
        %2484 = vmatpush1.msra.mxu0 0.0
        %2485 = vmatprep.subr.mxu0 0.0
        %2486 = vmatpush1.msra.mxu0 0.0
        %2487 = vmatprep.subr.mxu0 0.0
        %2488 = vmatpush1.msra.mxu0 0.0
        %2489 = vmatprep.subr.mxu0 0.0
        %2490 = vmatpush1.msra.mxu0 0.0
        %2491 = vmatprep.subr.mxu0 0.0
        %2492 = vmatpush1.msra.mxu0 0.0
        %2493 = vmatprep.subr.mxu0 0.0
        %2494 = vmatpush1.msra.mxu0 0.0
        %2495 = vmatprep.subr.mxu0 0.0
        %2496 = vmatpush1.msra.mxu0 0.0
        %2497 = vmatprep.subr.mxu0 0.0
        %2498 = vmatpush1.msra.mxu0 0.0
        %2499 = vmatprep.subr.mxu0 0.0
        %2500 = vmatpush1.msra.mxu0 0.0
        %2501 = vmatprep.subr.mxu0 0.0
        %2502 = vmatpush1.msra.mxu0 0.0
        %2503 = vmatprep.subr.mxu0 0.0
        %2504 = vmatpush1.msra.mxu0 0.0
        %2505 = vmatprep.subr.mxu0 0.0
        %2506 = vmatpush1.msra.mxu0 0.0
        %2507 = vmatprep.subr.mxu0 0.0
        %2508 = vmatpush1.msra.mxu0 0.0
        %2509 = vmatprep.subr.mxu0 0.0
        %2510 = vmatpush1.msra.mxu0 0.0
        %2511 = vmatprep.subr.mxu0 0.0
        %2512 = vmatpush1.msra.mxu0 0.0
        %2513 = vmatprep.subr.mxu0 0.0
        %2514 = vmatpush1.msra.mxu0 0.0
        %2515 = vmatprep.subr.mxu0 0.0
        %2516 = vmatpush1.msra.mxu0 0.0
        %2517 = vmatprep.subr.mxu0 0.0
        %2518 = vmatpush1.msra.mxu0 0.0
        %2519 = vmatprep.subr.mxu0 0.0
        %2520 = vmatpush1.msra.mxu0 0.0
        %2521 = vmatprep.subr.mxu0 0.0
        %2522 = vmatpush1.msra.mxu0 0.0
        %2523 = vmatprep.subr.mxu0 0.0
        %2524 = vmatpush1.msra.mxu0 0.0
        %2525 = vmatprep.subr.mxu0 0.0
        %2526 = vmatpush1.msra.mxu0 0.0
        %2527 = vmatprep.mubr.f32.mxu0 0.0
        %2528 = vmatmul.mubr.f32.gmra.mrb[0].mxu0 %v2248
        %v2529 = vpop.f32.mrb[0].mxu0
        %v2530 = vadd.f32 %v391, %v2529
        %v2531 = vpop.f32.mrb[0].mxu0
        %2532 = vmatprep.mubr.f32.mxu0 0.0
        %2533 = vmatmul.mubr.f32.gmra.mrb[0].mxu0 %v2250
        %v2534 = vpop.f32.mrb[0].mxu0
        %v2535 = vadd.f32 %v391, %v2534
        %v2536 = vpop.f32.mrb[0].mxu0
        %2537 = vdwg.mxu0
        %v2538 = vadd.f32 %v2461, %v2530
        %v2539 = vadd.f32 %v2462, %v2535
        %v2540 = vmul.f32 %v2538, 0.5
        %v2541 = vmul.f32 %v2539, 0.5
        %v2542 = vtanh.pop %v2540
        %v2543 = vtanh.pop %v2541
        %v2544 = vmul.f32 %v2542, 0.5
        %v2545 = vmul.f32 %v2543, 0.5
        %v2546 = vadd.f32 %v2544, 0.5
        %v2547 = vadd.f32 %v2545, 0.5
        %2550 = vrot.lane.b32.xlu0 %v2530, 96
        %v2551 = vpop.permute.xlu0 %2550
        %2552 = vrot.lane.b32.xlu0 %v2535, 96
        %v2553 = vpop.permute.xlu0 %2552
        %v2556 = vmul.f32 %v2546, %v2551
        %v2557 = vmul.f32 %v2547, %v2553
        %2560 = vrot.lane.b32.xlu0 %v2556, 32
        %v2561 = vpop.permute.xlu0 %2560
        %2562 = vrot.lane.b32.xlu0 %v2557, 32
        %v2563 = vpop.permute.xlu0 %2562
        %v2566 = vadd.f32 %v2461, %v2561
        %v2567 = vadd.f32 %v2462, %v2563
        %v2568 = vtanh.pop %v2566
        %v2569 = vtanh.pop %v2567
        %v2570 = vsub.f32 1.0, %v2546
        %v2571 = vsub.f32 1.0, %v2547
        %2574 = vrot.lane.b32.xlu0 %v2568, 112
        %v2575 = vpop.permute.xlu0 %2574
        %2576 = vrot.lane.b32.xlu0 %v2569, 112
        %v2577 = vpop.permute.xlu0 %2576
        %v2580 = vmul.f32 %v2570, %v2575
        %v2581 = vmul.f32 %v2571, %v2577
        %v2582 = vmul.f32 %v2546, %v2240
        %v2583 = vmul.f32 %v2547, %v2241
        %v2584 = vadd.f32 %v2580, %v2582
        %v2585 = vadd.f32 %v2581, %v2583
        %2588 = vrot.lane.b32.xlu0 %v2584, 112
        %v2589 = vpop.permute.xlu0 %2588
        %2590 = vrot.lane.b32.xlu0 %v2585, 112
        %v2591 = vpop.permute.xlu0 %2590
        %v2592 = vsel %vm393, %v2589, 0
        %v2594 = vsel %vm393, %v2591, 0
        %2596 = vmatprep.subr.mxu0 0.0
        %2597 = vmatpush1.msra.mxu0 %v379
        %2598 = vmatprep.subr.mxu0 0.0
        %2599 = vmatpush1.msra.mxu0 %v380
        %2600 = vmatprep.subr.mxu0 0.0
        %2601 = vmatpush1.msra.mxu0 0.0
        %2602 = vmatprep.subr.mxu0 0.0
        %2603 = vmatpush1.msra.mxu0 0.0
        %2604 = vmatprep.subr.mxu0 0.0
        %2605 = vmatpush1.msra.mxu0 0.0
        %2606 = vmatprep.subr.mxu0 0.0
        %2607 = vmatpush1.msra.mxu0 0.0
        %2608 = vmatprep.subr.mxu0 0.0
        %2609 = vmatpush1.msra.mxu0 0.0
        %2610 = vmatprep.subr.mxu0 0.0
        %2611 = vmatpush1.msra.mxu0 0.0
        %2612 = vmatprep.subr.mxu0 0.0
        %2613 = vmatpush1.msra.mxu0 0.0
        %2614 = vmatprep.subr.mxu0 0.0
        %2615 = vmatpush1.msra.mxu0 0.0
        %2616 = vmatprep.subr.mxu0 0.0
        %2617 = vmatpush1.msra.mxu0 0.0
        %2618 = vmatprep.subr.mxu0 0.0
        %2619 = vmatpush1.msra.mxu0 0.0
        %2620 = vmatprep.subr.mxu0 0.0
        %2621 = vmatpush1.msra.mxu0 0.0
        %2622 = vmatprep.subr.mxu0 0.0
        %2623 = vmatpush1.msra.mxu0 0.0
        %2624 = vmatprep.subr.mxu0 0.0
        %2625 = vmatpush1.msra.mxu0 0.0
        %2626 = vmatprep.subr.mxu0 0.0
        %2627 = vmatpush1.msra.mxu0 0.0
        %2628 = vmatprep.subr.mxu0 0.0
        %2629 = vmatpush1.msra.mxu0 0.0
        %2630 = vmatprep.subr.mxu0 0.0
        %2631 = vmatpush1.msra.mxu0 0.0
        %2632 = vmatprep.subr.mxu0 0.0
        %2633 = vmatpush1.msra.mxu0 0.0
        %2634 = vmatprep.subr.mxu0 0.0
        %2635 = vmatpush1.msra.mxu0 0.0
        %2636 = vmatprep.subr.mxu0 0.0
        %2637 = vmatpush1.msra.mxu0 0.0
        %2638 = vmatprep.subr.mxu0 0.0
        %2639 = vmatpush1.msra.mxu0 0.0
        %2640 = vmatprep.subr.mxu0 0.0
        %2641 = vmatpush1.msra.mxu0 0.0
        %2642 = vmatprep.subr.mxu0 0.0
        %2643 = vmatpush1.msra.mxu0 0.0
        %2644 = vmatprep.subr.mxu0 0.0
        %2645 = vmatpush1.msra.mxu0 0.0
        %2646 = vmatprep.subr.mxu0 0.0
        %2647 = vmatpush1.msra.mxu0 0.0
        %2648 = vmatprep.subr.mxu0 0.0
        %2649 = vmatpush1.msra.mxu0 0.0
        %2650 = vmatprep.subr.mxu0 0.0
        %2651 = vmatpush1.msra.mxu0 0.0
        %2652 = vmatprep.subr.mxu0 0.0
        %2653 = vmatpush1.msra.mxu0 0.0
        %2654 = vmatprep.subr.mxu0 0.0
        %2655 = vmatpush1.msra.mxu0 0.0
        %2656 = vmatprep.subr.mxu0 0.0
        %2657 = vmatpush1.msra.mxu0 0.0
        %2658 = vmatprep.subr.mxu0 0.0
        %2659 = vmatpush1.msra.mxu0 0.0
        %2660 = vmatprep.mubr.f32.mxu0 0.0
        %2661 = vmatmul.mubr.f32.gmra.mrb[0].mxu0 %v2592
        %v2662 = vpop.f32.mrb[0].mxu0
        %v2663 = vadd.f32 %v524, %v2662
        %v2664 = vpop.f32.mrb[0].mxu0
        %2665 = vmatprep.mubr.f32.mxu0 0.0
        %2666 = vmatmul.mubr.f32.gmra.mrb[0].mxu0 %v2594
        %v2667 = vpop.f32.mrb[0].mxu0
        %v2668 = vadd.f32 %v524, %v2667
        %v2669 = vpop.f32.mrb[0].mxu0
        %2670 = vdwg.mxu0
        %2673 = vrot.lane.b32.xlu0 %v2458, 112
        %v2674 = vpop.permute.xlu0 %2673
        %2675 = vrot.lane.b32.xlu0 %v2459, 112
        %v2676 = vpop.permute.xlu0 %2675
        %v2677 = vsel %vm393, %v2674, 0
        %v2679 = vsel %vm393, %v2676, 0
        %2681 = vmatprep.subr.mxu0 0.0
        %2682 = vmatpush1.msra.mxu0 %v382
        %2683 = vmatprep.subr.mxu0 0.0
        %2684 = vmatpush1.msra.mxu0 %v383
        %2685 = vmatprep.subr.mxu0 0.0
        %2686 = vmatpush1.msra.mxu0 0.0
        %2687 = vmatprep.subr.mxu0 0.0
        %2688 = vmatpush1.msra.mxu0 0.0
        %2689 = vmatprep.subr.mxu0 0.0
        %2690 = vmatpush1.msra.mxu0 0.0
        %2691 = vmatprep.subr.mxu0 0.0
        %2692 = vmatpush1.msra.mxu0 0.0
        %2693 = vmatprep.subr.mxu0 0.0
        %2694 = vmatpush1.msra.mxu0 0.0
        %2695 = vmatprep.subr.mxu0 0.0
        %2696 = vmatpush1.msra.mxu0 0.0
        %2697 = vmatprep.subr.mxu0 0.0
        %2698 = vmatpush1.msra.mxu0 0.0
        %2699 = vmatprep.subr.mxu0 0.0
        %2700 = vmatpush1.msra.mxu0 0.0
        %2701 = vmatprep.subr.mxu0 0.0
        %2702 = vmatpush1.msra.mxu0 0.0
        %2703 = vmatprep.subr.mxu0 0.0
        %2704 = vmatpush1.msra.mxu0 0.0
        %2705 = vmatprep.subr.mxu0 0.0
        %2706 = vmatpush1.msra.mxu0 0.0
        %2707 = vmatprep.subr.mxu0 0.0
        %2708 = vmatpush1.msra.mxu0 0.0
        %2709 = vmatprep.subr.mxu0 0.0
        %2710 = vmatpush1.msra.mxu0 0.0
        %2711 = vmatprep.subr.mxu0 0.0
        %2712 = vmatpush1.msra.mxu0 0.0
        %2713 = vmatprep.subr.mxu0 0.0
        %2714 = vmatpush1.msra.mxu0 0.0
        %2715 = vmatprep.subr.mxu0 0.0
        %2716 = vmatpush1.msra.mxu0 0.0
        %2717 = vmatprep.subr.mxu0 0.0
        %2718 = vmatpush1.msra.mxu0 0.0
        %2719 = vmatprep.subr.mxu0 0.0
        %2720 = vmatpush1.msra.mxu0 0.0
        %2721 = vmatprep.subr.mxu0 0.0
        %2722 = vmatpush1.msra.mxu0 0.0
        %2723 = vmatprep.subr.mxu0 0.0
        %2724 = vmatpush1.msra.mxu0 0.0
        %2725 = vmatprep.subr.mxu0 0.0
        %2726 = vmatpush1.msra.mxu0 0.0
        %2727 = vmatprep.subr.mxu0 0.0
        %2728 = vmatpush1.msra.mxu0 0.0
        %2729 = vmatprep.subr.mxu0 0.0
        %2730 = vmatpush1.msra.mxu0 0.0
        %2731 = vmatprep.subr.mxu0 0.0
        %2732 = vmatpush1.msra.mxu0 0.0
        %2733 = vmatprep.subr.mxu0 0.0
        %2734 = vmatpush1.msra.mxu0 0.0
        %2735 = vmatprep.subr.mxu0 0.0
        %2736 = vmatpush1.msra.mxu0 0.0
        %2737 = vmatprep.subr.mxu0 0.0
        %2738 = vmatpush1.msra.mxu0 0.0
        %2739 = vmatprep.subr.mxu0 0.0
        %2740 = vmatpush1.msra.mxu0 0.0
        %2741 = vmatprep.subr.mxu0 0.0
        %2742 = vmatpush1.msra.mxu0 0.0
        %2743 = vmatprep.subr.mxu0 0.0
        %2744 = vmatpush1.msra.mxu0 0.0
        %2745 = vmatprep.mubr.f32.mxu0 0.0
        %2746 = vmatmul.mubr.f32.gmra.mrb[0].mxu0 %v2677
        %v2747 = vpop.f32.mrb[0].mxu0
        %v2748 = vadd.f32 %v615, %v2747
        %v2749 = vpop.f32.mrb[0].mxu0
        %2750 = vmatprep.mubr.f32.mxu0 0.0
        %2751 = vmatmul.mubr.f32.gmra.mrb[0].mxu0 %v2679
        %v2752 = vpop.f32.mrb[0].mxu0
        %v2753 = vadd.f32 %v615, %v2752
        %v2754 = vpop.f32.mrb[0].mxu0
        %2755 = vdwg.mxu0
        %v2756 = vadd.f32 %v2663, %v2748
        %v2757 = vadd.f32 %v2668, %v2753
        %v2758 = vmul.f32 %v2756, 0.5
        %v2759 = vmul.f32 %v2757, 0.5
        %v2760 = vtanh.pop %v2758
        %v2761 = vtanh.pop %v2759
        %v2762 = vmul.f32 %v2760, 0.5
        %v2763 = vmul.f32 %v2761, 0.5
        %v2764 = vadd.f32 %v2762, 0.5
        %v2765 = vadd.f32 %v2763, 0.5
        %2768 = vrot.lane.b32.xlu0 %v2748, 96
        %v2769 = vpop.permute.xlu0 %2768
        %2770 = vrot.lane.b32.xlu0 %v2753, 96
        %v2771 = vpop.permute.xlu0 %2770
        %v2774 = vmul.f32 %v2764, %v2769
        %v2775 = vmul.f32 %v2765, %v2771
        %2778 = vrot.lane.b32.xlu0 %v2774, 32
        %v2779 = vpop.permute.xlu0 %2778
        %2780 = vrot.lane.b32.xlu0 %v2775, 32
        %v2781 = vpop.permute.xlu0 %2780
        %v2784 = vadd.f32 %v2663, %v2779
        %v2785 = vadd.f32 %v2668, %v2781
        %v2786 = vtanh.pop %v2784
        %v2787 = vtanh.pop %v2785
        %v2788 = vsub.f32 1.0, %v2764
        %v2789 = vsub.f32 1.0, %v2765
        %2792 = vrot.lane.b32.xlu0 %v2786, 112
        %v2793 = vpop.permute.xlu0 %2792
        %2794 = vrot.lane.b32.xlu0 %v2787, 112
        %v2795 = vpop.permute.xlu0 %2794
        %v2798 = vmul.f32 %v2788, %v2793
        %v2799 = vmul.f32 %v2789, %v2795
        %v2800 = vmul.f32 %v2764, %v2458
        %v2801 = vmul.f32 %v2765, %v2459
        %v2802 = vadd.f32 %v2798, %v2800
        %v2803 = vadd.f32 %v2799, %v2801
        %s2804 = scalar_lea.vmem %s340, 112 [#allocation2]
        %v2805 = vld [vmem:[%s2804] sm:$0xff]
        %v2806 = vld [vmem:[%s2804 + $0x8] sm:$0xff]
        %2807 = vmatprep.subr.mxu0 0.0
        %2808 = vmatpush1.msra.mxu0 %v376
        %2809 = vmatprep.subr.mxu0 0.0
        %2810 = vmatpush1.msra.mxu0 %v377
        %2811 = vmatprep.subr.mxu0 0.0
        %2812 = vmatpush1.msra.mxu0 0.0
        %2813 = vmatprep.subr.mxu0 0.0
        %2814 = vmatpush1.msra.mxu0 0.0
        %2815 = vmatprep.subr.mxu0 0.0
        %2816 = vmatpush1.msra.mxu0 0.0
        %2817 = vmatprep.subr.mxu0 0.0
        %2818 = vmatpush1.msra.mxu0 0.0
        %2819 = vmatprep.subr.mxu0 0.0
        %2820 = vmatpush1.msra.mxu0 0.0
        %2821 = vmatprep.subr.mxu0 0.0
        %2822 = vmatpush1.msra.mxu0 0.0
        %2823 = vmatprep.subr.mxu0 0.0
        %2824 = vmatpush1.msra.mxu0 0.0
        %2825 = vmatprep.subr.mxu0 0.0
        %2826 = vmatpush1.msra.mxu0 0.0
        %2827 = vmatprep.subr.mxu0 0.0
        %2828 = vmatpush1.msra.mxu0 0.0
        %2829 = vmatprep.subr.mxu0 0.0
        %2830 = vmatpush1.msra.mxu0 0.0
        %2831 = vmatprep.subr.mxu0 0.0
        %2832 = vmatpush1.msra.mxu0 0.0
        %2833 = vmatprep.subr.mxu0 0.0
        %2834 = vmatpush1.msra.mxu0 0.0
        %2835 = vmatprep.subr.mxu0 0.0
        %2836 = vmatpush1.msra.mxu0 0.0
        %2837 = vmatprep.subr.mxu0 0.0
        %2838 = vmatpush1.msra.mxu0 0.0
        %2839 = vmatprep.subr.mxu0 0.0
        %2840 = vmatpush1.msra.mxu0 0.0
        %2841 = vmatprep.subr.mxu0 0.0
        %2842 = vmatpush1.msra.mxu0 0.0
        %2843 = vmatprep.subr.mxu0 0.0
        %2844 = vmatpush1.msra.mxu0 0.0
        %2845 = vmatprep.subr.mxu0 0.0
        %2846 = vmatpush1.msra.mxu0 0.0
        %2847 = vmatprep.subr.mxu0 0.0
        %2848 = vmatpush1.msra.mxu0 0.0
        %2849 = vmatprep.subr.mxu0 0.0
        %2850 = vmatpush1.msra.mxu0 0.0
        %2851 = vmatprep.subr.mxu0 0.0
        %2852 = vmatpush1.msra.mxu0 0.0
        %2853 = vmatprep.subr.mxu0 0.0
        %2854 = vmatpush1.msra.mxu0 0.0
        %2855 = vmatprep.subr.mxu0 0.0
        %2856 = vmatpush1.msra.mxu0 0.0
        %2857 = vmatprep.subr.mxu0 0.0
        %2858 = vmatpush1.msra.mxu0 0.0
        %2859 = vmatprep.subr.mxu0 0.0
        %2860 = vmatpush1.msra.mxu0 0.0
        %2861 = vmatprep.subr.mxu0 0.0
        %2862 = vmatpush1.msra.mxu0 0.0
        %2863 = vmatprep.subr.mxu0 0.0
        %2864 = vmatpush1.msra.mxu0 0.0
        %2865 = vmatprep.subr.mxu0 0.0
        %2866 = vmatpush1.msra.mxu0 0.0
        %2867 = vmatprep.subr.mxu0 0.0
        %2868 = vmatpush1.msra.mxu0 0.0
        %2869 = vmatprep.subr.mxu0 0.0
        %2870 = vmatpush1.msra.mxu0 0.0
        %2871 = vmatprep.mubr.f32.mxu0 0.0
        %2872 = vmatmul.mubr.f32.gmra.mrb[0].mxu0 %v2592
        %v2873 = vpop.f32.mrb[0].mxu0
        %v2874 = vadd.f32 %v391, %v2873
        %v2875 = vpop.f32.mrb[0].mxu0
        %2876 = vmatprep.mubr.f32.mxu0 0.0
        %2877 = vmatmul.mubr.f32.gmra.mrb[0].mxu0 %v2594
        %v2878 = vpop.f32.mrb[0].mxu0
        %v2879 = vadd.f32 %v391, %v2878
        %v2880 = vpop.f32.mrb[0].mxu0
        %2881 = vdwg.mxu0
        %v2882 = vadd.f32 %v2805, %v2874
        %v2883 = vadd.f32 %v2806, %v2879
        %v2884 = vmul.f32 %v2882, 0.5
        %v2885 = vmul.f32 %v2883, 0.5
        %v2886 = vtanh.pop %v2884
        %v2887 = vtanh.pop %v2885
        %v2888 = vmul.f32 %v2886, 0.5
        %v2889 = vmul.f32 %v2887, 0.5
        %v2890 = vadd.f32 %v2888, 0.5
        %v2891 = vadd.f32 %v2889, 0.5
        %2894 = vrot.lane.b32.xlu0 %v2874, 96
        %v2895 = vpop.permute.xlu0 %2894
        %2896 = vrot.lane.b32.xlu0 %v2879, 96
        %v2897 = vpop.permute.xlu0 %2896
        %v2900 = vmul.f32 %v2890, %v2895
        %v2901 = vmul.f32 %v2891, %v2897
        %2904 = vrot.lane.b32.xlu0 %v2900, 32
        %v2905 = vpop.permute.xlu0 %2904
        %2906 = vrot.lane.b32.xlu0 %v2901, 32
        %v2907 = vpop.permute.xlu0 %2906
        %v2910 = vadd.f32 %v2805, %v2905
        %v2911 = vadd.f32 %v2806, %v2907
        %v2912 = vtanh.pop %v2910
        %v2913 = vtanh.pop %v2911
        %v2914 = vsub.f32 1.0, %v2890
        %v2915 = vsub.f32 1.0, %v2891
        %2918 = vrot.lane.b32.xlu0 %v2912, 112
        %v2919 = vpop.permute.xlu0 %2918
        %2920 = vrot.lane.b32.xlu0 %v2913, 112
        %v2921 = vpop.permute.xlu0 %2920
        %v2924 = vmul.f32 %v2914, %v2919
        %v2925 = vmul.f32 %v2915, %v2921
        %v2926 = vmul.f32 %v2890, %v2584
        %v2927 = vmul.f32 %v2891, %v2585
        %v2928 = vadd.f32 %v2924, %v2926
        %v2929 = vadd.f32 %v2925, %v2927
        %2932 = vrot.lane.b32.xlu0 %v2928, 112
        %v2933 = vpop.permute.xlu0 %2932
        %2934 = vrot.lane.b32.xlu0 %v2929, 112
        %v2935 = vpop.permute.xlu0 %2934
        %v2936 = vsel %vm393, %v2933, 0
        %v2938 = vsel %vm393, %v2935, 0
        %2940 = vmatprep.subr.mxu0 0.0
        %2941 = vmatpush1.msra.mxu0 %v379
        %2942 = vmatprep.subr.mxu0 0.0
        %2943 = vmatpush1.msra.mxu0 %v380
        %2944 = vmatprep.subr.mxu0 0.0
        %2945 = vmatpush1.msra.mxu0 0.0
        %2946 = vmatprep.subr.mxu0 0.0
        %2947 = vmatpush1.msra.mxu0 0.0
        %2948 = vmatprep.subr.mxu0 0.0
        %2949 = vmatpush1.msra.mxu0 0.0
        %2950 = vmatprep.subr.mxu0 0.0
        %2951 = vmatpush1.msra.mxu0 0.0
        %2952 = vmatprep.subr.mxu0 0.0
        %2953 = vmatpush1.msra.mxu0 0.0
        %2954 = vmatprep.subr.mxu0 0.0
        %2955 = vmatpush1.msra.mxu0 0.0
        %2956 = vmatprep.subr.mxu0 0.0
        %2957 = vmatpush1.msra.mxu0 0.0
        %2958 = vmatprep.subr.mxu0 0.0
        %2959 = vmatpush1.msra.mxu0 0.0
        %2960 = vmatprep.subr.mxu0 0.0
        %2961 = vmatpush1.msra.mxu0 0.0
        %2962 = vmatprep.subr.mxu0 0.0
        %2963 = vmatpush1.msra.mxu0 0.0
        %2964 = vmatprep.subr.mxu0 0.0
        %2965 = vmatpush1.msra.mxu0 0.0
        %2966 = vmatprep.subr.mxu0 0.0
        %2967 = vmatpush1.msra.mxu0 0.0
        %2968 = vmatprep.subr.mxu0 0.0
        %2969 = vmatpush1.msra.mxu0 0.0
        %2970 = vmatprep.subr.mxu0 0.0
        %2971 = vmatpush1.msra.mxu0 0.0
        %2972 = vmatprep.subr.mxu0 0.0
        %2973 = vmatpush1.msra.mxu0 0.0
        %2974 = vmatprep.subr.mxu0 0.0
        %2975 = vmatpush1.msra.mxu0 0.0
        %2976 = vmatprep.subr.mxu0 0.0
        %2977 = vmatpush1.msra.mxu0 0.0
        %2978 = vmatprep.subr.mxu0 0.0
        %2979 = vmatpush1.msra.mxu0 0.0
        %2980 = vmatprep.subr.mxu0 0.0
        %2981 = vmatpush1.msra.mxu0 0.0
        %2982 = vmatprep.subr.mxu0 0.0
        %2983 = vmatpush1.msra.mxu0 0.0
        %2984 = vmatprep.subr.mxu0 0.0
        %2985 = vmatpush1.msra.mxu0 0.0
        %2986 = vmatprep.subr.mxu0 0.0
        %2987 = vmatpush1.msra.mxu0 0.0
        %2988 = vmatprep.subr.mxu0 0.0
        %2989 = vmatpush1.msra.mxu0 0.0
        %2990 = vmatprep.subr.mxu0 0.0
        %2991 = vmatpush1.msra.mxu0 0.0
        %2992 = vmatprep.subr.mxu0 0.0
        %2993 = vmatpush1.msra.mxu0 0.0
        %2994 = vmatprep.subr.mxu0 0.0
        %2995 = vmatpush1.msra.mxu0 0.0
        %2996 = vmatprep.subr.mxu0 0.0
        %2997 = vmatpush1.msra.mxu0 0.0
        %2998 = vmatprep.subr.mxu0 0.0
        %2999 = vmatpush1.msra.mxu0 0.0
        %3000 = vmatprep.subr.mxu0 0.0
        %3001 = vmatpush1.msra.mxu0 0.0
        %3002 = vmatprep.subr.mxu0 0.0
        %3003 = vmatpush1.msra.mxu0 0.0
        %3004 = vmatprep.mubr.f32.mxu0 0.0
        %3005 = vmatmul.mubr.f32.gmra.mrb[0].mxu0 %v2936
        %v3006 = vpop.f32.mrb[0].mxu0
        %v3007 = vadd.f32 %v524, %v3006
        %v3008 = vpop.f32.mrb[0].mxu0
        %3009 = vmatprep.mubr.f32.mxu0 0.0
        %3010 = vmatmul.mubr.f32.gmra.mrb[0].mxu0 %v2938
        %v3011 = vpop.f32.mrb[0].mxu0
        %v3012 = vadd.f32 %v524, %v3011
        %v3013 = vpop.f32.mrb[0].mxu0
        %3014 = vdwg.mxu0
        %3017 = vrot.lane.b32.xlu0 %v2802, 112
        %v3018 = vpop.permute.xlu0 %3017
        %3019 = vrot.lane.b32.xlu0 %v2803, 112
        %v3020 = vpop.permute.xlu0 %3019
        %v3021 = vsel %vm393, %v3018, 0
        %v3023 = vsel %vm393, %v3020, 0
        %3025 = vmatprep.subr.mxu0 0.0
        %3026 = vmatpush1.msra.mxu0 %v382
        %3027 = vmatprep.subr.mxu0 0.0
        %3028 = vmatpush1.msra.mxu0 %v383
        %3029 = vmatprep.subr.mxu0 0.0
        %3030 = vmatpush1.msra.mxu0 0.0
        %3031 = vmatprep.subr.mxu0 0.0
        %3032 = vmatpush1.msra.mxu0 0.0
        %3033 = vmatprep.subr.mxu0 0.0
        %3034 = vmatpush1.msra.mxu0 0.0
        %3035 = vmatprep.subr.mxu0 0.0
        %3036 = vmatpush1.msra.mxu0 0.0
        %3037 = vmatprep.subr.mxu0 0.0
        %3038 = vmatpush1.msra.mxu0 0.0
        %3039 = vmatprep.subr.mxu0 0.0
        %3040 = vmatpush1.msra.mxu0 0.0
        %3041 = vmatprep.subr.mxu0 0.0
        %3042 = vmatpush1.msra.mxu0 0.0
        %3043 = vmatprep.subr.mxu0 0.0
        %3044 = vmatpush1.msra.mxu0 0.0
        %3045 = vmatprep.subr.mxu0 0.0
        %3046 = vmatpush1.msra.mxu0 0.0
        %3047 = vmatprep.subr.mxu0 0.0
        %3048 = vmatpush1.msra.mxu0 0.0
        %3049 = vmatprep.subr.mxu0 0.0
        %3050 = vmatpush1.msra.mxu0 0.0
        %3051 = vmatprep.subr.mxu0 0.0
        %3052 = vmatpush1.msra.mxu0 0.0
        %3053 = vmatprep.subr.mxu0 0.0
        %3054 = vmatpush1.msra.mxu0 0.0
        %3055 = vmatprep.subr.mxu0 0.0
        %3056 = vmatpush1.msra.mxu0 0.0
        %3057 = vmatprep.subr.mxu0 0.0
        %3058 = vmatpush1.msra.mxu0 0.0
        %3059 = vmatprep.subr.mxu0 0.0
        %3060 = vmatpush1.msra.mxu0 0.0
        %3061 = vmatprep.subr.mxu0 0.0
        %3062 = vmatpush1.msra.mxu0 0.0
        %3063 = vmatprep.subr.mxu0 0.0
        %3064 = vmatpush1.msra.mxu0 0.0
        %3065 = vmatprep.subr.mxu0 0.0
        %3066 = vmatpush1.msra.mxu0 0.0
        %3067 = vmatprep.subr.mxu0 0.0
        %3068 = vmatpush1.msra.mxu0 0.0
        %3069 = vmatprep.subr.mxu0 0.0
        %3070 = vmatpush1.msra.mxu0 0.0
        %3071 = vmatprep.subr.mxu0 0.0
        %3072 = vmatpush1.msra.mxu0 0.0
        %3073 = vmatprep.subr.mxu0 0.0
        %3074 = vmatpush1.msra.mxu0 0.0
        %3075 = vmatprep.subr.mxu0 0.0
        %3076 = vmatpush1.msra.mxu0 0.0
        %3077 = vmatprep.subr.mxu0 0.0
        %3078 = vmatpush1.msra.mxu0 0.0
        %3079 = vmatprep.subr.mxu0 0.0
        %3080 = vmatpush1.msra.mxu0 0.0
        %3081 = vmatprep.subr.mxu0 0.0
        %3082 = vmatpush1.msra.mxu0 0.0
        %3083 = vmatprep.subr.mxu0 0.0
        %3084 = vmatpush1.msra.mxu0 0.0
        %3085 = vmatprep.subr.mxu0 0.0
        %3086 = vmatpush1.msra.mxu0 0.0
        %3087 = vmatprep.subr.mxu0 0.0
        %3088 = vmatpush1.msra.mxu0 0.0
        %3089 = vmatprep.mubr.f32.mxu0 0.0
        %3090 = vmatmul.mubr.f32.gmra.mrb[0].mxu0 %v3021
        %v3091 = vpop.f32.mrb[0].mxu0
        %v3092 = vadd.f32 %v615, %v3091
        %v3093 = vpop.f32.mrb[0].mxu0
        %3094 = vmatprep.mubr.f32.mxu0 0.0
        %3095 = vmatmul.mubr.f32.gmra.mrb[0].mxu0 %v3023
        %v3096 = vpop.f32.mrb[0].mxu0
        %v3097 = vadd.f32 %v615, %v3096
        %v3098 = vpop.f32.mrb[0].mxu0
        %3099 = vdwg.mxu0
        %v3100 = vadd.f32 %v3007, %v3092
        %v3101 = vadd.f32 %v3012, %v3097
        %v3102 = vmul.f32 %v3100, 0.5
        %v3103 = vmul.f32 %v3101, 0.5
        %v3104 = vtanh.pop %v3102
        %v3105 = vtanh.pop %v3103
        %v3106 = vmul.f32 %v3104, 0.5
        %v3107 = vmul.f32 %v3105, 0.5
        %v3108 = vadd.f32 %v3106, 0.5
        %v3109 = vadd.f32 %v3107, 0.5
        %3112 = vrot.lane.b32.xlu0 %v3092, 96
        %v3113 = vpop.permute.xlu0 %3112
        %3114 = vrot.lane.b32.xlu0 %v3097, 96
        %v3115 = vpop.permute.xlu0 %3114
        %v3118 = vmul.f32 %v3108, %v3113
        %v3119 = vmul.f32 %v3109, %v3115
        %3122 = vrot.lane.b32.xlu0 %v3118, 32
        %v3123 = vpop.permute.xlu0 %3122
        %3124 = vrot.lane.b32.xlu0 %v3119, 32
        %v3125 = vpop.permute.xlu0 %3124
        %v3128 = vadd.f32 %v3007, %v3123
        %v3129 = vadd.f32 %v3012, %v3125
        %v3130 = vtanh.pop %v3128
        %v3131 = vtanh.pop %v3129
        %v3132 = vsub.f32 1.0, %v3108
        %v3133 = vsub.f32 1.0, %v3109
        %3136 = vrot.lane.b32.xlu0 %v3130, 112
        %v3137 = vpop.permute.xlu0 %3136
        %3138 = vrot.lane.b32.xlu0 %v3131, 112
        %v3139 = vpop.permute.xlu0 %3138
        %v3142 = vmul.f32 %v3132, %v3137
        %v3143 = vmul.f32 %v3133, %v3139
        %v3144 = vmul.f32 %v3108, %v2802
        %v3145 = vmul.f32 %v3109, %v2803
        %v3146 = vadd.f32 %v3142, %v3144
        %v3147 = vadd.f32 %v3143, %v3145
        %3150 = vrot.lane.b32.xlu0 %v3146, 112
        %v3151 = vpop.permute.xlu0 %3150
        %3152 = vrot.lane.b32.xlu0 %v3147, 112
        %v3153 = vpop.permute.xlu0 %3152
        %3156 = vst.msk [vmem:[%s374] sm:$0xff] %vm393, %v3151
        %3157 = vst.msk [vmem:[%s374 + $0x8] sm:$0xff] %vm393, %v3153
        %s3158 = smul.u32 2, %s18
        %p3159 = scmp.lt.s32.totalorder %s3158, 3
        %s3160 = scalar_select %p3159, %s3158, 3
        %s3161 = smul.addr %s3160, 8
        %s3162 = scalar_lea.vmem %s7, %s3161
        // Predicated region
        $region87: #{_lambda_.3} parent=81 // pred_check
          %p3163 = pneg %p188
        $region88: #{_lambda_.3} parent=81 // pred_check_branch
          %3165 = sbr.rel (%p3163) target = $region90
        $region89: #{_lambda_.3} parent=81 // pred_region
          %s3166 = smul.u32 2, %s18
        $region90: #{_lambda_.3} parent=81 // pred_fallthru
          _
      $region82: #{_lambda_.3} parent=5 // pred_fallthru
        _
      %p3167 = scmp.le.s32.totalorder 2, %s13
      // Predicated region
      $region91: #{_lambda_.3} parent=5 // pred_check
        %p3168 = pneg %p3167
      $region92: #{_lambda_.3} parent=5 // pred_check_branch
        %3170 = sbr.rel (%p3168) target = $region94
      $region93: #{_lambda_.3} parent=5 // pred_region
        %s3171 = ssub.s32 %s13, 2
        // Predicated region
        $region95: #{_lambda_.3} parent=93 // pred_check
          %p3172 = pneg %p194
        $region96: #{_lambda_.3} parent=93 // pred_check_branch
          %3174 = sbr.rel (%p3172) target = $region98
        $region97: #{_lambda_.3} parent=93 // pred_region
          %s3175 = smul.u32 2, %s19
          %p3176 = scmp.lt.s32.totalorder %s3175, 3
          %s3177 = scalar_select %p3176, %s3175, 3
          %s3178 = smul.addr %s3177, 8
          %s3179 = scalar_lea.vmem %s7, %s3178
        $region98: #{_lambda_.3} parent=93 // pred_fallthru
          _
      $region94: #{_lambda_.3} parent=5 // pred_fallthru
        _
    $region6: #{_lambda_.3} parent=1 // loop_footer
      %s17 = sadd.s32 1, %s13
    $region7: #{_lambda_.3} parent=1 // loop_footer_branch
      %12 = sbr.rel target = $region3
    $region8: #{_lambda_.3} parent=1 // loop_exit
      _

// kernel: _lambda_.4
$region0: #{_lambda_.4}
  #allocation0 [shape = 'u32[]', space=smem, size = 0x4, offset = 0x4, fixed_abs, tag = 'smem constant byte address 0x4 - core index']
  #allocation1 [shape = 'u32[144,128]{1,0:T(1,128)}', space=vmem, size = 0x12000, scoped, tag = 'internal scratch']
  %s0 = inlined_call_operand.vmem [shape: f32[2,16,16], index: 0, kind: input, shape index: {}, may-alias: {0,1}]
  %s1 = inlined_call_operand.vmem [shape: f32[2,16,16], index: 1, kind: input, shape index: {}, may-alias: {0,1}]
  %s2 = inlined_call_operand.vmem [shape: f32[2,16,16], index: 2, kind: input, shape index: {}]
  %s3 = inlined_call_operand.vmem [shape: f32[16,16], index: 3, kind: input, shape index: {}]
  %s4 = inlined_call_operand.vmem [shape: f32[16,4], index: 4, kind: input, shape index: {}]
  %s5 = inlined_call_operand.vmem [shape: f32[16,4], index: 5, kind: input, shape index: {}]
  %s6 = inlined_call_operand.vmem [shape: f32[16,16], index: 6, kind: input, shape index: {}]
  %s7 = inlined_call_operand.vmem [shape: f32[1,16], index: 7, kind: input, shape index: {}]
  %s8 = inlined_call_operand.vmem [shape: f32[16,16], index: 8, kind: input, shape index: {}]
  %s9 = inlined_call_operand.vmem [shape: f32[1,16], index: 9, kind: input, shape index: {}]
  %s10 = inlined_call_operand.vmem [shape: f32[16,8], index: 10, kind: input, shape index: {}]
  %s11 = inlined_call_operand.vmem [shape: f32[1,8], index: 11, kind: input, shape index: {}]
  %s12 = inlined_call_operand.vmem [shape: f32[1,8], index: 12, kind: input, shape index: {}]
  %s13 = inlined_call_operand.vmem [shape: f32[1,8], index: 13, kind: input, shape index: {}]
  %s14 = inlined_call_operand.vmem [shape: f32[8,8], index: 14, kind: input, shape index: {}]
  %s15 = inlined_call_operand.vmem [shape: f32[1,8], index: 15, kind: input, shape index: {}]
  %s16 = inlined_call_operand.vmem [shape: f32[8,8], index: 16, kind: input, shape index: {}]
  %s17 = inlined_call_operand.vmem [shape: f32[1,8], index: 17, kind: input, shape index: {}]
  %s18 = inlined_call_operand.vmem [shape: f32[2,8,16], index: 18, kind: output, shape index: {0}]
  %s19 = inlined_call_operand.hbm [shape: f32[2,4,16,16], index: 19, kind: output, shape index: {1}]
  %20 = xla_tuple %s18, %s19
  %s21 = sld [smem:[#allocation0]]
  $region113: #{_lambda_.4} parent=0
    _
  %s23 = ssub.s32 1, %s21
  %s24 = scalar_select 0, %s23, %s21
  $region1: #{_lambda_.4} parent=0
    #allocation2 [shape = 'u8[65536]{0}', space=vmem, size = 0x10000, scoped, tag = 'output window, operand 1']
    #allocation3 [shape = 's32[2]{0}', space=sflag, size = 0x8, scoped, tag = 'scoped memory for _lambda_.4']
    %25 = vsyncpa [#allocation3], 0
    %s26 = scalar_lea.sflag [#allocation3], 1
    %27 = vsyncpa %s26, 0
    loop: start=0, step=1, limit=4
    $region2: #{_lambda_.4} parent=1 // loop_pre_header
      _
    $region3: #{_lambda_.4} parent=1 // loop_header
      %s29 = sphi 0, %s33
      %p30 = scmp.ge.s32.totalorder %s29, 4
      %s36 = sphi 0, %s48
      %s37 = sphi 0, %s44
      %s38 = sphi 0, %s36
      %s39 = sphi 0, %s37
      %s40 = sphi 0, %s38
      %s41 = sphi 0, %s39
      %s51 = sphi 0, %s53
      %s54 = sphi 0, %s51
      %s55 = sphi 0, %s54
      %s71 = sphi 0, %s55
      %s79 = sphi 0, %s81
      %s82 = sphi 0, %s79
      %s83 = sphi 0, %s82
      %s99 = sphi 0, %s83
      %s107 = sphi 0, %s109
      %s110 = sphi 0, %s107
      %s111 = sphi 0, %s110
      %s127 = sphi 0, %s111
      %s131 = sphi 0, %s131
      %s133 = sphi 0, %s131
      %s134 = sphi 0, %s133
      %s148 = sphi 0, %s134
      %s152 = sphi 0, %s152
      %s154 = sphi 0, %s152
      %s155 = sphi 0, %s154
      %s169 = sphi 0, %s155
      %s173 = sphi 0, %s173
      %s175 = sphi 0, %s173
      %s176 = sphi 0, %s175
      %s190 = sphi 0, %s176
      %s194 = sphi 0, %s194
      %s196 = sphi 0, %s194
      %s197 = sphi 0, %s196
      %s211 = sphi 0, %s197
      %s215 = sphi 0, %s215
      %s217 = sphi 0, %s215
      %s218 = sphi 0, %s217
      %s232 = sphi 0, %s218
      %s236 = sphi 0, %s236
      %s238 = sphi 0, %s236
      %s239 = sphi 0, %s238
      %s253 = sphi 0, %s239
      %s257 = sphi 0, %s257
      %s259 = sphi 0, %s257
      %s260 = sphi 0, %s259
      %s274 = sphi 0, %s260
      %s278 = sphi 0, %s278
      %s280 = sphi 0, %s278
      %s281 = sphi 0, %s280
      %s295 = sphi 0, %s281
      %s299 = sphi 0, %s299
      %s301 = sphi 0, %s299
      %s302 = sphi 0, %s301
      %s316 = sphi 0, %s302
      %s320 = sphi 0, %s320
      %s322 = sphi 0, %s320
      %s323 = sphi 0, %s322
      %s337 = sphi 0, %s323
      %s341 = sphi 0, %s341
      %s343 = sphi 0, %s341
      %s344 = sphi 0, %s343
      %s358 = sphi 0, %s344
      %s362 = sphi 0, %s362
      %s364 = sphi 0, %s362
      %s365 = sphi 0, %s364
      %s379 = sphi 0, %s365
      %s383 = sphi 0, %s383
      %s385 = sphi 0, %s383
      %s386 = sphi 0, %s385
      %s400 = sphi 0, %s386
      %s404 = sphi 0, %s404
      %s406 = sphi 0, %s404
      %s407 = sphi 0, %s406
      %s421 = sphi 0, %s407
      %s425 = sphi 0, %s425
      %s427 = sphi 0, %s425
      %s428 = sphi 0, %s427
      %s442 = sphi 0, %s428
      %s450 = sphi 0, %s452
      %s453 = sphi 0, %s450
      %s454 = sphi 0, %s453
      %s470 = sphi 0, %s454
      %s478 = sphi 0, %s480
      %s481 = sphi 0, %s478
      %s482 = sphi 0, %s481
      %s498 = sphi 0, %s482
    $region4: #{_lambda_.4} parent=1 // loop_header_branch
      %32 = sbr.rel (%p30) target = $region8
    $region5: #{_lambda_.4} parent=1 // loop_body
      %s34 = ssub.s32 %s29, 1
      %s35 = ssub.s32 %s29, 2
      %s42 = sadd.s32 1, %s37
      %p43 = scmp.ge.s32.totalorder %s42, 1
      %s44 = scalar_select %p43, 0, %s42
      %s45 = sadd.s32 1, %s36
      %s46 = scalar_select %p43, %s45, %s36
      %p47 = scmp.ge.s32.totalorder %s46, 2
      %s48 = scalar_select %p47, 0, %s46
      %s49 = ssub.s32 %s36, %s48
      %p50 = scmp.eq.s32.totalorder %s49, 0
      %s52 = sadd.s32 %s51, 1
      %s53 = scalar_select %p50, %s51, %s52
      %p56 = pneg %p50
      %p57 = scmp.eq.s32.totalorder %s29, 1
      %p58 = por %p56, %p57
      %p59 = scmp.ne.s32.totalorder %s51, %s54
      %p60 = scmp.eq.s32.totalorder %s29, 0
      %p61 = por %p59, %p60
      %p62 = scmp.ne.s32.totalorder %s51, %s54
      %p63 = scmp.eq.s32.totalorder %s34, 1
      %p64 = por %p62, %p63
      %p65 = scmp.ne.s32.totalorder %s54, %s55
      %p66 = scmp.eq.s32.totalorder %s34, 0
      %p67 = por %p65, %p66
      %p68 = scmp.ne.s32.totalorder %s54, %s55
      %p69 = scmp.eq.s32.totalorder %s35, 1
      %p70 = por %p68, %p69
      %p72 = scmp.ne.s32.totalorder %s55, %s71
      %p73 = scmp.eq.s32.totalorder %s35, 0
      %p74 = por %p72, %p73
      %s75 = ssub.s32 %s36, %s48
      %s76 = ssub.s32 %s37, %s44
      %s77 = sor.u32 %s75, %s76
      %p78 = scmp.eq.s32.totalorder %s77, 0
      %s80 = sadd.s32 %s79, 1
      %s81 = scalar_select %p78, %s79, %s80
      %p84 = pneg %p78
      %p85 = scmp.eq.s32.totalorder %s29, 1
      %p86 = por %p84, %p85
      %p87 = scmp.ne.s32.totalorder %s79, %s82
      %p88 = scmp.eq.s32.totalorder %s29, 0
      %p89 = por %p87, %p88
      %p90 = scmp.ne.s32.totalorder %s79, %s82
      %p91 = scmp.eq.s32.totalorder %s34, 1
      %p92 = por %p90, %p91
      %p93 = scmp.ne.s32.totalorder %s82, %s83
      %p94 = scmp.eq.s32.totalorder %s34, 0
      %p95 = por %p93, %p94
      %p96 = scmp.ne.s32.totalorder %s82, %s83
      %p97 = scmp.eq.s32.totalorder %s35, 1
      %p98 = por %p96, %p97
      %p100 = scmp.ne.s32.totalorder %s83, %s99
      %p101 = scmp.eq.s32.totalorder %s35, 0
      %p102 = por %p100, %p101
      %s103 = ssub.s32 %s36, %s48
      %s104 = ssub.s32 %s37, %s44
      %s105 = sor.u32 %s103, %s104
      %p106 = scmp.eq.s32.totalorder %s105, 0
      %s108 = sadd.s32 %s107, 1
      %s109 = scalar_select %p106, %s107, %s108
      %p112 = pneg %p106
      %p113 = scmp.eq.s32.totalorder %s29, 1
      %p114 = por %p112, %p113
      %p115 = scmp.ne.s32.totalorder %s107, %s110
      %p116 = scmp.eq.s32.totalorder %s29, 0
      %p117 = por %p115, %p116
      %p118 = scmp.ne.s32.totalorder %s107, %s110
      %p119 = scmp.eq.s32.totalorder %s34, 1
      %p120 = por %p118, %p119
      %p121 = scmp.ne.s32.totalorder %s110, %s111
      %p122 = scmp.eq.s32.totalorder %s34, 0
      %p123 = por %p121, %p122
      %p124 = scmp.ne.s32.totalorder %s110, %s111
      %p125 = scmp.eq.s32.totalorder %s35, 1
      %p126 = por %p124, %p125
      %p128 = scmp.ne.s32.totalorder %s111, %s127
      %p129 = scmp.eq.s32.totalorder %s35, 0
      %p130 = por %p128, %p129
      %s132 = sadd.s32 %s131, 1
      %p135 = scmp.eq.s32.totalorder %s29, 1
      %p136 = scmp.ne.s32.totalorder %s131, %s133
      %p137 = scmp.eq.s32.totalorder %s29, 0
      %p138 = por %p136, %p137
      %p139 = scmp.ne.s32.totalorder %s131, %s133
      %p140 = scmp.eq.s32.totalorder %s34, 1
      %p141 = por %p139, %p140
      %p142 = scmp.ne.s32.totalorder %s133, %s134
      %p143 = scmp.eq.s32.totalorder %s34, 0
      %p144 = por %p142, %p143
      %p145 = scmp.ne.s32.totalorder %s133, %s134
      %p146 = scmp.eq.s32.totalorder %s35, 1
      %p147 = por %p145, %p146
      %p149 = scmp.ne.s32.totalorder %s134, %s148
      %p150 = scmp.eq.s32.totalorder %s35, 0
      %p151 = por %p149, %p150
      %s153 = sadd.s32 %s152, 1
      %p156 = scmp.eq.s32.totalorder %s29, 1
      %p157 = scmp.ne.s32.totalorder %s152, %s154
      %p158 = scmp.eq.s32.totalorder %s29, 0
      %p159 = por %p157, %p158
      %p160 = scmp.ne.s32.totalorder %s152, %s154
      %p161 = scmp.eq.s32.totalorder %s34, 1
      %p162 = por %p160, %p161
      %p163 = scmp.ne.s32.totalorder %s154, %s155
      %p164 = scmp.eq.s32.totalorder %s34, 0
      %p165 = por %p163, %p164
      %p166 = scmp.ne.s32.totalorder %s154, %s155
      %p167 = scmp.eq.s32.totalorder %s35, 1
      %p168 = por %p166, %p167
      %p170 = scmp.ne.s32.totalorder %s155, %s169
      %p171 = scmp.eq.s32.totalorder %s35, 0
      %p172 = por %p170, %p171
      %s174 = sadd.s32 %s173, 1
      %p177 = scmp.eq.s32.totalorder %s29, 1
      %p178 = scmp.ne.s32.totalorder %s173, %s175
      %p179 = scmp.eq.s32.totalorder %s29, 0
      %p180 = por %p178, %p179
      %p181 = scmp.ne.s32.totalorder %s173, %s175
      %p182 = scmp.eq.s32.totalorder %s34, 1
      %p183 = por %p181, %p182
      %p184 = scmp.ne.s32.totalorder %s175, %s176
      %p185 = scmp.eq.s32.totalorder %s34, 0
      %p186 = por %p184, %p185
      %p187 = scmp.ne.s32.totalorder %s175, %s176
      %p188 = scmp.eq.s32.totalorder %s35, 1
      %p189 = por %p187, %p188
      %p191 = scmp.ne.s32.totalorder %s176, %s190
      %p192 = scmp.eq.s32.totalorder %s35, 0
      %p193 = por %p191, %p192
      %s195 = sadd.s32 %s194, 1
      %p198 = scmp.eq.s32.totalorder %s29, 1
      %p199 = scmp.ne.s32.totalorder %s194, %s196
      %p200 = scmp.eq.s32.totalorder %s29, 0
      %p201 = por %p199, %p200
      %p202 = scmp.ne.s32.totalorder %s194, %s196
      %p203 = scmp.eq.s32.totalorder %s34, 1
      %p204 = por %p202, %p203
      %p205 = scmp.ne.s32.totalorder %s196, %s197
      %p206 = scmp.eq.s32.totalorder %s34, 0
      %p207 = por %p205, %p206
      %p208 = scmp.ne.s32.totalorder %s196, %s197
      %p209 = scmp.eq.s32.totalorder %s35, 1
      %p210 = por %p208, %p209
      %p212 = scmp.ne.s32.totalorder %s197, %s211
      %p213 = scmp.eq.s32.totalorder %s35, 0
      %p214 = por %p212, %p213
      %s216 = sadd.s32 %s215, 1
      %p219 = scmp.eq.s32.totalorder %s29, 1
      %p220 = scmp.ne.s32.totalorder %s215, %s217
      %p221 = scmp.eq.s32.totalorder %s29, 0
      %p222 = por %p220, %p221
      %p223 = scmp.ne.s32.totalorder %s215, %s217
      %p224 = scmp.eq.s32.totalorder %s34, 1
      %p225 = por %p223, %p224
      %p226 = scmp.ne.s32.totalorder %s217, %s218
      %p227 = scmp.eq.s32.totalorder %s34, 0
      %p228 = por %p226, %p227
      %p229 = scmp.ne.s32.totalorder %s217, %s218
      %p230 = scmp.eq.s32.totalorder %s35, 1
      %p231 = por %p229, %p230
      %p233 = scmp.ne.s32.totalorder %s218, %s232
      %p234 = scmp.eq.s32.totalorder %s35, 0
      %p235 = por %p233, %p234
      %s237 = sadd.s32 %s236, 1
      %p240 = scmp.eq.s32.totalorder %s29, 1
      %p241 = scmp.ne.s32.totalorder %s236, %s238
      %p242 = scmp.eq.s32.totalorder %s29, 0
      %p243 = por %p241, %p242
      %p244 = scmp.ne.s32.totalorder %s236, %s238
      %p245 = scmp.eq.s32.totalorder %s34, 1
      %p246 = por %p244, %p245
      %p247 = scmp.ne.s32.totalorder %s238, %s239
      %p248 = scmp.eq.s32.totalorder %s34, 0
      %p249 = por %p247, %p248
      %p250 = scmp.ne.s32.totalorder %s238, %s239
      %p251 = scmp.eq.s32.totalorder %s35, 1
      %p252 = por %p250, %p251
      %p254 = scmp.ne.s32.totalorder %s239, %s253
      %p255 = scmp.eq.s32.totalorder %s35, 0
      %p256 = por %p254, %p255
      %s258 = sadd.s32 %s257, 1
      %p261 = scmp.eq.s32.totalorder %s29, 1
      %p262 = scmp.ne.s32.totalorder %s257, %s259
      %p263 = scmp.eq.s32.totalorder %s29, 0
      %p264 = por %p262, %p263
      %p265 = scmp.ne.s32.totalorder %s257, %s259
      %p266 = scmp.eq.s32.totalorder %s34, 1
      %p267 = por %p265, %p266
      %p268 = scmp.ne.s32.totalorder %s259, %s260
      %p269 = scmp.eq.s32.totalorder %s34, 0
      %p270 = por %p268, %p269
      %p271 = scmp.ne.s32.totalorder %s259, %s260
      %p272 = scmp.eq.s32.totalorder %s35, 1
      %p273 = por %p271, %p272
      %p275 = scmp.ne.s32.totalorder %s260, %s274
      %p276 = scmp.eq.s32.totalorder %s35, 0
      %p277 = por %p275, %p276
      %s279 = sadd.s32 %s278, 1
      %p282 = scmp.eq.s32.totalorder %s29, 1
      %p283 = scmp.ne.s32.totalorder %s278, %s280
      %p284 = scmp.eq.s32.totalorder %s29, 0
      %p285 = por %p283, %p284
      %p286 = scmp.ne.s32.totalorder %s278, %s280
      %p287 = scmp.eq.s32.totalorder %s34, 1
      %p288 = por %p286, %p287
      %p289 = scmp.ne.s32.totalorder %s280, %s281
      %p290 = scmp.eq.s32.totalorder %s34, 0
      %p291 = por %p289, %p290
      %p292 = scmp.ne.s32.totalorder %s280, %s281
      %p293 = scmp.eq.s32.totalorder %s35, 1
      %p294 = por %p292, %p293
      %p296 = scmp.ne.s32.totalorder %s281, %s295
      %p297 = scmp.eq.s32.totalorder %s35, 0
      %p298 = por %p296, %p297
      %s300 = sadd.s32 %s299, 1
      %p303 = scmp.eq.s32.totalorder %s29, 1
      %p304 = scmp.ne.s32.totalorder %s299, %s301
      %p305 = scmp.eq.s32.totalorder %s29, 0
      %p306 = por %p304, %p305
      %p307 = scmp.ne.s32.totalorder %s299, %s301
      %p308 = scmp.eq.s32.totalorder %s34, 1
      %p309 = por %p307, %p308
      %p310 = scmp.ne.s32.totalorder %s301, %s302
      %p311 = scmp.eq.s32.totalorder %s34, 0
      %p312 = por %p310, %p311
      %p313 = scmp.ne.s32.totalorder %s301, %s302
      %p314 = scmp.eq.s32.totalorder %s35, 1
      %p315 = por %p313, %p314
      %p317 = scmp.ne.s32.totalorder %s302, %s316
      %p318 = scmp.eq.s32.totalorder %s35, 0
      %p319 = por %p317, %p318
      %s321 = sadd.s32 %s320, 1
      %p324 = scmp.eq.s32.totalorder %s29, 1
      %p325 = scmp.ne.s32.totalorder %s320, %s322
      %p326 = scmp.eq.s32.totalorder %s29, 0
      %p327 = por %p325, %p326
      %p328 = scmp.ne.s32.totalorder %s320, %s322
      %p329 = scmp.eq.s32.totalorder %s34, 1
      %p330 = por %p328, %p329
      %p331 = scmp.ne.s32.totalorder %s322, %s323
      %p332 = scmp.eq.s32.totalorder %s34, 0
      %p333 = por %p331, %p332
      %p334 = scmp.ne.s32.totalorder %s322, %s323
      %p335 = scmp.eq.s32.totalorder %s35, 1
      %p336 = por %p334, %p335
      %p338 = scmp.ne.s32.totalorder %s323, %s337
      %p339 = scmp.eq.s32.totalorder %s35, 0
      %p340 = por %p338, %p339
      %s342 = sadd.s32 %s341, 1
      %p345 = scmp.eq.s32.totalorder %s29, 1
      %p346 = scmp.ne.s32.totalorder %s341, %s343
      %p347 = scmp.eq.s32.totalorder %s29, 0
      %p348 = por %p346, %p347
      %p349 = scmp.ne.s32.totalorder %s341, %s343
      %p350 = scmp.eq.s32.totalorder %s34, 1
      %p351 = por %p349, %p350
      %p352 = scmp.ne.s32.totalorder %s343, %s344
      %p353 = scmp.eq.s32.totalorder %s34, 0
      %p354 = por %p352, %p353
      %p355 = scmp.ne.s32.totalorder %s343, %s344
      %p356 = scmp.eq.s32.totalorder %s35, 1
      %p357 = por %p355, %p356
      %p359 = scmp.ne.s32.totalorder %s344, %s358
      %p360 = scmp.eq.s32.totalorder %s35, 0
      %p361 = por %p359, %p360
      %s363 = sadd.s32 %s362, 1
      %p366 = scmp.eq.s32.totalorder %s29, 1
      %p367 = scmp.ne.s32.totalorder %s362, %s364
      %p368 = scmp.eq.s32.totalorder %s29, 0
      %p369 = por %p367, %p368
      %p370 = scmp.ne.s32.totalorder %s362, %s364
      %p371 = scmp.eq.s32.totalorder %s34, 1
      %p372 = por %p370, %p371
      %p373 = scmp.ne.s32.totalorder %s364, %s365
      %p374 = scmp.eq.s32.totalorder %s34, 0
      %p375 = por %p373, %p374
      %p376 = scmp.ne.s32.totalorder %s364, %s365
      %p377 = scmp.eq.s32.totalorder %s35, 1
      %p378 = por %p376, %p377
      %p380 = scmp.ne.s32.totalorder %s365, %s379
      %p381 = scmp.eq.s32.totalorder %s35, 0
      %p382 = por %p380, %p381
      %s384 = sadd.s32 %s383, 1
      %p387 = scmp.eq.s32.totalorder %s29, 1
      %p388 = scmp.ne.s32.totalorder %s383, %s385
      %p389 = scmp.eq.s32.totalorder %s29, 0
      %p390 = por %p388, %p389
      %p391 = scmp.ne.s32.totalorder %s383, %s385
      %p392 = scmp.eq.s32.totalorder %s34, 1
      %p393 = por %p391, %p392
      %p394 = scmp.ne.s32.totalorder %s385, %s386
      %p395 = scmp.eq.s32.totalorder %s34, 0
      %p396 = por %p394, %p395
      %p397 = scmp.ne.s32.totalorder %s385, %s386
      %p398 = scmp.eq.s32.totalorder %s35, 1
      %p399 = por %p397, %p398
      %p401 = scmp.ne.s32.totalorder %s386, %s400
      %p402 = scmp.eq.s32.totalorder %s35, 0
      %p403 = por %p401, %p402
      %s405 = sadd.s32 %s404, 1
      %p408 = scmp.eq.s32.totalorder %s29, 1
      %p409 = scmp.ne.s32.totalorder %s404, %s406
      %p410 = scmp.eq.s32.totalorder %s29, 0
      %p411 = por %p409, %p410
      %p412 = scmp.ne.s32.totalorder %s404, %s406
      %p413 = scmp.eq.s32.totalorder %s34, 1
      %p414 = por %p412, %p413
      %p415 = scmp.ne.s32.totalorder %s406, %s407
      %p416 = scmp.eq.s32.totalorder %s34, 0
      %p417 = por %p415, %p416
      %p418 = scmp.ne.s32.totalorder %s406, %s407
      %p419 = scmp.eq.s32.totalorder %s35, 1
      %p420 = por %p418, %p419
      %p422 = scmp.ne.s32.totalorder %s407, %s421
      %p423 = scmp.eq.s32.totalorder %s35, 0
      %p424 = por %p422, %p423
      %s426 = sadd.s32 %s425, 1
      %p429 = scmp.eq.s32.totalorder %s29, 1
      %p430 = scmp.ne.s32.totalorder %s425, %s427
      %p431 = scmp.eq.s32.totalorder %s29, 0
      %p432 = por %p430, %p431
      %p433 = scmp.ne.s32.totalorder %s425, %s427
      %p434 = scmp.eq.s32.totalorder %s34, 1
      %p435 = por %p433, %p434
      %p436 = scmp.ne.s32.totalorder %s427, %s428
      %p437 = scmp.eq.s32.totalorder %s34, 0
      %p438 = por %p436, %p437
      %p439 = scmp.ne.s32.totalorder %s427, %s428
      %p440 = scmp.eq.s32.totalorder %s35, 1
      %p441 = por %p439, %p440
      %p443 = scmp.ne.s32.totalorder %s428, %s442
      %p444 = scmp.eq.s32.totalorder %s35, 0
      %p445 = por %p443, %p444
      %s446 = ssub.s32 %s36, %s48
      %s447 = ssub.s32 %s37, %s44
      %s448 = sor.u32 %s446, %s447
      %p449 = scmp.eq.s32.totalorder %s448, 0
      %s451 = sadd.s32 %s450, 1
      %s452 = scalar_select %p449, %s450, %s451
      %p455 = pneg %p449
      %p456 = scmp.eq.s32.totalorder %s29, 1
      %p457 = por %p455, %p456
      %p458 = scmp.ne.s32.totalorder %s450, %s453
      %p459 = scmp.eq.s32.totalorder %s29, 0
      %p460 = por %p458, %p459
      %p461 = scmp.ne.s32.totalorder %s450, %s453
      %p462 = scmp.eq.s32.totalorder %s34, 1
      %p463 = por %p461, %p462
      %p464 = scmp.ne.s32.totalorder %s453, %s454
      %p465 = scmp.eq.s32.totalorder %s34, 0
      %p466 = por %p464, %p465
      %p467 = scmp.ne.s32.totalorder %s453, %s454
      %p468 = scmp.eq.s32.totalorder %s35, 1
      %p469 = por %p467, %p468
      %p471 = scmp.ne.s32.totalorder %s454, %s470
      %p472 = scmp.eq.s32.totalorder %s35, 0
      %p473 = por %p471, %p472
      %s474 = ssub.s32 %s36, %s48
      %s475 = ssub.s32 %s37, %s44
      %s476 = sor.u32 %s474, %s475
      %p477 = scmp.eq.s32.totalorder %s476, 0
      %s479 = sadd.s32 %s478, 1
      %s480 = scalar_select %p477, %s478, %s479
      %p483 = pneg %p477
      %p484 = scmp.eq.s32.totalorder %s29, 1
      %p485 = por %p483, %p484
      %p486 = scmp.ne.s32.totalorder %s478, %s481
      %p487 = scmp.eq.s32.totalorder %s29, 0
      %p488 = por %p486, %p487
      %p489 = scmp.ne.s32.totalorder %s478, %s481
      %p490 = scmp.eq.s32.totalorder %s34, 1
      %p491 = por %p489, %p490
      %p492 = scmp.ne.s32.totalorder %s481, %s482
      %p493 = scmp.eq.s32.totalorder %s34, 0
      %p494 = por %p492, %p493
      %p495 = scmp.ne.s32.totalorder %s481, %s482
      %p496 = scmp.eq.s32.totalorder %s35, 1
      %p497 = por %p495, %p496
      %p499 = scmp.ne.s32.totalorder %s482, %s498
      %p500 = scmp.eq.s32.totalorder %s35, 0
      %p501 = por %p499, %p500
      %p502 = scmp.le.s32.totalorder 1, %s29
      %p503 = scmp.lt.s32.totalorder %s29, 3
      %p504 = pnand %p502, %p503
      %p505 = pneg %p504
      // Predicated region
      $region9: #{_lambda_.4} parent=5 // pred_check
        _
      $region10: #{_lambda_.4} parent=5 // pred_check_branch
        %507 = sbr.rel (%p504) target = $region12
      $region11: #{_lambda_.4} parent=5 // pred_region
        %s508 = ssub.s32 %s29, 1
        // Predicated region
        $region13: #{_lambda_.4} parent=11 // pred_check
          %p509 = pneg %p144
        $region14: #{_lambda_.4} parent=11 // pred_check_branch
          %511 = sbr.rel (%p509) target = $region16
        $region15: #{_lambda_.4} parent=11 // pred_region
          _
        $region16: #{_lambda_.4} parent=11 // pred_fallthru
          _
        // Predicated region
        $region17: #{_lambda_.4} parent=11 // pred_check
          %p512 = pneg %p165
        $region18: #{_lambda_.4} parent=11 // pred_check_branch
          %514 = sbr.rel (%p512) target = $region20
        $region19: #{_lambda_.4} parent=11 // pred_region
          _
        $region20: #{_lambda_.4} parent=11 // pred_fallthru
          _
        // Predicated region
        $region21: #{_lambda_.4} parent=11 // pred_check
          %p515 = pneg %p186
        $region22: #{_lambda_.4} parent=11 // pred_check_branch
          %517 = sbr.rel (%p515) target = $region24
        $region23: #{_lambda_.4} parent=11 // pred_region
          _
        $region24: #{_lambda_.4} parent=11 // pred_fallthru
          _
        // Predicated region
        $region25: #{_lambda_.4} parent=11 // pred_check
          %p518 = pneg %p207
        $region26: #{_lambda_.4} parent=11 // pred_check_branch
          %520 = sbr.rel (%p518) target = $region28
        $region27: #{_lambda_.4} parent=11 // pred_region
          _
        $region28: #{_lambda_.4} parent=11 // pred_fallthru
          _
        // Predicated region
        $region29: #{_lambda_.4} parent=11 // pred_check
          %p521 = pneg %p228
        $region30: #{_lambda_.4} parent=11 // pred_check_branch
          %523 = sbr.rel (%p521) target = $region32
        $region31: #{_lambda_.4} parent=11 // pred_region
          _
        $region32: #{_lambda_.4} parent=11 // pred_fallthru
          _
        // Predicated region
        $region33: #{_lambda_.4} parent=11 // pred_check
          %p524 = pneg %p249
        $region34: #{_lambda_.4} parent=11 // pred_check_branch
          %526 = sbr.rel (%p524) target = $region36
        $region35: #{_lambda_.4} parent=11 // pred_region
          _
        $region36: #{_lambda_.4} parent=11 // pred_fallthru
          _
        // Predicated region
        $region37: #{_lambda_.4} parent=11 // pred_check
          %p527 = pneg %p270
        $region38: #{_lambda_.4} parent=11 // pred_check_branch
          %529 = sbr.rel (%p527) target = $region40
        $region39: #{_lambda_.4} parent=11 // pred_region
          _
        $region40: #{_lambda_.4} parent=11 // pred_fallthru
          _
        // Predicated region
        $region41: #{_lambda_.4} parent=11 // pred_check
          %p530 = pneg %p291
        $region42: #{_lambda_.4} parent=11 // pred_check_branch
          %532 = sbr.rel (%p530) target = $region44
        $region43: #{_lambda_.4} parent=11 // pred_region
          _
        $region44: #{_lambda_.4} parent=11 // pred_fallthru
          _
        // Predicated region
        $region45: #{_lambda_.4} parent=11 // pred_check
          %p533 = pneg %p312
        $region46: #{_lambda_.4} parent=11 // pred_check_branch
          %535 = sbr.rel (%p533) target = $region48
        $region47: #{_lambda_.4} parent=11 // pred_region
          _
        $region48: #{_lambda_.4} parent=11 // pred_fallthru
          _
        // Predicated region
        $region49: #{_lambda_.4} parent=11 // pred_check
          %p536 = pneg %p333
        $region50: #{_lambda_.4} parent=11 // pred_check_branch
          %538 = sbr.rel (%p536) target = $region52
        $region51: #{_lambda_.4} parent=11 // pred_region
          _
        $region52: #{_lambda_.4} parent=11 // pred_fallthru
          _
        // Predicated region
        $region53: #{_lambda_.4} parent=11 // pred_check
          %p539 = pneg %p354
        $region54: #{_lambda_.4} parent=11 // pred_check_branch
          %541 = sbr.rel (%p539) target = $region56
        $region55: #{_lambda_.4} parent=11 // pred_region
          _
        $region56: #{_lambda_.4} parent=11 // pred_fallthru
          _
        // Predicated region
        $region57: #{_lambda_.4} parent=11 // pred_check
          %p542 = pneg %p375
        $region58: #{_lambda_.4} parent=11 // pred_check_branch
          %544 = sbr.rel (%p542) target = $region60
        $region59: #{_lambda_.4} parent=11 // pred_region
          _
        $region60: #{_lambda_.4} parent=11 // pred_fallthru
          _
        // Predicated region
        $region61: #{_lambda_.4} parent=11 // pred_check
          %p545 = pneg %p396
        $region62: #{_lambda_.4} parent=11 // pred_check_branch
          %547 = sbr.rel (%p545) target = $region64
        $region63: #{_lambda_.4} parent=11 // pred_region
          _
        $region64: #{_lambda_.4} parent=11 // pred_fallthru
          _
        // Predicated region
        $region65: #{_lambda_.4} parent=11 // pred_check
          %p548 = pneg %p417
        $region66: #{_lambda_.4} parent=11 // pred_check_branch
          %550 = sbr.rel (%p548) target = $region68
        $region67: #{_lambda_.4} parent=11 // pred_region
          _
        $region68: #{_lambda_.4} parent=11 // pred_fallthru
          _
        // Predicated region
        $region69: #{_lambda_.4} parent=11 // pred_check
          %p551 = pneg %p438
        $region70: #{_lambda_.4} parent=11 // pred_check_branch
          %553 = sbr.rel (%p551) target = $region72
        $region71: #{_lambda_.4} parent=11 // pred_region
          _
        $region72: #{_lambda_.4} parent=11 // pred_fallthru
          _
      $region12: #{_lambda_.4} parent=5 // pred_fallthru
        _
      %p554 = scmp.lt.s32.totalorder %s29, 2
      // Predicated region
      $region73: #{_lambda_.4} parent=5 // pred_check
        %p555 = pneg %p554
      $region74: #{_lambda_.4} parent=5 // pred_check_branch
        %557 = sbr.rel (%p555) target = $region76
      $region75: #{_lambda_.4} parent=5 // pred_region
        // Predicated region
        $region77: #{_lambda_.4} parent=75 // pred_check
          %p558 = pneg %p61
        $region78: #{_lambda_.4} parent=75 // pred_check_branch
          %560 = sbr.rel (%p558) target = $region80
        $region79: #{_lambda_.4} parent=75 // pred_region
          %p561 = scmp.lt.s32.totalorder %s36, 1
          %s562 = scalar_select %p561, %s36, 1
          %s563 = smul.addr %s562, 2
          %s564 = smul.addr %s563, 8
          %s565 = scalar_lea.vmem %s0, %s564
        $region80: #{_lambda_.4} parent=75 // pred_fallthru
          _
        // Predicated region
        $region81: #{_lambda_.4} parent=75 // pred_check
          %p566 = pneg %p89
        $region82: #{_lambda_.4} parent=75 // pred_check_branch
          %568 = sbr.rel (%p566) target = $region84
        $region83: #{_lambda_.4} parent=75 // pred_region
          %s569 = smul.u32 2, %s37
          %p570 = scmp.lt.s32.totalorder %s36, 1
          %s571 = scalar_select %p570, %s36, 1
          %p572 = scmp.lt.s32.totalorder %s569, 1
          %s573 = scalar_select %p572, %s569, 1
          %s574 = smul.addr %s571, 2
          %s575 = sadd.s32 %s573, %s574
          %s576 = smul.addr %s575, 8
          %s577 = scalar_lea.vmem %s1, %s576
          %s578 = smul.u32 2, %s37
        $region84: #{_lambda_.4} parent=75 // pred_fallthru
          _
        // Predicated region
        $region85: #{_lambda_.4} parent=75 // pred_check
          %p579 = pneg %p117
        $region86: #{_lambda_.4} parent=75 // pred_check_branch
          %581 = sbr.rel (%p579) target = $region88
        $region87: #{_lambda_.4} parent=75 // pred_region
          %s582 = smul.u32 2, %s37
          %p583 = scmp.lt.s32.totalorder %s36, 1
          %s584 = scalar_select %p583, %s36, 1
          %p585 = scmp.lt.s32.totalorder %s582, 1
          %s586 = scalar_select %p585, %s582, 1
          %s587 = smul.addr %s584, 2
          %s588 = sadd.s32 %s586, %s587
          %s589 = smul.addr %s588, 8
          %s590 = scalar_lea.vmem %s2, %s589
          %s591 = smul.u32 2, %s37
        $region88: #{_lambda_.4} parent=75 // pred_fallthru
          _
      $region76: #{_lambda_.4} parent=5 // pred_fallthru
        _
      %p592 = scmp.le.s32.totalorder 1, %s29
      %p593 = scmp.lt.s32.totalorder %s29, 3
      %p594 = pnand %p592, %p593
      %p595 = pneg %p594
      // Predicated region
      $region89: #{_lambda_.4} parent=5 // pred_check
        _
      $region90: #{_lambda_.4} parent=5 // pred_check_branch
        %597 = sbr.rel (%p594) target = $region92
      $region91: #{_lambda_.4} parent=5 // pred_region
        %s598 = ssub.s32 %s29, 1
        %p599 = scmp.lt.s32.totalorder %s38, 1
        %s600 = scalar_select %p599, %s38, 1
        %s601 = smul.addr %s600, 2
        %s602 = smul.addr %s601, 8
        %s603 = scalar_lea.vmem %s0, %s602
        %p604 = pneg %p67
        %p605 = pneg %p64
        %s606 = smul.u32 2, %s39
        %p607 = scmp.lt.s32.totalorder %s38, 1
        %s608 = scalar_select %p607, %s38, 1
        %p609 = scmp.lt.s32.totalorder %s606, 1
        %s610 = scalar_select %p609, %s606, 1
        %s611 = smul.addr %s608, 2
        %s612 = sadd.s32 %s610, %s611
        %s613 = smul.addr %s612, 8
        %s614 = scalar_lea.vmem %s1, %s613
        %p615 = pneg %p95
        %p616 = pneg %p92
        %s617 = smul.u32 2, %s39
        %p618 = scmp.lt.s32.totalorder %s38, 1
        %s619 = scalar_select %p618, %s38, 1
        %p620 = scmp.lt.s32.totalorder %s617, 1
        %s621 = scalar_select %p620, %s617, 1
        %s622 = smul.addr %s619, 2
        %s623 = sadd.s32 %s621, %s622
        %s624 = smul.addr %s623, 8
        %s625 = scalar_lea.vmem %s2, %s624
        %p626 = pneg %p123
        %p627 = pneg %p120
        %p628 = pneg %p144
        %p629 = pneg %p141
        %p630 = pneg %p165
        %p631 = pneg %p162
        %p632 = pneg %p186
        %p633 = pneg %p183
        %p634 = pneg %p207
        %p635 = pneg %p204
        %p636 = pneg %p228
        %p637 = pneg %p225
        %p638 = pneg %p249
        %p639 = pneg %p246
        %p640 = pneg %p270
        %p641 = pneg %p267
        %p642 = pneg %p291
        %p643 = pneg %p288
        %p644 = pneg %p312
        %p645 = pneg %p309
        %p646 = pneg %p333
        %p647 = pneg %p330
        %p648 = pneg %p354
        %p649 = pneg %p351
        %p650 = pneg %p375
        %p651 = pneg %p372
        %p652 = pneg %p396
        %p653 = pneg %p393
        %p654 = pneg %p417
        %p655 = pneg %p414
        %p656 = pneg %p438
        %p657 = pneg %p435
        %p658 = pneg %p466
        %p659 = pneg %p463
        %p660 = scmp.lt.s32.totalorder %s38, 1
        %s661 = scalar_select %p660, %s38, 1
        %p662 = scmp.lt.s32.totalorder %s39, 0
        %s663 = scalar_select %p662, %s39, 0
        %s664 = sadd.s32 %s663, %s661
        %s665 = smul.addr %s664, 8
        %s666 = scalar_lea.vmem %s18, %s665
        %p667 = pneg %p494
        %p668 = pneg %p491
        %s669 = sand.u32 %s481, 1
        %s670 = scalar_lea.sflag [#allocation3], %s669
        %s671 = sand.u32 %s481, 1
        %s672 = smul.addr %s671, 64
        %s673 = scalar_lea.vmem [#allocation2], %s672
        %p674 = scmp.lt.s32.totalorder %s38, 1
        %s675 = scalar_select %p674, %s38, 1
        %s676 = smul.addr %s675, 2
        %s677 = smul.addr %s676, 8
        %s678 = scalar_lea.vmem %s0, %s677
        %s679 = smul.u32 2, %s39
        %p680 = scmp.lt.s32.totalorder %s38, 1
        %s681 = scalar_select %p680, %s38, 1
        %p682 = scmp.lt.s32.totalorder %s679, 1
        %s683 = scalar_select %p682, %s679, 1
        %s684 = smul.addr %s681, 2
        %s685 = sadd.s32 %s683, %s684
        %s686 = smul.addr %s685, 8
        %s687 = scalar_lea.vmem %s1, %s686
        %s688 = smul.u32 2, %s39
        %s689 = smul.u32 2, %s39
        %p690 = scmp.lt.s32.totalorder %s38, 1
        %s691 = scalar_select %p690, %s38, 1
        %p692 = scmp.lt.s32.totalorder %s689, 1
        %s693 = scalar_select %p692, %s689, 1
        %s694 = smul.addr %s691, 2
        %s695 = sadd.s32 %s693, %s694
        %s696 = smul.addr %s695, 8
        %s697 = scalar_lea.vmem %s2, %s696
        %s698 = smul.u32 2, %s39
        %p699 = scmp.lt.s32.totalorder %s38, 1
        %s700 = scalar_select %p699, %s38, 1
        %p701 = scmp.lt.s32.totalorder %s39, 0
        %s702 = scalar_select %p701, %s39, 0
        %s703 = sadd.s32 %s702, %s700
        %s704 = smul.addr %s703, 8
        %s705 = scalar_lea.vmem %s18, %s704
        %s706 = smul.u32 2, %s39
        %v707 = vld [vmem:[%s678] sm:$0xff]
        %v708 = vld [vmem:[%s678 + $0x8] sm:$0xff]
        %v709 = vld [vmem:[%s687] sm:$0xff]
        %v710 = vld [vmem:[%s687 + $0x8] sm:$0xff]
        %v711 = vld [vmem:[%s697] sm:$0xff]
        %v712 = vld [vmem:[%s697 + $0x8] sm:$0xff]
        %v713 = vld [vmem:[%s3] sm:$0xff]
        %v714 = vld [vmem:[%s3 + $0x8] sm:$0xff]
        %vm715 = vcmask 130048
        %v717 = vsel %vm715, %v707, 0
        %v720 = vsel %vm715, %v708, 0
        %722 = vmatprep.subr.mxu0 0.0
        %723 = vmatpush1.msra.mxu0 %v713
        %724 = vmatprep.subr.mxu0 0.0
        %725 = vmatpush1.msra.mxu0 %v714
        %726 = vmatprep.subr.mxu0 0.0
        %727 = vmatpush1.msra.mxu0 0.0
        %728 = vmatprep.subr.mxu0 0.0
        %729 = vmatpush1.msra.mxu0 0.0
        %730 = vmatprep.subr.mxu0 0.0
        %731 = vmatpush1.msra.mxu0 0.0
        %732 = vmatprep.subr.mxu0 0.0
        %733 = vmatpush1.msra.mxu0 0.0
        %734 = vmatprep.subr.mxu0 0.0
        %735 = vmatpush1.msra.mxu0 0.0
        %736 = vmatprep.subr.mxu0 0.0
        %737 = vmatpush1.msra.mxu0 0.0
        %738 = vmatprep.subr.mxu0 0.0
        %739 = vmatpush1.msra.mxu0 0.0
        %740 = vmatprep.subr.mxu0 0.0
        %741 = vmatpush1.msra.mxu0 0.0
        %742 = vmatprep.subr.mxu0 0.0
        %743 = vmatpush1.msra.mxu0 0.0
        %744 = vmatprep.subr.mxu0 0.0
        %745 = vmatpush1.msra.mxu0 0.0
        %746 = vmatprep.subr.mxu0 0.0
        %747 = vmatpush1.msra.mxu0 0.0
        %748 = vmatprep.subr.mxu0 0.0
        %749 = vmatpush1.msra.mxu0 0.0
        %750 = vmatprep.subr.mxu0 0.0
        %751 = vmatpush1.msra.mxu0 0.0
        %752 = vmatprep.subr.mxu0 0.0
        %753 = vmatpush1.msra.mxu0 0.0
        %754 = vmatprep.subr.mxu0 0.0
        %755 = vmatpush1.msra.mxu0 0.0
        %756 = vmatprep.subr.mxu0 0.0
        %757 = vmatpush1.msra.mxu0 0.0
        %758 = vmatprep.subr.mxu0 0.0
        %759 = vmatpush1.msra.mxu0 0.0
        %760 = vmatprep.subr.mxu0 0.0
        %761 = vmatpush1.msra.mxu0 0.0
        %762 = vmatprep.subr.mxu0 0.0
        %763 = vmatpush1.msra.mxu0 0.0
        %764 = vmatprep.subr.mxu0 0.0
        %765 = vmatpush1.msra.mxu0 0.0
        %766 = vmatprep.subr.mxu0 0.0
        %767 = vmatpush1.msra.mxu0 0.0
        %768 = vmatprep.subr.mxu0 0.0
        %769 = vmatpush1.msra.mxu0 0.0
        %770 = vmatprep.subr.mxu0 0.0
        %771 = vmatpush1.msra.mxu0 0.0
        %772 = vmatprep.subr.mxu0 0.0
        %773 = vmatpush1.msra.mxu0 0.0
        %774 = vmatprep.subr.mxu0 0.0
        %775 = vmatpush1.msra.mxu0 0.0
        %776 = vmatprep.subr.mxu0 0.0
        %777 = vmatpush1.msra.mxu0 0.0
        %778 = vmatprep.subr.mxu0 0.0
        %779 = vmatpush1.msra.mxu0 0.0
        %780 = vmatprep.subr.mxu0 0.0
        %781 = vmatpush1.msra.mxu0 0.0
        %782 = vmatprep.subr.mxu0 0.0
        %783 = vmatpush1.msra.mxu0 0.0
        %784 = vmatprep.subr.mxu0 0.0
        %785 = vmatpush1.msra.mxu0 0.0
        %786 = vmatprep.mubr.f32.mxu0 0.0
        %787 = vmatmul.mubr.f32.gmra.mrb[0].mxu0 %v717
        %v788 = vpop.f32.mrb[0].mxu0
        %v789 = vadd.f32 0.0, %v788
        %v790 = vpop.f32.mrb[0].mxu0
        %791 = vmatprep.mubr.f32.mxu0 0.0
        %792 = vmatmul.mubr.f32.gmra.mrb[0].mxu0 %v720
        %v793 = vpop.f32.mrb[0].mxu0
        %v794 = vadd.f32 0.0, %v793
        %v795 = vpop.f32.mrb[0].mxu0
        %796 = vdwg.mxu0
        %v798 = vsel %vm715, %v709, 0
        %v801 = vsel %vm715, %v710, 0
        %803 = vmatprep.subr.mxu0 0.0
        %804 = vmatpush1.msra.mxu0 %v713
        %805 = vmatprep.subr.mxu0 0.0
        %806 = vmatpush1.msra.mxu0 %v714
        %807 = vmatprep.subr.mxu0 0.0
        %808 = vmatpush1.msra.mxu0 0.0
        %809 = vmatprep.subr.mxu0 0.0
        %810 = vmatpush1.msra.mxu0 0.0
        %811 = vmatprep.subr.mxu0 0.0
        %812 = vmatpush1.msra.mxu0 0.0
        %813 = vmatprep.subr.mxu0 0.0
        %814 = vmatpush1.msra.mxu0 0.0
        %815 = vmatprep.subr.mxu0 0.0
        %816 = vmatpush1.msra.mxu0 0.0
        %817 = vmatprep.subr.mxu0 0.0
        %818 = vmatpush1.msra.mxu0 0.0
        %819 = vmatprep.subr.mxu0 0.0
        %820 = vmatpush1.msra.mxu0 0.0
        %821 = vmatprep.subr.mxu0 0.0
        %822 = vmatpush1.msra.mxu0 0.0
        %823 = vmatprep.subr.mxu0 0.0
        %824 = vmatpush1.msra.mxu0 0.0
        %825 = vmatprep.subr.mxu0 0.0
        %826 = vmatpush1.msra.mxu0 0.0
        %827 = vmatprep.subr.mxu0 0.0
        %828 = vmatpush1.msra.mxu0 0.0
        %829 = vmatprep.subr.mxu0 0.0
        %830 = vmatpush1.msra.mxu0 0.0
        %831 = vmatprep.subr.mxu0 0.0
        %832 = vmatpush1.msra.mxu0 0.0
        %833 = vmatprep.subr.mxu0 0.0
        %834 = vmatpush1.msra.mxu0 0.0
        %835 = vmatprep.subr.mxu0 0.0
        %836 = vmatpush1.msra.mxu0 0.0
        %837 = vmatprep.subr.mxu0 0.0
        %838 = vmatpush1.msra.mxu0 0.0
        %839 = vmatprep.subr.mxu0 0.0
        %840 = vmatpush1.msra.mxu0 0.0
        %841 = vmatprep.subr.mxu0 0.0
        %842 = vmatpush1.msra.mxu0 0.0
        %843 = vmatprep.subr.mxu0 0.0
        %844 = vmatpush1.msra.mxu0 0.0
        %845 = vmatprep.subr.mxu0 0.0
        %846 = vmatpush1.msra.mxu0 0.0
        %847 = vmatprep.subr.mxu0 0.0
        %848 = vmatpush1.msra.mxu0 0.0
        %849 = vmatprep.subr.mxu0 0.0
        %850 = vmatpush1.msra.mxu0 0.0
        %851 = vmatprep.subr.mxu0 0.0
        %852 = vmatpush1.msra.mxu0 0.0
        %853 = vmatprep.subr.mxu0 0.0
        %854 = vmatpush1.msra.mxu0 0.0
        %855 = vmatprep.subr.mxu0 0.0
        %856 = vmatpush1.msra.mxu0 0.0
        %857 = vmatprep.subr.mxu0 0.0
        %858 = vmatpush1.msra.mxu0 0.0
        %859 = vmatprep.subr.mxu0 0.0
        %860 = vmatpush1.msra.mxu0 0.0
        %861 = vmatprep.subr.mxu0 0.0
        %862 = vmatpush1.msra.mxu0 0.0
        %863 = vmatprep.subr.mxu0 0.0
        %864 = vmatpush1.msra.mxu0 0.0
        %865 = vmatprep.subr.mxu0 0.0
        %866 = vmatpush1.msra.mxu0 0.0
        %867 = vmatprep.mubr.f32.mxu0 0.0
        %868 = vmatmul.mubr.f32.gmra.mrb[0].mxu0 %v798
        %v869 = vpop.f32.mrb[0].mxu0
        %v870 = vadd.f32 0.0, %v869
        %v871 = vpop.f32.mrb[0].mxu0
        %872 = vmatprep.mubr.f32.mxu0 0.0
        %873 = vmatmul.mubr.f32.gmra.mrb[0].mxu0 %v801
        %v874 = vpop.f32.mrb[0].mxu0
        %v875 = vadd.f32 0.0, %v874
        %v876 = vpop.f32.mrb[0].mxu0
        %877 = vdwg.mxu0
        %v878 = vld [vmem:[%s4] sm:$0xff]
        %v879 = vld [vmem:[%s4 + $0x8] sm:$0xff]
        %v881 = vsel %vm715, %v870, 0
        %v884 = vsel %vm715, %v875, 0
        %886 = vmatprep.subr.mxu0 0.0
        %887 = vmatpush1.msra.mxu0 %v878
        %888 = vmatprep.subr.mxu0 0.0
        %889 = vmatpush1.msra.mxu0 %v879
        %890 = vmatprep.subr.mxu0 0.0
        %891 = vmatpush1.msra.mxu0 0.0
        %892 = vmatprep.subr.mxu0 0.0
        %893 = vmatpush1.msra.mxu0 0.0
        %894 = vmatprep.subr.mxu0 0.0
        %895 = vmatpush1.msra.mxu0 0.0
        %896 = vmatprep.subr.mxu0 0.0
        %897 = vmatpush1.msra.mxu0 0.0
        %898 = vmatprep.subr.mxu0 0.0
        %899 = vmatpush1.msra.mxu0 0.0
        %900 = vmatprep.subr.mxu0 0.0
        %901 = vmatpush1.msra.mxu0 0.0
        %902 = vmatprep.subr.mxu0 0.0
        %903 = vmatpush1.msra.mxu0 0.0
        %904 = vmatprep.subr.mxu0 0.0
        %905 = vmatpush1.msra.mxu0 0.0
        %906 = vmatprep.subr.mxu0 0.0
        %907 = vmatpush1.msra.mxu0 0.0
        %908 = vmatprep.subr.mxu0 0.0
        %909 = vmatpush1.msra.mxu0 0.0
        %910 = vmatprep.subr.mxu0 0.0
        %911 = vmatpush1.msra.mxu0 0.0
        %912 = vmatprep.subr.mxu0 0.0
        %913 = vmatpush1.msra.mxu0 0.0
        %914 = vmatprep.subr.mxu0 0.0
        %915 = vmatpush1.msra.mxu0 0.0
        %916 = vmatprep.subr.mxu0 0.0
        %917 = vmatpush1.msra.mxu0 0.0
        %918 = vmatprep.subr.mxu0 0.0
        %919 = vmatpush1.msra.mxu0 0.0
        %920 = vmatprep.subr.mxu0 0.0
        %921 = vmatpush1.msra.mxu0 0.0
        %922 = vmatprep.subr.mxu0 0.0
        %923 = vmatpush1.msra.mxu0 0.0
        %924 = vmatprep.subr.mxu0 0.0
        %925 = vmatpush1.msra.mxu0 0.0
        %926 = vmatprep.subr.mxu0 0.0
        %927 = vmatpush1.msra.mxu0 0.0
        %928 = vmatprep.subr.mxu0 0.0
        %929 = vmatpush1.msra.mxu0 0.0
        %930 = vmatprep.subr.mxu0 0.0
        %931 = vmatpush1.msra.mxu0 0.0
        %932 = vmatprep.subr.mxu0 0.0
        %933 = vmatpush1.msra.mxu0 0.0
        %934 = vmatprep.subr.mxu0 0.0
        %935 = vmatpush1.msra.mxu0 0.0
        %936 = vmatprep.subr.mxu0 0.0
        %937 = vmatpush1.msra.mxu0 0.0
        %938 = vmatprep.subr.mxu0 0.0
        %939 = vmatpush1.msra.mxu0 0.0
        %940 = vmatprep.subr.mxu0 0.0
        %941 = vmatpush1.msra.mxu0 0.0
        %942 = vmatprep.subr.mxu0 0.0
        %943 = vmatpush1.msra.mxu0 0.0
        %944 = vmatprep.subr.mxu0 0.0
        %945 = vmatpush1.msra.mxu0 0.0
        %946 = vmatprep.subr.mxu0 0.0
        %947 = vmatpush1.msra.mxu0 0.0
        %948 = vmatprep.subr.mxu0 0.0
        %949 = vmatpush1.msra.mxu0 0.0
        %950 = vmatprep.mubr.f32.mxu0 0.0
        %951 = vmatmul.mubr.f32.gmra.mrb[0].mxu0 %v881
        %v952 = vpop.f32.mrb[0].mxu0
        %v953 = vadd.f32 0.0, %v952
        %v954 = vpop.f32.mrb[0].mxu0
        %955 = vmatprep.mubr.f32.mxu0 0.0
        %956 = vmatmul.mubr.f32.gmra.mrb[0].mxu0 %v884
        %v957 = vpop.f32.mrb[0].mxu0
        %v958 = vadd.f32 0.0, %v957
        %v959 = vpop.f32.mrb[0].mxu0
        %960 = vdwg.mxu0
        %v961 = vld [vmem:[%s5] sm:$0xff]
        %v962 = vld [vmem:[%s5 + $0x8] sm:$0xff]
        %v964 = vsel %vm715, %v789, 0
        %v967 = vsel %vm715, %v794, 0
        %969 = vmatprep.subr.mxu0 0.0
        %970 = vmatpush1.msra.mxu0 %v961
        %971 = vmatprep.subr.mxu0 0.0
        %972 = vmatpush1.msra.mxu0 %v962
        %973 = vmatprep.subr.mxu0 0.0
        %974 = vmatpush1.msra.mxu0 0.0
        %975 = vmatprep.subr.mxu0 0.0
        %976 = vmatpush1.msra.mxu0 0.0
        %977 = vmatprep.subr.mxu0 0.0
        %978 = vmatpush1.msra.mxu0 0.0
        %979 = vmatprep.subr.mxu0 0.0
        %980 = vmatpush1.msra.mxu0 0.0
        %981 = vmatprep.subr.mxu0 0.0
        %982 = vmatpush1.msra.mxu0 0.0
        %983 = vmatprep.subr.mxu0 0.0
        %984 = vmatpush1.msra.mxu0 0.0
        %985 = vmatprep.subr.mxu0 0.0
        %986 = vmatpush1.msra.mxu0 0.0
        %987 = vmatprep.subr.mxu0 0.0
        %988 = vmatpush1.msra.mxu0 0.0
        %989 = vmatprep.subr.mxu0 0.0
        %990 = vmatpush1.msra.mxu0 0.0
        %991 = vmatprep.subr.mxu0 0.0
        %992 = vmatpush1.msra.mxu0 0.0
        %993 = vmatprep.subr.mxu0 0.0
        %994 = vmatpush1.msra.mxu0 0.0
        %995 = vmatprep.subr.mxu0 0.0
        %996 = vmatpush1.msra.mxu0 0.0
        %997 = vmatprep.subr.mxu0 0.0
        %998 = vmatpush1.msra.mxu0 0.0
        %999 = vmatprep.subr.mxu0 0.0
        %1000 = vmatpush1.msra.mxu0 0.0
        %1001 = vmatprep.subr.mxu0 0.0
        %1002 = vmatpush1.msra.mxu0 0.0
        %1003 = vmatprep.subr.mxu0 0.0
        %1004 = vmatpush1.msra.mxu0 0.0
        %1005 = vmatprep.subr.mxu0 0.0
        %1006 = vmatpush1.msra.mxu0 0.0
        %1007 = vmatprep.subr.mxu0 0.0
        %1008 = vmatpush1.msra.mxu0 0.0
        %1009 = vmatprep.subr.mxu0 0.0
        %1010 = vmatpush1.msra.mxu0 0.0
        %1011 = vmatprep.subr.mxu0 0.0
        %1012 = vmatpush1.msra.mxu0 0.0
        %1013 = vmatprep.subr.mxu0 0.0
        %1014 = vmatpush1.msra.mxu0 0.0
        %1015 = vmatprep.subr.mxu0 0.0
        %1016 = vmatpush1.msra.mxu0 0.0
        %1017 = vmatprep.subr.mxu0 0.0
        %1018 = vmatpush1.msra.mxu0 0.0
        %1019 = vmatprep.subr.mxu0 0.0
        %1020 = vmatpush1.msra.mxu0 0.0
        %1021 = vmatprep.subr.mxu0 0.0
        %1022 = vmatpush1.msra.mxu0 0.0
        %1023 = vmatprep.subr.mxu0 0.0
        %1024 = vmatpush1.msra.mxu0 0.0
        %1025 = vmatprep.subr.mxu0 0.0
        %1026 = vmatpush1.msra.mxu0 0.0
        %1027 = vmatprep.subr.mxu0 0.0
        %1028 = vmatpush1.msra.mxu0 0.0
        %1029 = vmatprep.subr.mxu0 0.0
        %1030 = vmatpush1.msra.mxu0 0.0
        %1031 = vmatprep.subr.mxu0 0.0
        %1032 = vmatpush1.msra.mxu0 0.0
        %1033 = vmatprep.mubr.f32.mxu0 0.0
        %1034 = vmatmul.mubr.f32.gmra.mrb[0].mxu0 %v964
        %v1035 = vpop.f32.mrb[0].mxu0
        %v1036 = vadd.f32 0.0, %v1035
        %v1037 = vpop.f32.mrb[0].mxu0
        %1038 = vmatprep.mubr.f32.mxu0 0.0
        %1039 = vmatmul.mubr.f32.gmra.mrb[0].mxu0 %v967
        %v1040 = vpop.f32.mrb[0].mxu0
        %v1041 = vadd.f32 0.0, %v1040
        %v1042 = vpop.f32.mrb[0].mxu0
        %1043 = vdwg.mxu0
        %1044 = vxpose.xlu0.b32.start [1/16] %v1036, 128
        %1045 = vxpose.xlu0.b32.cont [2/16] %v1041, 128
        %1046 = vxpose.xlu0.b32.cont [3/16] 0.0, 128
        %1047 = vxpose.xlu0.b32.cont [4/16] 0.0, 128
        %1048 = vxpose.xlu0.b32.cont [5/16] 0.0, 128
        %1049 = vxpose.xlu0.b32.cont [6/16] 0.0, 128
        %1050 = vxpose.xlu0.b32.cont [7/16] 0.0, 128
        %1051 = vxpose.xlu0.b32.cont [8/16] 0.0, 128
        %1052 = vxpose.xlu0.b32.cont [9/16] 0.0, 128
        %1053 = vxpose.xlu0.b32.cont [10/16] 0.0, 128
        %1054 = vxpose.xlu0.b32.cont [11/16] 0.0, 128
        %1055 = vxpose.xlu0.b32.cont [12/16] 0.0, 128
        %1056 = vxpose.xlu0.b32.cont [13/16] 0.0, 128
        %1057 = vxpose.xlu0.b32.cont [14/16] 0.0, 128
        %1058 = vxpose.xlu0.b32.cont [15/16] 0.0, 128
        %1059 = vxpose.xlu0.b32.end [16/16] 0.0, 128
        %v1060 = vpop.trf.xlu0
        %v1061 = vpop.trf.xlu0
        %v1062 = vpop.trf.xlu0
        %v1063 = vpop.trf.xlu0
        %v1064 = vpop.trf.xlu0
        %v1065 = vpop.trf.xlu0
        %v1066 = vpop.trf.xlu0
        %v1067 = vpop.trf.xlu0
        %v1068 = vpop.trf.xlu0
        %v1069 = vpop.trf.xlu0
        %v1070 = vpop.trf.xlu0
        %v1071 = vpop.trf.xlu0
        %v1072 = vpop.trf.xlu0
        %v1073 = vpop.trf.xlu0
        %v1074 = vpop.trf.xlu0
        %v1075 = vpop.trf.xlu0
        %1077 = vset.pattern.permute.xlu0 0
        %1078 = vperm.xlu0 %1077, %v953
        %v1079 = vpop.permute.xlu0 %1078
        %1082 = vset.pattern.permute.xlu0 0
        %1083 = vperm.xlu0 %1082, %v958
        %v1084 = vpop.permute.xlu0 %1083
        %v1086 = vlaneseq
        %v1087 = vshrl.u32 %v1086, 7
        %v1088 = vsub.s32 0, %v1087
        %v1089 = vrot.slane %v1060, %v1088
        %v1090 = vadd.f32 %v1079, %v1089
        %v1091 = vadd.f32 %v1084, %v1089
        %vm1092 = vcmp.gt.f32.partialorder %v1090, 0.0
        %vm1093 = vcmp.gt.f32.partialorder %v1091, 0.0
        %v1094 = vmul.f32 %v1090, 0.2
        %v1095 = vmul.f32 %v1091, 0.2
        %v1096 = vsel %vm1092, %v1090, %v1094
        %v1097 = vsel %vm1093, %v1091, %v1095
        %vm1098 = vcmp.gt.f32.partialorder %v711, 0.0
        %vm1099 = vcmp.gt.f32.partialorder %v712, 0.0
        %v1100 = vsel %vm1098, %v1096, -1e+09
        %v1101 = vsel %vm1099, %v1097, -1e+09
        %v1102 = vsel %vm715, %v1100, -inf
        %1103 = vmax.xlane.f32.xlu0 %v1102
        %v1104 = vpop.xlane.xlu0 %1103
        %v1105 = vsel %vm715, %v1101, -inf
        %1106 = vmax.xlane.f32.xlu0 %v1105
        %v1107 = vpop.xlane.xlu0 %1106
        %v1108 = vsub.f32 %v1100, %v1104
        %v1109 = vsub.f32 %v1101, %v1107
        %v1110 = vmul.f32 %v1108, 1.442695
        %v1111 = vpow.pop %v1110
        %v1112 = vmul.f32 %v1109, 1.442695
        %v1113 = vpow.pop %v1112
        %v1114 = vsel %vm715, %v1111, 0.0
        %1115 = vadd.xlane.f32.xlu0 %v1114
        %v1116 = vpop.xlane.xlu0 %1115
        %v1117 = vsel %vm715, %v1113, 0.0
        %1118 = vadd.xlane.f32.xlu0 %v1117
        %v1119 = vpop.xlane.xlu0 %1118
        %v1120 = vrcp.pop %v1116
        %v1121 = vmul.f32 %v1111, %v1120
        %v1122 = vrcp.pop %v1119
        %v1123 = vmul.f32 %v1113, %v1122
        %1124 = vst.msk [vmem:[%s673] sm:$0xff] %vm715, %v1121
        %1125 = vst.msk [vmem:[%s673 + $0x8] sm:$0xff] %vm715, %v1123
        %v1127 = vsel %vm715, %v1121, 0
        %v1130 = vsel %vm715, %v1123, 0
        %1132 = vmatprep.subr.mxu0 0.0
        %1133 = vmatpush1.msra.mxu0 %v789
        %1134 = vmatprep.subr.mxu0 0.0
        %1135 = vmatpush1.msra.mxu0 %v794
        %1136 = vmatprep.subr.mxu0 0.0
        %1137 = vmatpush1.msra.mxu0 0.0
        %1138 = vmatprep.subr.mxu0 0.0
        %1139 = vmatpush1.msra.mxu0 0.0
        %1140 = vmatprep.subr.mxu0 0.0
        %1141 = vmatpush1.msra.mxu0 0.0
        %1142 = vmatprep.subr.mxu0 0.0
        %1143 = vmatpush1.msra.mxu0 0.0
        %1144 = vmatprep.subr.mxu0 0.0
        %1145 = vmatpush1.msra.mxu0 0.0
        %1146 = vmatprep.subr.mxu0 0.0
        %1147 = vmatpush1.msra.mxu0 0.0
        %1148 = vmatprep.subr.mxu0 0.0
        %1149 = vmatpush1.msra.mxu0 0.0
        %1150 = vmatprep.subr.mxu0 0.0
        %1151 = vmatpush1.msra.mxu0 0.0
        %1152 = vmatprep.subr.mxu0 0.0
        %1153 = vmatpush1.msra.mxu0 0.0
        %1154 = vmatprep.subr.mxu0 0.0
        %1155 = vmatpush1.msra.mxu0 0.0
        %1156 = vmatprep.subr.mxu0 0.0
        %1157 = vmatpush1.msra.mxu0 0.0
        %1158 = vmatprep.subr.mxu0 0.0
        %1159 = vmatpush1.msra.mxu0 0.0
        %1160 = vmatprep.subr.mxu0 0.0
        %1161 = vmatpush1.msra.mxu0 0.0
        %1162 = vmatprep.subr.mxu0 0.0
        %1163 = vmatpush1.msra.mxu0 0.0
        %1164 = vmatprep.subr.mxu0 0.0
        %1165 = vmatpush1.msra.mxu0 0.0
        %1166 = vmatprep.subr.mxu0 0.0
        %1167 = vmatpush1.msra.mxu0 0.0
        %1168 = vmatprep.subr.mxu0 0.0
        %1169 = vmatpush1.msra.mxu0 0.0
        %1170 = vmatprep.subr.mxu0 0.0
        %1171 = vmatpush1.msra.mxu0 0.0
        %1172 = vmatprep.subr.mxu0 0.0
        %1173 = vmatpush1.msra.mxu0 0.0
        %1174 = vmatprep.subr.mxu0 0.0
        %1175 = vmatpush1.msra.mxu0 0.0
        %1176 = vmatprep.subr.mxu0 0.0
        %1177 = vmatpush1.msra.mxu0 0.0
        %1178 = vmatprep.subr.mxu0 0.0
        %1179 = vmatpush1.msra.mxu0 0.0
        %1180 = vmatprep.subr.mxu0 0.0
        %1181 = vmatpush1.msra.mxu0 0.0
        %1182 = vmatprep.subr.mxu0 0.0
        %1183 = vmatpush1.msra.mxu0 0.0
        %1184 = vmatprep.subr.mxu0 0.0
        %1185 = vmatpush1.msra.mxu0 0.0
        %1186 = vmatprep.subr.mxu0 0.0
        %1187 = vmatpush1.msra.mxu0 0.0
        %1188 = vmatprep.subr.mxu0 0.0
        %1189 = vmatpush1.msra.mxu0 0.0
        %1190 = vmatprep.subr.mxu0 0.0
        %1191 = vmatpush1.msra.mxu0 0.0
        %1192 = vmatprep.subr.mxu0 0.0
        %1193 = vmatpush1.msra.mxu0 0.0
        %1194 = vmatprep.subr.mxu0 0.0
        %1195 = vmatpush1.msra.mxu0 0.0
        %1196 = vmatprep.mubr.f32.mxu0 0.0
        %1197 = vmatmul.mubr.f32.gmra.mrb[0].mxu0 %v1127
        %v1198 = vpop.f32.mrb[0].mxu0
        %v1199 = vadd.f32 0.0, %v1198
        %v1200 = vpop.f32.mrb[0].mxu0
        %1201 = vmatprep.mubr.f32.mxu0 0.0
        %1202 = vmatmul.mubr.f32.gmra.mrb[0].mxu0 %v1130
        %v1203 = vpop.f32.mrb[0].mxu0
        %v1204 = vadd.f32 0.0, %v1203
        %v1205 = vpop.f32.mrb[0].mxu0
        %1206 = vdwg.mxu0
        %1207 = vset.pattern.permute.xlu0 1
        %1208 = vperm.xlu0 %1207, %v953
        %v1209 = vpop.permute.xlu0 %1208
        %1211 = vset.pattern.permute.xlu0 1
        %1212 = vperm.xlu0 %1211, %v958
        %v1213 = vpop.permute.xlu0 %1212
        %v1215 = vlaneseq
        %v1216 = vshrl.u32 %v1215, 7
        %v1217 = vsub.s32 1, %v1216
        %v1218 = vrot.slane %v1060, %v1217
        %v1219 = vadd.f32 %v1209, %v1218
        %v1220 = vadd.f32 %v1213, %v1218
        %vm1221 = vcmp.gt.f32.partialorder %v1219, 0.0
        %vm1222 = vcmp.gt.f32.partialorder %v1220, 0.0
        %v1223 = vmul.f32 %v1219, 0.2
        %v1224 = vmul.f32 %v1220, 0.2
        %v1225 = vsel %vm1221, %v1219, %v1223
        %v1226 = vsel %vm1222, %v1220, %v1224
        %v1227 = vsel %vm1098, %v1225, -1e+09
        %v1228 = vsel %vm1099, %v1226, -1e+09
        %v1229 = vsel %vm715, %v1227, -inf
        %1230 = vmax.xlane.f32.xlu0 %v1229
        %v1231 = vpop.xlane.xlu0 %1230
        %v1232 = vsel %vm715, %v1228, -inf
        %1233 = vmax.xlane.f32.xlu0 %v1232
        %v1234 = vpop.xlane.xlu0 %1233
        %v1235 = vsub.f32 %v1227, %v1231
        %v1236 = vsub.f32 %v1228, %v1234
        %v1237 = vmul.f32 %v1235, 1.442695
        %v1238 = vpow.pop %v1237
        %v1239 = vmul.f32 %v1236, 1.442695
        %v1240 = vpow.pop %v1239
        %v1241 = vsel %vm715, %v1238, 0.0
        %1242 = vadd.xlane.f32.xlu0 %v1241
        %v1243 = vpop.xlane.xlu0 %1242
        %v1244 = vsel %vm715, %v1240, 0.0
        %1245 = vadd.xlane.f32.xlu0 %v1244
        %v1246 = vpop.xlane.xlu0 %1245
        %v1247 = vrcp.pop %v1243
        %v1248 = vmul.f32 %v1238, %v1247
        %v1249 = vrcp.pop %v1246
        %v1250 = vmul.f32 %v1240, %v1249
        %s1251 = scalar_lea.vmem %s673, 16 [#allocation2]
        %1252 = vst.msk [vmem:[%s1251] sm:$0xff] %vm715, %v1248
        %1253 = vst.msk [vmem:[%s1251 + $0x8] sm:$0xff] %vm715, %v1250
        %1254 = vrot.lane.b32.xlu0 %v789, 124
        %v1255 = vpop.permute.xlu0 %1254
        %1256 = vrot.lane.b32.xlu0 %v794, 124
        %v1257 = vpop.permute.xlu0 %1256
        %v1261 = vsel %vm715, %v1248, 0
        %v1264 = vsel %vm715, %v1250, 0
        %1266 = vmatprep.subr.mxu0 0.0
        %1267 = vmatpush1.msra.mxu0 %v1255
        %1268 = vmatprep.subr.mxu0 0.0
        %1269 = vmatpush1.msra.mxu0 %v1257
        %1270 = vmatprep.subr.mxu0 0.0
        %1271 = vmatpush1.msra.mxu0 0.0
        %1272 = vmatprep.subr.mxu0 0.0
        %1273 = vmatpush1.msra.mxu0 0.0
        %1274 = vmatprep.subr.mxu0 0.0
        %1275 = vmatpush1.msra.mxu0 0.0
        %1276 = vmatprep.subr.mxu0 0.0
        %1277 = vmatpush1.msra.mxu0 0.0
        %1278 = vmatprep.subr.mxu0 0.0
        %1279 = vmatpush1.msra.mxu0 0.0
        %1280 = vmatprep.subr.mxu0 0.0
        %1281 = vmatpush1.msra.mxu0 0.0
        %1282 = vmatprep.subr.mxu0 0.0
        %1283 = vmatpush1.msra.mxu0 0.0
        %1284 = vmatprep.subr.mxu0 0.0
        %1285 = vmatpush1.msra.mxu0 0.0
        %1286 = vmatprep.subr.mxu0 0.0
        %1287 = vmatpush1.msra.mxu0 0.0
        %1288 = vmatprep.subr.mxu0 0.0
        %1289 = vmatpush1.msra.mxu0 0.0
        %1290 = vmatprep.subr.mxu0 0.0
        %1291 = vmatpush1.msra.mxu0 0.0
        %1292 = vmatprep.subr.mxu0 0.0
        %1293 = vmatpush1.msra.mxu0 0.0
        %1294 = vmatprep.subr.mxu0 0.0
        %1295 = vmatpush1.msra.mxu0 0.0
        %1296 = vmatprep.subr.mxu0 0.0
        %1297 = vmatpush1.msra.mxu0 0.0
        %1298 = vmatprep.subr.mxu0 0.0
        %1299 = vmatpush1.msra.mxu0 0.0
        %1300 = vmatprep.subr.mxu0 0.0
        %1301 = vmatpush1.msra.mxu0 0.0
        %1302 = vmatprep.subr.mxu0 0.0
        %1303 = vmatpush1.msra.mxu0 0.0
        %1304 = vmatprep.subr.mxu0 0.0
        %1305 = vmatpush1.msra.mxu0 0.0
        %1306 = vmatprep.subr.mxu0 0.0
        %1307 = vmatpush1.msra.mxu0 0.0
        %1308 = vmatprep.subr.mxu0 0.0
        %1309 = vmatpush1.msra.mxu0 0.0
        %1310 = vmatprep.subr.mxu0 0.0
        %1311 = vmatpush1.msra.mxu0 0.0
        %1312 = vmatprep.subr.mxu0 0.0
        %1313 = vmatpush1.msra.mxu0 0.0
        %1314 = vmatprep.subr.mxu0 0.0
        %1315 = vmatpush1.msra.mxu0 0.0
        %1316 = vmatprep.subr.mxu0 0.0
        %1317 = vmatpush1.msra.mxu0 0.0
        %1318 = vmatprep.subr.mxu0 0.0
        %1319 = vmatpush1.msra.mxu0 0.0
        %1320 = vmatprep.subr.mxu0 0.0
        %1321 = vmatpush1.msra.mxu0 0.0
        %1322 = vmatprep.subr.mxu0 0.0
        %1323 = vmatpush1.msra.mxu0 0.0
        %1324 = vmatprep.subr.mxu0 0.0
        %1325 = vmatpush1.msra.mxu0 0.0
        %1326 = vmatprep.subr.mxu0 0.0
        %1327 = vmatpush1.msra.mxu0 0.0
        %1328 = vmatprep.subr.mxu0 0.0
        %1329 = vmatpush1.msra.mxu0 0.0
        %1330 = vmatprep.mubr.f32.mxu0 0.0
        %1331 = vmatmul.mubr.f32.gmra.mrb[0].mxu0 %v1261
        %v1332 = vpop.f32.mrb[0].mxu0
        %v1333 = vadd.f32 0.0, %v1332
        %v1334 = vpop.f32.mrb[0].mxu0
        %1335 = vmatprep.mubr.f32.mxu0 0.0
        %1336 = vmatmul.mubr.f32.gmra.mrb[0].mxu0 %v1264
        %v1337 = vpop.f32.mrb[0].mxu0
        %v1338 = vadd.f32 0.0, %v1337
        %v1339 = vpop.f32.mrb[0].mxu0
        %1340 = vdwg.mxu0
        %1341 = vset.pattern.permute.xlu0 2
        %1342 = vperm.xlu0 %1341, %v953
        %v1343 = vpop.permute.xlu0 %1342
        %1345 = vset.pattern.permute.xlu0 2
        %1346 = vperm.xlu0 %1345, %v958
        %v1347 = vpop.permute.xlu0 %1346
        %v1349 = vlaneseq
        %v1350 = vshrl.u32 %v1349, 7
        %v1351 = vsub.s32 2, %v1350
        %v1352 = vrot.slane %v1060, %v1351
        %v1353 = vadd.f32 %v1343, %v1352
        %v1354 = vadd.f32 %v1347, %v1352
        %vm1355 = vcmp.gt.f32.partialorder %v1353, 0.0
        %vm1356 = vcmp.gt.f32.partialorder %v1354, 0.0
        %v1357 = vmul.f32 %v1353, 0.2
        %v1358 = vmul.f32 %v1354, 0.2
        %v1359 = vsel %vm1355, %v1353, %v1357
        %v1360 = vsel %vm1356, %v1354, %v1358
        %v1361 = vsel %vm1098, %v1359, -1e+09
        %v1362 = vsel %vm1099, %v1360, -1e+09
        %v1363 = vsel %vm715, %v1361, -inf
        %1364 = vmax.xlane.f32.xlu0 %v1363
        %v1365 = vpop.xlane.xlu0 %1364
        %v1366 = vsel %vm715, %v1362, -inf
        %1367 = vmax.xlane.f32.xlu0 %v1366
        %v1368 = vpop.xlane.xlu0 %1367
        %v1369 = vsub.f32 %v1361, %v1365
        %v1370 = vsub.f32 %v1362, %v1368
        %v1371 = vmul.f32 %v1369, 1.442695
        %v1372 = vpow.pop %v1371
        %v1373 = vmul.f32 %v1370, 1.442695
        %v1374 = vpow.pop %v1373
        %v1375 = vsel %vm715, %v1372, 0.0
        %1376 = vadd.xlane.f32.xlu0 %v1375
        %v1377 = vpop.xlane.xlu0 %1376
        %v1378 = vsel %vm715, %v1374, 0.0
        %1379 = vadd.xlane.f32.xlu0 %v1378
        %v1380 = vpop.xlane.xlu0 %1379
        %v1381 = vrcp.pop %v1377
        %v1382 = vmul.f32 %v1372, %v1381
        %v1383 = vrcp.pop %v1380
        %v1384 = vmul.f32 %v1374, %v1383
        %s1385 = scalar_lea.vmem %s673, 32 [#allocation2]
        %1386 = vst.msk [vmem:[%s1385] sm:$0xff] %vm715, %v1382
        %1387 = vst.msk [vmem:[%s1385 + $0x8] sm:$0xff] %vm715, %v1384
        %1388 = vrot.lane.b32.xlu0 %v789, 120
        %v1389 = vpop.permute.xlu0 %1388
        %1390 = vrot.lane.b32.xlu0 %v794, 120
        %v1391 = vpop.permute.xlu0 %1390
        %v1395 = vsel %vm715, %v1382, 0
        %v1398 = vsel %vm715, %v1384, 0
        %1400 = vmatprep.subr.mxu0 0.0
        %1401 = vmatpush1.msra.mxu0 %v1389
        %1402 = vmatprep.subr.mxu0 0.0
        %1403 = vmatpush1.msra.mxu0 %v1391
        %1404 = vmatprep.subr.mxu0 0.0
        %1405 = vmatpush1.msra.mxu0 0.0
        %1406 = vmatprep.subr.mxu0 0.0
        %1407 = vmatpush1.msra.mxu0 0.0
        %1408 = vmatprep.subr.mxu0 0.0
        %1409 = vmatpush1.msra.mxu0 0.0
        %1410 = vmatprep.subr.mxu0 0.0
        %1411 = vmatpush1.msra.mxu0 0.0
        %1412 = vmatprep.subr.mxu0 0.0
        %1413 = vmatpush1.msra.mxu0 0.0
        %1414 = vmatprep.subr.mxu0 0.0
        %1415 = vmatpush1.msra.mxu0 0.0
        %1416 = vmatprep.subr.mxu0 0.0
        %1417 = vmatpush1.msra.mxu0 0.0
        %1418 = vmatprep.subr.mxu0 0.0
        %1419 = vmatpush1.msra.mxu0 0.0
        %1420 = vmatprep.subr.mxu0 0.0
        %1421 = vmatpush1.msra.mxu0 0.0
        %1422 = vmatprep.subr.mxu0 0.0
        %1423 = vmatpush1.msra.mxu0 0.0
        %1424 = vmatprep.subr.mxu0 0.0
        %1425 = vmatpush1.msra.mxu0 0.0
        %1426 = vmatprep.subr.mxu0 0.0
        %1427 = vmatpush1.msra.mxu0 0.0
        %1428 = vmatprep.subr.mxu0 0.0
        %1429 = vmatpush1.msra.mxu0 0.0
        %1430 = vmatprep.subr.mxu0 0.0
        %1431 = vmatpush1.msra.mxu0 0.0
        %1432 = vmatprep.subr.mxu0 0.0
        %1433 = vmatpush1.msra.mxu0 0.0
        %1434 = vmatprep.subr.mxu0 0.0
        %1435 = vmatpush1.msra.mxu0 0.0
        %1436 = vmatprep.subr.mxu0 0.0
        %1437 = vmatpush1.msra.mxu0 0.0
        %1438 = vmatprep.subr.mxu0 0.0
        %1439 = vmatpush1.msra.mxu0 0.0
        %1440 = vmatprep.subr.mxu0 0.0
        %1441 = vmatpush1.msra.mxu0 0.0
        %1442 = vmatprep.subr.mxu0 0.0
        %1443 = vmatpush1.msra.mxu0 0.0
        %1444 = vmatprep.subr.mxu0 0.0
        %1445 = vmatpush1.msra.mxu0 0.0
        %1446 = vmatprep.subr.mxu0 0.0
        %1447 = vmatpush1.msra.mxu0 0.0
        %1448 = vmatprep.subr.mxu0 0.0
        %1449 = vmatpush1.msra.mxu0 0.0
        %1450 = vmatprep.subr.mxu0 0.0
        %1451 = vmatpush1.msra.mxu0 0.0
        %1452 = vmatprep.subr.mxu0 0.0
        %1453 = vmatpush1.msra.mxu0 0.0
        %1454 = vmatprep.subr.mxu0 0.0
        %1455 = vmatpush1.msra.mxu0 0.0
        %1456 = vmatprep.subr.mxu0 0.0
        %1457 = vmatpush1.msra.mxu0 0.0
        %1458 = vmatprep.subr.mxu0 0.0
        %1459 = vmatpush1.msra.mxu0 0.0
        %1460 = vmatprep.subr.mxu0 0.0
        %1461 = vmatpush1.msra.mxu0 0.0
        %1462 = vmatprep.subr.mxu0 0.0
        %1463 = vmatpush1.msra.mxu0 0.0
        %1464 = vmatprep.mubr.f32.mxu0 0.0
        %1465 = vmatmul.mubr.f32.gmra.mrb[0].mxu0 %v1395
        %v1466 = vpop.f32.mrb[0].mxu0
        %v1467 = vadd.f32 0.0, %v1466
        %v1468 = vpop.f32.mrb[0].mxu0
        %1469 = vmatprep.mubr.f32.mxu0 0.0
        %1470 = vmatmul.mubr.f32.gmra.mrb[0].mxu0 %v1398
        %v1471 = vpop.f32.mrb[0].mxu0
        %v1472 = vadd.f32 0.0, %v1471
        %v1473 = vpop.f32.mrb[0].mxu0
        %1474 = vdwg.mxu0
        %1475 = vset.pattern.permute.xlu0 3
        %1476 = vperm.xlu0 %1475, %v953
        %v1477 = vpop.permute.xlu0 %1476
        %1479 = vset.pattern.permute.xlu0 3
        %1480 = vperm.xlu0 %1479, %v958
        %v1481 = vpop.permute.xlu0 %1480
        %v1483 = vlaneseq
        %v1484 = vshrl.u32 %v1483, 7
        %v1485 = vsub.s32 3, %v1484
        %v1486 = vrot.slane %v1060, %v1485
        %v1487 = vadd.f32 %v1477, %v1486
        %v1488 = vadd.f32 %v1481, %v1486
        %vm1489 = vcmp.gt.f32.partialorder %v1487, 0.0
        %vm1490 = vcmp.gt.f32.partialorder %v1488, 0.0
        %v1491 = vmul.f32 %v1487, 0.2
        %v1492 = vmul.f32 %v1488, 0.2
        %v1493 = vsel %vm1489, %v1487, %v1491
        %v1494 = vsel %vm1490, %v1488, %v1492
        %v1495 = vsel %vm1098, %v1493, -1e+09
        %v1496 = vsel %vm1099, %v1494, -1e+09
        %v1497 = vsel %vm715, %v1495, -inf
        %1498 = vmax.xlane.f32.xlu0 %v1497
        %v1499 = vpop.xlane.xlu0 %1498
        %v1500 = vsel %vm715, %v1496, -inf
        %1501 = vmax.xlane.f32.xlu0 %v1500
        %v1502 = vpop.xlane.xlu0 %1501
        %v1503 = vsub.f32 %v1495, %v1499
        %v1504 = vsub.f32 %v1496, %v1502
        %v1505 = vmul.f32 %v1503, 1.442695
        %v1506 = vpow.pop %v1505
        %v1507 = vmul.f32 %v1504, 1.442695
        %v1508 = vpow.pop %v1507
        %v1509 = vsel %vm715, %v1506, 0.0
        %1510 = vadd.xlane.f32.xlu0 %v1509
        %v1511 = vpop.xlane.xlu0 %1510
        %v1512 = vsel %vm715, %v1508, 0.0
        %1513 = vadd.xlane.f32.xlu0 %v1512
        %v1514 = vpop.xlane.xlu0 %1513
        %v1515 = vrcp.pop %v1511
        %v1516 = vmul.f32 %v1506, %v1515
        %v1517 = vrcp.pop %v1514
        %v1518 = vmul.f32 %v1508, %v1517
        %s1519 = scalar_lea.vmem %s673, 48 [#allocation2]
        %1520 = vst.msk [vmem:[%s1519] sm:$0xff] %vm715, %v1516
        %1521 = vst.msk [vmem:[%s1519 + $0x8] sm:$0xff] %vm715, %v1518
        %1522 = vrot.lane.b32.xlu0 %v789, 116
        %v1523 = vpop.permute.xlu0 %1522
        %1524 = vrot.lane.b32.xlu0 %v794, 116
        %v1525 = vpop.permute.xlu0 %1524
        %v1529 = vsel %vm715, %v1516, 0
        %v1532 = vsel %vm715, %v1518, 0
        %1534 = vmatprep.subr.mxu0 0.0
        %1535 = vmatpush1.msra.mxu0 %v1523
        %1536 = vmatprep.subr.mxu0 0.0
        %1537 = vmatpush1.msra.mxu0 %v1525
        %1538 = vmatprep.subr.mxu0 0.0
        %1539 = vmatpush1.msra.mxu0 0.0
        %1540 = vmatprep.subr.mxu0 0.0
        %1541 = vmatpush1.msra.mxu0 0.0
        %1542 = vmatprep.subr.mxu0 0.0
        %1543 = vmatpush1.msra.mxu0 0.0
        %1544 = vmatprep.subr.mxu0 0.0
        %1545 = vmatpush1.msra.mxu0 0.0
        %1546 = vmatprep.subr.mxu0 0.0
        %1547 = vmatpush1.msra.mxu0 0.0
        %1548 = vmatprep.subr.mxu0 0.0
        %1549 = vmatpush1.msra.mxu0 0.0
        %1550 = vmatprep.subr.mxu0 0.0
        %1551 = vmatpush1.msra.mxu0 0.0
        %1552 = vmatprep.subr.mxu0 0.0
        %1553 = vmatpush1.msra.mxu0 0.0
        %1554 = vmatprep.subr.mxu0 0.0
        %1555 = vmatpush1.msra.mxu0 0.0
        %1556 = vmatprep.subr.mxu0 0.0
        %1557 = vmatpush1.msra.mxu0 0.0
        %1558 = vmatprep.subr.mxu0 0.0
        %1559 = vmatpush1.msra.mxu0 0.0
        %1560 = vmatprep.subr.mxu0 0.0
        %1561 = vmatpush1.msra.mxu0 0.0
        %1562 = vmatprep.subr.mxu0 0.0
        %1563 = vmatpush1.msra.mxu0 0.0
        %1564 = vmatprep.subr.mxu0 0.0
        %1565 = vmatpush1.msra.mxu0 0.0
        %1566 = vmatprep.subr.mxu0 0.0
        %1567 = vmatpush1.msra.mxu0 0.0
        %1568 = vmatprep.subr.mxu0 0.0
        %1569 = vmatpush1.msra.mxu0 0.0
        %1570 = vmatprep.subr.mxu0 0.0
        %1571 = vmatpush1.msra.mxu0 0.0
        %1572 = vmatprep.subr.mxu0 0.0
        %1573 = vmatpush1.msra.mxu0 0.0
        %1574 = vmatprep.subr.mxu0 0.0
        %1575 = vmatpush1.msra.mxu0 0.0
        %1576 = vmatprep.subr.mxu0 0.0
        %1577 = vmatpush1.msra.mxu0 0.0
        %1578 = vmatprep.subr.mxu0 0.0
        %1579 = vmatpush1.msra.mxu0 0.0
        %1580 = vmatprep.subr.mxu0 0.0
        %1581 = vmatpush1.msra.mxu0 0.0
        %1582 = vmatprep.subr.mxu0 0.0
        %1583 = vmatpush1.msra.mxu0 0.0
        %1584 = vmatprep.subr.mxu0 0.0
        %1585 = vmatpush1.msra.mxu0 0.0
        %1586 = vmatprep.subr.mxu0 0.0
        %1587 = vmatpush1.msra.mxu0 0.0
        %1588 = vmatprep.subr.mxu0 0.0
        %1589 = vmatpush1.msra.mxu0 0.0
        %1590 = vmatprep.subr.mxu0 0.0
        %1591 = vmatpush1.msra.mxu0 0.0
        %1592 = vmatprep.subr.mxu0 0.0
        %1593 = vmatpush1.msra.mxu0 0.0
        %1594 = vmatprep.subr.mxu0 0.0
        %1595 = vmatpush1.msra.mxu0 0.0
        %1596 = vmatprep.subr.mxu0 0.0
        %1597 = vmatpush1.msra.mxu0 0.0
        %1598 = vmatprep.mubr.f32.mxu0 0.0
        %1599 = vmatmul.mubr.f32.gmra.mrb[0].mxu0 %v1529
        %v1600 = vpop.f32.mrb[0].mxu0
        %v1601 = vadd.f32 0.0, %v1600
        %v1602 = vpop.f32.mrb[0].mxu0
        %1603 = vmatprep.mubr.f32.mxu0 0.0
        %1604 = vmatmul.mubr.f32.gmra.mrb[0].mxu0 %v1532
        %v1605 = vpop.f32.mrb[0].mxu0
        %v1606 = vadd.f32 0.0, %v1605
        %v1607 = vpop.f32.mrb[0].mxu0
        %1608 = vdwg.mxu0
        %1611 = vrot.lane.b32.xlu0 %v1333, 4
        %v1612 = vpop.permute.xlu0 %1611
        %1613 = vrot.lane.b32.xlu0 %v1338, 4
        %v1614 = vpop.permute.xlu0 %1613
        %1619 = vrot.lane.b32.xlu0 %v1467, 8
        %v1620 = vpop.permute.xlu0 %1619
        %1621 = vrot.lane.b32.xlu0 %v1472, 8
        %v1622 = vpop.permute.xlu0 %1621
        %1627 = vrot.lane.b32.xlu0 %v1601, 12
        %v1628 = vpop.permute.xlu0 %1627
        %1629 = vrot.lane.b32.xlu0 %v1606, 12
        %v1630 = vpop.permute.xlu0 %1629
        %vm1633 = vcmask 31744
        %v1634 = vsel %vm1633, %v1199, %v1612
        %v1635 = vsel %vm1633, %v1204, %v1614
        %vm1636 = vcmask 64512
        %v1637 = vsel %vm1636, %v1634, %v1620
        %v1638 = vsel %vm1636, %v1635, %v1622
        %vm1639 = vcmask 97280
        %v1640 = vsel %vm1639, %v1637, %v1628
        %v1641 = vsel %vm1639, %v1638, %v1630
        %v1642 = vld [vmem:[%s6] sm:$0xff]
        %v1643 = vld [vmem:[%s6 + $0x8] sm:$0xff]
        %v1644 = vld [vmem:[%s7] sm:$0x1]
        %v1646 = vlaneseq
        %v1647 = vshrl.u32 %v1646, 7
        %v1648 = vsub.s32 0, %v1647
        %v1649 = vrot.slane %v1644, %v1648
        %v1652 = vsel %vm715, %v1640, 0
        %v1655 = vsel %vm715, %v1641, 0
        %1657 = vmatprep.subr.mxu0 0.0
        %1658 = vmatpush1.msra.mxu0 %v1642
        %1659 = vmatprep.subr.mxu0 0.0
        %1660 = vmatpush1.msra.mxu0 %v1643
        %1661 = vmatprep.subr.mxu0 0.0
        %1662 = vmatpush1.msra.mxu0 0.0
        %1663 = vmatprep.subr.mxu0 0.0
        %1664 = vmatpush1.msra.mxu0 0.0
        %1665 = vmatprep.subr.mxu0 0.0
        %1666 = vmatpush1.msra.mxu0 0.0
        %1667 = vmatprep.subr.mxu0 0.0
        %1668 = vmatpush1.msra.mxu0 0.0
        %1669 = vmatprep.subr.mxu0 0.0
        %1670 = vmatpush1.msra.mxu0 0.0
        %1671 = vmatprep.subr.mxu0 0.0
        %1672 = vmatpush1.msra.mxu0 0.0
        %1673 = vmatprep.subr.mxu0 0.0
        %1674 = vmatpush1.msra.mxu0 0.0
        %1675 = vmatprep.subr.mxu0 0.0
        %1676 = vmatpush1.msra.mxu0 0.0
        %1677 = vmatprep.subr.mxu0 0.0
        %1678 = vmatpush1.msra.mxu0 0.0
        %1679 = vmatprep.subr.mxu0 0.0
        %1680 = vmatpush1.msra.mxu0 0.0
        %1681 = vmatprep.subr.mxu0 0.0
        %1682 = vmatpush1.msra.mxu0 0.0
        %1683 = vmatprep.subr.mxu0 0.0
        %1684 = vmatpush1.msra.mxu0 0.0
        %1685 = vmatprep.subr.mxu0 0.0
        %1686 = vmatpush1.msra.mxu0 0.0
        %1687 = vmatprep.subr.mxu0 0.0
        %1688 = vmatpush1.msra.mxu0 0.0
        %1689 = vmatprep.subr.mxu0 0.0
        %1690 = vmatpush1.msra.mxu0 0.0
        %1691 = vmatprep.subr.mxu0 0.0
        %1692 = vmatpush1.msra.mxu0 0.0
        %1693 = vmatprep.subr.mxu0 0.0
        %1694 = vmatpush1.msra.mxu0 0.0
        %1695 = vmatprep.subr.mxu0 0.0
        %1696 = vmatpush1.msra.mxu0 0.0
        %1697 = vmatprep.subr.mxu0 0.0
        %1698 = vmatpush1.msra.mxu0 0.0
        %1699 = vmatprep.subr.mxu0 0.0
        %1700 = vmatpush1.msra.mxu0 0.0
        %1701 = vmatprep.subr.mxu0 0.0
        %1702 = vmatpush1.msra.mxu0 0.0
        %1703 = vmatprep.subr.mxu0 0.0
        %1704 = vmatpush1.msra.mxu0 0.0
        %1705 = vmatprep.subr.mxu0 0.0
        %1706 = vmatpush1.msra.mxu0 0.0
        %1707 = vmatprep.subr.mxu0 0.0
        %1708 = vmatpush1.msra.mxu0 0.0
        %1709 = vmatprep.subr.mxu0 0.0
        %1710 = vmatpush1.msra.mxu0 0.0
        %1711 = vmatprep.subr.mxu0 0.0
        %1712 = vmatpush1.msra.mxu0 0.0
        %1713 = vmatprep.subr.mxu0 0.0
        %1714 = vmatpush1.msra.mxu0 0.0
        %1715 = vmatprep.subr.mxu0 0.0
        %1716 = vmatpush1.msra.mxu0 0.0
        %1717 = vmatprep.subr.mxu0 0.0
        %1718 = vmatpush1.msra.mxu0 0.0
        %1719 = vmatprep.subr.mxu0 0.0
        %1720 = vmatpush1.msra.mxu0 0.0
        %1721 = vmatprep.mubr.f32.mxu0 0.0
        %1722 = vmatmul.mubr.f32.gmra.mrb[0].mxu0 %v1652
        %v1723 = vpop.f32.mrb[0].mxu0
        %v1724 = vadd.f32 %v1649, %v1723
        %v1725 = vpop.f32.mrb[0].mxu0
        %1726 = vmatprep.mubr.f32.mxu0 0.0
        %1727 = vmatmul.mubr.f32.gmra.mrb[0].mxu0 %v1655
        %v1728 = vpop.f32.mrb[0].mxu0
        %v1729 = vadd.f32 %v1649, %v1728
        %v1730 = vpop.f32.mrb[0].mxu0
        %1731 = vdwg.mxu0
        %v1732 = vmax.f32 %v1724, 0.0
        %v1733 = vmax.f32 %v1729, 0.0
        %v1734 = vld [vmem:[%s8] sm:$0xff]
        %v1735 = vld [vmem:[%s8 + $0x8] sm:$0xff]
        %v1736 = vld [vmem:[%s9] sm:$0x1]
        %v1738 = vlaneseq
        %v1739 = vshrl.u32 %v1738, 7
        %v1740 = vsub.s32 0, %v1739
        %v1741 = vrot.slane %v1736, %v1740
        %v1744 = vsel %vm715, %v1732, 0
        %v1747 = vsel %vm715, %v1733, 0
        %1749 = vmatprep.subr.mxu0 0.0
        %1750 = vmatpush1.msra.mxu0 %v1734
        %1751 = vmatprep.subr.mxu0 0.0
        %1752 = vmatpush1.msra.mxu0 %v1735
        %1753 = vmatprep.subr.mxu0 0.0
        %1754 = vmatpush1.msra.mxu0 0.0
        %1755 = vmatprep.subr.mxu0 0.0
        %1756 = vmatpush1.msra.mxu0 0.0
        %1757 = vmatprep.subr.mxu0 0.0
        %1758 = vmatpush1.msra.mxu0 0.0
        %1759 = vmatprep.subr.mxu0 0.0
        %1760 = vmatpush1.msra.mxu0 0.0
        %1761 = vmatprep.subr.mxu0 0.0
        %1762 = vmatpush1.msra.mxu0 0.0
        %1763 = vmatprep.subr.mxu0 0.0
        %1764 = vmatpush1.msra.mxu0 0.0
        %1765 = vmatprep.subr.mxu0 0.0
        %1766 = vmatpush1.msra.mxu0 0.0
        %1767 = vmatprep.subr.mxu0 0.0
        %1768 = vmatpush1.msra.mxu0 0.0
        %1769 = vmatprep.subr.mxu0 0.0
        %1770 = vmatpush1.msra.mxu0 0.0
        %1771 = vmatprep.subr.mxu0 0.0
        %1772 = vmatpush1.msra.mxu0 0.0
        %1773 = vmatprep.subr.mxu0 0.0
        %1774 = vmatpush1.msra.mxu0 0.0
        %1775 = vmatprep.subr.mxu0 0.0
        %1776 = vmatpush1.msra.mxu0 0.0
        %1777 = vmatprep.subr.mxu0 0.0
        %1778 = vmatpush1.msra.mxu0 0.0
        %1779 = vmatprep.subr.mxu0 0.0
        %1780 = vmatpush1.msra.mxu0 0.0
        %1781 = vmatprep.subr.mxu0 0.0
        %1782 = vmatpush1.msra.mxu0 0.0
        %1783 = vmatprep.subr.mxu0 0.0
        %1784 = vmatpush1.msra.mxu0 0.0
        %1785 = vmatprep.subr.mxu0 0.0
        %1786 = vmatpush1.msra.mxu0 0.0
        %1787 = vmatprep.subr.mxu0 0.0
        %1788 = vmatpush1.msra.mxu0 0.0
        %1789 = vmatprep.subr.mxu0 0.0
        %1790 = vmatpush1.msra.mxu0 0.0
        %1791 = vmatprep.subr.mxu0 0.0
        %1792 = vmatpush1.msra.mxu0 0.0
        %1793 = vmatprep.subr.mxu0 0.0
        %1794 = vmatpush1.msra.mxu0 0.0
        %1795 = vmatprep.subr.mxu0 0.0
        %1796 = vmatpush1.msra.mxu0 0.0
        %1797 = vmatprep.subr.mxu0 0.0
        %1798 = vmatpush1.msra.mxu0 0.0
        %1799 = vmatprep.subr.mxu0 0.0
        %1800 = vmatpush1.msra.mxu0 0.0
        %1801 = vmatprep.subr.mxu0 0.0
        %1802 = vmatpush1.msra.mxu0 0.0
        %1803 = vmatprep.subr.mxu0 0.0
        %1804 = vmatpush1.msra.mxu0 0.0
        %1805 = vmatprep.subr.mxu0 0.0
        %1806 = vmatpush1.msra.mxu0 0.0
        %1807 = vmatprep.subr.mxu0 0.0
        %1808 = vmatpush1.msra.mxu0 0.0
        %1809 = vmatprep.subr.mxu0 0.0
        %1810 = vmatpush1.msra.mxu0 0.0
        %1811 = vmatprep.subr.mxu0 0.0
        %1812 = vmatpush1.msra.mxu0 0.0
        %1813 = vmatprep.mubr.f32.mxu0 0.0
        %1814 = vmatmul.mubr.f32.gmra.mrb[0].mxu0 %v1744
        %v1815 = vpop.f32.mrb[0].mxu0
        %v1816 = vadd.f32 %v1741, %v1815
        %v1817 = vpop.f32.mrb[0].mxu0
        %1818 = vmatprep.mubr.f32.mxu0 0.0
        %1819 = vmatmul.mubr.f32.gmra.mrb[0].mxu0 %v1747
        %v1820 = vpop.f32.mrb[0].mxu0
        %v1821 = vadd.f32 %v1741, %v1820
        %v1822 = vpop.f32.mrb[0].mxu0
        %1823 = vdwg.mxu0
        %v1824 = vadd.f32 %v1816, %v1640
        %v1825 = vadd.f32 %v1821, %v1641
        %v1826 = vmax.f32 %v1824, 0.0
        %v1827 = vmax.f32 %v1825, 0.0
        %v1828 = vld [vmem:[%s10] sm:$0xff]
        %v1829 = vld [vmem:[%s10 + $0x8] sm:$0xff]
        %v1830 = vld [vmem:[%s11] sm:$0x1]
        %v1832 = vlaneseq
        %v1833 = vshrl.u32 %v1832, 7
        %v1834 = vsub.s32 0, %v1833
        %v1835 = vrot.slane %v1830, %v1834
        %v1838 = vsel %vm715, %v1826, 0
        %v1841 = vsel %vm715, %v1827, 0
        %1843 = vmatprep.subr.mxu0 0.0
        %1844 = vmatpush1.msra.mxu0 %v1828
        %1845 = vmatprep.subr.mxu0 0.0
        %1846 = vmatpush1.msra.mxu0 %v1829
        %1847 = vmatprep.subr.mxu0 0.0
        %1848 = vmatpush1.msra.mxu0 0.0
        %1849 = vmatprep.subr.mxu0 0.0
        %1850 = vmatpush1.msra.mxu0 0.0
        %1851 = vmatprep.subr.mxu0 0.0
        %1852 = vmatpush1.msra.mxu0 0.0
        %1853 = vmatprep.subr.mxu0 0.0
        %1854 = vmatpush1.msra.mxu0 0.0
        %1855 = vmatprep.subr.mxu0 0.0
        %1856 = vmatpush1.msra.mxu0 0.0
        %1857 = vmatprep.subr.mxu0 0.0
        %1858 = vmatpush1.msra.mxu0 0.0
        %1859 = vmatprep.subr.mxu0 0.0
        %1860 = vmatpush1.msra.mxu0 0.0
        %1861 = vmatprep.subr.mxu0 0.0
        %1862 = vmatpush1.msra.mxu0 0.0
        %1863 = vmatprep.subr.mxu0 0.0
        %1864 = vmatpush1.msra.mxu0 0.0
        %1865 = vmatprep.subr.mxu0 0.0
        %1866 = vmatpush1.msra.mxu0 0.0
        %1867 = vmatprep.subr.mxu0 0.0
        %1868 = vmatpush1.msra.mxu0 0.0
        %1869 = vmatprep.subr.mxu0 0.0
        %1870 = vmatpush1.msra.mxu0 0.0
        %1871 = vmatprep.subr.mxu0 0.0
        %1872 = vmatpush1.msra.mxu0 0.0
        %1873 = vmatprep.subr.mxu0 0.0
        %1874 = vmatpush1.msra.mxu0 0.0
        %1875 = vmatprep.subr.mxu0 0.0
        %1876 = vmatpush1.msra.mxu0 0.0
        %1877 = vmatprep.subr.mxu0 0.0
        %1878 = vmatpush1.msra.mxu0 0.0
        %1879 = vmatprep.subr.mxu0 0.0
        %1880 = vmatpush1.msra.mxu0 0.0
        %1881 = vmatprep.subr.mxu0 0.0
        %1882 = vmatpush1.msra.mxu0 0.0
        %1883 = vmatprep.subr.mxu0 0.0
        %1884 = vmatpush1.msra.mxu0 0.0
        %1885 = vmatprep.subr.mxu0 0.0
        %1886 = vmatpush1.msra.mxu0 0.0
        %1887 = vmatprep.subr.mxu0 0.0
        %1888 = vmatpush1.msra.mxu0 0.0
        %1889 = vmatprep.subr.mxu0 0.0
        %1890 = vmatpush1.msra.mxu0 0.0
        %1891 = vmatprep.subr.mxu0 0.0
        %1892 = vmatpush1.msra.mxu0 0.0
        %1893 = vmatprep.subr.mxu0 0.0
        %1894 = vmatpush1.msra.mxu0 0.0
        %1895 = vmatprep.subr.mxu0 0.0
        %1896 = vmatpush1.msra.mxu0 0.0
        %1897 = vmatprep.subr.mxu0 0.0
        %1898 = vmatpush1.msra.mxu0 0.0
        %1899 = vmatprep.subr.mxu0 0.0
        %1900 = vmatpush1.msra.mxu0 0.0
        %1901 = vmatprep.subr.mxu0 0.0
        %1902 = vmatpush1.msra.mxu0 0.0
        %1903 = vmatprep.subr.mxu0 0.0
        %1904 = vmatpush1.msra.mxu0 0.0
        %1905 = vmatprep.subr.mxu0 0.0
        %1906 = vmatpush1.msra.mxu0 0.0
        %1907 = vmatprep.mubr.f32.mxu0 0.0
        %1908 = vmatmul.mubr.f32.gmra.mrb[0].mxu0 %v1838
        %v1909 = vpop.f32.mrb[0].mxu0
        %v1910 = vadd.f32 %v1835, %v1909
        %v1911 = vpop.f32.mrb[0].mxu0
        %1912 = vmatprep.mubr.f32.mxu0 0.0
        %1913 = vmatmul.mubr.f32.gmra.mrb[0].mxu0 %v1841
        %v1914 = vpop.f32.mrb[0].mxu0
        %v1915 = vadd.f32 %v1835, %v1914
        %v1916 = vpop.f32.mrb[0].mxu0
        %1917 = vdwg.mxu0
        %v1918 = vsel %vm1636, %v1910, 0.0
        %1919 = vadd.xlane.f32.xlu0 %v1918
        %v1920 = vpop.xlane.xlu0 %1919
        %v1921 = vsel %vm1636, %v1915, 0.0
        %1922 = vadd.xlane.f32.xlu0 %v1921
        %v1923 = vpop.xlane.xlu0 %1922
        %v1924 = vrcp.pop 8.0
        %v1925 = vmul.f32 %v1920, %v1924
        %v1926 = vmul.f32 %v1923, %v1924
        %v1927 = vsub.f32 %v1910, %v1925
        %v1928 = vsub.f32 %v1915, %v1926
        %v1929 = vmul.f32 %v1927, %v1927
        %v1930 = vmul.f32 %v1928, %v1928
        %v1931 = vsel %vm1636, %v1929, 0.0
        %1932 = vadd.xlane.f32.xlu0 %v1931
        %v1933 = vpop.xlane.xlu0 %1932
        %v1934 = vsel %vm1636, %v1930, 0.0
        %1935 = vadd.xlane.f32.xlu0 %v1934
        %v1936 = vpop.xlane.xlu0 %1935
        %v1937 = vmul.f32 %v1933, %v1924
        %v1938 = vmul.f32 %v1936, %v1924
        %v1939 = vadd.f32 %v1937, 1e-05
        %v1940 = vadd.f32 %v1938, 1e-05
        %v1941 = vrsqrt.pop %v1939
        %v1942 = vrsqrt.pop %v1940
        %v1943 = vmul.f32 %v1927, %v1941
        %v1944 = vmul.f32 %v1928, %v1942
        %v1945 = vld [vmem:[%s12] sm:$0x1]
        %v1947 = vlaneseq
        %v1948 = vshrl.u32 %v1947, 7
        %v1949 = vsub.s32 0, %v1948
        %v1950 = vrot.slane %v1945, %v1949
        %v1952 = vmul.f32 %v1943, %v1950
        %v1953 = vmul.f32 %v1944, %v1950
        %v1954 = vld [vmem:[%s13] sm:$0x1]
        %v1956 = vlaneseq
        %v1957 = vshrl.u32 %v1956, 7
        %v1958 = vsub.s32 0, %v1957
        %v1959 = vrot.slane %v1954, %v1958
        %v1961 = vadd.f32 %v1952, %v1959
        %v1962 = vadd.f32 %v1953, %v1959
        %v1963 = vtanh.pop %v1961
        %v1964 = vtanh.pop %v1962
        %v1965 = vld [vmem:[%s14] sm:$0xff]
        %v1966 = vld [vmem:[%s15] sm:$0x1]
        %v1968 = vlaneseq
        %v1969 = vshrl.u32 %v1968, 7
        %v1970 = vsub.s32 0, %v1969
        %v1971 = vrot.slane %v1966, %v1970
        %v1974 = vsel %vm1636, %v1963, 0
        %v1977 = vsel %vm1636, %v1964, 0
        %1979 = vmatprep.subr.mxu0 0.0
        %1980 = vmatpush1.msra.mxu0 %v1965
        %1981 = vmatprep.subr.mxu0 0.0
        %1982 = vmatpush1.msra.mxu0 0.0
        %1983 = vmatprep.subr.mxu0 0.0
        %1984 = vmatpush1.msra.mxu0 0.0
        %1985 = vmatprep.subr.mxu0 0.0
        %1986 = vmatpush1.msra.mxu0 0.0
        %1987 = vmatprep.subr.mxu0 0.0
        %1988 = vmatpush1.msra.mxu0 0.0
        %1989 = vmatprep.subr.mxu0 0.0
        %1990 = vmatpush1.msra.mxu0 0.0
        %1991 = vmatprep.subr.mxu0 0.0
        %1992 = vmatpush1.msra.mxu0 0.0
        %1993 = vmatprep.subr.mxu0 0.0
        %1994 = vmatpush1.msra.mxu0 0.0
        %1995 = vmatprep.subr.mxu0 0.0
        %1996 = vmatpush1.msra.mxu0 0.0
        %1997 = vmatprep.subr.mxu0 0.0
        %1998 = vmatpush1.msra.mxu0 0.0
        %1999 = vmatprep.subr.mxu0 0.0
        %2000 = vmatpush1.msra.mxu0 0.0
        %2001 = vmatprep.subr.mxu0 0.0
        %2002 = vmatpush1.msra.mxu0 0.0
        %2003 = vmatprep.subr.mxu0 0.0
        %2004 = vmatpush1.msra.mxu0 0.0
        %2005 = vmatprep.subr.mxu0 0.0
        %2006 = vmatpush1.msra.mxu0 0.0
        %2007 = vmatprep.subr.mxu0 0.0
        %2008 = vmatpush1.msra.mxu0 0.0
        %2009 = vmatprep.subr.mxu0 0.0
        %2010 = vmatpush1.msra.mxu0 0.0
        %2011 = vmatprep.subr.mxu0 0.0
        %2012 = vmatpush1.msra.mxu0 0.0
        %2013 = vmatprep.subr.mxu0 0.0
        %2014 = vmatpush1.msra.mxu0 0.0
        %2015 = vmatprep.subr.mxu0 0.0
        %2016 = vmatpush1.msra.mxu0 0.0
        %2017 = vmatprep.subr.mxu0 0.0
        %2018 = vmatpush1.msra.mxu0 0.0
        %2019 = vmatprep.subr.mxu0 0.0
        %2020 = vmatpush1.msra.mxu0 0.0
        %2021 = vmatprep.subr.mxu0 0.0
        %2022 = vmatpush1.msra.mxu0 0.0
        %2023 = vmatprep.subr.mxu0 0.0
        %2024 = vmatpush1.msra.mxu0 0.0
        %2025 = vmatprep.subr.mxu0 0.0
        %2026 = vmatpush1.msra.mxu0 0.0
        %2027 = vmatprep.subr.mxu0 0.0
        %2028 = vmatpush1.msra.mxu0 0.0
        %2029 = vmatprep.subr.mxu0 0.0
        %2030 = vmatpush1.msra.mxu0 0.0
        %2031 = vmatprep.subr.mxu0 0.0
        %2032 = vmatpush1.msra.mxu0 0.0
        %2033 = vmatprep.subr.mxu0 0.0
        %2034 = vmatpush1.msra.mxu0 0.0
        %2035 = vmatprep.subr.mxu0 0.0
        %2036 = vmatpush1.msra.mxu0 0.0
        %2037 = vmatprep.subr.mxu0 0.0
        %2038 = vmatpush1.msra.mxu0 0.0
        %2039 = vmatprep.subr.mxu0 0.0
        %2040 = vmatpush1.msra.mxu0 0.0
        %2041 = vmatprep.subr.mxu0 0.0
        %2042 = vmatpush1.msra.mxu0 0.0
        %2043 = vmatprep.mubr.f32.mxu0 0.0
        %2044 = vmatmul.mubr.f32.gmra.mrb[0].mxu0 %v1974
        %v2045 = vpop.f32.mrb[0].mxu0
        %v2046 = vadd.f32 %v1971, %v2045
        %v2047 = vpop.f32.mrb[0].mxu0
        %2048 = vmatprep.mubr.f32.mxu0 0.0
        %2049 = vmatmul.mubr.f32.gmra.mrb[0].mxu0 %v1977
        %v2050 = vpop.f32.mrb[0].mxu0
        %v2051 = vadd.f32 %v1971, %v2050
        %v2052 = vpop.f32.mrb[0].mxu0
        %2053 = vdwg.mxu0
        %v2054 = vmax.f32 %v2046, 0.0
        %v2055 = vmax.f32 %v2051, 0.0
        %v2056 = vld [vmem:[%s16] sm:$0xff]
        %v2057 = vld [vmem:[%s17] sm:$0x1]
        %v2059 = vlaneseq
        %v2060 = vshrl.u32 %v2059, 7
        %v2061 = vsub.s32 0, %v2060
        %v2062 = vrot.slane %v2057, %v2061
        %v2065 = vsel %vm1636, %v2054, 0
        %v2068 = vsel %vm1636, %v2055, 0
        %2070 = vmatprep.subr.mxu0 0.0
        %2071 = vmatpush1.msra.mxu0 %v2056
        %2072 = vmatprep.subr.mxu0 0.0
        %2073 = vmatpush1.msra.mxu0 0.0
        %2074 = vmatprep.subr.mxu0 0.0
        %2075 = vmatpush1.msra.mxu0 0.0
        %2076 = vmatprep.subr.mxu0 0.0
        %2077 = vmatpush1.msra.mxu0 0.0
        %2078 = vmatprep.subr.mxu0 0.0
        %2079 = vmatpush1.msra.mxu0 0.0
        %2080 = vmatprep.subr.mxu0 0.0
        %2081 = vmatpush1.msra.mxu0 0.0
        %2082 = vmatprep.subr.mxu0 0.0
        %2083 = vmatpush1.msra.mxu0 0.0
        %2084 = vmatprep.subr.mxu0 0.0
        %2085 = vmatpush1.msra.mxu0 0.0
        %2086 = vmatprep.subr.mxu0 0.0
        %2087 = vmatpush1.msra.mxu0 0.0
        %2088 = vmatprep.subr.mxu0 0.0
        %2089 = vmatpush1.msra.mxu0 0.0
        %2090 = vmatprep.subr.mxu0 0.0
        %2091 = vmatpush1.msra.mxu0 0.0
        %2092 = vmatprep.subr.mxu0 0.0
        %2093 = vmatpush1.msra.mxu0 0.0
        %2094 = vmatprep.subr.mxu0 0.0
        %2095 = vmatpush1.msra.mxu0 0.0
        %2096 = vmatprep.subr.mxu0 0.0
        %2097 = vmatpush1.msra.mxu0 0.0
        %2098 = vmatprep.subr.mxu0 0.0
        %2099 = vmatpush1.msra.mxu0 0.0
        %2100 = vmatprep.subr.mxu0 0.0
        %2101 = vmatpush1.msra.mxu0 0.0
        %2102 = vmatprep.subr.mxu0 0.0
        %2103 = vmatpush1.msra.mxu0 0.0
        %2104 = vmatprep.subr.mxu0 0.0
        %2105 = vmatpush1.msra.mxu0 0.0
        %2106 = vmatprep.subr.mxu0 0.0
        %2107 = vmatpush1.msra.mxu0 0.0
        %2108 = vmatprep.subr.mxu0 0.0
        %2109 = vmatpush1.msra.mxu0 0.0
        %2110 = vmatprep.subr.mxu0 0.0
        %2111 = vmatpush1.msra.mxu0 0.0
        %2112 = vmatprep.subr.mxu0 0.0
        %2113 = vmatpush1.msra.mxu0 0.0
        %2114 = vmatprep.subr.mxu0 0.0
        %2115 = vmatpush1.msra.mxu0 0.0
        %2116 = vmatprep.subr.mxu0 0.0
        %2117 = vmatpush1.msra.mxu0 0.0
        %2118 = vmatprep.subr.mxu0 0.0
        %2119 = vmatpush1.msra.mxu0 0.0
        %2120 = vmatprep.subr.mxu0 0.0
        %2121 = vmatpush1.msra.mxu0 0.0
        %2122 = vmatprep.subr.mxu0 0.0
        %2123 = vmatpush1.msra.mxu0 0.0
        %2124 = vmatprep.subr.mxu0 0.0
        %2125 = vmatpush1.msra.mxu0 0.0
        %2126 = vmatprep.subr.mxu0 0.0
        %2127 = vmatpush1.msra.mxu0 0.0
        %2128 = vmatprep.subr.mxu0 0.0
        %2129 = vmatpush1.msra.mxu0 0.0
        %2130 = vmatprep.subr.mxu0 0.0
        %2131 = vmatpush1.msra.mxu0 0.0
        %2132 = vmatprep.subr.mxu0 0.0
        %2133 = vmatpush1.msra.mxu0 0.0
        %2134 = vmatprep.mubr.f32.mxu0 0.0
        %2135 = vmatmul.mubr.f32.gmra.mrb[0].mxu0 %v2065
        %v2136 = vpop.f32.mrb[0].mxu0
        %v2137 = vadd.f32 %v2062, %v2136
        %v2138 = vpop.f32.mrb[0].mxu0
        %2139 = vmatprep.mubr.f32.mxu0 0.0
        %2140 = vmatmul.mubr.f32.gmra.mrb[0].mxu0 %v2068
        %v2141 = vpop.f32.mrb[0].mxu0
        %v2142 = vadd.f32 %v2062, %v2141
        %v2143 = vpop.f32.mrb[0].mxu0
        %2144 = vdwg.mxu0
        %2145 = vxpose.xlu0.b32.start [1/16] %v2137, 128
        %2146 = vxpose.xlu0.b32.cont [2/16] %v2142, 128
        %2147 = vxpose.xlu0.b32.cont [3/16] 0.0, 128
        %2148 = vxpose.xlu0.b32.cont [4/16] 0.0, 128
        %2149 = vxpose.xlu0.b32.cont [5/16] 0.0, 128
        %2150 = vxpose.xlu0.b32.cont [6/16] 0.0, 128
        %2151 = vxpose.xlu0.b32.cont [7/16] 0.0, 128
        %2152 = vxpose.xlu0.b32.cont [8/16] 0.0, 128
        %2153 = vxpose.xlu0.b32.cont [9/16] 0.0, 128
        %2154 = vxpose.xlu0.b32.cont [10/16] 0.0, 128
        %2155 = vxpose.xlu0.b32.cont [11/16] 0.0, 128
        %2156 = vxpose.xlu0.b32.cont [12/16] 0.0, 128
        %2157 = vxpose.xlu0.b32.cont [13/16] 0.0, 128
        %2158 = vxpose.xlu0.b32.cont [14/16] 0.0, 128
        %2159 = vxpose.xlu0.b32.cont [15/16] 0.0, 128
        %2160 = vxpose.xlu0.b32.end [16/16] 0.0, 128
        %v2161 = vpop.trf.xlu0
        %v2162 = vpop.trf.xlu0
        %v2163 = vpop.trf.xlu0
        %v2164 = vpop.trf.xlu0
        %v2165 = vpop.trf.xlu0
        %v2166 = vpop.trf.xlu0
        %v2167 = vpop.trf.xlu0
        %v2168 = vpop.trf.xlu0
        %v2169 = vpop.trf.xlu0
        %v2170 = vpop.trf.xlu0
        %v2171 = vpop.trf.xlu0
        %v2172 = vpop.trf.xlu0
        %v2173 = vpop.trf.xlu0
        %v2174 = vpop.trf.xlu0
        %v2175 = vpop.trf.xlu0
        %v2176 = vpop.trf.xlu0
        %2177 = vst.msk [vmem:[%s705] sm:$0xff] %vm715, %v2161
        %p2178 = scmp.lt.s32.totalorder %s38, 1
        %s2179 = scalar_select %p2178, %s38, 1
        %p2180 = scmp.lt.s32.totalorder %s39, 0
        %s2181 = scalar_select %p2180, %s39, 0
        %s2182 = sadd.s32 %s2181, %s2179
        %s2183 = smul.addr %s2182, 8
        %s2184 = scalar_lea.vmem %s18, %s2183
        %s2185 = sand.u32 %s481, 1
        %s2186 = scalar_lea.sflag [#allocation3], %s2185
        %s2187 = sand.u32 %s481, 1
        %s2188 = smul.addr %s2187, 64
        %s2189 = scalar_lea.vmem [#allocation2], %s2188
        // Predicated region
        $region93: #{_lambda_.4} parent=91 // pred_check
          %p2190 = pneg %p463
        $region94: #{_lambda_.4} parent=91 // pred_check_branch
          %2192 = sbr.rel (%p2190) target = $region96
        $region95: #{_lambda_.4} parent=91 // pred_region
          _
        $region96: #{_lambda_.4} parent=91 // pred_fallthru
          _
        // Predicated region
        $region97: #{_lambda_.4} parent=91 // pred_check
          %p2193 = pneg %p491
        $region98: #{_lambda_.4} parent=91 // pred_check_branch
          %2195 = sbr.rel (%p2193) target = $region100
        $region99: #{_lambda_.4} parent=91 // pred_region
          %s2196 = smul.u32 2, %s39
          %s2198 = ssub.s32 1024, 1024
          %2199 = vsyncadd %s2186, %s2198
          %s2200 = smul.addr %s38, 8
          %s2201 = sadd.s32 %s2196, %s2200
          %s2202 = smul.addr %s2201, 128
          %s2203 = scalar_lea.hbm %s19, %s2202
          %s2204 = sshll.u32 %s2189, 4
          %s2205 = int_to_ptr.vmem [resolvable:$true] %s2204
          %2210 = dma.vmem_to_hbm [thread:$0]  %s2205, 1024, %s2203, %s2186, 128, 128, 8
        $region100: #{_lambda_.4} parent=91 // pred_fallthru
          _
      $region92: #{_lambda_.4} parent=5 // pred_fallthru
        _
      %p2211 = scmp.le.s32.totalorder 2, %s29
      // Predicated region
      $region101: #{_lambda_.4} parent=5 // pred_check
        %p2212 = pneg %p2211
      $region102: #{_lambda_.4} parent=5 // pred_check_branch
        %2214 = sbr.rel (%p2212) target = $region104
      $region103: #{_lambda_.4} parent=5 // pred_region
        %s2215 = ssub.s32 %s29, 2
        // Predicated region
        $region105: #{_lambda_.4} parent=103 // pred_check
          %p2216 = pneg %p469
        $region106: #{_lambda_.4} parent=103 // pred_check_branch
          %2218 = sbr.rel (%p2216) target = $region108
        $region107: #{_lambda_.4} parent=103 // pred_region
          %p2219 = scmp.lt.s32.totalorder %s40, 1
          %s2220 = scalar_select %p2219, %s40, 1
          %p2221 = scmp.lt.s32.totalorder %s41, 0
          %s2222 = scalar_select %p2221, %s41, 0
          %s2223 = sadd.s32 %s2222, %s2220
          %s2224 = smul.addr %s2223, 8
          %s2225 = scalar_lea.vmem %s18, %s2224
        $region108: #{_lambda_.4} parent=103 // pred_fallthru
          _
        // Predicated region
        $region109: #{_lambda_.4} parent=103 // pred_check
          %p2226 = pneg %p497
        $region110: #{_lambda_.4} parent=103 // pred_check_branch
          %2228 = sbr.rel (%p2226) target = $region112
        $region111: #{_lambda_.4} parent=103 // pred_region
          %s2229 = sand.u32 %s482, 1
          %s2230 = scalar_lea.sflag [#allocation3], %s2229
          %s2231 = sand.u32 %s482, 1
          %s2232 = smul.addr %s2231, 64
          %s2233 = scalar_lea.vmem [#allocation2], %s2232
          %2234 = dma.done %s2230, 1024
        $region112: #{_lambda_.4} parent=103 // pred_fallthru
          _
      $region104: #{_lambda_.4} parent=5 // pred_fallthru
        _
    $region6: #{_lambda_.4} parent=1 // loop_footer
      %s33 = sadd.s32 1, %s29
    $region7: #{_lambda_.4} parent=1 // loop_footer_branch
      %28 = sbr.rel target = $region3
    $region8: #{_lambda_.4} parent=1 // loop_exit
      _
    %2235 = vsyncpa [#allocation3], 1
    %s2236 = scalar_lea.sflag [#allocation3], 1
    %2237 = vsyncpa %s2236, 1

</llo_original>
